<compile_context>
chip_gen: v7x
topology: tpu7x:2x2x1
jax: 0.10.0
libtpu: 0.0.40
codegen_flags: <defaults>
</compile_context>

<pallas_src>
import functools

import jax
import jax.numpy as jnp
from jax.experimental import pallas as pl
from jax.experimental.pallas import tpu as pltpu

VMEM_SPEC = pl.BlockSpec(memory_space=pltpu.MemorySpace.VMEM)
_VMEM_LIMIT = 48 * 1024 * 1024  # explicit scoped-VMEM cap (review: ~48 MiB on v7x)


def _derive_lane_tile(K, O, budget_bytes=8 << 20):
    """Lane tile for the norm-free gridded GEMM path, derived from a VMEM budget:
    2 pipeline buffers x (bf16 X tile + f32 out tile) + resident bf16 weights,
    clamped to the 512..2048 range the measured tile sweeps favour."""
    per_lane = 2 * (K * 2) + 2 * (O * 4)
    t = (budget_bytes - O * K * 2) // max(per_lane, 1)
    t = max(512, min(int(t), 2048))
    return (t // 128) * 128


# ------------------------------ Pallas kernels ------------------------------

def _conv_stage_kernel(*refs, has_bias, has_mask, norm, valid_count):
    """One conv GEMM block:  out = norm(W @ X + bias)  for one sample (or one
    (sample, M-tile) for norm-free stages).

      W    : (O, K)       bf16  (weights as LHS -> lane-dense output)
      X    : (1, K, T)     bf16  (one sample's im2col patches / M-tile)
      bias : (O, 1)        f32   (optional)
      mask : (4, T)        f32   (optional, per-group column validity for the
                                  sub-pixel ConvTranspose output)
      out  : (1, O, T)     bf16/f32

    norm == "instance" is the reference's per-sample (x - mean) /
    (unbiased_std + 1e-5) over all (C, H, W) elements of that sample.
    """
    w_ref, x_ref = refs[0], refs[1]
    i = 2
    b_ref = refs[i] if has_bias else None
    i += int(has_bias)
    m_ref = refs[i] if has_mask else None
    i += int(has_mask)
    o_ref = refs[i]

    y = jnp.dot(w_ref[...], x_ref[0], preferred_element_type=jnp.float32)
    if has_bias:
        y = y + b_ref[...]                       # (O, 1) broadcast over lanes

    if norm == "instance":
        n = valid_count
        if has_mask:
            # Sub-pixel ConvTranspose: rows are 4 groups of Cout channels and
            # m_ref holds each group's (1, S) column validity.  Statistics use
            # valid columns only; the normalization is applied to every column
            # and the invalid ones are cropped by the XLA parity-interleave
            # downstream (documented coupling).
            m = m_ref[...]
            cout = y.shape[0] // 4
            s1 = jnp.zeros((1, 1), jnp.float32)
            for g in range(4):
                s1 = s1 + jnp.sum(y[g * cout:(g + 1) * cout, :] * m[g:g + 1, :],
                                  keepdims=True)
            mean = s1 / n
            d = y - mean
            s2 = jnp.zeros((1, 1), jnp.float32)
            for g in range(4):
                dg = d[g * cout:(g + 1) * cout, :]
                s2 = s2 + jnp.sum(dg * dg * m[g:g + 1, :], keepdims=True)
            var = s2 / (n - 1.0)                 # torch.std default: unbiased
        else:
            mean = jnp.sum(y, keepdims=True) / n
            d = y - mean
            var = jnp.sum(d * d, keepdims=True) / (n - 1.0)
        inv = pl.reciprocal(jnp.sqrt(var) + 1e-5, approx=True)   # eps on std
        y = d * inv

    o_ref[0] = y.astype(o_ref.dtype)


def _bn_stage_kernel(*refs, batch, fuse_tail):
    """ConvT-as-conv GEMM + training-mode BatchNorm2d (gamma=1, beta=0, biased
    var, eps on var), optionally fused with the tanh -> 1x1 conv -> signed
    expm1 tail of last_Conv.

      W    : (O, K)      bf16
      X    : (B, K, S)   bf16
      bias : (O, 1)      f32
      [W2  : (O2, O) bf16, bias2 : (O2, 1) f32]
      out  : (B, O|O2, S)
    """
    w_ref, x_ref, b_ref = refs[0], refs[1], refs[2]
    if fuse_tail:
        w2_ref, b2_ref, o_ref = refs[3], refs[4], refs[5]
    else:
        o_ref = refs[3]

    w = w_ref[...]
    bias = b_ref[...]
    n = float(batch * x_ref.shape[2])

    # Pass 1: per-sample GEMMs (weights as LHS -> lane-dense (O, S) tiles) and
    # the per-channel sums for the batch statistics.
    ys = []
    s1 = jnp.zeros((w.shape[0], 1), jnp.float32)
    for bi in range(batch):
        y = jnp.dot(w, x_ref[bi], preferred_element_type=jnp.float32) + bias
        ys.append(y)
        s1 = s1 + jnp.sum(y, axis=1, keepdims=True)
    mean = s1 / n

    # Pass 2: per-channel biased variance (BatchNorm), eps added to the var.
    s2 = jnp.zeros_like(s1)
    ds = []
    for bi in range(batch):
        d = ys[bi] - mean
        ds.append(d)
        s2 = s2 + jnp.sum(d * d, axis=1, keepdims=True)
    inv = jax.lax.rsqrt(s2 / n + 1e-5)

    for bi in range(batch):
        ybn = ds[bi] * inv
        if fuse_tail:
            # tanh (EUP, f32) -> 1x1 conv -> signed expm1 with a SINGLE exp:
            # where(z >= 0, exp(z) - 1, 1 - exp(-z)) == sign-select(exp(|z|)-1).
            t = jnp.tanh(ybn).astype(jnp.bfloat16)
            z = jnp.dot(w2_ref[...], t, preferred_element_type=jnp.float32)
            z = z + b2_ref[...]
            e = jnp.exp(jnp.abs(z)) - 1.0
            ybn = jnp.where(z >= 0.0, e, -e)
        o_ref[bi] = ybn.astype(o_ref.dtype)


# ---------------------------- pallas_call wrappers ----------------------------

def _conv_stage(w2d, pat, bias=None, group_mask=None, *, norm="none",
                valid_count=1, out_dtype=jnp.bfloat16):
    """pat: (B, K, S) patches, w2d: (O, K) -> (B, O, S)."""
    B, K, S = pat.shape
    O = w2d.shape[0]

    inputs = [w2d.astype(jnp.bfloat16), pat.astype(jnp.bfloat16)]
    if bias is not None:
        inputs.append(bias.reshape(O, 1).astype(jnp.float32))
    if group_mask is not None:
        inputs.append(group_mask.astype(jnp.float32))

    kernel = functools.partial(
        _conv_stage_kernel, has_bias=bias is not None,
        has_mask=group_mask is not None, norm=norm,
        valid_count=float(valid_count))

    if norm == "none":
        # (batch, M-tile) grid, VMEM-budget-derived lane tile, both "parallel".
        T = _derive_lane_tile(K, O)
        if S <= T or S % T:
            T = S
        grid = (B, S // T)
        in_specs = [pl.BlockSpec((O, K), lambda b, m: (0, 0)),
                    pl.BlockSpec((1, K, T), lambda b, m: (b, 0, m))]
        if bias is not None:
            in_specs.append(pl.BlockSpec((O, 1), lambda b, m: (0, 0)))
        if group_mask is not None:
            in_specs.append(pl.BlockSpec(group_mask.shape, lambda b, m: (0, 0)))
        out_specs = pl.BlockSpec((1, O, T), lambda b, m: (b, 0, m))
        dims = ("parallel", "parallel")
    else:
        # Per-sample grid: each step normalizes one sample's full (O, S) block.
        grid = (B,)
        in_specs = [pl.BlockSpec((O, K), lambda b: (0, 0)),
                    pl.BlockSpec((1, K, S), lambda b: (b, 0, 0))]
        if bias is not None:
            in_specs.append(pl.BlockSpec((O, 1), lambda b: (0, 0)))
        if group_mask is not None:
            in_specs.append(pl.BlockSpec(group_mask.shape, lambda b: (0, 0)))
        out_specs = pl.BlockSpec((1, O, S), lambda b: (b, 0, 0))
        dims = ("parallel",)

    return pl.pallas_call(
        kernel,
        out_shape=jax.ShapeDtypeStruct((B, O, S), out_dtype),
        grid=grid,
        in_specs=in_specs,
        out_specs=out_specs,
        compiler_params=pltpu.CompilerParams(
            dimension_semantics=dims, vmem_limit_bytes=_VMEM_LIMIT),
    )(*inputs)


def _bn_stage(w2d, pat, bias, w_tail=None, b_tail=None, *,
              out_dtype=jnp.bfloat16):
    """Whole-array BatchNorm GEMM stage (cross-sample stats), optional fused
    tanh/1x1/expm1 tail.  pat: (B, K, S) -> (B, O|O2, S)."""
    B, K, S = pat.shape
    O = w2d.shape[0]
    inputs = [w2d.astype(jnp.bfloat16), pat.astype(jnp.bfloat16),
              bias.reshape(O, 1).astype(jnp.float32)]
    fuse_tail = w_tail is not None
    O_out = O
    if fuse_tail:
        O_out = w_tail.shape[0]
        inputs += [w_tail.astype(jnp.bfloat16),
                   b_tail.reshape(O_out, 1).astype(jnp.float32)]
    kernel = functools.partial(_bn_stage_kernel, batch=B, fuse_tail=fuse_tail)
    return pl.pallas_call(
        kernel,
        out_shape=jax.ShapeDtypeStruct((B, O_out, S), out_dtype),
        in_specs=[VMEM_SPEC] * len(inputs),
        out_specs=VMEM_SPEC,
        compiler_params=pltpu.CompilerParams(vmem_limit_bytes=_VMEM_LIMIT),
    )(*inputs)


# ------------------------------ conv building blocks ------------------------------

def _im2col(x, kh, kw, padding):
    """x: (B, C, H, W) -> patches (B, C*kh*kw, Ho*Wo), rows ordered (c, di, dj)."""
    B, C, H, W = x.shape
    xp = jnp.pad(x, ((0, 0), (0, 0), (padding, padding), (padding, padding)))
    Ho = H + 2 * padding - kh + 1
    Wo = W + 2 * padding - kw + 1
    slabs = [xp[:, :, di:di + Ho, dj:dj + Wo]
             for di in range(kh) for dj in range(kw)]
    pat = jnp.stack(slabs, axis=2)                       # (B, C, kh*kw, Ho, Wo)
    return pat.reshape(B, C * kh * kw, Ho * Wo), Ho, Wo


def conv3x3_stage(x, w, bias):
    """Plain stride-1 3x3 conv (s0): norm-free gridded GEMM path."""
    B, C, H, W = x.shape
    O = w.shape[0]
    pat, Ho, Wo = _im2col(x, 3, 3, 1)
    out = _conv_stage(w.reshape(O, C * 9), pat, bias, norm="none")
    return out.reshape(B, O, Ho, Wo)


def downsample_stage(x, weight_s):
    """AvgPool2d(2,2) + LeakyReLU(0.2) + conv3x3(p1, no bias) + per-sample norm.
    Pool/LeakyReLU run once on the 1x activation in f32 (XLA producer, fuses
    into the bf16 patch build); the GEMM + instance-style norm are one Pallas
    kernel gridded over batch."""
    xf = x.astype(jnp.float32)
    p = 0.25 * (xf[:, :, 0::2, 0::2] + xf[:, :, 0::2, 1::2] +
                xf[:, :, 1::2, 0::2] + xf[:, :, 1::2, 1::2])
    p = jnp.where(p >= 0, p, 0.2 * p).astype(jnp.bfloat16)
    B, C, H, W = p.shape
    O = weight_s.shape[0]
    pat, Ho, Wo = _im2col(p, 3, 3, 1)
    out = _conv_stage(weight_s.reshape(O, C * 9), pat, None, norm="instance",
                      valid_count=O * Ho * Wo)
    return out.reshape(B, O, Ho, Wo)


def _upsample_subkernels(w_up):
    """ConvTranspose2d(4x4, s2, p1) weights (Cin, Cout, 4, 4) -> stacked 2x2
    sub-pixel kernels (4*Cout, Cin*4); row groups ordered (rY, rX)."""
    wf = jnp.flip(w_up, axis=(2, 3)).transpose(1, 0, 2, 3)    # (Cout, Cin, 4, 4)
    Cout, Cin = wf.shape[0], wf.shape[1]
    blocks = [wf[:, :, rY::2, rX::2].reshape(Cout, Cin * 4)
              for rY in range(2) for rX in range(2)]
    return jnp.concatenate(blocks, axis=0)


def _upsample_group_mask(H, W):
    """Per-group (4, (H+1)*(W+1)) column validity mask for the sub-pixel GEMM."""
    Hp1, Wp1 = H + 1, W + 1
    u = jnp.arange(Hp1)[:, None]
    v = jnp.arange(Wp1)[None, :]
    rows = []
    for rY in range(2):
        for rX in range(2):
            m = ((u >= rY) & (u < rY + H) & (v >= rX) & (v < rX + W))
            rows.append(m.astype(jnp.float32).reshape(1, Hp1 * Wp1))
    return jnp.concatenate(rows, axis=0)


def upsample_stage(x, wsub2d):
    """ReLU + ConvTranspose2d(4,4,s2,p1, no bias) + per-sample norm.

    Sub-pixel decomposition: one GEMM over 2x2 patches of pad(x, 1) with the
    four stacked sub-kernels (no zero-dilation -> 4x fewer MACs, 4x smaller
    patch slab).  ReLU runs once on the 1x activation; the masked per-sample
    norm is fused into the GEMM kernel; the parity interleave is cheap XLA glue
    that also crops the invalid (normalized-but-unused) columns."""
    B, Cin, H, W = x.shape
    Cout = wsub2d.shape[0] // 4
    Hp1, Wp1 = H + 1, W + 1

    xr = jnp.maximum(x, 0)
    xp = jnp.pad(xr, ((0, 0), (0, 0), (1, 1), (1, 1)))
    slabs = [xp[:, :, a:a + Hp1, b:b + Wp1] for a in range(2) for b in range(2)]
    pat = jnp.stack(slabs, axis=2).reshape(B, Cin * 4, Hp1 * Wp1)

    out = _conv_stage(wsub2d, pat, None, _upsample_group_mask(H, W),
                      norm="instance", valid_count=Cout * (2 * H) * (2 * W))

    y = out.reshape(B, 2, 2, Cout, Hp1, Wp1)
    quads = [[y[:, rY, rX, :, rY:rY + H, rX:rX + W] for rX in range(2)]
             for rY in range(2)]
    blk = jnp.stack([jnp.stack(r, axis=0) for r in quads], axis=0)  # (2,2,B,O,H,W)
    return blk.transpose(2, 3, 4, 0, 5, 1).reshape(B, Cout, 2 * H, 2 * W)


def _flip_convT_weights(w):
    """PyTorch ConvTranspose2d weights (Cin, Cout, kh, kw) -> equivalent
    stride-1 conv weights (Cout, Cin, kh, kw) (use padding = k-1-p = 1)."""
    return jnp.flip(w, axis=(2, 3)).transpose(1, 0, 2, 3)


# ----------------------------------- UNet -----------------------------------

def unet_forward(x, params):
    B, inc, H, W = x.shape
    kc = params["s0_w"].shape[0]
    ouc = params["lc3_w"].shape[0]
    layer_num = 0
    while (1 << layer_num) < H:
        layer_num += 1

    x_bf = x.astype(jnp.bfloat16)

    # Derived weight forms prepared once, outside the decoder loop.
    w_up_sub = _upsample_subkernels(params["weight_up"])
    w_up0 = _flip_convT_weights(params["up0_w"]).reshape(kc, 2 * kc * 9)
    w_lc0 = _flip_convT_weights(params["lc0_w"]).reshape(kc, (kc + inc) * 9)

    layer = [None] * (layer_num + 2)
    layer[0] = conv3x3_stage(x_bf, params["s0_w"], params["s0_b"])
    for i in range(layer_num):
        layer[i + 1] = downsample_stage(layer[i], params["weight_s"])
    layer[layer_num + 1] = layer[layer_num]
    for i in range(layer_num):
        idx = layer_num - i
        skip = jnp.concatenate([layer[idx + 1], layer[idx]], axis=1)
        layer[idx] = upsample_stage(skip, w_up_sub)

    # up0: ReLU + ConvTranspose2d(3,3,s1,p1)+bias + BatchNorm2d(train) + Dropout(0)
    up_in = jnp.maximum(jnp.concatenate([layer[1], layer[0]], axis=1), 0)
    pat, Ho, Wo = _im2col(up_in, 3, 3, 1)
    up0 = _bn_stage(w_up0, pat, params["up0_b"]).reshape(B, kc, Ho, Wo)

    # last_Conv: ConvT(3,3,s1,p1)+bias -> BN -> tanh -> Conv1x1+bias, then the
    # signed expm1 -- the 1x1/tanh/expm1 tail is fused into the same kernel.
    lc_in = jnp.concatenate([up0, x_bf], axis=1)
    pat, Ho, Wo = _im2col(lc_in, 3, 3, 1)
    out = _bn_stage(w_lc0, pat, params["lc0_b"],
                    w_tail=params["lc3_w"].reshape(ouc, kc),
                    b_tail=params["lc3_b"],
                    out_dtype=jnp.float32)
    return out.reshape(B, ouc, Ho, Wo)


# ------------------------------ parameter init ------------------------------

def init_params(kc=16, inc=3, ouc=3):
    key = jax.random.PRNGKey(0)
    ks = jax.random.split(key, 8)

    def kaiming(k, shape, fan):
        return jax.random.normal(k, shape, jnp.float32) * jnp.sqrt(2.0 / fan)

    return {
        # Conv2d(inc, kc, 3, 1, 1): kaiming fan_out, zero bias
        "s0_w": kaiming(ks[0], (kc, inc, 3, 3), kc * 9),
        "s0_b": jnp.zeros((kc,), jnp.float32),
        # nn.Parameter (kc, kc, 3, 3), kaiming fan_out (no bias)
        "weight_s": kaiming(ks[1], (kc, kc, 3, 3), kc * 9),
        # nn.Parameter (2kc, kc, 4, 4), kaiming fan_in (ConvTranspose layout, no bias)
        "weight_up": kaiming(ks[2], (2 * kc, kc, 4, 4), kc * 16),
        # up0 ConvTranspose2d(2kc, kc, 3, 1, 1)
        "up0_w": kaiming(ks[3], (2 * kc, kc, 3, 3), kc * 9),
        "up0_b": jax.random.normal(ks[4], (kc,), jnp.float32) * 0.05,
        # last_Conv[0] ConvTranspose2d(kc+inc, kc, 3, 1, 1)
        "lc0_w": kaiming(ks[5], (kc + inc, kc, 3, 3), kc * 9),
        "lc0_b": jax.random.normal(ks[6], (kc,), jnp.float32) * 0.05,
        # last_Conv[3] Conv2d(kc, ouc, 1, 1, 0): zero bias
        "lc3_w": kaiming(ks[7], (ouc, kc, 1, 1), ouc),
        "lc3_b": jnp.zeros((ouc,), jnp.float32),
    }


# ----------------------------------- main -----------------------------------

if __name__ == "__main__":
    params = init_params(kc=16, inc=3, ouc=3)
    x = jax.random.normal(jax.random.PRNGKey(0), (2, 3, 16, 16), jnp.float32)

    fwd = jax.jit(unet_forward)
    out = jax.block_until_ready(fwd(x, params))

    assert out.shape == (2, 3, 16, 16), out.shape
    assert bool(jnp.all(jnp.isfinite(out)))
    print("KERNEL_OK")
</pallas_src>

<mosaic_0001>
module attributes {stable_mosaic.version = 11 : i64} {
  func.func @_conv_stage_kernel(%arg0: i32, %arg1: i32, %arg2: memref<16x27xbf16, #tpu.memory_space<vmem>>, %arg3: memref<1x27x256xbf16, #tpu.memory_space<vmem>>, %arg4: memref<16x1xf32, #tpu.memory_space<vmem>>, %arg5: memref<1x16x256xbf16, #tpu.memory_space<vmem>>) attributes {dimension_semantics = [#tpu.dimension_semantics<parallel>, #tpu.dimension_semantics<parallel>], iteration_bounds = array<i64: 2, 1>, scalar_prefetch = 0 : i64, scratch_operands = 0 : i64, tpu.core_type = #tpu.core_type<tc>, window_params = [{pipeline_mode = #tpu.pipeline_mode<synchronous>, transform_indices = @transform_0, window_bounds = array<i64: 16, 27>}, {transform_indices = @transform_1, window_bounds = array<i64: 1, 27, 256>}, {pipeline_mode = #tpu.pipeline_mode<synchronous>, transform_indices = @transform_2, window_bounds = array<i64: 16, 1>}, {transform_indices = @transform_3, window_bounds = array<i64: 1, 16, 256>}]} {
    %c0 = arith.constant 0 : index
    %c0_0 = arith.constant 0 : index
    %0 = vector.load %arg2[%c0, %c0_0] : memref<16x27xbf16, #tpu.memory_space<vmem>>, vector<16x27xbf16>
    %c0_1 = arith.constant 0 : index
    %c0_2 = arith.constant 0 : index
    %c0_3 = arith.constant 0 : index
    %1 = vector.load %arg3[%c0_1, %c0_2, %c0_3] : memref<1x27x256xbf16, #tpu.memory_space<vmem>>, vector<1x27x256xbf16>
    %2 = vector.shape_cast %1 : vector<1x27x256xbf16> to vector<27x256xbf16>
    %cst = arith.constant dense<0.000000e+00> : vector<16x256xf32>
    %3 = tpu.matmul %0, %2, %cst {dimension_numbers = #tpu.dot_dimension_numbers<[1], [0], [0], [1], [0, 0, 1, 1], [], []>} : vector<16x27xbf16>, vector<27x256xbf16>, vector<16x256xf32> -> vector<16x256xf32>
    %c0_4 = arith.constant 0 : index
    %c0_5 = arith.constant 0 : index
    %4 = vector.load %arg4[%c0_4, %c0_5] : memref<16x1xf32, #tpu.memory_space<vmem>>, vector<16x1xf32>
    %5 = vector.broadcast %4 : vector<16x1xf32> to vector<16x256xf32>
    %6 = arith.addf %3, %5 : vector<16x256xf32>
    %7 = arith.truncf %6 : vector<16x256xf32> to vector<16x256xbf16>
    %c0_6 = arith.constant 0 : index
    %c0_7 = arith.constant 0 : index
    %c0_8 = arith.constant 0 : index
    %8 = vector.load %arg5[%c0_6, %c0_7, %c0_8] : memref<1x16x256xbf16, #tpu.memory_space<vmem>>, vector<1x16x256xbf16>
    %9 = vector.shape_cast %8 : vector<1x16x256xbf16> to vector<16x256xbf16>
    %10 = vector.shape_cast %7 : vector<16x256xbf16> to vector<1x16x256xbf16>
    tpu.vector_store %arg5[%c0_6, %c0_7, %c0_8], %10 {strides = array<i32>} : memref<1x16x256xbf16, #tpu.memory_space<vmem>>, vector<1x16x256xbf16>,
    return
  }
  func.func @transform_0(%arg0: i32, %arg1: i32) -> (i32, i32) {
    %c0_i32 = arith.constant 0 : i32
    %c0_i32_0 = arith.constant 0 : i32
    %c0_i32_1 = arith.constant 0 : i32
    return %c0_i32, %c0_i32_0 : i32, i32
  }
  func.func @transform_1(%arg0: i32, %arg1: i32) -> (i32, i32, i32) {
    %c0_i32 = arith.constant 0 : i32
    %c0_i32_0 = arith.constant 0 : i32
    return %arg0, %c0_i32, %arg1 : i32, i32, i32
  }
  func.func @transform_2(%arg0: i32, %arg1: i32) -> (i32, i32) {
    %c0_i32 = arith.constant 0 : i32
    %c0_i32_0 = arith.constant 0 : i32
    %c0_i32_1 = arith.constant 0 : i32
    return %c0_i32, %c0_i32_0 : i32, i32
  }
  func.func @transform_3(%arg0: i32, %arg1: i32) -> (i32, i32, i32) {
    %c0_i32 = arith.constant 0 : i32
    %c0_i32_0 = arith.constant 0 : i32
    return %arg0, %c0_i32, %arg1 : i32, i32, i32
  }
}

module attributes {stable_mosaic.version = 11 : i64} {
  func.func @_conv_stage_kernel(%arg0: i32, %arg1: memref<16x144xbf16, #tpu.memory_space<vmem>>, %arg2: memref<1x144x64xbf16, #tpu.memory_space<vmem>>, %arg3: memref<1x16x64xbf16, #tpu.memory_space<vmem>>) attributes {dimension_semantics = [#tpu.dimension_semantics<parallel>], iteration_bounds = array<i64: 2>, scalar_prefetch = 0 : i64, scratch_operands = 0 : i64, tpu.core_type = #tpu.core_type<tc>, window_params = [{pipeline_mode = #tpu.pipeline_mode<synchronous>, transform_indices = @transform_0, window_bounds = array<i64: 16, 144>}, {transform_indices = @transform_1, window_bounds = array<i64: 1, 144, 64>}, {transform_indices = @transform_2, window_bounds = array<i64: 1, 16, 64>}]} {
    %c0 = arith.constant 0 : index
    %c0_0 = arith.constant 0 : index
    %0 = vector.load %arg1[%c0, %c0_0] : memref<16x144xbf16, #tpu.memory_space<vmem>>, vector<16x144xbf16>
    %c0_1 = arith.constant 0 : index
    %c0_2 = arith.constant 0 : index
    %c0_3 = arith.constant 0 : index
    %1 = vector.load %arg2[%c0_1, %c0_2, %c0_3] : memref<1x144x64xbf16, #tpu.memory_space<vmem>>, vector<1x144x64xbf16>
    %2 = vector.shape_cast %1 : vector<1x144x64xbf16> to vector<144x64xbf16>
    %cst = arith.constant dense<0.000000e+00> : vector<16x64xf32>
    %3 = tpu.matmul %0, %2, %cst {dimension_numbers = #tpu.dot_dimension_numbers<[1], [0], [0], [1], [0, 0, 1, 1], [], []>} : vector<16x144xbf16>, vector<144x64xbf16>, vector<16x64xf32> -> vector<16x64xf32>
    %4 = vector.shape_cast %3 : vector<16x64xf32> to vector<1x16x64xf32>
    %cst_4 = arith.constant dense<0.000000e+00> : vector<1xf32>
    %5 = vector.multi_reduction <add>, %4, %cst_4 [1, 2] : vector<1x16x64xf32> to vector<1xf32>
    %6 = vector.shape_cast %5 : vector<1xf32> to vector<1x1x1xf32>
    %7 = vector.extract %6[0, 0, 0] : f32 from vector<1x1x1xf32>
    %8 = vector.broadcast %7 : f32 to vector<1x1xf32>
    %cst_5 = arith.constant 1.024000e+03 : f32
    %9 = vector.broadcast %cst_5 : f32 to vector<1x1xf32>
    %10 = arith.divf %8, %9 : vector<1x1xf32>
    %11 = vector.broadcast %10 : vector<1x1xf32> to vector<16x64xf32>
    %12 = arith.subf %3, %11 : vector<16x64xf32>
    %13 = arith.mulf %12, %12 : vector<16x64xf32>
    %14 = vector.shape_cast %13 : vector<16x64xf32> to vector<1x16x64xf32>
    %cst_6 = arith.constant dense<0.000000e+00> : vector<1xf32>
    %15 = vector.multi_reduction <add>, %14, %cst_6 [1, 2] : vector<1x16x64xf32> to vector<1xf32>
    %16 = vector.shape_cast %15 : vector<1xf32> to vector<1x1x1xf32>
    %17 = vector.extract %16[0, 0, 0] : f32 from vector<1x1x1xf32>
    %18 = vector.broadcast %17 : f32 to vector<1x1xf32>
    %cst_7 = arith.constant 1.023000e+03 : f32
    %19 = vector.broadcast %cst_7 : f32 to vector<1x1xf32>
    %20 = arith.divf %18, %19 : vector<1x1xf32>
    %21 = math.sqrt %20 : vector<1x1xf32>
    %cst_8 = arith.constant 9.99999974E-6 : f32
    %22 = vector.broadcast %cst_8 : f32 to vector<1x1xf32>
    %23 = arith.addf %21, %22 : vector<1x1xf32>
    %24 = tpu.reciprocal %23 {approx = true} : vector<1x1xf32> -> vector<1x1xf32>
    %25 = vector.broadcast %24 : vector<1x1xf32> to vector<16x64xf32>
    %26 = arith.mulf %12, %25 : vector<16x64xf32>
    %27 = arith.truncf %26 : vector<16x64xf32> to vector<16x64xbf16>
    %c0_9 = arith.constant 0 : index
    %c0_10 = arith.constant 0 : index
    %c0_11 = arith.constant 0 : index
    %28 = vector.load %arg3[%c0_9, %c0_10, %c0_11] : memref<1x16x64xbf16, #tpu.memory_space<vmem>>, vector<1x16x64xbf16>
    %29 = vector.shape_cast %28 : vector<1x16x64xbf16> to vector<16x64xbf16>
    %30 = vector.shape_cast %27 : vector<16x64xbf16> to vector<1x16x64xbf16>
    tpu.vector_store %arg3[%c0_9, %c0_10, %c0_11], %30 {strides = array<i32>} : memref<1x16x64xbf16, #tpu.memory_space<vmem>>, vector<1x16x64xbf16>,
    return
  }
  func.func @transform_0(%arg0: i32) -> (i32, i32) {
    %c0_i32 = arith.constant 0 : i32
    %c0_i32_0 = arith.constant 0 : i32
    %c0_i32_1 = arith.constant 0 : i32
    return %c0_i32, %c0_i32_0 : i32, i32
  }
  func.func @transform_1(%arg0: i32) -> (i32, i32, i32) {
    %c0_i32 = arith.constant 0 : i32
    %c0_i32_0 = arith.constant 0 : i32
    %c0_i32_1 = arith.constant 0 : i32
    return %arg0, %c0_i32, %c0_i32_0 : i32, i32, i32
  }
  func.func @transform_2(%arg0: i32) -> (i32, i32, i32) {
    %c0_i32 = arith.constant 0 : i32
    %c0_i32_0 = arith.constant 0 : i32
    %c0_i32_1 = arith.constant 0 : i32
    return %arg0, %c0_i32, %c0_i32_0 : i32, i32, i32
  }
}

module attributes {stable_mosaic.version = 11 : i64} {
  func.func @_conv_stage_kernel(%arg0: i32, %arg1: memref<16x144xbf16, #tpu.memory_space<vmem>>, %arg2: memref<1x144x16xbf16, #tpu.memory_space<vmem>>, %arg3: memref<1x16x16xbf16, #tpu.memory_space<vmem>>) attributes {dimension_semantics = [#tpu.dimension_semantics<parallel>], iteration_bounds = array<i64: 2>, scalar_prefetch = 0 : i64, scratch_operands = 0 : i64, tpu.core_type = #tpu.core_type<tc>, window_params = [{pipeline_mode = #tpu.pipeline_mode<synchronous>, transform_indices = @transform_0, window_bounds = array<i64: 16, 144>}, {transform_indices = @transform_1, window_bounds = array<i64: 1, 144, 16>}, {transform_indices = @transform_2, window_bounds = array<i64: 1, 16, 16>}]} {
    %c0 = arith.constant 0 : index
    %c0_0 = arith.constant 0 : index
    %0 = vector.load %arg1[%c0, %c0_0] : memref<16x144xbf16, #tpu.memory_space<vmem>>, vector<16x144xbf16>
    %c0_1 = arith.constant 0 : index
    %c0_2 = arith.constant 0 : index
    %c0_3 = arith.constant 0 : index
    %1 = vector.load %arg2[%c0_1, %c0_2, %c0_3] : memref<1x144x16xbf16, #tpu.memory_space<vmem>>, vector<1x144x16xbf16>
    %2 = vector.shape_cast %1 : vector<1x144x16xbf16> to vector<144x16xbf16>
    %cst = arith.constant dense<0.000000e+00> : vector<16x16xf32>
    %3 = tpu.matmul %0, %2, %cst {dimension_numbers = #tpu.dot_dimension_numbers<[1], [0], [0], [1], [0, 0, 1, 1], [], []>} : vector<16x144xbf16>, vector<144x16xbf16>, vector<16x16xf32> -> vector<16x16xf32>
    %4 = vector.shape_cast %3 : vector<16x16xf32> to vector<1x16x16xf32>
    %cst_4 = arith.constant dense<0.000000e+00> : vector<1xf32>
    %5 = vector.multi_reduction <add>, %4, %cst_4 [1, 2] : vector<1x16x16xf32> to vector<1xf32>
    %6 = vector.shape_cast %5 : vector<1xf32> to vector<1x1x1xf32>
    %7 = vector.extract %6[0, 0, 0] : f32 from vector<1x1x1xf32>
    %8 = vector.broadcast %7 : f32 to vector<1x1xf32>
    %cst_5 = arith.constant 2.560000e+02 : f32
    %9 = vector.broadcast %cst_5 : f32 to vector<1x1xf32>
    %10 = arith.divf %8, %9 : vector<1x1xf32>
    %11 = vector.broadcast %10 : vector<1x1xf32> to vector<16x16xf32>
    %12 = arith.subf %3, %11 : vector<16x16xf32>
    %13 = arith.mulf %12, %12 : vector<16x16xf32>
    %14 = vector.shape_cast %13 : vector<16x16xf32> to vector<1x16x16xf32>
    %cst_6 = arith.constant dense<0.000000e+00> : vector<1xf32>
    %15 = vector.multi_reduction <add>, %14, %cst_6 [1, 2] : vector<1x16x16xf32> to vector<1xf32>
    %16 = vector.shape_cast %15 : vector<1xf32> to vector<1x1x1xf32>
    %17 = vector.extract %16[0, 0, 0] : f32 from vector<1x1x1xf32>
    %18 = vector.broadcast %17 : f32 to vector<1x1xf32>
    %cst_7 = arith.constant 2.550000e+02 : f32
    %19 = vector.broadcast %cst_7 : f32 to vector<1x1xf32>
    %20 = arith.divf %18, %19 : vector<1x1xf32>
    %21 = math.sqrt %20 : vector<1x1xf32>
    %cst_8 = arith.constant 9.99999974E-6 : f32
    %22 = vector.broadcast %cst_8 : f32 to vector<1x1xf32>
    %23 = arith.addf %21, %22 : vector<1x1xf32>
    %24 = tpu.reciprocal %23 {approx = true} : vector<1x1xf32> -> vector<1x1xf32>
    %25 = vector.broadcast %24 : vector<1x1xf32> to vector<16x16xf32>
    %26 = arith.mulf %12, %25 : vector<16x16xf32>
    %27 = arith.truncf %26 : vector<16x16xf32> to vector<16x16xbf16>
    %c0_9 = arith.constant 0 : index
    %c0_10 = arith.constant 0 : index
    %c0_11 = arith.constant 0 : index
    %28 = vector.load %arg3[%c0_9, %c0_10, %c0_11] : memref<1x16x16xbf16, #tpu.memory_space<vmem>>, vector<1x16x16xbf16>
    %29 = vector.shape_cast %28 : vector<1x16x16xbf16> to vector<16x16xbf16>
    %30 = vector.shape_cast %27 : vector<16x16xbf16> to vector<1x16x16xbf16>
    tpu.vector_store %arg3[%c0_9, %c0_10, %c0_11], %30 {strides = array<i32>} : memref<1x16x16xbf16, #tpu.memory_space<vmem>>, vector<1x16x16xbf16>,
    return
  }
  func.func @transform_0(%arg0: i32) -> (i32, i32) {
    %c0_i32 = arith.constant 0 : i32
    %c0_i32_0 = arith.constant 0 : i32
    %c0_i32_1 = arith.constant 0 : i32
    return %c0_i32, %c0_i32_0 : i32, i32
  }
  func.func @transform_1(%arg0: i32) -> (i32, i32, i32) {
    %c0_i32 = arith.constant 0 : i32
    %c0_i32_0 = arith.constant 0 : i32
    %c0_i32_1 = arith.constant 0 : i32
    return %arg0, %c0_i32, %c0_i32_0 : i32, i32, i32
  }
  func.func @transform_2(%arg0: i32) -> (i32, i32, i32) {
    %c0_i32 = arith.constant 0 : i32
    %c0_i32_0 = arith.constant 0 : i32
    %c0_i32_1 = arith.constant 0 : i32
    return %arg0, %c0_i32, %c0_i32_0 : i32, i32, i32
  }
}

module attributes {stable_mosaic.version = 11 : i64} {
  func.func @_conv_stage_kernel(%arg0: i32, %arg1: memref<16x144xbf16, #tpu.memory_space<vmem>>, %arg2: memref<1x144x4xbf16, #tpu.memory_space<vmem>>, %arg3: memref<1x16x4xbf16, #tpu.memory_space<vmem>>) attributes {dimension_semantics = [#tpu.dimension_semantics<parallel>], iteration_bounds = array<i64: 2>, scalar_prefetch = 0 : i64, scratch_operands = 0 : i64, tpu.core_type = #tpu.core_type<tc>, window_params = [{pipeline_mode = #tpu.pipeline_mode<synchronous>, transform_indices = @transform_0, window_bounds = array<i64: 16, 144>}, {transform_indices = @transform_1, window_bounds = array<i64: 1, 144, 4>}, {transform_indices = @transform_2, window_bounds = array<i64: 1, 16, 4>}]} {
    %c0 = arith.constant 0 : index
    %c0_0 = arith.constant 0 : index
    %0 = vector.load %arg1[%c0, %c0_0] : memref<16x144xbf16, #tpu.memory_space<vmem>>, vector<16x144xbf16>
    %c0_1 = arith.constant 0 : index
    %c0_2 = arith.constant 0 : index
    %c0_3 = arith.constant 0 : index
    %1 = vector.load %arg2[%c0_1, %c0_2, %c0_3] : memref<1x144x4xbf16, #tpu.memory_space<vmem>>, vector<1x144x4xbf16>
    %2 = vector.shape_cast %1 : vector<1x144x4xbf16> to vector<144x4xbf16>
    %cst = arith.constant dense<0.000000e+00> : vector<16x4xf32>
    %3 = tpu.matmul %0, %2, %cst {dimension_numbers = #tpu.dot_dimension_numbers<[1], [0], [0], [1], [0, 0, 1, 1], [], []>} : vector<16x144xbf16>, vector<144x4xbf16>, vector<16x4xf32> -> vector<16x4xf32>
    %4 = vector.shape_cast %3 : vector<16x4xf32> to vector<1x16x4xf32>
    %cst_4 = arith.constant dense<0.000000e+00> : vector<1xf32>
    %5 = vector.multi_reduction <add>, %4, %cst_4 [1, 2] : vector<1x16x4xf32> to vector<1xf32>
    %6 = vector.shape_cast %5 : vector<1xf32> to vector<1x1x1xf32>
    %7 = vector.extract %6[0, 0, 0] : f32 from vector<1x1x1xf32>
    %8 = vector.broadcast %7 : f32 to vector<1x1xf32>
    %cst_5 = arith.constant 6.400000e+01 : f32
    %9 = vector.broadcast %cst_5 : f32 to vector<1x1xf32>
    %10 = arith.divf %8, %9 : vector<1x1xf32>
    %11 = vector.broadcast %10 : vector<1x1xf32> to vector<16x4xf32>
    %12 = arith.subf %3, %11 : vector<16x4xf32>
    %13 = arith.mulf %12, %12 : vector<16x4xf32>
    %14 = vector.shape_cast %13 : vector<16x4xf32> to vector<1x16x4xf32>
    %cst_6 = arith.constant dense<0.000000e+00> : vector<1xf32>
    %15 = vector.multi_reduction <add>, %14, %cst_6 [1, 2] : vector<1x16x4xf32> to vector<1xf32>
    %16 = vector.shape_cast %15 : vector<1xf32> to vector<1x1x1xf32>
    %17 = vector.extract %16[0, 0, 0] : f32 from vector<1x1x1xf32>
    %18 = vector.broadcast %17 : f32 to vector<1x1xf32>
    %cst_7 = arith.constant 6.300000e+01 : f32
    %19 = vector.broadcast %cst_7 : f32 to vector<1x1xf32>
    %20 = arith.divf %18, %19 : vector<1x1xf32>
    %21 = math.sqrt %20 : vector<1x1xf32>
    %cst_8 = arith.constant 9.99999974E-6 : f32
    %22 = vector.broadcast %cst_8 : f32 to vector<1x1xf32>
    %23 = arith.addf %21, %22 : vector<1x1xf32>
    %24 = tpu.reciprocal %23 {approx = true} : vector<1x1xf32> -> vector<1x1xf32>
    %25 = vector.broadcast %24 : vector<1x1xf32> to vector<16x4xf32>
    %26 = arith.mulf %12, %25 : vector<16x4xf32>
    %27 = arith.truncf %26 : vector<16x4xf32> to vector<16x4xbf16>
    %c0_9 = arith.constant 0 : index
    %c0_10 = arith.constant 0 : index
    %c0_11 = arith.constant 0 : index
    %28 = vector.load %arg3[%c0_9, %c0_10, %c0_11] : memref<1x16x4xbf16, #tpu.memory_space<vmem>>, vector<1x16x4xbf16>
    %29 = vector.shape_cast %28 : vector<1x16x4xbf16> to vector<16x4xbf16>
    %30 = vector.shape_cast %27 : vector<16x4xbf16> to vector<1x16x4xbf16>
    tpu.vector_store %arg3[%c0_9, %c0_10, %c0_11], %30 {strides = array<i32>} : memref<1x16x4xbf16, #tpu.memory_space<vmem>>, vector<1x16x4xbf16>,
    return
  }
  func.func @transform_0(%arg0: i32) -> (i32, i32) {
    %c0_i32 = arith.constant 0 : i32
    %c0_i32_0 = arith.constant 0 : i32
    %c0_i32_1 = arith.constant 0 : i32
    return %c0_i32, %c0_i32_0 : i32, i32
  }
  func.func @transform_1(%arg0: i32) -> (i32, i32, i32) {
    %c0_i32 = arith.constant 0 : i32
    %c0_i32_0 = arith.constant 0 : i32
    %c0_i32_1 = arith.constant 0 : i32
    return %arg0, %c0_i32, %c0_i32_0 : i32, i32, i32
  }
  func.func @transform_2(%arg0: i32) -> (i32, i32, i32) {
    %c0_i32 = arith.constant 0 : i32
    %c0_i32_0 = arith.constant 0 : i32
    %c0_i32_1 = arith.constant 0 : i32
    return %arg0, %c0_i32, %c0_i32_0 : i32, i32, i32
  }
}

module attributes {stable_mosaic.version = 11 : i64} {
  func.func @_conv_stage_kernel(%arg0: i32, %arg1: memref<16x144xbf16, #tpu.memory_space<vmem>>, %arg2: memref<1x144x1xbf16, #tpu.memory_space<vmem>>, %arg3: memref<1x16x1xbf16, #tpu.memory_space<vmem>>) attributes {dimension_semantics = [#tpu.dimension_semantics<parallel>], iteration_bounds = array<i64: 2>, scalar_prefetch = 0 : i64, scratch_operands = 0 : i64, tpu.core_type = #tpu.core_type<tc>, window_params = [{pipeline_mode = #tpu.pipeline_mode<synchronous>, transform_indices = @transform_0, window_bounds = array<i64: 16, 144>}, {transform_indices = @transform_1, window_bounds = array<i64: 1, 144, 1>}, {transform_indices = @transform_2, window_bounds = array<i64: 1, 16, 1>}]} {
    %c0 = arith.constant 0 : index
    %c0_0 = arith.constant 0 : index
    %0 = vector.load %arg1[%c0, %c0_0] : memref<16x144xbf16, #tpu.memory_space<vmem>>, vector<16x144xbf16>
    %c0_1 = arith.constant 0 : index
    %c0_2 = arith.constant 0 : index
    %c0_3 = arith.constant 0 : index
    %1 = vector.load %arg2[%c0_1, %c0_2, %c0_3] : memref<1x144x1xbf16, #tpu.memory_space<vmem>>, vector<1x144x1xbf16>
    %2 = vector.shape_cast %1 : vector<1x144x1xbf16> to vector<144x1xbf16>
    %cst = arith.constant dense<0.000000e+00> : vector<16x1xf32>
    %3 = tpu.matmul %0, %2, %cst {dimension_numbers = #tpu.dot_dimension_numbers<[1], [0], [0], [1], [0, 0, 1, 1], [], []>} : vector<16x144xbf16>, vector<144x1xbf16>, vector<16x1xf32> -> vector<16x1xf32>
    %4 = vector.shape_cast %3 : vector<16x1xf32> to vector<1x16x1xf32>
    %cst_4 = arith.constant dense<0.000000e+00> : vector<1xf32>
    %5 = vector.multi_reduction <add>, %4, %cst_4 [1, 2] : vector<1x16x1xf32> to vector<1xf32>
    %6 = vector.shape_cast %5 : vector<1xf32> to vector<1x1x1xf32>
    %7 = vector.extract %6[0, 0, 0] : f32 from vector<1x1x1xf32>
    %8 = vector.broadcast %7 : f32 to vector<1x1xf32>
    %cst_5 = arith.constant 1.600000e+01 : f32
    %9 = vector.broadcast %cst_5 : f32 to vector<1x1xf32>
    %10 = arith.divf %8, %9 : vector<1x1xf32>
    %11 = vector.broadcast %10 : vector<1x1xf32> to vector<16x1xf32>
    %12 = arith.subf %3, %11 : vector<16x1xf32>
    %13 = arith.mulf %12, %12 : vector<16x1xf32>
    %14 = vector.shape_cast %13 : vector<16x1xf32> to vector<1x16x1xf32>
    %cst_6 = arith.constant dense<0.000000e+00> : vector<1xf32>
    %15 = vector.multi_reduction <add>, %14, %cst_6 [1, 2] : vector<1x16x1xf32> to vector<1xf32>
    %16 = vector.shape_cast %15 : vector<1xf32> to vector<1x1x1xf32>
    %17 = vector.extract %16[0, 0, 0] : f32 from vector<1x1x1xf32>
    %18 = vector.broadcast %17 : f32 to vector<1x1xf32>
    %cst_7 = arith.constant 1.500000e+01 : f32
    %19 = vector.broadcast %cst_7 : f32 to vector<1x1xf32>
    %20 = arith.divf %18, %19 : vector<1x1xf32>
    %21 = math.sqrt %20 : vector<1x1xf32>
    %cst_8 = arith.constant 9.99999974E-6 : f32
    %22 = vector.broadcast %cst_8 : f32 to vector<1x1xf32>
    %23 = arith.addf %21, %22 : vector<1x1xf32>
    %24 = tpu.reciprocal %23 {approx = true} : vector<1x1xf32> -> vector<1x1xf32>
    %25 = vector.broadcast %24 : vector<1x1xf32> to vector<16x1xf32>
    %26 = arith.mulf %12, %25 : vector<16x1xf32>
    %27 = arith.truncf %26 : vector<16x1xf32> to vector<16x1xbf16>
    %c0_9 = arith.constant 0 : index
    %c0_10 = arith.constant 0 : index
    %c0_11 = arith.constant 0 : index
    %28 = vector.load %arg3[%c0_9, %c0_10, %c0_11] : memref<1x16x1xbf16, #tpu.memory_space<vmem>>, vector<1x16x1xbf16>
    %29 = vector.shape_cast %28 : vector<1x16x1xbf16> to vector<16x1xbf16>
    %30 = vector.shape_cast %27 : vector<16x1xbf16> to vector<1x16x1xbf16>
    tpu.vector_store %arg3[%c0_9, %c0_10, %c0_11], %30 {strides = array<i32>} : memref<1x16x1xbf16, #tpu.memory_space<vmem>>, vector<1x16x1xbf16>,
    return
  }
  func.func @transform_0(%arg0: i32) -> (i32, i32) {
    %c0_i32 = arith.constant 0 : i32
    %c0_i32_0 = arith.constant 0 : i32
    %c0_i32_1 = arith.constant 0 : i32
    return %c0_i32, %c0_i32_0 : i32, i32
  }
  func.func @transform_1(%arg0: i32) -> (i32, i32, i32) {
    %c0_i32 = arith.constant 0 : i32
    %c0_i32_0 = arith.constant 0 : i32
    %c0_i32_1 = arith.constant 0 : i32
    return %arg0, %c0_i32, %c0_i32_0 : i32, i32, i32
  }
  func.func @transform_2(%arg0: i32) -> (i32, i32, i32) {
    %c0_i32 = arith.constant 0 : i32
    %c0_i32_0 = arith.constant 0 : i32
    %c0_i32_1 = arith.constant 0 : i32
    return %arg0, %c0_i32, %c0_i32_0 : i32, i32, i32
  }
}

module attributes {stable_mosaic.version = 11 : i64} {
  func.func @_conv_stage_kernel(%arg0: i32, %arg1: memref<64x128xbf16, #tpu.memory_space<vmem>>, %arg2: memref<1x128x4xbf16, #tpu.memory_space<vmem>>, %arg3: memref<4x4xf32, #tpu.memory_space<vmem>>, %arg4: memref<1x64x4xbf16, #tpu.memory_space<vmem>>) attributes {dimension_semantics = [#tpu.dimension_semantics<parallel>], iteration_bounds = array<i64: 2>, scalar_prefetch = 0 : i64, scratch_operands = 0 : i64, tpu.core_type = #tpu.core_type<tc>, window_params = [{pipeline_mode = #tpu.pipeline_mode<synchronous>, transform_indices = @transform_0, window_bounds = array<i64: 64, 128>}, {transform_indices = @transform_1, window_bounds = array<i64: 1, 128, 4>}, {pipeline_mode = #tpu.pipeline_mode<synchronous>, transform_indices = @transform_2, window_bounds = array<i64: 4, 4>}, {transform_indices = @transform_3, window_bounds = array<i64: 1, 64, 4>}]} {
    %c0 = arith.constant 0 : index
    %c0_0 = arith.constant 0 : index
    %0 = vector.load %arg1[%c0, %c0_0] : memref<64x128xbf16, #tpu.memory_space<vmem>>, vector<64x128xbf16>
    %c0_1 = arith.constant 0 : index
    %c0_2 = arith.constant 0 : index
    %c0_3 = arith.constant 0 : index
    %1 = vector.load %arg2[%c0_1, %c0_2, %c0_3] : memref<1x128x4xbf16, #tpu.memory_space<vmem>>, vector<1x128x4xbf16>
    %2 = vector.shape_cast %1 : vector<1x128x4xbf16> to vector<128x4xbf16>
    %cst = arith.constant dense<0.000000e+00> : vector<64x4xf32>
    %3 = tpu.matmul %0, %2, %cst {dimension_numbers = #tpu.dot_dimension_numbers<[1], [0], [0], [1], [0, 0, 1, 1], [], []>} : vector<64x128xbf16>, vector<128x4xbf16>, vector<64x4xf32> -> vector<64x4xf32>
    %c0_4 = arith.constant 0 : index
    %c0_5 = arith.constant 0 : index
    %4 = vector.load %arg3[%c0_4, %c0_5] : memref<4x4xf32, #tpu.memory_space<vmem>>, vector<4x4xf32>
    %cst_6 = arith.constant 0.000000e+00 : f32
    %5 = vector.broadcast %cst_6 : f32 to vector<1x1xf32>
    %6 = vector.extract_strided_slice %3 {offsets = [0, 0], sizes = [16, 4], strides = [1, 1]} : vector<64x4xf32> to vector<16x4xf32>
    %7 = vector.extract_strided_slice %4 {offsets = [0, 0], sizes = [1, 4], strides = [1, 1]} : vector<4x4xf32> to vector<1x4xf32>
    %8 = vector.broadcast %7 : vector<1x4xf32> to vector<16x4xf32>
    %9 = arith.mulf %6, %8 : vector<16x4xf32>
    %10 = vector.shape_cast %9 : vector<16x4xf32> to vector<1x16x4xf32>
    %cst_7 = arith.constant dense<0.000000e+00> : vector<1xf32>
    %11 = vector.multi_reduction <add>, %10, %cst_7 [1, 2] : vector<1x16x4xf32> to vector<1xf32>
    %12 = vector.shape_cast %11 : vector<1xf32> to vector<1x1x1xf32>
    %13 = vector.extract %12[0, 0, 0] : f32 from vector<1x1x1xf32>
    %14 = vector.broadcast %13 : f32 to vector<1x1xf32>
    %15 = arith.addf %5, %14 : vector<1x1xf32>
    %16 = vector.extract_strided_slice %3 {offsets = [16, 0], sizes = [16, 4], strides = [1, 1]} : vector<64x4xf32> to vector<16x4xf32>
    %17 = vector.extract_strided_slice %4 {offsets = [1, 0], sizes = [1, 4], strides = [1, 1]} : vector<4x4xf32> to vector<1x4xf32>
    %18 = vector.broadcast %17 : vector<1x4xf32> to vector<16x4xf32>
    %19 = arith.mulf %16, %18 : vector<16x4xf32>
    %20 = vector.shape_cast %19 : vector<16x4xf32> to vector<1x16x4xf32>
    %cst_8 = arith.constant dense<0.000000e+00> : vector<1xf32>
    %21 = vector.multi_reduction <add>, %20, %cst_8 [1, 2] : vector<1x16x4xf32> to vector<1xf32>
    %22 = vector.shape_cast %21 : vector<1xf32> to vector<1x1x1xf32>
    %23 = vector.extract %22[0, 0, 0] : f32 from vector<1x1x1xf32>
    %24 = vector.broadcast %23 : f32 to vector<1x1xf32>
    %25 = arith.addf %15, %24 : vector<1x1xf32>
    %26 = vector.extract_strided_slice %3 {offsets = [32, 0], sizes = [16, 4], strides = [1, 1]} : vector<64x4xf32> to vector<16x4xf32>
    %27 = vector.extract_strided_slice %4 {offsets = [2, 0], sizes = [1, 4], strides = [1, 1]} : vector<4x4xf32> to vector<1x4xf32>
    %28 = vector.broadcast %27 : vector<1x4xf32> to vector<16x4xf32>
    %29 = arith.mulf %26, %28 : vector<16x4xf32>
    %30 = vector.shape_cast %29 : vector<16x4xf32> to vector<1x16x4xf32>
    %cst_9 = arith.constant dense<0.000000e+00> : vector<1xf32>
    %31 = vector.multi_reduction <add>, %30, %cst_9 [1, 2] : vector<1x16x4xf32> to vector<1xf32>
    %32 = vector.shape_cast %31 : vector<1xf32> to vector<1x1x1xf32>
    %33 = vector.extract %32[0, 0, 0] : f32 from vector<1x1x1xf32>
    %34 = vector.broadcast %33 : f32 to vector<1x1xf32>
    %35 = arith.addf %25, %34 : vector<1x1xf32>
    %36 = vector.extract_strided_slice %3 {offsets = [48, 0], sizes = [16, 4], strides = [1, 1]} : vector<64x4xf32> to vector<16x4xf32>
    %37 = vector.extract_strided_slice %4 {offsets = [3, 0], sizes = [1, 4], strides = [1, 1]} : vector<4x4xf32> to vector<1x4xf32>
    %38 = vector.broadcast %37 : vector<1x4xf32> to vector<16x4xf32>
    %39 = arith.mulf %36, %38 : vector<16x4xf32>
    %40 = vector.shape_cast %39 : vector<16x4xf32> to vector<1x16x4xf32>
    %cst_10 = arith.constant dense<0.000000e+00> : vector<1xf32>
    %41 = vector.multi_reduction <add>, %40, %cst_10 [1, 2] : vector<1x16x4xf32> to vector<1xf32>
    %42 = vector.shape_cast %41 : vector<1xf32> to vector<1x1x1xf32>
    %43 = vector.extract %42[0, 0, 0] : f32 from vector<1x1x1xf32>
    %44 = vector.broadcast %43 : f32 to vector<1x1xf32>
    %45 = arith.addf %35, %44 : vector<1x1xf32>
    %cst_11 = arith.constant 6.400000e+01 : f32
    %46 = vector.broadcast %cst_11 : f32 to vector<1x1xf32>
    %47 = arith.divf %45, %46 : vector<1x1xf32>
    %48 = vector.broadcast %47 : vector<1x1xf32> to vector<64x4xf32>
    %49 = arith.subf %3, %48 : vector<64x4xf32>
    %cst_12 = arith.constant 0.000000e+00 : f32
    %50 = vector.broadcast %cst_12 : f32 to vector<1x1xf32>
    %51 = vector.extract_strided_slice %49 {offsets = [0, 0], sizes = [16, 4], strides = [1, 1]} : vector<64x4xf32> to vector<16x4xf32>
    %52 = arith.mulf %51, %51 : vector<16x4xf32>
    %53 = vector.extract_strided_slice %4 {offsets = [0, 0], sizes = [1, 4], strides = [1, 1]} : vector<4x4xf32> to vector<1x4xf32>
    %54 = vector.broadcast %53 : vector<1x4xf32> to vector<16x4xf32>
    %55 = arith.mulf %52, %54 : vector<16x4xf32>
    %56 = vector.shape_cast %55 : vector<16x4xf32> to vector<1x16x4xf32>
    %cst_13 = arith.constant dense<0.000000e+00> : vector<1xf32>
    %57 = vector.multi_reduction <add>, %56, %cst_13 [1, 2] : vector<1x16x4xf32> to vector<1xf32>
    %58 = vector.shape_cast %57 : vector<1xf32> to vector<1x1x1xf32>
    %59 = vector.extract %58[0, 0, 0] : f32 from vector<1x1x1xf32>
    %60 = vector.broadcast %59 : f32 to vector<1x1xf32>
    %61 = arith.addf %50, %60 : vector<1x1xf32>
    %62 = vector.extract_strided_slice %49 {offsets = [16, 0], sizes = [16, 4], strides = [1, 1]} : vector<64x4xf32> to vector<16x4xf32>
    %63 = arith.mulf %62, %62 : vector<16x4xf32>
    %64 = vector.extract_strided_slice %4 {offsets = [1, 0], sizes = [1, 4], strides = [1, 1]} : vector<4x4xf32> to vector<1x4xf32>
    %65 = vector.broadcast %64 : vector<1x4xf32> to vector<16x4xf32>
    %66 = arith.mulf %63, %65 : vector<16x4xf32>
    %67 = vector.shape_cast %66 : vector<16x4xf32> to vector<1x16x4xf32>
    %cst_14 = arith.constant dense<0.000000e+00> : vector<1xf32>
    %68 = vector.multi_reduction <add>, %67, %cst_14 [1, 2] : vector<1x16x4xf32> to vector<1xf32>
    %69 = vector.shape_cast %68 : vector<1xf32> to vector<1x1x1xf32>
    %70 = vector.extract %69[0, 0, 0] : f32 from vector<1x1x1xf32>
    %71 = vector.broadcast %70 : f32 to vector<1x1xf32>
    %72 = arith.addf %61, %71 : vector<1x1xf32>
    %73 = vector.extract_strided_slice %49 {offsets = [32, 0], sizes = [16, 4], strides = [1, 1]} : vector<64x4xf32> to vector<16x4xf32>
    %74 = arith.mulf %73, %73 : vector<16x4xf32>
    %75 = vector.extract_strided_slice %4 {offsets = [2, 0], sizes = [1, 4], strides = [1, 1]} : vector<4x4xf32> to vector<1x4xf32>
    %76 = vector.broadcast %75 : vector<1x4xf32> to vector<16x4xf32>
    %77 = arith.mulf %74, %76 : vector<16x4xf32>
    %78 = vector.shape_cast %77 : vector<16x4xf32> to vector<1x16x4xf32>
    %cst_15 = arith.constant dense<0.000000e+00> : vector<1xf32>
    %79 = vector.multi_reduction <add>, %78, %cst_15 [1, 2] : vector<1x16x4xf32> to vector<1xf32>
    %80 = vector.shape_cast %79 : vector<1xf32> to vector<1x1x1xf32>
    %81 = vector.extract %80[0, 0, 0] : f32 from vector<1x1x1xf32>
    %82 = vector.broadcast %81 : f32 to vector<1x1xf32>
    %83 = arith.addf %72, %82 : vector<1x1xf32>
    %84 = vector.extract_strided_slice %49 {offsets = [48, 0], sizes = [16, 4], strides = [1, 1]} : vector<64x4xf32> to vector<16x4xf32>
    %85 = arith.mulf %84, %84 : vector<16x4xf32>
    %86 = vector.extract_strided_slice %4 {offsets = [3, 0], sizes = [1, 4], strides = [1, 1]} : vector<4x4xf32> to vector<1x4xf32>
    %87 = vector.broadcast %86 : vector<1x4xf32> to vector<16x4xf32>
    %88 = arith.mulf %85, %87 : vector<16x4xf32>
    %89 = vector.shape_cast %88 : vector<16x4xf32> to vector<1x16x4xf32>
    %cst_16 = arith.constant dense<0.000000e+00> : vector<1xf32>
    %90 = vector.multi_reduction <add>, %89, %cst_16 [1, 2] : vector<1x16x4xf32> to vector<1xf32>
    %91 = vector.shape_cast %90 : vector<1xf32> to vector<1x1x1xf32>
    %92 = vector.extract %91[0, 0, 0] : f32 from vector<1x1x1xf32>
    %93 = vector.broadcast %92 : f32 to vector<1x1xf32>
    %94 = arith.addf %83, %93 : vector<1x1xf32>
    %cst_17 = arith.constant 6.300000e+01 : f32
    %95 = vector.broadcast %cst_17 : f32 to vector<1x1xf32>
    %96 = arith.divf %94, %95 : vector<1x1xf32>
    %97 = math.sqrt %96 : vector<1x1xf32>
    %cst_18 = arith.constant 9.99999974E-6 : f32
    %98 = vector.broadcast %cst_18 : f32 to vector<1x1xf32>
    %99 = arith.addf %97, %98 : vector<1x1xf32>
    %100 = tpu.reciprocal %99 {approx = true} : vector<1x1xf32> -> vector<1x1xf32>
    %101 = vector.broadcast %100 : vector<1x1xf32> to vector<64x4xf32>
    %102 = arith.mulf %49, %101 : vector<64x4xf32>
    %103 = arith.truncf %102 : vector<64x4xf32> to vector<64x4xbf16>
    %c0_19 = arith.constant 0 : index
    %c0_20 = arith.constant 0 : index
    %c0_21 = arith.constant 0 : index
    %104 = vector.load %arg4[%c0_19, %c0_20, %c0_21] : memref<1x64x4xbf16, #tpu.memory_space<vmem>>, vector<1x64x4xbf16>
    %105 = vector.shape_cast %104 : vector<1x64x4xbf16> to vector<64x4xbf16>
    %106 = vector.shape_cast %103 : vector<64x4xbf16> to vector<1x64x4xbf16>
    tpu.vector_store %arg4[%c0_19, %c0_20, %c0_21], %106 {strides = array<i32>} : memref<1x64x4xbf16, #tpu.memory_space<vmem>>, vector<1x64x4xbf16>,
    return
  }
  func.func @transform_0(%arg0: i32) -> (i32, i32) {
    %c0_i32 = arith.constant 0 : i32
    %c0_i32_0 = arith.constant 0 : i32
    %c0_i32_1 = arith.constant 0 : i32
    return %c0_i32, %c0_i32_0 : i32, i32
  }
  func.func @transform_1(%arg0: i32) -> (i32, i32, i32) {
    %c0_i32 = arith.constant 0 : i32
    %c0_i32_0 = arith.constant 0 : i32
    %c0_i32_1 = arith.constant 0 : i32
    return %arg0, %c0_i32, %c0_i32_0 : i32, i32, i32
  }
  func.func @transform_2(%arg0: i32) -> (i32, i32) {
    %c0_i32 = arith.constant 0 : i32
    %c0_i32_0 = arith.constant 0 : i32
    %c0_i32_1 = arith.constant 0 : i32
    return %c0_i32, %c0_i32_0 : i32, i32
  }
  func.func @transform_3(%arg0: i32) -> (i32, i32, i32) {
    %c0_i32 = arith.constant 0 : i32
    %c0_i32_0 = arith.constant 0 : i32
    %c0_i32_1 = arith.constant 0 : i32
    return %arg0, %c0_i32, %c0_i32_0 : i32, i32, i32
  }
}

module attributes {stable_mosaic.version = 11 : i64} {
  func.func @_conv_stage_kernel(%arg0: i32, %arg1: memref<64x128xbf16, #tpu.memory_space<vmem>>, %arg2: memref<1x128x9xbf16, #tpu.memory_space<vmem>>, %arg3: memref<4x9xf32, #tpu.memory_space<vmem>>, %arg4: memref<1x64x9xbf16, #tpu.memory_space<vmem>>) attributes {dimension_semantics = [#tpu.dimension_semantics<parallel>], iteration_bounds = array<i64: 2>, scalar_prefetch = 0 : i64, scratch_operands = 0 : i64, tpu.core_type = #tpu.core_type<tc>, window_params = [{pipeline_mode = #tpu.pipeline_mode<synchronous>, transform_indices = @transform_0, window_bounds = array<i64: 64, 128>}, {transform_indices = @transform_1, window_bounds = array<i64: 1, 128, 9>}, {pipeline_mode = #tpu.pipeline_mode<synchronous>, transform_indices = @transform_2, window_bounds = array<i64: 4, 9>}, {transform_indices = @transform_3, window_bounds = array<i64: 1, 64, 9>}]} {
    %c0 = arith.constant 0 : index
    %c0_0 = arith.constant 0 : index
    %0 = vector.load %arg1[%c0, %c0_0] : memref<64x128xbf16, #tpu.memory_space<vmem>>, vector<64x128xbf16>
    %c0_1 = arith.constant 0 : index
    %c0_2 = arith.constant 0 : index
    %c0_3 = arith.constant 0 : index
    %1 = vector.load %arg2[%c0_1, %c0_2, %c0_3] : memref<1x128x9xbf16, #tpu.memory_space<vmem>>, vector<1x128x9xbf16>
    %2 = vector.shape_cast %1 : vector<1x128x9xbf16> to vector<128x9xbf16>
    %cst = arith.constant dense<0.000000e+00> : vector<64x9xf32>
    %3 = tpu.matmul %0, %2, %cst {dimension_numbers = #tpu.dot_dimension_numbers<[1], [0], [0], [1], [0, 0, 1, 1], [], []>} : vector<64x128xbf16>, vector<128x9xbf16>, vector<64x9xf32> -> vector<64x9xf32>
    %c0_4 = arith.constant 0 : index
    %c0_5 = arith.constant 0 : index
    %4 = vector.load %arg3[%c0_4, %c0_5] : memref<4x9xf32, #tpu.memory_space<vmem>>, vector<4x9xf32>
    %cst_6 = arith.constant 0.000000e+00 : f32
    %5 = vector.broadcast %cst_6 : f32 to vector<1x1xf32>
    %6 = vector.extract_strided_slice %3 {offsets = [0, 0], sizes = [16, 9], strides = [1, 1]} : vector<64x9xf32> to vector<16x9xf32>
    %7 = vector.extract_strided_slice %4 {offsets = [0, 0], sizes = [1, 9], strides = [1, 1]} : vector<4x9xf32> to vector<1x9xf32>
    %8 = vector.broadcast %7 : vector<1x9xf32> to vector<16x9xf32>
    %9 = arith.mulf %6, %8 : vector<16x9xf32>
    %10 = vector.shape_cast %9 : vector<16x9xf32> to vector<1x16x9xf32>
    %cst_7 = arith.constant dense<0.000000e+00> : vector<1xf32>
    %11 = vector.multi_reduction <add>, %10, %cst_7 [1, 2] : vector<1x16x9xf32> to vector<1xf32>
    %12 = vector.shape_cast %11 : vector<1xf32> to vector<1x1x1xf32>
    %13 = vector.extract %12[0, 0, 0] : f32 from vector<1x1x1xf32>
    %14 = vector.broadcast %13 : f32 to vector<1x1xf32>
    %15 = arith.addf %5, %14 : vector<1x1xf32>
    %16 = vector.extract_strided_slice %3 {offsets = [16, 0], sizes = [16, 9], strides = [1, 1]} : vector<64x9xf32> to vector<16x9xf32>
    %17 = vector.extract_strided_slice %4 {offsets = [1, 0], sizes = [1, 9], strides = [1, 1]} : vector<4x9xf32> to vector<1x9xf32>
    %18 = vector.broadcast %17 : vector<1x9xf32> to vector<16x9xf32>
    %19 = arith.mulf %16, %18 : vector<16x9xf32>
    %20 = vector.shape_cast %19 : vector<16x9xf32> to vector<1x16x9xf32>
    %cst_8 = arith.constant dense<0.000000e+00> : vector<1xf32>
    %21 = vector.multi_reduction <add>, %20, %cst_8 [1, 2] : vector<1x16x9xf32> to vector<1xf32>
    %22 = vector.shape_cast %21 : vector<1xf32> to vector<1x1x1xf32>
    %23 = vector.extract %22[0, 0, 0] : f32 from vector<1x1x1xf32>
    %24 = vector.broadcast %23 : f32 to vector<1x1xf32>
    %25 = arith.addf %15, %24 : vector<1x1xf32>
    %26 = vector.extract_strided_slice %3 {offsets = [32, 0], sizes = [16, 9], strides = [1, 1]} : vector<64x9xf32> to vector<16x9xf32>
    %27 = vector.extract_strided_slice %4 {offsets = [2, 0], sizes = [1, 9], strides = [1, 1]} : vector<4x9xf32> to vector<1x9xf32>
    %28 = vector.broadcast %27 : vector<1x9xf32> to vector<16x9xf32>
    %29 = arith.mulf %26, %28 : vector<16x9xf32>
    %30 = vector.shape_cast %29 : vector<16x9xf32> to vector<1x16x9xf32>
    %cst_9 = arith.constant dense<0.000000e+00> : vector<1xf32>
    %31 = vector.multi_reduction <add>, %30, %cst_9 [1, 2] : vector<1x16x9xf32> to vector<1xf32>
    %32 = vector.shape_cast %31 : vector<1xf32> to vector<1x1x1xf32>
    %33 = vector.extract %32[0, 0, 0] : f32 from vector<1x1x1xf32>
    %34 = vector.broadcast %33 : f32 to vector<1x1xf32>
    %35 = arith.addf %25, %34 : vector<1x1xf32>
    %36 = vector.extract_strided_slice %3 {offsets = [48, 0], sizes = [16, 9], strides = [1, 1]} : vector<64x9xf32> to vector<16x9xf32>
    %37 = vector.extract_strided_slice %4 {offsets = [3, 0], sizes = [1, 9], strides = [1, 1]} : vector<4x9xf32> to vector<1x9xf32>
    %38 = vector.broadcast %37 : vector<1x9xf32> to vector<16x9xf32>
    %39 = arith.mulf %36, %38 : vector<16x9xf32>
    %40 = vector.shape_cast %39 : vector<16x9xf32> to vector<1x16x9xf32>
    %cst_10 = arith.constant dense<0.000000e+00> : vector<1xf32>
    %41 = vector.multi_reduction <add>, %40, %cst_10 [1, 2] : vector<1x16x9xf32> to vector<1xf32>
    %42 = vector.shape_cast %41 : vector<1xf32> to vector<1x1x1xf32>
    %43 = vector.extract %42[0, 0, 0] : f32 from vector<1x1x1xf32>
    %44 = vector.broadcast %43 : f32 to vector<1x1xf32>
    %45 = arith.addf %35, %44 : vector<1x1xf32>
    %cst_11 = arith.constant 2.560000e+02 : f32
    %46 = vector.broadcast %cst_11 : f32 to vector<1x1xf32>
    %47 = arith.divf %45, %46 : vector<1x1xf32>
    %48 = vector.broadcast %47 : vector<1x1xf32> to vector<64x9xf32>
    %49 = arith.subf %3, %48 : vector<64x9xf32>
    %cst_12 = arith.constant 0.000000e+00 : f32
    %50 = vector.broadcast %cst_12 : f32 to vector<1x1xf32>
    %51 = vector.extract_strided_slice %49 {offsets = [0, 0], sizes = [16, 9], strides = [1, 1]} : vector<64x9xf32> to vector<16x9xf32>
    %52 = arith.mulf %51, %51 : vector<16x9xf32>
    %53 = vector.extract_strided_slice %4 {offsets = [0, 0], sizes = [1, 9], strides = [1, 1]} : vector<4x9xf32> to vector<1x9xf32>
    %54 = vector.broadcast %53 : vector<1x9xf32> to vector<16x9xf32>
    %55 = arith.mulf %52, %54 : vector<16x9xf32>
    %56 = vector.shape_cast %55 : vector<16x9xf32> to vector<1x16x9xf32>
    %cst_13 = arith.constant dense<0.000000e+00> : vector<1xf32>
    %57 = vector.multi_reduction <add>, %56, %cst_13 [1, 2] : vector<1x16x9xf32> to vector<1xf32>
    %58 = vector.shape_cast %57 : vector<1xf32> to vector<1x1x1xf32>
    %59 = vector.extract %58[0, 0, 0] : f32 from vector<1x1x1xf32>
    %60 = vector.broadcast %59 : f32 to vector<1x1xf32>
    %61 = arith.addf %50, %60 : vector<1x1xf32>
    %62 = vector.extract_strided_slice %49 {offsets = [16, 0], sizes = [16, 9], strides = [1, 1]} : vector<64x9xf32> to vector<16x9xf32>
    %63 = arith.mulf %62, %62 : vector<16x9xf32>
    %64 = vector.extract_strided_slice %4 {offsets = [1, 0], sizes = [1, 9], strides = [1, 1]} : vector<4x9xf32> to vector<1x9xf32>
    %65 = vector.broadcast %64 : vector<1x9xf32> to vector<16x9xf32>
    %66 = arith.mulf %63, %65 : vector<16x9xf32>
    %67 = vector.shape_cast %66 : vector<16x9xf32> to vector<1x16x9xf32>
    %cst_14 = arith.constant dense<0.000000e+00> : vector<1xf32>
    %68 = vector.multi_reduction <add>, %67, %cst_14 [1, 2] : vector<1x16x9xf32> to vector<1xf32>
    %69 = vector.shape_cast %68 : vector<1xf32> to vector<1x1x1xf32>
    %70 = vector.extract %69[0, 0, 0] : f32 from vector<1x1x1xf32>
    %71 = vector.broadcast %70 : f32 to vector<1x1xf32>
    %72 = arith.addf %61, %71 : vector<1x1xf32>
    %73 = vector.extract_strided_slice %49 {offsets = [32, 0], sizes = [16, 9], strides = [1, 1]} : vector<64x9xf32> to vector<16x9xf32>
    %74 = arith.mulf %73, %73 : vector<16x9xf32>
    %75 = vector.extract_strided_slice %4 {offsets = [2, 0], sizes = [1, 9], strides = [1, 1]} : vector<4x9xf32> to vector<1x9xf32>
    %76 = vector.broadcast %75 : vector<1x9xf32> to vector<16x9xf32>
    %77 = arith.mulf %74, %76 : vector<16x9xf32>
    %78 = vector.shape_cast %77 : vector<16x9xf32> to vector<1x16x9xf32>
    %cst_15 = arith.constant dense<0.000000e+00> : vector<1xf32>
    %79 = vector.multi_reduction <add>, %78, %cst_15 [1, 2] : vector<1x16x9xf32> to vector<1xf32>
    %80 = vector.shape_cast %79 : vector<1xf32> to vector<1x1x1xf32>
    %81 = vector.extract %80[0, 0, 0] : f32 from vector<1x1x1xf32>
    %82 = vector.broadcast %81 : f32 to vector<1x1xf32>
    %83 = arith.addf %72, %82 : vector<1x1xf32>
    %84 = vector.extract_strided_slice %49 {offsets = [48, 0], sizes = [16, 9], strides = [1, 1]} : vector<64x9xf32> to vector<16x9xf32>
    %85 = arith.mulf %84, %84 : vector<16x9xf32>
    %86 = vector.extract_strided_slice %4 {offsets = [3, 0], sizes = [1, 9], strides = [1, 1]} : vector<4x9xf32> to vector<1x9xf32>
    %87 = vector.broadcast %86 : vector<1x9xf32> to vector<16x9xf32>
    %88 = arith.mulf %85, %87 : vector<16x9xf32>
    %89 = vector.shape_cast %88 : vector<16x9xf32> to vector<1x16x9xf32>
    %cst_16 = arith.constant dense<0.000000e+00> : vector<1xf32>
    %90 = vector.multi_reduction <add>, %89, %cst_16 [1, 2] : vector<1x16x9xf32> to vector<1xf32>
    %91 = vector.shape_cast %90 : vector<1xf32> to vector<1x1x1xf32>
    %92 = vector.extract %91[0, 0, 0] : f32 from vector<1x1x1xf32>
    %93 = vector.broadcast %92 : f32 to vector<1x1xf32>
    %94 = arith.addf %83, %93 : vector<1x1xf32>
    %cst_17 = arith.constant 2.550000e+02 : f32
    %95 = vector.broadcast %cst_17 : f32 to vector<1x1xf32>
    %96 = arith.divf %94, %95 : vector<1x1xf32>
    %97 = math.sqrt %96 : vector<1x1xf32>
    %cst_18 = arith.constant 9.99999974E-6 : f32
    %98 = vector.broadcast %cst_18 : f32 to vector<1x1xf32>
    %99 = arith.addf %97, %98 : vector<1x1xf32>
    %100 = tpu.reciprocal %99 {approx = true} : vector<1x1xf32> -> vector<1x1xf32>
    %101 = vector.broadcast %100 : vector<1x1xf32> to vector<64x9xf32>
    %102 = arith.mulf %49, %101 : vector<64x9xf32>
    %103 = arith.truncf %102 : vector<64x9xf32> to vector<64x9xbf16>
    %c0_19 = arith.constant 0 : index
    %c0_20 = arith.constant 0 : index
    %c0_21 = arith.constant 0 : index
    %104 = vector.load %arg4[%c0_19, %c0_20, %c0_21] : memref<1x64x9xbf16, #tpu.memory_space<vmem>>, vector<1x64x9xbf16>
    %105 = vector.shape_cast %104 : vector<1x64x9xbf16> to vector<64x9xbf16>
    %106 = vector.shape_cast %103 : vector<64x9xbf16> to vector<1x64x9xbf16>
    tpu.vector_store %arg4[%c0_19, %c0_20, %c0_21], %106 {strides = array<i32>} : memref<1x64x9xbf16, #tpu.memory_space<vmem>>, vector<1x64x9xbf16>,
    return
  }
  func.func @transform_0(%arg0: i32) -> (i32, i32) {
    %c0_i32 = arith.constant 0 : i32
    %c0_i32_0 = arith.constant 0 : i32
    %c0_i32_1 = arith.constant 0 : i32
    return %c0_i32, %c0_i32_0 : i32, i32
  }
  func.func @transform_1(%arg0: i32) -> (i32, i32, i32) {
    %c0_i32 = arith.constant 0 : i32
    %c0_i32_0 = arith.constant 0 : i32
    %c0_i32_1 = arith.constant 0 : i32
    return %arg0, %c0_i32, %c0_i32_0 : i32, i32, i32
  }
  func.func @transform_2(%arg0: i32) -> (i32, i32) {
    %c0_i32 = arith.constant 0 : i32
    %c0_i32_0 = arith.constant 0 : i32
    %c0_i32_1 = arith.constant 0 : i32
    return %c0_i32, %c0_i32_0 : i32, i32
  }
  func.func @transform_3(%arg0: i32) -> (i32, i32, i32) {
    %c0_i32 = arith.constant 0 : i32
    %c0_i32_0 = arith.constant 0 : i32
    %c0_i32_1 = arith.constant 0 : i32
    return %arg0, %c0_i32, %c0_i32_0 : i32, i32, i32
  }
}

module attributes {stable_mosaic.version = 11 : i64} {
  func.func @_conv_stage_kernel(%arg0: i32, %arg1: memref<64x128xbf16, #tpu.memory_space<vmem>>, %arg2: memref<1x128x25xbf16, #tpu.memory_space<vmem>>, %arg3: memref<4x25xf32, #tpu.memory_space<vmem>>, %arg4: memref<1x64x25xbf16, #tpu.memory_space<vmem>>) attributes {dimension_semantics = [#tpu.dimension_semantics<parallel>], iteration_bounds = array<i64: 2>, scalar_prefetch = 0 : i64, scratch_operands = 0 : i64, tpu.core_type = #tpu.core_type<tc>, window_params = [{pipeline_mode = #tpu.pipeline_mode<synchronous>, transform_indices = @transform_0, window_bounds = array<i64: 64, 128>}, {transform_indices = @transform_1, window_bounds = array<i64: 1, 128, 25>}, {pipeline_mode = #tpu.pipeline_mode<synchronous>, transform_indices = @transform_2, window_bounds = array<i64: 4, 25>}, {transform_indices = @transform_3, window_bounds = array<i64: 1, 64, 25>}]} {
    %c0 = arith.constant 0 : index
    %c0_0 = arith.constant 0 : index
    %0 = vector.load %arg1[%c0, %c0_0] : memref<64x128xbf16, #tpu.memory_space<vmem>>, vector<64x128xbf16>
    %c0_1 = arith.constant 0 : index
    %c0_2 = arith.constant 0 : index
    %c0_3 = arith.constant 0 : index
    %1 = vector.load %arg2[%c0_1, %c0_2, %c0_3] : memref<1x128x25xbf16, #tpu.memory_space<vmem>>, vector<1x128x25xbf16>
    %2 = vector.shape_cast %1 : vector<1x128x25xbf16> to vector<128x25xbf16>
    %cst = arith.constant dense<0.000000e+00> : vector<64x25xf32>
    %3 = tpu.matmul %0, %2, %cst {dimension_numbers = #tpu.dot_dimension_numbers<[1], [0], [0], [1], [0, 0, 1, 1], [], []>} : vector<64x128xbf16>, vector<128x25xbf16>, vector<64x25xf32> -> vector<64x25xf32>
    %c0_4 = arith.constant 0 : index
    %c0_5 = arith.constant 0 : index
    %4 = vector.load %arg3[%c0_4, %c0_5] : memref<4x25xf32, #tpu.memory_space<vmem>>, vector<4x25xf32>
    %cst_6 = arith.constant 0.000000e+00 : f32
    %5 = vector.broadcast %cst_6 : f32 to vector<1x1xf32>
    %6 = vector.extract_strided_slice %3 {offsets = [0, 0], sizes = [16, 25], strides = [1, 1]} : vector<64x25xf32> to vector<16x25xf32>
    %7 = vector.extract_strided_slice %4 {offsets = [0, 0], sizes = [1, 25], strides = [1, 1]} : vector<4x25xf32> to vector<1x25xf32>
    %8 = vector.broadcast %7 : vector<1x25xf32> to vector<16x25xf32>
    %9 = arith.mulf %6, %8 : vector<16x25xf32>
    %10 = vector.shape_cast %9 : vector<16x25xf32> to vector<1x16x25xf32>
    %cst_7 = arith.constant dense<0.000000e+00> : vector<1xf32>
    %11 = vector.multi_reduction <add>, %10, %cst_7 [1, 2] : vector<1x16x25xf32> to vector<1xf32>
    %12 = vector.shape_cast %11 : vector<1xf32> to vector<1x1x1xf32>
    %13 = vector.extract %12[0, 0, 0] : f32 from vector<1x1x1xf32>
    %14 = vector.broadcast %13 : f32 to vector<1x1xf32>
    %15 = arith.addf %5, %14 : vector<1x1xf32>
    %16 = vector.extract_strided_slice %3 {offsets = [16, 0], sizes = [16, 25], strides = [1, 1]} : vector<64x25xf32> to vector<16x25xf32>
    %17 = vector.extract_strided_slice %4 {offsets = [1, 0], sizes = [1, 25], strides = [1, 1]} : vector<4x25xf32> to vector<1x25xf32>
    %18 = vector.broadcast %17 : vector<1x25xf32> to vector<16x25xf32>
    %19 = arith.mulf %16, %18 : vector<16x25xf32>
    %20 = vector.shape_cast %19 : vector<16x25xf32> to vector<1x16x25xf32>
    %cst_8 = arith.constant dense<0.000000e+00> : vector<1xf32>
    %21 = vector.multi_reduction <add>, %20, %cst_8 [1, 2] : vector<1x16x25xf32> to vector<1xf32>
    %22 = vector.shape_cast %21 : vector<1xf32> to vector<1x1x1xf32>
    %23 = vector.extract %22[0, 0, 0] : f32 from vector<1x1x1xf32>
    %24 = vector.broadcast %23 : f32 to vector<1x1xf32>
    %25 = arith.addf %15, %24 : vector<1x1xf32>
    %26 = vector.extract_strided_slice %3 {offsets = [32, 0], sizes = [16, 25], strides = [1, 1]} : vector<64x25xf32> to vector<16x25xf32>
    %27 = vector.extract_strided_slice %4 {offsets = [2, 0], sizes = [1, 25], strides = [1, 1]} : vector<4x25xf32> to vector<1x25xf32>
    %28 = vector.broadcast %27 : vector<1x25xf32> to vector<16x25xf32>
    %29 = arith.mulf %26, %28 : vector<16x25xf32>
    %30 = vector.shape_cast %29 : vector<16x25xf32> to vector<1x16x25xf32>
    %cst_9 = arith.constant dense<0.000000e+00> : vector<1xf32>
    %31 = vector.multi_reduction <add>, %30, %cst_9 [1, 2] : vector<1x16x25xf32> to vector<1xf32>
    %32 = vector.shape_cast %31 : vector<1xf32> to vector<1x1x1xf32>
    %33 = vector.extract %32[0, 0, 0] : f32 from vector<1x1x1xf32>
    %34 = vector.broadcast %33 : f32 to vector<1x1xf32>
    %35 = arith.addf %25, %34 : vector<1x1xf32>
    %36 = vector.extract_strided_slice %3 {offsets = [48, 0], sizes = [16, 25], strides = [1, 1]} : vector<64x25xf32> to vector<16x25xf32>
    %37 = vector.extract_strided_slice %4 {offsets = [3, 0], sizes = [1, 25], strides = [1, 1]} : vector<4x25xf32> to vector<1x25xf32>
    %38 = vector.broadcast %37 : vector<1x25xf32> to vector<16x25xf32>
    %39 = arith.mulf %36, %38 : vector<16x25xf32>
    %40 = vector.shape_cast %39 : vector<16x25xf32> to vector<1x16x25xf32>
    %cst_10 = arith.constant dense<0.000000e+00> : vector<1xf32>
    %41 = vector.multi_reduction <add>, %40, %cst_10 [1, 2] : vector<1x16x25xf32> to vector<1xf32>
    %42 = vector.shape_cast %41 : vector<1xf32> to vector<1x1x1xf32>
    %43 = vector.extract %42[0, 0, 0] : f32 from vector<1x1x1xf32>
    %44 = vector.broadcast %43 : f32 to vector<1x1xf32>
    %45 = arith.addf %35, %44 : vector<1x1xf32>
    %cst_11 = arith.constant 1.024000e+03 : f32
    %46 = vector.broadcast %cst_11 : f32 to vector<1x1xf32>
    %47 = arith.divf %45, %46 : vector<1x1xf32>
    %48 = vector.broadcast %47 : vector<1x1xf32> to vector<64x25xf32>
    %49 = arith.subf %3, %48 : vector<64x25xf32>
    %cst_12 = arith.constant 0.000000e+00 : f32
    %50 = vector.broadcast %cst_12 : f32 to vector<1x1xf32>
    %51 = vector.extract_strided_slice %49 {offsets = [0, 0], sizes = [16, 25], strides = [1, 1]} : vector<64x25xf32> to vector<16x25xf32>
    %52 = arith.mulf %51, %51 : vector<16x25xf32>
    %53 = vector.extract_strided_slice %4 {offsets = [0, 0], sizes = [1, 25], strides = [1, 1]} : vector<4x25xf32> to vector<1x25xf32>
    %54 = vector.broadcast %53 : vector<1x25xf32> to vector<16x25xf32>
    %55 = arith.mulf %52, %54 : vector<16x25xf32>
    %56 = vector.shape_cast %55 : vector<16x25xf32> to vector<1x16x25xf32>
    %cst_13 = arith.constant dense<0.000000e+00> : vector<1xf32>
    %57 = vector.multi_reduction <add>, %56, %cst_13 [1, 2] : vector<1x16x25xf32> to vector<1xf32>
    %58 = vector.shape_cast %57 : vector<1xf32> to vector<1x1x1xf32>
    %59 = vector.extract %58[0, 0, 0] : f32 from vector<1x1x1xf32>
    %60 = vector.broadcast %59 : f32 to vector<1x1xf32>
    %61 = arith.addf %50, %60 : vector<1x1xf32>
    %62 = vector.extract_strided_slice %49 {offsets = [16, 0], sizes = [16, 25], strides = [1, 1]} : vector<64x25xf32> to vector<16x25xf32>
    %63 = arith.mulf %62, %62 : vector<16x25xf32>
    %64 = vector.extract_strided_slice %4 {offsets = [1, 0], sizes = [1, 25], strides = [1, 1]} : vector<4x25xf32> to vector<1x25xf32>
    %65 = vector.broadcast %64 : vector<1x25xf32> to vector<16x25xf32>
    %66 = arith.mulf %63, %65 : vector<16x25xf32>
    %67 = vector.shape_cast %66 : vector<16x25xf32> to vector<1x16x25xf32>
    %cst_14 = arith.constant dense<0.000000e+00> : vector<1xf32>
    %68 = vector.multi_reduction <add>, %67, %cst_14 [1, 2] : vector<1x16x25xf32> to vector<1xf32>
    %69 = vector.shape_cast %68 : vector<1xf32> to vector<1x1x1xf32>
    %70 = vector.extract %69[0, 0, 0] : f32 from vector<1x1x1xf32>
    %71 = vector.broadcast %70 : f32 to vector<1x1xf32>
    %72 = arith.addf %61, %71 : vector<1x1xf32>
    %73 = vector.extract_strided_slice %49 {offsets = [32, 0], sizes = [16, 25], strides = [1, 1]} : vector<64x25xf32> to vector<16x25xf32>
    %74 = arith.mulf %73, %73 : vector<16x25xf32>
    %75 = vector.extract_strided_slice %4 {offsets = [2, 0], sizes = [1, 25], strides = [1, 1]} : vector<4x25xf32> to vector<1x25xf32>
    %76 = vector.broadcast %75 : vector<1x25xf32> to vector<16x25xf32>
    %77 = arith.mulf %74, %76 : vector<16x25xf32>
    %78 = vector.shape_cast %77 : vector<16x25xf32> to vector<1x16x25xf32>
    %cst_15 = arith.constant dense<0.000000e+00> : vector<1xf32>
    %79 = vector.multi_reduction <add>, %78, %cst_15 [1, 2] : vector<1x16x25xf32> to vector<1xf32>
    %80 = vector.shape_cast %79 : vector<1xf32> to vector<1x1x1xf32>
    %81 = vector.extract %80[0, 0, 0] : f32 from vector<1x1x1xf32>
    %82 = vector.broadcast %81 : f32 to vector<1x1xf32>
    %83 = arith.addf %72, %82 : vector<1x1xf32>
    %84 = vector.extract_strided_slice %49 {offsets = [48, 0], sizes = [16, 25], strides = [1, 1]} : vector<64x25xf32> to vector<16x25xf32>
    %85 = arith.mulf %84, %84 : vector<16x25xf32>
    %86 = vector.extract_strided_slice %4 {offsets = [3, 0], sizes = [1, 25], strides = [1, 1]} : vector<4x25xf32> to vector<1x25xf32>
    %87 = vector.broadcast %86 : vector<1x25xf32> to vector<16x25xf32>
    %88 = arith.mulf %85, %87 : vector<16x25xf32>
    %89 = vector.shape_cast %88 : vector<16x25xf32> to vector<1x16x25xf32>
    %cst_16 = arith.constant dense<0.000000e+00> : vector<1xf32>
    %90 = vector.multi_reduction <add>, %89, %cst_16 [1, 2] : vector<1x16x25xf32> to vector<1xf32>
    %91 = vector.shape_cast %90 : vector<1xf32> to vector<1x1x1xf32>
    %92 = vector.extract %91[0, 0, 0] : f32 from vector<1x1x1xf32>
    %93 = vector.broadcast %92 : f32 to vector<1x1xf32>
    %94 = arith.addf %83, %93 : vector<1x1xf32>
    %cst_17 = arith.constant 1.023000e+03 : f32
    %95 = vector.broadcast %cst_17 : f32 to vector<1x1xf32>
    %96 = arith.divf %94, %95 : vector<1x1xf32>
    %97 = math.sqrt %96 : vector<1x1xf32>
    %cst_18 = arith.constant 9.99999974E-6 : f32
    %98 = vector.broadcast %cst_18 : f32 to vector<1x1xf32>
    %99 = arith.addf %97, %98 : vector<1x1xf32>
    %100 = tpu.reciprocal %99 {approx = true} : vector<1x1xf32> -> vector<1x1xf32>
    %101 = vector.broadcast %100 : vector<1x1xf32> to vector<64x25xf32>
    %102 = arith.mulf %49, %101 : vector<64x25xf32>
    %103 = arith.truncf %102 : vector<64x25xf32> to vector<64x25xbf16>
    %c0_19 = arith.constant 0 : index
    %c0_20 = arith.constant 0 : index
    %c0_21 = arith.constant 0 : index
    %104 = vector.load %arg4[%c0_19, %c0_20, %c0_21] : memref<1x64x25xbf16, #tpu.memory_space<vmem>>, vector<1x64x25xbf16>
    %105 = vector.shape_cast %104 : vector<1x64x25xbf16> to vector<64x25xbf16>
    %106 = vector.shape_cast %103 : vector<64x25xbf16> to vector<1x64x25xbf16>
    tpu.vector_store %arg4[%c0_19, %c0_20, %c0_21], %106 {strides = array<i32>} : memref<1x64x25xbf16, #tpu.memory_space<vmem>>, vector<1x64x25xbf16>,
    return
  }
  func.func @transform_0(%arg0: i32) -> (i32, i32) {
    %c0_i32 = arith.constant 0 : i32
    %c0_i32_0 = arith.constant 0 : i32
    %c0_i32_1 = arith.constant 0 : i32
    return %c0_i32, %c0_i32_0 : i32, i32
  }
  func.func @transform_1(%arg0: i32) -> (i32, i32, i32) {
    %c0_i32 = arith.constant 0 : i32
    %c0_i32_0 = arith.constant 0 : i32
    %c0_i32_1 = arith.constant 0 : i32
    return %arg0, %c0_i32, %c0_i32_0 : i32, i32, i32
  }
  func.func @transform_2(%arg0: i32) -> (i32, i32) {
    %c0_i32 = arith.constant 0 : i32
    %c0_i32_0 = arith.constant 0 : i32
    %c0_i32_1 = arith.constant 0 : i32
    return %c0_i32, %c0_i32_0 : i32, i32
  }
  func.func @transform_3(%arg0: i32) -> (i32, i32, i32) {
    %c0_i32 = arith.constant 0 : i32
    %c0_i32_0 = arith.constant 0 : i32
    %c0_i32_1 = arith.constant 0 : i32
    return %arg0, %c0_i32, %c0_i32_0 : i32, i32, i32
  }
}

module attributes {stable_mosaic.version = 11 : i64} {
  func.func @_conv_stage_kernel(%arg0: i32, %arg1: memref<64x128xbf16, #tpu.memory_space<vmem>>, %arg2: memref<1x128x81xbf16, #tpu.memory_space<vmem>>, %arg3: memref<4x81xf32, #tpu.memory_space<vmem>>, %arg4: memref<1x64x81xbf16, #tpu.memory_space<vmem>>) attributes {dimension_semantics = [#tpu.dimension_semantics<parallel>], iteration_bounds = array<i64: 2>, scalar_prefetch = 0 : i64, scratch_operands = 0 : i64, tpu.core_type = #tpu.core_type<tc>, window_params = [{pipeline_mode = #tpu.pipeline_mode<synchronous>, transform_indices = @transform_0, window_bounds = array<i64: 64, 128>}, {transform_indices = @transform_1, window_bounds = array<i64: 1, 128, 81>}, {pipeline_mode = #tpu.pipeline_mode<synchronous>, transform_indices = @transform_2, window_bounds = array<i64: 4, 81>}, {transform_indices = @transform_3, window_bounds = array<i64: 1, 64, 81>}]} {
    %c0 = arith.constant 0 : index
    %c0_0 = arith.constant 0 : index
    %0 = vector.load %arg1[%c0, %c0_0] : memref<64x128xbf16, #tpu.memory_space<vmem>>, vector<64x128xbf16>
    %c0_1 = arith.constant 0 : index
    %c0_2 = arith.constant 0 : index
    %c0_3 = arith.constant 0 : index
    %1 = vector.load %arg2[%c0_1, %c0_2, %c0_3] : memref<1x128x81xbf16, #tpu.memory_space<vmem>>, vector<1x128x81xbf16>
    %2 = vector.shape_cast %1 : vector<1x128x81xbf16> to vector<128x81xbf16>
    %cst = arith.constant dense<0.000000e+00> : vector<64x81xf32>
    %3 = tpu.matmul %0, %2, %cst {dimension_numbers = #tpu.dot_dimension_numbers<[1], [0], [0], [1], [0, 0, 1, 1], [], []>} : vector<64x128xbf16>, vector<128x81xbf16>, vector<64x81xf32> -> vector<64x81xf32>
    %c0_4 = arith.constant 0 : index
    %c0_5 = arith.constant 0 : index
    %4 = vector.load %arg3[%c0_4, %c0_5] : memref<4x81xf32, #tpu.memory_space<vmem>>, vector<4x81xf32>
    %cst_6 = arith.constant 0.000000e+00 : f32
    %5 = vector.broadcast %cst_6 : f32 to vector<1x1xf32>
    %6 = vector.extract_strided_slice %3 {offsets = [0, 0], sizes = [16, 81], strides = [1, 1]} : vector<64x81xf32> to vector<16x81xf32>
    %7 = vector.extract_strided_slice %4 {offsets = [0, 0], sizes = [1, 81], strides = [1, 1]} : vector<4x81xf32> to vector<1x81xf32>
    %8 = vector.broadcast %7 : vector<1x81xf32> to vector<16x81xf32>
    %9 = arith.mulf %6, %8 : vector<16x81xf32>
    %10 = vector.shape_cast %9 : vector<16x81xf32> to vector<1x16x81xf32>
    %cst_7 = arith.constant dense<0.000000e+00> : vector<1xf32>
    %11 = vector.multi_reduction <add>, %10, %cst_7 [1, 2] : vector<1x16x81xf32> to vector<1xf32>
    %12 = vector.shape_cast %11 : vector<1xf32> to vector<1x1x1xf32>
    %13 = vector.extract %12[0, 0, 0] : f32 from vector<1x1x1xf32>
    %14 = vector.broadcast %13 : f32 to vector<1x1xf32>
    %15 = arith.addf %5, %14 : vector<1x1xf32>
    %16 = vector.extract_strided_slice %3 {offsets = [16, 0], sizes = [16, 81], strides = [1, 1]} : vector<64x81xf32> to vector<16x81xf32>
    %17 = vector.extract_strided_slice %4 {offsets = [1, 0], sizes = [1, 81], strides = [1, 1]} : vector<4x81xf32> to vector<1x81xf32>
    %18 = vector.broadcast %17 : vector<1x81xf32> to vector<16x81xf32>
    %19 = arith.mulf %16, %18 : vector<16x81xf32>
    %20 = vector.shape_cast %19 : vector<16x81xf32> to vector<1x16x81xf32>
    %cst_8 = arith.constant dense<0.000000e+00> : vector<1xf32>
    %21 = vector.multi_reduction <add>, %20, %cst_8 [1, 2] : vector<1x16x81xf32> to vector<1xf32>
    %22 = vector.shape_cast %21 : vector<1xf32> to vector<1x1x1xf32>
    %23 = vector.extract %22[0, 0, 0] : f32 from vector<1x1x1xf32>
    %24 = vector.broadcast %23 : f32 to vector<1x1xf32>
    %25 = arith.addf %15, %24 : vector<1x1xf32>
    %26 = vector.extract_strided_slice %3 {offsets = [32, 0], sizes = [16, 81], strides = [1, 1]} : vector<64x81xf32> to vector<16x81xf32>
    %27 = vector.extract_strided_slice %4 {offsets = [2, 0], sizes = [1, 81], strides = [1, 1]} : vector<4x81xf32> to vector<1x81xf32>
    %28 = vector.broadcast %27 : vector<1x81xf32> to vector<16x81xf32>
    %29 = arith.mulf %26, %28 : vector<16x81xf32>
    %30 = vector.shape_cast %29 : vector<16x81xf32> to vector<1x16x81xf32>
    %cst_9 = arith.constant dense<0.000000e+00> : vector<1xf32>
    %31 = vector.multi_reduction <add>, %30, %cst_9 [1, 2] : vector<1x16x81xf32> to vector<1xf32>
    %32 = vector.shape_cast %31 : vector<1xf32> to vector<1x1x1xf32>
    %33 = vector.extract %32[0, 0, 0] : f32 from vector<1x1x1xf32>
    %34 = vector.broadcast %33 : f32 to vector<1x1xf32>
    %35 = arith.addf %25, %34 : vector<1x1xf32>
    %36 = vector.extract_strided_slice %3 {offsets = [48, 0], sizes = [16, 81], strides = [1, 1]} : vector<64x81xf32> to vector<16x81xf32>
    %37 = vector.extract_strided_slice %4 {offsets = [3, 0], sizes = [1, 81], strides = [1, 1]} : vector<4x81xf32> to vector<1x81xf32>
    %38 = vector.broadcast %37 : vector<1x81xf32> to vector<16x81xf32>
    %39 = arith.mulf %36, %38 : vector<16x81xf32>
    %40 = vector.shape_cast %39 : vector<16x81xf32> to vector<1x16x81xf32>
    %cst_10 = arith.constant dense<0.000000e+00> : vector<1xf32>
    %41 = vector.multi_reduction <add>, %40, %cst_10 [1, 2] : vector<1x16x81xf32> to vector<1xf32>
    %42 = vector.shape_cast %41 : vector<1xf32> to vector<1x1x1xf32>
    %43 = vector.extract %42[0, 0, 0] : f32 from vector<1x1x1xf32>
    %44 = vector.broadcast %43 : f32 to vector<1x1xf32>
    %45 = arith.addf %35, %44 : vector<1x1xf32>
    %cst_11 = arith.constant 4.096000e+03 : f32
    %46 = vector.broadcast %cst_11 : f32 to vector<1x1xf32>
    %47 = arith.divf %45, %46 : vector<1x1xf32>
    %48 = vector.broadcast %47 : vector<1x1xf32> to vector<64x81xf32>
    %49 = arith.subf %3, %48 : vector<64x81xf32>
    %cst_12 = arith.constant 0.000000e+00 : f32
    %50 = vector.broadcast %cst_12 : f32 to vector<1x1xf32>
    %51 = vector.extract_strided_slice %49 {offsets = [0, 0], sizes = [16, 81], strides = [1, 1]} : vector<64x81xf32> to vector<16x81xf32>
    %52 = arith.mulf %51, %51 : vector<16x81xf32>
    %53 = vector.extract_strided_slice %4 {offsets = [0, 0], sizes = [1, 81], strides = [1, 1]} : vector<4x81xf32> to vector<1x81xf32>
    %54 = vector.broadcast %53 : vector<1x81xf32> to vector<16x81xf32>
    %55 = arith.mulf %52, %54 : vector<16x81xf32>
    %56 = vector.shape_cast %55 : vector<16x81xf32> to vector<1x16x81xf32>
    %cst_13 = arith.constant dense<0.000000e+00> : vector<1xf32>
    %57 = vector.multi_reduction <add>, %56, %cst_13 [1, 2] : vector<1x16x81xf32> to vector<1xf32>
    %58 = vector.shape_cast %57 : vector<1xf32> to vector<1x1x1xf32>
    %59 = vector.extract %58[0, 0, 0] : f32 from vector<1x1x1xf32>
    %60 = vector.broadcast %59 : f32 to vector<1x1xf32>
    %61 = arith.addf %50, %60 : vector<1x1xf32>
    %62 = vector.extract_strided_slice %49 {offsets = [16, 0], sizes = [16, 81], strides = [1, 1]} : vector<64x81xf32> to vector<16x81xf32>
    %63 = arith.mulf %62, %62 : vector<16x81xf32>
    %64 = vector.extract_strided_slice %4 {offsets = [1, 0], sizes = [1, 81], strides = [1, 1]} : vector<4x81xf32> to vector<1x81xf32>
    %65 = vector.broadcast %64 : vector<1x81xf32> to vector<16x81xf32>
    %66 = arith.mulf %63, %65 : vector<16x81xf32>
    %67 = vector.shape_cast %66 : vector<16x81xf32> to vector<1x16x81xf32>
    %cst_14 = arith.constant dense<0.000000e+00> : vector<1xf32>
    %68 = vector.multi_reduction <add>, %67, %cst_14 [1, 2] : vector<1x16x81xf32> to vector<1xf32>
    %69 = vector.shape_cast %68 : vector<1xf32> to vector<1x1x1xf32>
    %70 = vector.extract %69[0, 0, 0] : f32 from vector<1x1x1xf32>
    %71 = vector.broadcast %70 : f32 to vector<1x1xf32>
    %72 = arith.addf %61, %71 : vector<1x1xf32>
    %73 = vector.extract_strided_slice %49 {offsets = [32, 0], sizes = [16, 81], strides = [1, 1]} : vector<64x81xf32> to vector<16x81xf32>
    %74 = arith.mulf %73, %73 : vector<16x81xf32>
    %75 = vector.extract_strided_slice %4 {offsets = [2, 0], sizes = [1, 81], strides = [1, 1]} : vector<4x81xf32> to vector<1x81xf32>
    %76 = vector.broadcast %75 : vector<1x81xf32> to vector<16x81xf32>
    %77 = arith.mulf %74, %76 : vector<16x81xf32>
    %78 = vector.shape_cast %77 : vector<16x81xf32> to vector<1x16x81xf32>
    %cst_15 = arith.constant dense<0.000000e+00> : vector<1xf32>
    %79 = vector.multi_reduction <add>, %78, %cst_15 [1, 2] : vector<1x16x81xf32> to vector<1xf32>
    %80 = vector.shape_cast %79 : vector<1xf32> to vector<1x1x1xf32>
    %81 = vector.extract %80[0, 0, 0] : f32 from vector<1x1x1xf32>
    %82 = vector.broadcast %81 : f32 to vector<1x1xf32>
    %83 = arith.addf %72, %82 : vector<1x1xf32>
    %84 = vector.extract_strided_slice %49 {offsets = [48, 0], sizes = [16, 81], strides = [1, 1]} : vector<64x81xf32> to vector<16x81xf32>
    %85 = arith.mulf %84, %84 : vector<16x81xf32>
    %86 = vector.extract_strided_slice %4 {offsets = [3, 0], sizes = [1, 81], strides = [1, 1]} : vector<4x81xf32> to vector<1x81xf32>
    %87 = vector.broadcast %86 : vector<1x81xf32> to vector<16x81xf32>
    %88 = arith.mulf %85, %87 : vector<16x81xf32>
    %89 = vector.shape_cast %88 : vector<16x81xf32> to vector<1x16x81xf32>
    %cst_16 = arith.constant dense<0.000000e+00> : vector<1xf32>
    %90 = vector.multi_reduction <add>, %89, %cst_16 [1, 2] : vector<1x16x81xf32> to vector<1xf32>
    %91 = vector.shape_cast %90 : vector<1xf32> to vector<1x1x1xf32>
    %92 = vector.extract %91[0, 0, 0] : f32 from vector<1x1x1xf32>
    %93 = vector.broadcast %92 : f32 to vector<1x1xf32>
    %94 = arith.addf %83, %93 : vector<1x1xf32>
    %cst_17 = arith.constant 4.095000e+03 : f32
    %95 = vector.broadcast %cst_17 : f32 to vector<1x1xf32>
    %96 = arith.divf %94, %95 : vector<1x1xf32>
    %97 = math.sqrt %96 : vector<1x1xf32>
    %cst_18 = arith.constant 9.99999974E-6 : f32
    %98 = vector.broadcast %cst_18 : f32 to vector<1x1xf32>
    %99 = arith.addf %97, %98 : vector<1x1xf32>
    %100 = tpu.reciprocal %99 {approx = true} : vector<1x1xf32> -> vector<1x1xf32>
    %101 = vector.broadcast %100 : vector<1x1xf32> to vector<64x81xf32>
    %102 = arith.mulf %49, %101 : vector<64x81xf32>
    %103 = arith.truncf %102 : vector<64x81xf32> to vector<64x81xbf16>
    %c0_19 = arith.constant 0 : index
    %c0_20 = arith.constant 0 : index
    %c0_21 = arith.constant 0 : index
    %104 = vector.load %arg4[%c0_19, %c0_20, %c0_21] : memref<1x64x81xbf16, #tpu.memory_space<vmem>>, vector<1x64x81xbf16>
    %105 = vector.shape_cast %104 : vector<1x64x81xbf16> to vector<64x81xbf16>
    %106 = vector.shape_cast %103 : vector<64x81xbf16> to vector<1x64x81xbf16>
    tpu.vector_store %arg4[%c0_19, %c0_20, %c0_21], %106 {strides = array<i32>} : memref<1x64x81xbf16, #tpu.memory_space<vmem>>, vector<1x64x81xbf16>,
    return
  }
  func.func @transform_0(%arg0: i32) -> (i32, i32) {
    %c0_i32 = arith.constant 0 : i32
    %c0_i32_0 = arith.constant 0 : i32
    %c0_i32_1 = arith.constant 0 : i32
    return %c0_i32, %c0_i32_0 : i32, i32
  }
  func.func @transform_1(%arg0: i32) -> (i32, i32, i32) {
    %c0_i32 = arith.constant 0 : i32
    %c0_i32_0 = arith.constant 0 : i32
    %c0_i32_1 = arith.constant 0 : i32
    return %arg0, %c0_i32, %c0_i32_0 : i32, i32, i32
  }
  func.func @transform_2(%arg0: i32) -> (i32, i32) {
    %c0_i32 = arith.constant 0 : i32
    %c0_i32_0 = arith.constant 0 : i32
    %c0_i32_1 = arith.constant 0 : i32
    return %c0_i32, %c0_i32_0 : i32, i32
  }
  func.func @transform_3(%arg0: i32) -> (i32, i32, i32) {
    %c0_i32 = arith.constant 0 : i32
    %c0_i32_0 = arith.constant 0 : i32
    %c0_i32_1 = arith.constant 0 : i32
    return %arg0, %c0_i32, %c0_i32_0 : i32, i32, i32
  }
}

module attributes {stable_mosaic.version = 11 : i64} {
  func.func @_bn_stage_kernel(%arg0: memref<16x288xbf16, #tpu.memory_space<vmem>>, %arg1: memref<2x288x256xbf16, #tpu.memory_space<vmem>>, %arg2: memref<16x1xf32, #tpu.memory_space<vmem>>, %arg3: memref<2x16x256xbf16, #tpu.memory_space<vmem>>) attributes {dimension_semantics = [], scalar_prefetch = 0 : i64, scratch_operands = 0 : i64, tpu.core_type = #tpu.core_type<tc>} {
    %c0 = arith.constant 0 : index
    %c0_0 = arith.constant 0 : index
    %0 = vector.load %arg0[%c0, %c0_0] : memref<16x288xbf16, #tpu.memory_space<vmem>>, vector<16x288xbf16>
    %c0_1 = arith.constant 0 : index
    %c0_2 = arith.constant 0 : index
    %1 = vector.load %arg2[%c0_1, %c0_2] : memref<16x1xf32, #tpu.memory_space<vmem>>, vector<16x1xf32>
    %cst = arith.constant 0.000000e+00 : f32
    %2 = vector.broadcast %cst : f32 to vector<16x1xf32>
    %c0_3 = arith.constant 0 : index
    %c0_4 = arith.constant 0 : index
    %c0_5 = arith.constant 0 : index
    %3 = vector.load %arg1[%c0_3, %c0_4, %c0_5] : memref<2x288x256xbf16, #tpu.memory_space<vmem>>, vector<1x288x256xbf16>
    %4 = vector.shape_cast %3 : vector<1x288x256xbf16> to vector<288x256xbf16>
    %cst_6 = arith.constant dense<0.000000e+00> : vector<16x256xf32>
    %5 = tpu.matmul %0, %4, %cst_6 {dimension_numbers = #tpu.dot_dimension_numbers<[1], [0], [0], [1], [0, 0, 1, 1], [], []>} : vector<16x288xbf16>, vector<288x256xbf16>, vector<16x256xf32> -> vector<16x256xf32>
    %6 = vector.broadcast %1 : vector<16x1xf32> to vector<16x256xf32>
    %7 = arith.addf %5, %6 : vector<16x256xf32>
    %cst_7 = arith.constant dense<0.000000e+00> : vector<16xf32>
    %8 = vector.multi_reduction <add>, %7, %cst_7 [1] : vector<16x256xf32> to vector<16xf32>
    %9 = vector.shape_cast %8 : vector<16xf32> to vector<16x1xf32>
    %10 = arith.addf %2, %9 : vector<16x1xf32>
    %c1 = arith.constant 1 : index
    %c0_8 = arith.constant 0 : index
    %c0_9 = arith.constant 0 : index
    %11 = vector.load %arg1[%c1, %c0_8, %c0_9] : memref<2x288x256xbf16, #tpu.memory_space<vmem>>, vector<1x288x256xbf16>
    %12 = vector.shape_cast %11 : vector<1x288x256xbf16> to vector<288x256xbf16>
    %cst_10 = arith.constant dense<0.000000e+00> : vector<16x256xf32>
    %13 = tpu.matmul %0, %12, %cst_10 {dimension_numbers = #tpu.dot_dimension_numbers<[1], [0], [0], [1], [0, 0, 1, 1], [], []>} : vector<16x288xbf16>, vector<288x256xbf16>, vector<16x256xf32> -> vector<16x256xf32>
    %14 = vector.broadcast %1 : vector<16x1xf32> to vector<16x256xf32>
    %15 = arith.addf %13, %14 : vector<16x256xf32>
    %cst_11 = arith.constant dense<0.000000e+00> : vector<16xf32>
    %16 = vector.multi_reduction <add>, %15, %cst_11 [1] : vector<16x256xf32> to vector<16xf32>
    %17 = vector.shape_cast %16 : vector<16xf32> to vector<16x1xf32>
    %18 = arith.addf %10, %17 : vector<16x1xf32>
    %cst_12 = arith.constant 5.120000e+02 : f32
    %19 = vector.broadcast %cst_12 : f32 to vector<16x1xf32>
    %20 = arith.divf %18, %19 : vector<16x1xf32>
    %cst_13 = arith.constant 0.000000e+00 : f32
    %21 = vector.broadcast %cst_13 : f32 to vector<16x1xf32>
    %22 = vector.broadcast %20 : vector<16x1xf32> to vector<16x256xf32>
    %23 = arith.subf %7, %22 : vector<16x256xf32>
    %24 = arith.mulf %23, %23 : vector<16x256xf32>
    %cst_14 = arith.constant dense<0.000000e+00> : vector<16xf32>
    %25 = vector.multi_reduction <add>, %24, %cst_14 [1] : vector<16x256xf32> to vector<16xf32>
    %26 = vector.shape_cast %25 : vector<16xf32> to vector<16x1xf32>
    %27 = arith.addf %21, %26 : vector<16x1xf32>
    %28 = vector.broadcast %20 : vector<16x1xf32> to vector<16x256xf32>
    %29 = arith.subf %15, %28 : vector<16x256xf32>
    %30 = arith.mulf %29, %29 : vector<16x256xf32>
    %cst_15 = arith.constant dense<0.000000e+00> : vector<16xf32>
    %31 = vector.multi_reduction <add>, %30, %cst_15 [1] : vector<16x256xf32> to vector<16xf32>
    %32 = vector.shape_cast %31 : vector<16xf32> to vector<16x1xf32>
    %33 = arith.addf %27, %32 : vector<16x1xf32>
    %cst_16 = arith.constant 5.120000e+02 : f32
    %34 = vector.broadcast %cst_16 : f32 to vector<16x1xf32>
    %35 = arith.divf %33, %34 : vector<16x1xf32>
    %cst_17 = arith.constant 9.99999974E-6 : f32
    %36 = vector.broadcast %cst_17 : f32 to vector<16x1xf32>
    %37 = arith.addf %35, %36 : vector<16x1xf32>
    %38 = math.rsqrt %37 : vector<16x1xf32>
    %39 = vector.broadcast %38 : vector<16x1xf32> to vector<16x256xf32>
    %40 = arith.mulf %23, %39 : vector<16x256xf32>
    %41 = arith.truncf %40 : vector<16x256xf32> to vector<16x256xbf16>
    %c0_18 = arith.constant 0 : index
    %c0_19 = arith.constant 0 : index
    %c0_20 = arith.constant 0 : index
    %42 = vector.load %arg3[%c0_18, %c0_19, %c0_20] : memref<2x16x256xbf16, #tpu.memory_space<vmem>>, vector<1x16x256xbf16>
    %43 = vector.shape_cast %42 : vector<1x16x256xbf16> to vector<16x256xbf16>
    %44 = vector.shape_cast %41 : vector<16x256xbf16> to vector<1x16x256xbf16>
    tpu.vector_store %arg3[%c0_18, %c0_19, %c0_20], %44 {strides = array<i32>} : memref<2x16x256xbf16, #tpu.memory_space<vmem>>, vector<1x16x256xbf16>,
    %45 = vector.broadcast %38 : vector<16x1xf32> to vector<16x256xf32>
    %46 = arith.mulf %29, %45 : vector<16x256xf32>
    %47 = arith.truncf %46 : vector<16x256xf32> to vector<16x256xbf16>
    %c1_21 = arith.constant 1 : index
    %c0_22 = arith.constant 0 : index
    %c0_23 = arith.constant 0 : index
    %48 = vector.load %arg3[%c1_21, %c0_22, %c0_23] : memref<2x16x256xbf16, #tpu.memory_space<vmem>>, vector<1x16x256xbf16>
    %49 = vector.shape_cast %48 : vector<1x16x256xbf16> to vector<16x256xbf16>
    %50 = vector.shape_cast %47 : vector<16x256xbf16> to vector<1x16x256xbf16>
    tpu.vector_store %arg3[%c1_21, %c0_22, %c0_23], %50 {strides = array<i32>} : memref<2x16x256xbf16, #tpu.memory_space<vmem>>, vector<1x16x256xbf16>,
    return
  }
}

module attributes {stable_mosaic.version = 11 : i64} {
  func.func @_bn_stage_kernel(%arg0: memref<16x171xbf16, #tpu.memory_space<vmem>>, %arg1: memref<2x171x256xbf16, #tpu.memory_space<vmem>>, %arg2: memref<16x1xf32, #tpu.memory_space<vmem>>, %arg3: memref<3x16xbf16, #tpu.memory_space<vmem>>, %arg4: memref<3x1xf32, #tpu.memory_space<vmem>>, %arg5: memref<2x3x256xf32, #tpu.memory_space<vmem>>) attributes {dimension_semantics = [], scalar_prefetch = 0 : i64, scratch_operands = 0 : i64, tpu.core_type = #tpu.core_type<tc>} {
    %c0 = arith.constant 0 : index
    %c0_0 = arith.constant 0 : index
    %0 = vector.load %arg0[%c0, %c0_0] : memref<16x171xbf16, #tpu.memory_space<vmem>>, vector<16x171xbf16>
    %c0_1 = arith.constant 0 : index
    %c0_2 = arith.constant 0 : index
    %1 = vector.load %arg2[%c0_1, %c0_2] : memref<16x1xf32, #tpu.memory_space<vmem>>, vector<16x1xf32>
    %cst = arith.constant 0.000000e+00 : f32
    %2 = vector.broadcast %cst : f32 to vector<16x1xf32>
    %c0_3 = arith.constant 0 : index
    %c0_4 = arith.constant 0 : index
    %c0_5 = arith.constant 0 : index
    %3 = vector.load %arg1[%c0_3, %c0_4, %c0_5] : memref<2x171x256xbf16, #tpu.memory_space<vmem>>, vector<1x171x256xbf16>
    %4 = vector.shape_cast %3 : vector<1x171x256xbf16> to vector<171x256xbf16>
    %cst_6 = arith.constant dense<0.000000e+00> : vector<16x256xf32>
    %5 = tpu.matmul %0, %4, %cst_6 {dimension_numbers = #tpu.dot_dimension_numbers<[1], [0], [0], [1], [0, 0, 1, 1], [], []>} : vector<16x171xbf16>, vector<171x256xbf16>, vector<16x256xf32> -> vector<16x256xf32>
    %6 = vector.broadcast %1 : vector<16x1xf32> to vector<16x256xf32>
    %7 = arith.addf %5, %6 : vector<16x256xf32>
    %cst_7 = arith.constant dense<0.000000e+00> : vector<16xf32>
    %8 = vector.multi_reduction <add>, %7, %cst_7 [1] : vector<16x256xf32> to vector<16xf32>
    %9 = vector.shape_cast %8 : vector<16xf32> to vector<16x1xf32>
    %10 = arith.addf %2, %9 : vector<16x1xf32>
    %c1 = arith.constant 1 : index
    %c0_8 = arith.constant 0 : index
    %c0_9 = arith.constant 0 : index
    %11 = vector.load %arg1[%c1, %c0_8, %c0_9] : memref<2x171x256xbf16, #tpu.memory_space<vmem>>, vector<1x171x256xbf16>
    %12 = vector.shape_cast %11 : vector<1x171x256xbf16> to vector<171x256xbf16>
    %cst_10 = arith.constant dense<0.000000e+00> : vector<16x256xf32>
    %13 = tpu.matmul %0, %12, %cst_10 {dimension_numbers = #tpu.dot_dimension_numbers<[1], [0], [0], [1], [0, 0, 1, 1], [], []>} : vector<16x171xbf16>, vector<171x256xbf16>, vector<16x256xf32> -> vector<16x256xf32>
    %14 = vector.broadcast %1 : vector<16x1xf32> to vector<16x256xf32>
    %15 = arith.addf %13, %14 : vector<16x256xf32>
    %cst_11 = arith.constant dense<0.000000e+00> : vector<16xf32>
    %16 = vector.multi_reduction <add>, %15, %cst_11 [1] : vector<16x256xf32> to vector<16xf32>
    %17 = vector.shape_cast %16 : vector<16xf32> to vector<16x1xf32>
    %18 = arith.addf %10, %17 : vector<16x1xf32>
    %cst_12 = arith.constant 5.120000e+02 : f32
    %19 = vector.broadcast %cst_12 : f32 to vector<16x1xf32>
    %20 = arith.divf %18, %19 : vector<16x1xf32>
    %cst_13 = arith.constant 0.000000e+00 : f32
    %21 = vector.broadcast %cst_13 : f32 to vector<16x1xf32>
    %22 = vector.broadcast %20 : vector<16x1xf32> to vector<16x256xf32>
    %23 = arith.subf %7, %22 : vector<16x256xf32>
    %24 = arith.mulf %23, %23 : vector<16x256xf32>
    %cst_14 = arith.constant dense<0.000000e+00> : vector<16xf32>
    %25 = vector.multi_reduction <add>, %24, %cst_14 [1] : vector<16x256xf32> to vector<16xf32>
    %26 = vector.shape_cast %25 : vector<16xf32> to vector<16x1xf32>
    %27 = arith.addf %21, %26 : vector<16x1xf32>
    %28 = vector.broadcast %20 : vector<16x1xf32> to vector<16x256xf32>
    %29 = arith.subf %15, %28 : vector<16x256xf32>
    %30 = arith.mulf %29, %29 : vector<16x256xf32>
    %cst_15 = arith.constant dense<0.000000e+00> : vector<16xf32>
    %31 = vector.multi_reduction <add>, %30, %cst_15 [1] : vector<16x256xf32> to vector<16xf32>
    %32 = vector.shape_cast %31 : vector<16xf32> to vector<16x1xf32>
    %33 = arith.addf %27, %32 : vector<16x1xf32>
    %cst_16 = arith.constant 5.120000e+02 : f32
    %34 = vector.broadcast %cst_16 : f32 to vector<16x1xf32>
    %35 = arith.divf %33, %34 : vector<16x1xf32>
    %cst_17 = arith.constant 9.99999974E-6 : f32
    %36 = vector.broadcast %cst_17 : f32 to vector<16x1xf32>
    %37 = arith.addf %35, %36 : vector<16x1xf32>
    %38 = math.rsqrt %37 : vector<16x1xf32>
    %39 = vector.broadcast %38 : vector<16x1xf32> to vector<16x256xf32>
    %40 = arith.mulf %23, %39 : vector<16x256xf32>
    %41 = math.tanh %40 : vector<16x256xf32>
    %42 = arith.truncf %41 : vector<16x256xf32> to vector<16x256xbf16>
    %c0_18 = arith.constant 0 : index
    %c0_19 = arith.constant 0 : index
    %43 = vector.load %arg3[%c0_18, %c0_19] : memref<3x16xbf16, #tpu.memory_space<vmem>>, vector<3x16xbf16>
    %cst_20 = arith.constant dense<0.000000e+00> : vector<3x256xf32>
    %44 = tpu.matmul %43, %42, %cst_20 {dimension_numbers = #tpu.dot_dimension_numbers<[1], [0], [0], [1], [0, 0, 1, 1], [], []>} : vector<3x16xbf16>, vector<16x256xbf16>, vector<3x256xf32> -> vector<3x256xf32>
    %c0_21 = arith.constant 0 : index
    %c0_22 = arith.constant 0 : index
    %45 = vector.load %arg4[%c0_21, %c0_22] : memref<3x1xf32, #tpu.memory_space<vmem>>, vector<3x1xf32>
    %46 = vector.broadcast %45 : vector<3x1xf32> to vector<3x256xf32>
    %47 = arith.addf %44, %46 : vector<3x256xf32>
    %48 = math.absf %47 : vector<3x256xf32>
    %49 = math.exp %48 : vector<3x256xf32>
    %cst_23 = arith.constant 1.000000e+00 : f32
    %50 = vector.broadcast %cst_23 : f32 to vector<3x256xf32>
    %51 = arith.subf %49, %50 : vector<3x256xf32>
    %cst_24 = arith.constant 0.000000e+00 : f32
    %52 = vector.broadcast %cst_24 : f32 to vector<3x256xf32>
    %53 = arith.cmpf oge, %47, %52 : vector<3x256xf32>
    %cst_25 = arith.constant 0.000000e+00 : f32
    %54 = vector.broadcast %cst_25 : f32 to vector<3x256xf32>
    %55 = arith.subf %54, %51 : vector<3x256xf32>
    %56 = arith.select %53, %51, %55 : vector<3x256xi1>, vector<3x256xf32>
    %c0_26 = arith.constant 0 : index
    %c0_27 = arith.constant 0 : index
    %c0_28 = arith.constant 0 : index
    %57 = vector.load %arg5[%c0_26, %c0_27, %c0_28] : memref<2x3x256xf32, #tpu.memory_space<vmem>>, vector<1x3x256xf32>
    %58 = vector.shape_cast %57 : vector<1x3x256xf32> to vector<3x256xf32>
    %59 = vector.shape_cast %56 : vector<3x256xf32> to vector<1x3x256xf32>
    tpu.vector_store %arg5[%c0_26, %c0_27, %c0_28], %59 {strides = array<i32>} : memref<2x3x256xf32, #tpu.memory_space<vmem>>, vector<1x3x256xf32>,
    %60 = vector.broadcast %38 : vector<16x1xf32> to vector<16x256xf32>
    %61 = arith.mulf %29, %60 : vector<16x256xf32>
    %62 = math.tanh %61 : vector<16x256xf32>
    %63 = arith.truncf %62 : vector<16x256xf32> to vector<16x256xbf16>
    %c0_29 = arith.constant 0 : index
    %c0_30 = arith.constant 0 : index
    %64 = vector.load %arg3[%c0_29, %c0_30] : memref<3x16xbf16, #tpu.memory_space<vmem>>, vector<3x16xbf16>
    %cst_31 = arith.constant dense<0.000000e+00> : vector<3x256xf32>
    %65 = tpu.matmul %64, %63, %cst_31 {dimension_numbers = #tpu.dot_dimension_numbers<[1], [0], [0], [1], [0, 0, 1, 1], [], []>} : vector<3x16xbf16>, vector<16x256xbf16>, vector<3x256xf32> -> vector<3x256xf32>
    %c0_32 = arith.constant 0 : index
    %c0_33 = arith.constant 0 : index
    %66 = vector.load %arg4[%c0_32, %c0_33] : memref<3x1xf32, #tpu.memory_space<vmem>>, vector<3x1xf32>
    %67 = vector.broadcast %66 : vector<3x1xf32> to vector<3x256xf32>
    %68 = arith.addf %65, %67 : vector<3x256xf32>
    %69 = math.absf %68 : vector<3x256xf32>
    %70 = math.exp %69 : vector<3x256xf32>
    %cst_34 = arith.constant 1.000000e+00 : f32
    %71 = vector.broadcast %cst_34 : f32 to vector<3x256xf32>
    %72 = arith.subf %70, %71 : vector<3x256xf32>
    %cst_35 = arith.constant 0.000000e+00 : f32
    %73 = vector.broadcast %cst_35 : f32 to vector<3x256xf32>
    %74 = arith.cmpf oge, %68, %73 : vector<3x256xf32>
    %cst_36 = arith.constant 0.000000e+00 : f32
    %75 = vector.broadcast %cst_36 : f32 to vector<3x256xf32>
    %76 = arith.subf %75, %72 : vector<3x256xf32>
    %77 = arith.select %74, %72, %76 : vector<3x256xi1>, vector<3x256xf32>
    %c1_37 = arith.constant 1 : index
    %c0_38 = arith.constant 0 : index
    %c0_39 = arith.constant 0 : index
    %78 = vector.load %arg5[%c1_37, %c0_38, %c0_39] : memref<2x3x256xf32, #tpu.memory_space<vmem>>, vector<1x3x256xf32>
    %79 = vector.shape_cast %78 : vector<1x3x256xf32> to vector<3x256xf32>
    %80 = vector.shape_cast %77 : vector<3x256xf32> to vector<1x3x256xf32>
    tpu.vector_store %arg5[%c1_37, %c0_38, %c0_39], %80 {strides = array<i32>} : memref<2x3x256xf32, #tpu.memory_space<vmem>>, vector<1x3x256xf32>,
    return
  }
}

</mosaic_0001>

<llo_original>
// kernel: unet_forward.11
$region0: #{unet_forward.11}
  #allocation0 [shape = 'u32[]', space=smem, size = 0x4, offset = 0x4, fixed_abs, tag = 'smem constant byte address 0x4 - core index']
  #allocation1 [shape = 'u32[144,128]{1,0:T(1,128)}', space=vmem, size = 0x12000, scoped, tag = 'internal scratch']
  %s0 = inlined_call_operand.vmem [shape: bf16[16,27], index: 0, kind: input, shape index: {}]
  %s1 = inlined_call_operand.vmem [shape: bf16[2,27,256], index: 1, kind: input, shape index: {}]
  %s2 = inlined_call_operand.vmem [shape: f32[16,1], index: 2, kind: input, shape index: {}]
  %s3 = inlined_call_operand.vmem [shape: bf16[2,16,256], index: 3, kind: output, shape index: {}]
  %s4 = sld [smem:[#allocation0]]
  $region45: #{unet_forward.11} parent=0
    _
  %s6 = ssub.s32 1, %s4
  %s7 = scalar_select 0, %s6, %s4
  loop: start=0, step=1, limit=4
  $region2: #{unet_forward.11} parent=0 // loop_pre_header
    _
  $region3: #{unet_forward.11} parent=0 // loop_header
    %s9 = sphi 0, %s13
    %p10 = scmp.ge.s32.totalorder %s9, 4
    %s16 = sphi 0, %s28
    %s17 = sphi 0, %s24
    %s18 = sphi 0, %s16
    %s19 = sphi 0, %s17
    %s20 = sphi 0, %s18
    %s21 = sphi 0, %s19
    %s29 = sphi 0, %s29
    %s31 = sphi 0, %s29
    %s32 = sphi 0, %s31
    %s46 = sphi 0, %s32
    %s54 = sphi 0, %s56
    %s57 = sphi 0, %s54
    %s58 = sphi 0, %s57
    %s74 = sphi 0, %s58
    %s78 = sphi 0, %s78
    %s80 = sphi 0, %s78
    %s81 = sphi 0, %s80
    %s95 = sphi 0, %s81
    %s103 = sphi 0, %s105
    %s106 = sphi 0, %s103
    %s107 = sphi 0, %s106
    %s123 = sphi 0, %s107
  $region4: #{unet_forward.11} parent=0 // loop_header_branch
    %12 = sbr.rel (%p10) target = $region8
  $region5: #{unet_forward.11} parent=0 // loop_body
    %s14 = ssub.s32 %s9, 1
    %s15 = ssub.s32 %s9, 2
    %s22 = sadd.s32 1, %s17
    %p23 = scmp.ge.s32.totalorder %s22, 1
    %s24 = scalar_select %p23, 0, %s22
    %s25 = sadd.s32 1, %s16
    %s26 = scalar_select %p23, %s25, %s16
    %p27 = scmp.ge.s32.totalorder %s26, 2
    %s28 = scalar_select %p27, 0, %s26
    %s30 = sadd.s32 %s29, 1
    %p33 = scmp.eq.s32.totalorder %s9, 1
    %p34 = scmp.ne.s32.totalorder %s29, %s31
    %p35 = scmp.eq.s32.totalorder %s9, 0
    %p36 = por %p34, %p35
    %p37 = scmp.ne.s32.totalorder %s29, %s31
    %p38 = scmp.eq.s32.totalorder %s14, 1
    %p39 = por %p37, %p38
    %p40 = scmp.ne.s32.totalorder %s31, %s32
    %p41 = scmp.eq.s32.totalorder %s14, 0
    %p42 = por %p40, %p41
    %p43 = scmp.ne.s32.totalorder %s31, %s32
    %p44 = scmp.eq.s32.totalorder %s15, 1
    %p45 = por %p43, %p44
    %p47 = scmp.ne.s32.totalorder %s32, %s46
    %p48 = scmp.eq.s32.totalorder %s15, 0
    %p49 = por %p47, %p48
    %s50 = ssub.s32 %s16, %s28
    %s51 = ssub.s32 %s17, %s24
    %s52 = sor.u32 %s50, %s51
    %p53 = scmp.eq.s32.totalorder %s52, 0
    %s55 = sadd.s32 %s54, 1
    %s56 = scalar_select %p53, %s54, %s55
    %p59 = pneg %p53
    %p60 = scmp.eq.s32.totalorder %s9, 1
    %p61 = por %p59, %p60
    %p62 = scmp.ne.s32.totalorder %s54, %s57
    %p63 = scmp.eq.s32.totalorder %s9, 0
    %p64 = por %p62, %p63
    %p65 = scmp.ne.s32.totalorder %s54, %s57
    %p66 = scmp.eq.s32.totalorder %s14, 1
    %p67 = por %p65, %p66
    %p68 = scmp.ne.s32.totalorder %s57, %s58
    %p69 = scmp.eq.s32.totalorder %s14, 0
    %p70 = por %p68, %p69
    %p71 = scmp.ne.s32.totalorder %s57, %s58
    %p72 = scmp.eq.s32.totalorder %s15, 1
    %p73 = por %p71, %p72
    %p75 = scmp.ne.s32.totalorder %s58, %s74
    %p76 = scmp.eq.s32.totalorder %s15, 0
    %p77 = por %p75, %p76
    %s79 = sadd.s32 %s78, 1
    %p82 = scmp.eq.s32.totalorder %s9, 1
    %p83 = scmp.ne.s32.totalorder %s78, %s80
    %p84 = scmp.eq.s32.totalorder %s9, 0
    %p85 = por %p83, %p84
    %p86 = scmp.ne.s32.totalorder %s78, %s80
    %p87 = scmp.eq.s32.totalorder %s14, 1
    %p88 = por %p86, %p87
    %p89 = scmp.ne.s32.totalorder %s80, %s81
    %p90 = scmp.eq.s32.totalorder %s14, 0
    %p91 = por %p89, %p90
    %p92 = scmp.ne.s32.totalorder %s80, %s81
    %p93 = scmp.eq.s32.totalorder %s15, 1
    %p94 = por %p92, %p93
    %p96 = scmp.ne.s32.totalorder %s81, %s95
    %p97 = scmp.eq.s32.totalorder %s15, 0
    %p98 = por %p96, %p97
    %s99 = ssub.s32 %s16, %s28
    %s100 = ssub.s32 %s17, %s24
    %s101 = sor.u32 %s99, %s100
    %p102 = scmp.eq.s32.totalorder %s101, 0
    %s104 = sadd.s32 %s103, 1
    %s105 = scalar_select %p102, %s103, %s104
    %p108 = pneg %p102
    %p109 = scmp.eq.s32.totalorder %s9, 1
    %p110 = por %p108, %p109
    %p111 = scmp.ne.s32.totalorder %s103, %s106
    %p112 = scmp.eq.s32.totalorder %s9, 0
    %p113 = por %p111, %p112
    %p114 = scmp.ne.s32.totalorder %s103, %s106
    %p115 = scmp.eq.s32.totalorder %s14, 1
    %p116 = por %p114, %p115
    %p117 = scmp.ne.s32.totalorder %s106, %s107
    %p118 = scmp.eq.s32.totalorder %s14, 0
    %p119 = por %p117, %p118
    %p120 = scmp.ne.s32.totalorder %s106, %s107
    %p121 = scmp.eq.s32.totalorder %s15, 1
    %p122 = por %p120, %p121
    %p124 = scmp.ne.s32.totalorder %s107, %s123
    %p125 = scmp.eq.s32.totalorder %s15, 0
    %p126 = por %p124, %p125
    %p127 = scmp.le.s32.totalorder 1, %s9
    %p128 = scmp.lt.s32.totalorder %s9, 3
    %p129 = pnand %p127, %p128
    %p130 = pneg %p129
    // Predicated region
    $region9: #{unet_forward.11} parent=5 // pred_check
      _
    $region10: #{unet_forward.11} parent=5 // pred_check_branch
      %132 = sbr.rel (%p129) target = $region12
    $region11: #{unet_forward.11} parent=5 // pred_region
      %s133 = ssub.s32 %s9, 1
      // Predicated region
      $region13: #{unet_forward.11} parent=11 // pred_check
        %p134 = pneg %p42
      $region14: #{unet_forward.11} parent=11 // pred_check_branch
        %136 = sbr.rel (%p134) target = $region16
      $region15: #{unet_forward.11} parent=11 // pred_region
        _
      $region16: #{unet_forward.11} parent=11 // pred_fallthru
        _
      // Predicated region
      $region17: #{unet_forward.11} parent=11 // pred_check
        %p137 = pneg %p91
      $region18: #{unet_forward.11} parent=11 // pred_check_branch
        %139 = sbr.rel (%p137) target = $region20
      $region19: #{unet_forward.11} parent=11 // pred_region
        _
      $region20: #{unet_forward.11} parent=11 // pred_fallthru
        _
    $region12: #{unet_forward.11} parent=5 // pred_fallthru
      _
    %p140 = scmp.lt.s32.totalorder %s9, 2
    // Predicated region
    $region21: #{unet_forward.11} parent=5 // pred_check
      %p141 = pneg %p140
    $region22: #{unet_forward.11} parent=5 // pred_check_branch
      %143 = sbr.rel (%p141) target = $region24
    $region23: #{unet_forward.11} parent=5 // pred_region
      // Predicated region
      $region25: #{unet_forward.11} parent=23 // pred_check
        %p144 = pneg %p64
      $region26: #{unet_forward.11} parent=23 // pred_check_branch
        %146 = sbr.rel (%p144) target = $region28
      $region27: #{unet_forward.11} parent=23 // pred_region
        %s147 = smul.u32 2, %s17
        %p148 = scmp.lt.s32.totalorder %s16, 1
        %s149 = scalar_select %p148, %s16, 1
        %p150 = scmp.lt.s32.totalorder %s147, 1
        %s151 = scalar_select %p150, %s147, 1
        %s152 = smul.addr %s149, 8
        %s153 = sadd.s32 %s151, %s152
        %s154 = smul.addr %s153, 4
        %s155 = scalar_lea.vmem %s1, %s154
        %s156 = smul.u32 2, %s17
      $region28: #{unet_forward.11} parent=23 // pred_fallthru
        _
    $region24: #{unet_forward.11} parent=5 // pred_fallthru
      _
    %p157 = scmp.le.s32.totalorder 1, %s9
    %p158 = scmp.lt.s32.totalorder %s9, 3
    %p159 = pnand %p157, %p158
    %p160 = pneg %p159
    // Predicated region
    $region29: #{unet_forward.11} parent=5 // pred_check
      _
    $region30: #{unet_forward.11} parent=5 // pred_check_branch
      %162 = sbr.rel (%p159) target = $region32
    $region31: #{unet_forward.11} parent=5 // pred_region
      %s163 = ssub.s32 %s9, 1
      %p164 = pneg %p42
      %p165 = pneg %p39
      %s166 = smul.u32 2, %s19
      %p167 = scmp.lt.s32.totalorder %s18, 1
      %s168 = scalar_select %p167, %s18, 1
      %p169 = scmp.lt.s32.totalorder %s166, 1
      %s170 = scalar_select %p169, %s166, 1
      %s171 = smul.addr %s168, 8
      %s172 = sadd.s32 %s170, %s171
      %s173 = smul.addr %s172, 4
      %s174 = scalar_lea.vmem %s1, %s173
      %p175 = pneg %p70
      %p176 = pneg %p67
      %p177 = pneg %p91
      %p178 = pneg %p88
      %p179 = pneg %p119
      %p180 = pneg %p116
      %s181 = smul.u32 2, %s19
      %p182 = scmp.lt.s32.totalorder %s18, 1
      %s183 = scalar_select %p182, %s18, 1
      %p184 = scmp.lt.s32.totalorder %s181, 1
      %s185 = scalar_select %p184, %s181, 1
      %s186 = smul.addr %s183, 4
      %s187 = sadd.s32 %s185, %s186
      %s188 = smul.addr %s187, 4
      %s189 = scalar_lea.vmem %s3, %s188
      %s190 = smul.u32 2, %s19
      %p191 = scmp.lt.s32.totalorder %s18, 1
      %s192 = scalar_select %p191, %s18, 1
      %p193 = scmp.lt.s32.totalorder %s190, 1
      %s194 = scalar_select %p193, %s190, 1
      %s195 = smul.addr %s192, 8
      %s196 = sadd.s32 %s194, %s195
      %s197 = smul.addr %s196, 4
      %s198 = scalar_lea.vmem %s1, %s197
      %s199 = smul.u32 2, %s19
      %s200 = smul.u32 2, %s19
      %p201 = scmp.lt.s32.totalorder %s18, 1
      %s202 = scalar_select %p201, %s18, 1
      %p203 = scmp.lt.s32.totalorder %s200, 1
      %s204 = scalar_select %p203, %s200, 1
      %s205 = smul.addr %s202, 4
      %s206 = sadd.s32 %s204, %s205
      %s207 = smul.addr %s206, 4
      %s208 = scalar_lea.vmem %s3, %s207
      %s209 = smul.u32 2, %s19
      %v211 = vld [vmem:[%s0] sm:$0xf]
      %v212 = vld [vmem:[%s0 + $0x4] sm:$0xf]
      %v213 = vld [vmem:[%s198] sm:$0xff]
      %v214 = vld [vmem:[%s198 + $0x8] sm:$0xff]
      %v215 = vld [vmem:[%s198 + $0x10] sm:$0xff]
      %v216 = vld [vmem:[%s198 + $0x18] sm:$0x33]
      %v217 = vld [vmem:[%s2] sm:$0xff]
      %v218 = vld [vmem:[%s2 + $0x8] sm:$0xff]
      %220 = vset.pattern.permute.xlu0 0
      %221 = vperm.xlu0 %220, %v217
      %v222 = vpop.permute.xlu0 %221
      %225 = vset.pattern.permute.xlu0 0
      %226 = vperm.xlu0 %225, %v218
      %v227 = vpop.permute.xlu0 %226
      %v231 = vunpack.c.l.b16 %v211
      %v232 = vunpack.c.l.b16 %v212
      %v233 = vpack.c.b16 %v232, %v231
      %v238 = vunpack.c.l.b16 %v213
      %v239 = vunpack.c.h.b16 %v213
      %v240 = vunpack.c.l.b16 %v214
      %v241 = vunpack.c.h.b16 %v214
      %v242 = vunpack.c.l.b16 %v215
      %v243 = vunpack.c.h.b16 %v215
      %v244 = vunpack.c.l.b16 %v216
      %v245 = vunpack.c.h.b16 %v216
      %v246 = vpack.c.b16 %v240, %v238
      %v247 = vpack.c.b16 %v241, %v239
      %v248 = vpack.c.b16 %v244, %v242
      %v249 = vpack.c.b16 %v245, %v243
      %vm252 = vcmask 220160
      %v254 = vsel %vm252, %v233, 0
      %vm256 = vcmask 1044480
      %vm257 = vcmask 1045504
      %v258 = vsel %vm256, 4294967295, 65535
      %v259 = vsel %vm257, %v258, 0
      %v261 = vand.u32 %v248, %v259
      %v264 = vand.u32 %v249, %v259
      %266 = vmatprep.subr.bf16.mxu0 %v247
      %267 = vmatpush1.bf16.msra.mxu0 %v246
      %268 = vmatprep.subr.bf16.mxu0 %v264
      %269 = vmatpush1.bf16.msra.mxu0 %v261
      %270 = vmatprep.subr.bf16.mxu0 0
      %271 = vmatpush1.bf16.msra.mxu0 0
      %272 = vmatprep.subr.bf16.mxu0 0
      %273 = vmatpush1.bf16.msra.mxu0 0
      %274 = vmatprep.subr.bf16.mxu0 0
      %275 = vmatpush1.bf16.msra.mxu0 0
      %276 = vmatprep.subr.bf16.mxu0 0
      %277 = vmatpush1.bf16.msra.mxu0 0
      %278 = vmatprep.subr.bf16.mxu0 0
      %279 = vmatpush1.bf16.msra.mxu0 0
      %280 = vmatprep.subr.bf16.mxu0 0
      %281 = vmatpush1.bf16.msra.mxu0 0
      %282 = vmatprep.subr.bf16.mxu0 0
      %283 = vmatpush1.bf16.msra.mxu0 0
      %284 = vmatprep.subr.bf16.mxu0 0
      %285 = vmatpush1.bf16.msra.mxu0 0
      %286 = vmatprep.subr.bf16.mxu0 0
      %287 = vmatpush1.bf16.msra.mxu0 0
      %288 = vmatprep.subr.bf16.mxu0 0
      %289 = vmatpush1.bf16.msra.mxu0 0
      %290 = vmatprep.subr.bf16.mxu0 0
      %291 = vmatpush1.bf16.msra.mxu0 0
      %292 = vmatprep.subr.bf16.mxu0 0
      %293 = vmatpush1.bf16.msra.mxu0 0
      %294 = vmatprep.subr.bf16.mxu0 0
      %295 = vmatpush1.bf16.msra.mxu0 0
      %296 = vmatprep.subr.bf16.mxu0 0
      %297 = vmatpush1.bf16.msra.mxu0 0
      %298 = vmatprep.mubr.bf16.mxu0 0
      %299 = vmatmul.mubr.bf16.gmra.mrb[0].mxu0 %v254
      %v300 = vpop.f32.mrb[0].mxu0
      %v301 = vadd.f32 %v222, %v300
      %v302 = vpop.f32.mrb[0].mxu0
      %v303 = vadd.f32 %v222, %v302
      %v304 = vpop.f32.mrb[0].mxu0
      %v305 = vadd.f32 %v227, %v304
      %v306 = vpop.f32.mrb[0].mxu0
      %v307 = vadd.f32 %v227, %v306
      %308 = vdwg.mxu0
      %v309 = vpack.c.bf16 %v305, %v301
      %v310 = vpack.c.bf16 %v307, %v303
      %v313 = vunpack.c.l.b16 %v309
      %v314 = vunpack.c.l.b16 %v310
      %v315 = vunpack.c.h.b16 %v309
      %v316 = vunpack.c.h.b16 %v310
      %v317 = vpack.c.b16 %v314, %v313
      %v318 = vpack.c.b16 %v316, %v315
      %321 = vst [vmem:[%s208] sm:$0xff] %v317
      %322 = vst [vmem:[%s208 + $0x8] sm:$0xff] %v318
      %s323 = smul.u32 2, %s19
      %p324 = scmp.lt.s32.totalorder %s18, 1
      %s325 = scalar_select %p324, %s18, 1
      %p326 = scmp.lt.s32.totalorder %s323, 1
      %s327 = scalar_select %p326, %s323, 1
      %s328 = smul.addr %s325, 4
      %s329 = sadd.s32 %s327, %s328
      %s330 = smul.addr %s329, 4
      %s331 = scalar_lea.vmem %s3, %s330
      // Predicated region
      $region33: #{unet_forward.11} parent=31 // pred_check
        %p332 = pneg %p116
      $region34: #{unet_forward.11} parent=31 // pred_check_branch
        %334 = sbr.rel (%p332) target = $region36
      $region35: #{unet_forward.11} parent=31 // pred_region
        %s335 = smul.u32 2, %s19
      $region36: #{unet_forward.11} parent=31 // pred_fallthru
        _
    $region32: #{unet_forward.11} parent=5 // pred_fallthru
      _
    %p336 = scmp.le.s32.totalorder 2, %s9
    // Predicated region
    $region37: #{unet_forward.11} parent=5 // pred_check
      %p337 = pneg %p336
    $region38: #{unet_forward.11} parent=5 // pred_check_branch
      %339 = sbr.rel (%p337) target = $region40
    $region39: #{unet_forward.11} parent=5 // pred_region
      %s340 = ssub.s32 %s9, 2
      // Predicated region
      $region41: #{unet_forward.11} parent=39 // pred_check
        %p341 = pneg %p122
      $region42: #{unet_forward.11} parent=39 // pred_check_branch
        %343 = sbr.rel (%p341) target = $region44
      $region43: #{unet_forward.11} parent=39 // pred_region
        %s344 = smul.u32 2, %s21
        %p345 = scmp.lt.s32.totalorder %s20, 1
        %s346 = scalar_select %p345, %s20, 1
        %p347 = scmp.lt.s32.totalorder %s344, 1
        %s348 = scalar_select %p347, %s344, 1
        %s349 = smul.addr %s346, 4
        %s350 = sadd.s32 %s348, %s349
        %s351 = smul.addr %s350, 4
        %s352 = scalar_lea.vmem %s3, %s351
      $region44: #{unet_forward.11} parent=39 // pred_fallthru
        _
    $region40: #{unet_forward.11} parent=5 // pred_fallthru
      _
  $region6: #{unet_forward.11} parent=0 // loop_footer
    %s13 = sadd.s32 1, %s9
  $region7: #{unet_forward.11} parent=0 // loop_footer_branch
    %8 = sbr.rel target = $region3
  $region8: #{unet_forward.11} parent=0 // loop_exit
    _

// kernel: unet_forward.12
$region0: #{unet_forward.12}
  #allocation0 [shape = 'u32[]', space=smem, size = 0x4, offset = 0x4, fixed_abs, tag = 'smem constant byte address 0x4 - core index']
  #allocation1 [shape = 'u32[144,128]{1,0:T(1,128)}', space=vmem, size = 0x12000, scoped, tag = 'internal scratch']
  %s0 = inlined_call_operand.vmem [shape: bf16[16,144], index: 0, kind: input, shape index: {}]
  %s1 = inlined_call_operand.vmem [shape: bf16[2,144,64], index: 1, kind: input, shape index: {}]
  %s2 = inlined_call_operand.vmem [shape: bf16[2,16,64], index: 2, kind: output, shape index: {}]
  %s3 = sld [smem:[#allocation0]]
  $region41: #{unet_forward.12} parent=0
    _
  %s5 = ssub.s32 1, %s3
  %s6 = scalar_select 0, %s5, %s3
  loop: start=0, step=1, limit=4
  $region2: #{unet_forward.12} parent=0 // loop_pre_header
    _
  $region3: #{unet_forward.12} parent=0 // loop_header
    %s8 = sphi 0, %s12
    %p9 = scmp.ge.s32.totalorder %s8, 4
    %s16 = sphi 0, %s16
    %s18 = sphi 0, %s16
    %s19 = sphi 0, %s18
    %s33 = sphi 0, %s19
    %s39 = sphi 0, %s41
    %s42 = sphi 0, %s39
    %s43 = sphi 0, %s42
    %s59 = sphi 0, %s43
    %s65 = sphi 0, %s67
    %s68 = sphi 0, %s65
    %s69 = sphi 0, %s68
    %s85 = sphi 0, %s69
  $region4: #{unet_forward.12} parent=0 // loop_header_branch
    %11 = sbr.rel (%p9) target = $region8
  $region5: #{unet_forward.12} parent=0 // loop_body
    %s13 = ssub.s32 %s8, 1
    %s14 = ssub.s32 %s8, 2
    %s15 = sadd.s32 %s8, 1
    %s17 = sadd.s32 %s16, 1
    %p20 = scmp.eq.s32.totalorder %s8, 1
    %p21 = scmp.ne.s32.totalorder %s16, %s18
    %p22 = scmp.eq.s32.totalorder %s8, 0
    %p23 = por %p21, %p22
    %p24 = scmp.ne.s32.totalorder %s16, %s18
    %p25 = scmp.eq.s32.totalorder %s13, 1
    %p26 = por %p24, %p25
    %p27 = scmp.ne.s32.totalorder %s18, %s19
    %p28 = scmp.eq.s32.totalorder %s13, 0
    %p29 = por %p27, %p28
    %p30 = scmp.ne.s32.totalorder %s18, %s19
    %p31 = scmp.eq.s32.totalorder %s14, 1
    %p32 = por %p30, %p31
    %p34 = scmp.ne.s32.totalorder %s19, %s33
    %p35 = scmp.eq.s32.totalorder %s14, 0
    %p36 = por %p34, %p35
    %s37 = ssub.s32 %s8, %s15
    %p38 = scmp.eq.s32.totalorder %s37, 0
    %s40 = sadd.s32 %s39, 1
    %s41 = scalar_select %p38, %s39, %s40
    %p44 = pneg %p38
    %p45 = scmp.eq.s32.totalorder %s8, 1
    %p46 = por %p44, %p45
    %p47 = scmp.ne.s32.totalorder %s39, %s42
    %p48 = scmp.eq.s32.totalorder %s8, 0
    %p49 = por %p47, %p48
    %p50 = scmp.ne.s32.totalorder %s39, %s42
    %p51 = scmp.eq.s32.totalorder %s13, 1
    %p52 = por %p50, %p51
    %p53 = scmp.ne.s32.totalorder %s42, %s43
    %p54 = scmp.eq.s32.totalorder %s13, 0
    %p55 = por %p53, %p54
    %p56 = scmp.ne.s32.totalorder %s42, %s43
    %p57 = scmp.eq.s32.totalorder %s14, 1
    %p58 = por %p56, %p57
    %p60 = scmp.ne.s32.totalorder %s43, %s59
    %p61 = scmp.eq.s32.totalorder %s14, 0
    %p62 = por %p60, %p61
    %s63 = ssub.s32 %s8, %s15
    %p64 = scmp.eq.s32.totalorder %s63, 0
    %s66 = sadd.s32 %s65, 1
    %s67 = scalar_select %p64, %s65, %s66
    %p70 = pneg %p64
    %p71 = scmp.eq.s32.totalorder %s8, 1
    %p72 = por %p70, %p71
    %p73 = scmp.ne.s32.totalorder %s65, %s68
    %p74 = scmp.eq.s32.totalorder %s8, 0
    %p75 = por %p73, %p74
    %p76 = scmp.ne.s32.totalorder %s65, %s68
    %p77 = scmp.eq.s32.totalorder %s13, 1
    %p78 = por %p76, %p77
    %p79 = scmp.ne.s32.totalorder %s68, %s69
    %p80 = scmp.eq.s32.totalorder %s13, 0
    %p81 = por %p79, %p80
    %p82 = scmp.ne.s32.totalorder %s68, %s69
    %p83 = scmp.eq.s32.totalorder %s14, 1
    %p84 = por %p82, %p83
    %p86 = scmp.ne.s32.totalorder %s69, %s85
    %p87 = scmp.eq.s32.totalorder %s14, 0
    %p88 = por %p86, %p87
    %p89 = scmp.le.s32.totalorder 1, %s8
    %p90 = scmp.lt.s32.totalorder %s8, 3
    %p91 = pnand %p89, %p90
    %p92 = pneg %p91
    // Predicated region
    $region9: #{unet_forward.12} parent=5 // pred_check
      _
    $region10: #{unet_forward.12} parent=5 // pred_check_branch
      %94 = sbr.rel (%p91) target = $region12
    $region11: #{unet_forward.12} parent=5 // pred_region
      %s95 = ssub.s32 %s8, 1
      // Predicated region
      $region13: #{unet_forward.12} parent=11 // pred_check
        %p96 = pneg %p29
      $region14: #{unet_forward.12} parent=11 // pred_check_branch
        %98 = sbr.rel (%p96) target = $region16
      $region15: #{unet_forward.12} parent=11 // pred_region
        _
      $region16: #{unet_forward.12} parent=11 // pred_fallthru
        _
    $region12: #{unet_forward.12} parent=5 // pred_fallthru
      _
    %p99 = scmp.lt.s32.totalorder %s8, 2
    // Predicated region
    $region17: #{unet_forward.12} parent=5 // pred_check
      %p100 = pneg %p99
    $region18: #{unet_forward.12} parent=5 // pred_check_branch
      %102 = sbr.rel (%p100) target = $region20
    $region19: #{unet_forward.12} parent=5 // pred_region
      // Predicated region
      $region21: #{unet_forward.12} parent=19 // pred_check
        %p103 = pneg %p49
      $region22: #{unet_forward.12} parent=19 // pred_check_branch
        %105 = sbr.rel (%p103) target = $region24
      $region23: #{unet_forward.12} parent=19 // pred_region
        %p106 = scmp.lt.s32.totalorder %s8, 1
        %s107 = scalar_select %p106, %s8, 1
        %s108 = smul.addr %s107, 18
        %s109 = smul.addr %s108, 4
        %s110 = scalar_lea.vmem %s1, %s109
      $region24: #{unet_forward.12} parent=19 // pred_fallthru
        _
    $region20: #{unet_forward.12} parent=5 // pred_fallthru
      _
    %p111 = scmp.le.s32.totalorder 1, %s8
    %p112 = scmp.lt.s32.totalorder %s8, 3
    %p113 = pnand %p111, %p112
    %p114 = pneg %p113
    // Predicated region
    $region25: #{unet_forward.12} parent=5 // pred_check
      _
    $region26: #{unet_forward.12} parent=5 // pred_check_branch
      %116 = sbr.rel (%p113) target = $region28
    $region27: #{unet_forward.12} parent=5 // pred_region
      %s117 = ssub.s32 %s8, 1
      %p118 = pneg %p29
      %p119 = pneg %p26
      %p120 = scmp.lt.s32.totalorder %s13, 1
      %s121 = scalar_select %p120, %s13, 1
      %s122 = smul.addr %s121, 18
      %s123 = smul.addr %s122, 4
      %s124 = scalar_lea.vmem %s1, %s123
      %p125 = pneg %p55
      %p126 = pneg %p52
      %p127 = pneg %p81
      %p128 = pneg %p78
      %p129 = scmp.lt.s32.totalorder %s13, 1
      %s130 = scalar_select %p129, %s13, 1
      %s131 = smul.addr %s130, 2
      %s132 = smul.addr %s131, 4
      %s133 = scalar_lea.vmem %s2, %s132
      %p134 = scmp.lt.s32.totalorder %s13, 1
      %s135 = scalar_select %p134, %s13, 1
      %s136 = smul.addr %s135, 18
      %s137 = smul.addr %s136, 4
      %s138 = scalar_lea.vmem %s1, %s137
      %p139 = scmp.lt.s32.totalorder %s13, 1
      %s140 = scalar_select %p139, %s13, 1
      %s141 = smul.addr %s140, 2
      %s142 = smul.addr %s141, 4
      %s143 = scalar_lea.vmem %s2, %s142
      %v145 = vld [vmem:[%s0] sm:$0xff]
      %v146 = vld [vmem:[%s0 + $0x8] sm:$0xff]
      %v147 = vld [vmem:[%s138] sm:$0xf]
      %v148 = vld [vmem:[%s138 + $0x4] sm:$0xf]
      %v149 = vld [vmem:[%s138 + $0x8] sm:$0xf]
      %v150 = vld [vmem:[%s138 + $0xc] sm:$0xf]
      %v151 = vld [vmem:[%s138 + $0x10] sm:$0xf]
      %v152 = vld [vmem:[%s138 + $0x14] sm:$0xf]
      %v153 = vld [vmem:[%s138 + $0x18] sm:$0xf]
      %v154 = vld [vmem:[%s138 + $0x1c] sm:$0xf]
      %v155 = vld [vmem:[%s138 + $0x20] sm:$0xf]
      %v156 = vld [vmem:[%s138 + $0x24] sm:$0xf]
      %v157 = vld [vmem:[%s138 + $0x28] sm:$0xf]
      %v158 = vld [vmem:[%s138 + $0x2c] sm:$0xf]
      %v159 = vld [vmem:[%s138 + $0x30] sm:$0xf]
      %v160 = vld [vmem:[%s138 + $0x34] sm:$0xf]
      %v161 = vld [vmem:[%s138 + $0x38] sm:$0xf]
      %v162 = vld [vmem:[%s138 + $0x3c] sm:$0xf]
      %v163 = vld [vmem:[%s138 + $0x40] sm:$0xf]
      %v164 = vld [vmem:[%s138 + $0x44] sm:$0xf]
      %v167 = vunpack.c.l.b16 %v145
      %v168 = vunpack.c.h.b16 %v145
      %v169 = vunpack.c.l.b16 %v146
      %v170 = vunpack.c.h.b16 %v146
      %v171 = vpack.c.b16 %v169, %v167
      %v172 = vpack.c.b16 %v170, %v168
      %v192 = vunpack.c.l.b16 %v147
      %v193 = vunpack.c.l.b16 %v148
      %v194 = vunpack.c.l.b16 %v149
      %v195 = vunpack.c.l.b16 %v150
      %v196 = vunpack.c.l.b16 %v151
      %v197 = vunpack.c.l.b16 %v152
      %v198 = vunpack.c.l.b16 %v153
      %v199 = vunpack.c.l.b16 %v154
      %v200 = vunpack.c.l.b16 %v155
      %v201 = vunpack.c.l.b16 %v156
      %v202 = vunpack.c.l.b16 %v157
      %v203 = vunpack.c.l.b16 %v158
      %v204 = vunpack.c.l.b16 %v159
      %v205 = vunpack.c.l.b16 %v160
      %v206 = vunpack.c.l.b16 %v161
      %v207 = vunpack.c.l.b16 %v162
      %v208 = vunpack.c.l.b16 %v163
      %v209 = vunpack.c.l.b16 %v164
      %v210 = vpack.c.b16 %v193, %v192
      %v211 = vpack.c.b16 %v195, %v194
      %v212 = vpack.c.b16 %v197, %v196
      %v213 = vpack.c.b16 %v199, %v198
      %v214 = vpack.c.b16 %v201, %v200
      %v215 = vpack.c.b16 %v203, %v202
      %v216 = vpack.c.b16 %v205, %v204
      %v217 = vpack.c.b16 %v207, %v206
      %v218 = vpack.c.b16 %v209, %v208
      %vm228 = vcmask 130048
      %v230 = vsel %vm228, %v172, 0
      %232 = vmatprep.subr.bf16.mxu0 0
      %233 = vmatpush1.bf16.msra.mxu0 %v210
      %234 = vmatprep.subr.bf16.mxu0 0
      %235 = vmatpush1.bf16.msra.mxu0 %v211
      %236 = vmatprep.subr.bf16.mxu0 0
      %237 = vmatpush1.bf16.msra.mxu0 %v212
      %238 = vmatprep.subr.bf16.mxu0 0
      %239 = vmatpush1.bf16.msra.mxu0 %v213
      %240 = vmatprep.subr.bf16.mxu0 0
      %241 = vmatpush1.bf16.msra.mxu0 %v214
      %242 = vmatprep.subr.bf16.mxu0 0
      %243 = vmatpush1.bf16.msra.mxu0 %v215
      %244 = vmatprep.subr.bf16.mxu0 0
      %245 = vmatpush1.bf16.msra.mxu0 %v216
      %246 = vmatprep.subr.bf16.mxu0 0
      %247 = vmatpush1.bf16.msra.mxu0 %v217
      %248 = vmatprep.subr.bf16.mxu0 0
      %249 = vmatpush1.bf16.msra.mxu0 %v218
      %250 = vmatprep.subr.bf16.mxu0 0
      %251 = vmatpush1.bf16.msra.mxu0 0
      %252 = vmatprep.subr.bf16.mxu0 0
      %253 = vmatpush1.bf16.msra.mxu0 0
      %254 = vmatprep.subr.bf16.mxu0 0
      %255 = vmatpush1.bf16.msra.mxu0 0
      %256 = vmatprep.subr.bf16.mxu0 0
      %257 = vmatpush1.bf16.msra.mxu0 0
      %258 = vmatprep.subr.bf16.mxu0 0
      %259 = vmatpush1.bf16.msra.mxu0 0
      %260 = vmatprep.subr.bf16.mxu0 0
      %261 = vmatpush1.bf16.msra.mxu0 0
      %262 = vmatprep.subr.bf16.mxu0 0
      %263 = vmatpush1.bf16.msra.mxu0 0
      %264 = vmatprep.mubr.bf16.mxu0 %v230
      %265 = vmatmul.mubr.bf16.gmra.mrb[0].mxu0 %v171
      %v266 = vpop.f32.mrb[0].mxu0
      %v267 = vadd.f32 0.0, %v266
      %v268 = vpop.f32.mrb[0].mxu0
      %v269 = vpop.f32.mrb[0].mxu0
      %v270 = vadd.f32 0.0, %v269
      %v271 = vpop.f32.mrb[0].mxu0
      %272 = vdwg.mxu0
      %vm273 = vcmask 523264
      %v274 = vsel %vm273, %v267, 0.0
      %v275 = vsel %vm273, %v270, 0.0
      %v276 = vadd.f32 %v274, %v275
      %277 = vadd.xlane.f32.xlu0 %v276
      %v278 = vpop.xlane.xlu0 %277
      %v279 = vrot.slane %v278, 4
      %v280 = vadd.f32 %v278, %v279
      %v281 = vrot.slane %v280, 2
      %v282 = vadd.f32 %v280, %v281
      %v283 = vrot.slane %v282, 1
      %v284 = vadd.f32 %v282, %v283
      %s285 = vtos %v284
      %v286 = vstv %s285
      %v287 = vrcp.pop 1024.0
      %v288 = vmul.f32 %v286, %v287
      %v289 = vsub.f32 %v267, %v288
      %v290 = vsub.f32 %v270, %v288
      %v291 = vmul.f32 %v289, %v289
      %v292 = vmul.f32 %v290, %v290
      %v293 = vsel %vm273, %v291, 0.0
      %v294 = vsel %vm273, %v292, 0.0
      %v295 = vadd.f32 %v293, %v294
      %296 = vadd.xlane.f32.xlu0 %v295
      %v297 = vpop.xlane.xlu0 %296
      %v298 = vrot.slane %v297, 4
      %v299 = vadd.f32 %v297, %v298
      %v300 = vrot.slane %v299, 2
      %v301 = vadd.f32 %v299, %v300
      %v302 = vrot.slane %v301, 1
      %v303 = vadd.f32 %v301, %v302
      %s304 = vtos %v303
      %v305 = vstv %s304
      %v306 = vrcp.pop 1023.0
      %v307 = vmul.f32 %v305, %v306
      %v308 = vrsqrt.pop %v307
      %v309 = vmul.f32 %v307, %v308
      %vm310 = vcmp.eq.f32.partialorder %v307, inf
      %v311 = vsel %vm310, %v307, %v309
      %vm312 = vcmp.eq.f32.partialorder %v307, 0.0
      %v313 = vand.u32 %v307, 2147483648
      %v314 = vsel %vm312, %v313, %v311
      %v315 = vadd.f32 %v314, 1e-05
      %v316 = vrcp.pop %v315
      %v317 = vmul.f32 %v289, %v316
      %v318 = vmul.f32 %v290, %v316
      %v319 = vpack.c.bf16 %v318, %v317
      %v321 = vunpack.c.l.b16 %v319
      %v322 = vunpack.c.h.b16 %v319
      %v323 = vpack.c.b16 %v321, %v321
      %v324 = vpack.c.b16 %v322, %v322
      %vm327 = vcmask 519168
      %328 = vst.msk [vmem:[%s143] sm:$0xf] %vm327, %v323
      %329 = vst.msk [vmem:[%s143 + $0x4] sm:$0xf] %vm327, %v324
      %p330 = scmp.lt.s32.totalorder %s13, 1
      %s331 = scalar_select %p330, %s13, 1
      %s332 = smul.addr %s331, 2
      %s333 = smul.addr %s332, 4
      %s334 = scalar_lea.vmem %s2, %s333
      // Predicated region
      $region29: #{unet_forward.12} parent=27 // pred_check
        %p335 = pneg %p78
      $region30: #{unet_forward.12} parent=27 // pred_check_branch
        %337 = sbr.rel (%p335) target = $region32
      $region31: #{unet_forward.12} parent=27 // pred_region
        _
      $region32: #{unet_forward.12} parent=27 // pred_fallthru
        _
    $region28: #{unet_forward.12} parent=5 // pred_fallthru
      _
    %p338 = scmp.le.s32.totalorder 2, %s8
    // Predicated region
    $region33: #{unet_forward.12} parent=5 // pred_check
      %p339 = pneg %p338
    $region34: #{unet_forward.12} parent=5 // pred_check_branch
      %341 = sbr.rel (%p339) target = $region36
    $region35: #{unet_forward.12} parent=5 // pred_region
      %s342 = ssub.s32 %s8, 2
      // Predicated region
      $region37: #{unet_forward.12} parent=35 // pred_check
        %p343 = pneg %p84
      $region38: #{unet_forward.12} parent=35 // pred_check_branch
        %345 = sbr.rel (%p343) target = $region40
      $region39: #{unet_forward.12} parent=35 // pred_region
        %p346 = scmp.lt.s32.totalorder %s14, 1
        %s347 = scalar_select %p346, %s14, 1
        %s348 = smul.addr %s347, 2
        %s349 = smul.addr %s348, 4
        %s350 = scalar_lea.vmem %s2, %s349
      $region40: #{unet_forward.12} parent=35 // pred_fallthru
        _
    $region36: #{unet_forward.12} parent=5 // pred_fallthru
      _
  $region6: #{unet_forward.12} parent=0 // loop_footer
    %s12 = sadd.s32 1, %s8
  $region7: #{unet_forward.12} parent=0 // loop_footer_branch
    %7 = sbr.rel target = $region3
  $region8: #{unet_forward.12} parent=0 // loop_exit
    _

// kernel: unet_forward.13
$region0: #{unet_forward.13}
  #allocation0 [shape = 'u32[]', space=smem, size = 0x4, offset = 0x4, fixed_abs, tag = 'smem constant byte address 0x4 - core index']
  #allocation1 [shape = 'u32[144,128]{1,0:T(1,128)}', space=vmem, size = 0x12000, scoped, tag = 'internal scratch']
  %s0 = inlined_call_operand.vmem [shape: bf16[16,144], index: 0, kind: input, shape index: {}]
  %s1 = inlined_call_operand.vmem [shape: bf16[2,144,16], index: 1, kind: input, shape index: {}]
  %s2 = inlined_call_operand.vmem [shape: bf16[2,16,16], index: 2, kind: output, shape index: {}]
  %s3 = sld [smem:[#allocation0]]
  $region41: #{unet_forward.13} parent=0
    _
  %s5 = ssub.s32 1, %s3
  %s6 = scalar_select 0, %s5, %s3
  loop: start=0, step=1, limit=4
  $region2: #{unet_forward.13} parent=0 // loop_pre_header
    _
  $region3: #{unet_forward.13} parent=0 // loop_header
    %s8 = sphi 0, %s12
    %p9 = scmp.ge.s32.totalorder %s8, 4
    %s16 = sphi 0, %s16
    %s18 = sphi 0, %s16
    %s19 = sphi 0, %s18
    %s33 = sphi 0, %s19
    %s39 = sphi 0, %s41
    %s42 = sphi 0, %s39
    %s43 = sphi 0, %s42
    %s59 = sphi 0, %s43
    %s65 = sphi 0, %s67
    %s68 = sphi 0, %s65
    %s69 = sphi 0, %s68
    %s85 = sphi 0, %s69
  $region4: #{unet_forward.13} parent=0 // loop_header_branch
    %11 = sbr.rel (%p9) target = $region8
  $region5: #{unet_forward.13} parent=0 // loop_body
    %s13 = ssub.s32 %s8, 1
    %s14 = ssub.s32 %s8, 2
    %s15 = sadd.s32 %s8, 1
    %s17 = sadd.s32 %s16, 1
    %p20 = scmp.eq.s32.totalorder %s8, 1
    %p21 = scmp.ne.s32.totalorder %s16, %s18
    %p22 = scmp.eq.s32.totalorder %s8, 0
    %p23 = por %p21, %p22
    %p24 = scmp.ne.s32.totalorder %s16, %s18
    %p25 = scmp.eq.s32.totalorder %s13, 1
    %p26 = por %p24, %p25
    %p27 = scmp.ne.s32.totalorder %s18, %s19
    %p28 = scmp.eq.s32.totalorder %s13, 0
    %p29 = por %p27, %p28
    %p30 = scmp.ne.s32.totalorder %s18, %s19
    %p31 = scmp.eq.s32.totalorder %s14, 1
    %p32 = por %p30, %p31
    %p34 = scmp.ne.s32.totalorder %s19, %s33
    %p35 = scmp.eq.s32.totalorder %s14, 0
    %p36 = por %p34, %p35
    %s37 = ssub.s32 %s8, %s15
    %p38 = scmp.eq.s32.totalorder %s37, 0
    %s40 = sadd.s32 %s39, 1
    %s41 = scalar_select %p38, %s39, %s40
    %p44 = pneg %p38
    %p45 = scmp.eq.s32.totalorder %s8, 1
    %p46 = por %p44, %p45
    %p47 = scmp.ne.s32.totalorder %s39, %s42
    %p48 = scmp.eq.s32.totalorder %s8, 0
    %p49 = por %p47, %p48
    %p50 = scmp.ne.s32.totalorder %s39, %s42
    %p51 = scmp.eq.s32.totalorder %s13, 1
    %p52 = por %p50, %p51
    %p53 = scmp.ne.s32.totalorder %s42, %s43
    %p54 = scmp.eq.s32.totalorder %s13, 0
    %p55 = por %p53, %p54
    %p56 = scmp.ne.s32.totalorder %s42, %s43
    %p57 = scmp.eq.s32.totalorder %s14, 1
    %p58 = por %p56, %p57
    %p60 = scmp.ne.s32.totalorder %s43, %s59
    %p61 = scmp.eq.s32.totalorder %s14, 0
    %p62 = por %p60, %p61
    %s63 = ssub.s32 %s8, %s15
    %p64 = scmp.eq.s32.totalorder %s63, 0
    %s66 = sadd.s32 %s65, 1
    %s67 = scalar_select %p64, %s65, %s66
    %p70 = pneg %p64
    %p71 = scmp.eq.s32.totalorder %s8, 1
    %p72 = por %p70, %p71
    %p73 = scmp.ne.s32.totalorder %s65, %s68
    %p74 = scmp.eq.s32.totalorder %s8, 0
    %p75 = por %p73, %p74
    %p76 = scmp.ne.s32.totalorder %s65, %s68
    %p77 = scmp.eq.s32.totalorder %s13, 1
    %p78 = por %p76, %p77
    %p79 = scmp.ne.s32.totalorder %s68, %s69
    %p80 = scmp.eq.s32.totalorder %s13, 0
    %p81 = por %p79, %p80
    %p82 = scmp.ne.s32.totalorder %s68, %s69
    %p83 = scmp.eq.s32.totalorder %s14, 1
    %p84 = por %p82, %p83
    %p86 = scmp.ne.s32.totalorder %s69, %s85
    %p87 = scmp.eq.s32.totalorder %s14, 0
    %p88 = por %p86, %p87
    %p89 = scmp.le.s32.totalorder 1, %s8
    %p90 = scmp.lt.s32.totalorder %s8, 3
    %p91 = pnand %p89, %p90
    %p92 = pneg %p91
    // Predicated region
    $region9: #{unet_forward.13} parent=5 // pred_check
      _
    $region10: #{unet_forward.13} parent=5 // pred_check_branch
      %94 = sbr.rel (%p91) target = $region12
    $region11: #{unet_forward.13} parent=5 // pred_region
      %s95 = ssub.s32 %s8, 1
      // Predicated region
      $region13: #{unet_forward.13} parent=11 // pred_check
        %p96 = pneg %p29
      $region14: #{unet_forward.13} parent=11 // pred_check_branch
        %98 = sbr.rel (%p96) target = $region16
      $region15: #{unet_forward.13} parent=11 // pred_region
        _
      $region16: #{unet_forward.13} parent=11 // pred_fallthru
        _
    $region12: #{unet_forward.13} parent=5 // pred_fallthru
      _
    %p99 = scmp.lt.s32.totalorder %s8, 2
    // Predicated region
    $region17: #{unet_forward.13} parent=5 // pred_check
      %p100 = pneg %p99
    $region18: #{unet_forward.13} parent=5 // pred_check_branch
      %102 = sbr.rel (%p100) target = $region20
    $region19: #{unet_forward.13} parent=5 // pred_region
      // Predicated region
      $region21: #{unet_forward.13} parent=19 // pred_check
        %p103 = pneg %p49
      $region22: #{unet_forward.13} parent=19 // pred_check_branch
        %105 = sbr.rel (%p103) target = $region24
      $region23: #{unet_forward.13} parent=19 // pred_region
        %p106 = scmp.lt.s32.totalorder %s8, 1
        %s107 = scalar_select %p106, %s8, 1
        %s108 = smul.addr %s107, 18
        %s109 = smul.addr %s108, 4
        %s110 = scalar_lea.vmem %s1, %s109
      $region24: #{unet_forward.13} parent=19 // pred_fallthru
        _
    $region20: #{unet_forward.13} parent=5 // pred_fallthru
      _
    %p111 = scmp.le.s32.totalorder 1, %s8
    %p112 = scmp.lt.s32.totalorder %s8, 3
    %p113 = pnand %p111, %p112
    %p114 = pneg %p113
    // Predicated region
    $region25: #{unet_forward.13} parent=5 // pred_check
      _
    $region26: #{unet_forward.13} parent=5 // pred_check_branch
      %116 = sbr.rel (%p113) target = $region28
    $region27: #{unet_forward.13} parent=5 // pred_region
      %s117 = ssub.s32 %s8, 1
      %p118 = pneg %p29
      %p119 = pneg %p26
      %p120 = scmp.lt.s32.totalorder %s13, 1
      %s121 = scalar_select %p120, %s13, 1
      %s122 = smul.addr %s121, 18
      %s123 = smul.addr %s122, 4
      %s124 = scalar_lea.vmem %s1, %s123
      %p125 = pneg %p55
      %p126 = pneg %p52
      %p127 = pneg %p81
      %p128 = pneg %p78
      %p129 = scmp.lt.s32.totalorder %s13, 1
      %s130 = scalar_select %p129, %s13, 1
      %s131 = smul.addr %s130, 2
      %s132 = smul.addr %s131, 4
      %s133 = scalar_lea.vmem %s2, %s132
      %p134 = scmp.lt.s32.totalorder %s13, 1
      %s135 = scalar_select %p134, %s13, 1
      %s136 = smul.addr %s135, 18
      %s137 = smul.addr %s136, 4
      %s138 = scalar_lea.vmem %s1, %s137
      %p139 = scmp.lt.s32.totalorder %s13, 1
      %s140 = scalar_select %p139, %s13, 1
      %s141 = smul.addr %s140, 2
      %s142 = smul.addr %s141, 4
      %s143 = scalar_lea.vmem %s2, %s142
      %v145 = vld [vmem:[%s0] sm:$0xff]
      %v146 = vld [vmem:[%s0 + $0x8] sm:$0xff]
      %v147 = vld [vmem:[%s138] sm:$0xf]
      %v148 = vld [vmem:[%s138 + $0x4] sm:$0xf]
      %v149 = vld [vmem:[%s138 + $0x8] sm:$0xf]
      %v150 = vld [vmem:[%s138 + $0xc] sm:$0xf]
      %v151 = vld [vmem:[%s138 + $0x10] sm:$0xf]
      %v152 = vld [vmem:[%s138 + $0x14] sm:$0xf]
      %v153 = vld [vmem:[%s138 + $0x18] sm:$0xf]
      %v154 = vld [vmem:[%s138 + $0x1c] sm:$0xf]
      %v155 = vld [vmem:[%s138 + $0x20] sm:$0xf]
      %v156 = vld [vmem:[%s138 + $0x24] sm:$0xf]
      %v157 = vld [vmem:[%s138 + $0x28] sm:$0xf]
      %v158 = vld [vmem:[%s138 + $0x2c] sm:$0xf]
      %v159 = vld [vmem:[%s138 + $0x30] sm:$0xf]
      %v160 = vld [vmem:[%s138 + $0x34] sm:$0xf]
      %v161 = vld [vmem:[%s138 + $0x38] sm:$0xf]
      %v162 = vld [vmem:[%s138 + $0x3c] sm:$0xf]
      %v163 = vld [vmem:[%s138 + $0x40] sm:$0xf]
      %v164 = vld [vmem:[%s138 + $0x44] sm:$0xf]
      %v167 = vunpack.c.l.b16 %v145
      %v168 = vunpack.c.h.b16 %v145
      %v169 = vunpack.c.l.b16 %v146
      %v170 = vunpack.c.h.b16 %v146
      %v171 = vpack.c.b16 %v169, %v167
      %v172 = vpack.c.b16 %v170, %v168
      %v192 = vunpack.c.l.b16 %v147
      %v193 = vunpack.c.l.b16 %v148
      %v194 = vunpack.c.l.b16 %v149
      %v195 = vunpack.c.l.b16 %v150
      %v196 = vunpack.c.l.b16 %v151
      %v197 = vunpack.c.l.b16 %v152
      %v198 = vunpack.c.l.b16 %v153
      %v199 = vunpack.c.l.b16 %v154
      %v200 = vunpack.c.l.b16 %v155
      %v201 = vunpack.c.l.b16 %v156
      %v202 = vunpack.c.l.b16 %v157
      %v203 = vunpack.c.l.b16 %v158
      %v204 = vunpack.c.l.b16 %v159
      %v205 = vunpack.c.l.b16 %v160
      %v206 = vunpack.c.l.b16 %v161
      %v207 = vunpack.c.l.b16 %v162
      %v208 = vunpack.c.l.b16 %v163
      %v209 = vunpack.c.l.b16 %v164
      %v210 = vpack.c.b16 %v193, %v192
      %v211 = vpack.c.b16 %v195, %v194
      %v212 = vpack.c.b16 %v197, %v196
      %v213 = vpack.c.b16 %v199, %v198
      %v214 = vpack.c.b16 %v201, %v200
      %v215 = vpack.c.b16 %v203, %v202
      %v216 = vpack.c.b16 %v205, %v204
      %v217 = vpack.c.b16 %v207, %v206
      %v218 = vpack.c.b16 %v209, %v208
      %vm228 = vcmask 130048
      %v230 = vsel %vm228, %v172, 0
      %232 = vmatprep.subr.bf16.mxu0 0
      %233 = vmatpush1.bf16.msra.mxu0 %v210
      %234 = vmatprep.subr.bf16.mxu0 0
      %235 = vmatpush1.bf16.msra.mxu0 %v211
      %236 = vmatprep.subr.bf16.mxu0 0
      %237 = vmatpush1.bf16.msra.mxu0 %v212
      %238 = vmatprep.subr.bf16.mxu0 0
      %239 = vmatpush1.bf16.msra.mxu0 %v213
      %240 = vmatprep.subr.bf16.mxu0 0
      %241 = vmatpush1.bf16.msra.mxu0 %v214
      %242 = vmatprep.subr.bf16.mxu0 0
      %243 = vmatpush1.bf16.msra.mxu0 %v215
      %244 = vmatprep.subr.bf16.mxu0 0
      %245 = vmatpush1.bf16.msra.mxu0 %v216
      %246 = vmatprep.subr.bf16.mxu0 0
      %247 = vmatpush1.bf16.msra.mxu0 %v217
      %248 = vmatprep.subr.bf16.mxu0 0
      %249 = vmatpush1.bf16.msra.mxu0 %v218
      %250 = vmatprep.subr.bf16.mxu0 0
      %251 = vmatpush1.bf16.msra.mxu0 0
      %252 = vmatprep.subr.bf16.mxu0 0
      %253 = vmatpush1.bf16.msra.mxu0 0
      %254 = vmatprep.subr.bf16.mxu0 0
      %255 = vmatpush1.bf16.msra.mxu0 0
      %256 = vmatprep.subr.bf16.mxu0 0
      %257 = vmatpush1.bf16.msra.mxu0 0
      %258 = vmatprep.subr.bf16.mxu0 0
      %259 = vmatpush1.bf16.msra.mxu0 0
      %260 = vmatprep.subr.bf16.mxu0 0
      %261 = vmatpush1.bf16.msra.mxu0 0
      %262 = vmatprep.subr.bf16.mxu0 0
      %263 = vmatpush1.bf16.msra.mxu0 0
      %264 = vmatprep.mubr.bf16.mxu0 %v230
      %265 = vmatmul.mubr.bf16.gmra.mrb[0].mxu0 %v171
      %v266 = vpop.f32.mrb[0].mxu0
      %v267 = vadd.f32 0.0, %v266
      %v268 = vpop.f32.mrb[0].mxu0
      %v269 = vpop.f32.mrb[0].mxu0
      %v270 = vadd.f32 0.0, %v269
      %v271 = vpop.f32.mrb[0].mxu0
      %272 = vdwg.mxu0
      %v273 = vsel %vm228, %v267, 0.0
      %v274 = vsel %vm228, %v270, 0.0
      %v275 = vadd.f32 %v273, %v274
      %276 = vadd.xlane.f32.xlu0 %v275
      %v277 = vpop.xlane.xlu0 %276
      %v278 = vrot.slane %v277, 4
      %v279 = vadd.f32 %v277, %v278
      %v280 = vrot.slane %v279, 2
      %v281 = vadd.f32 %v279, %v280
      %v282 = vrot.slane %v281, 1
      %v283 = vadd.f32 %v281, %v282
      %s284 = vtos %v283
      %v285 = vstv %s284
      %v286 = vrcp.pop 256.0
      %v287 = vmul.f32 %v285, %v286
      %v288 = vsub.f32 %v267, %v287
      %v289 = vsub.f32 %v270, %v287
      %v290 = vmul.f32 %v288, %v288
      %v291 = vmul.f32 %v289, %v289
      %v292 = vsel %vm228, %v290, 0.0
      %v293 = vsel %vm228, %v291, 0.0
      %v294 = vadd.f32 %v292, %v293
      %295 = vadd.xlane.f32.xlu0 %v294
      %v296 = vpop.xlane.xlu0 %295
      %v297 = vrot.slane %v296, 4
      %v298 = vadd.f32 %v296, %v297
      %v299 = vrot.slane %v298, 2
      %v300 = vadd.f32 %v298, %v299
      %v301 = vrot.slane %v300, 1
      %v302 = vadd.f32 %v300, %v301
      %s303 = vtos %v302
      %v304 = vstv %s303
      %v305 = vrcp.pop 255.0
      %v306 = vmul.f32 %v304, %v305
      %v307 = vrsqrt.pop %v306
      %v308 = vmul.f32 %v306, %v307
      %vm309 = vcmp.eq.f32.partialorder %v306, inf
      %v310 = vsel %vm309, %v306, %v308
      %vm311 = vcmp.eq.f32.partialorder %v306, 0.0
      %v312 = vand.u32 %v306, 2147483648
      %v313 = vsel %vm311, %v312, %v310
      %v314 = vadd.f32 %v313, 1e-05
      %v315 = vrcp.pop %v314
      %v316 = vmul.f32 %v288, %v315
      %v317 = vmul.f32 %v289, %v315
      %v318 = vpack.c.bf16 %v317, %v316
      %v320 = vunpack.c.l.b16 %v318
      %v321 = vunpack.c.h.b16 %v318
      %v322 = vpack.c.b16 %v320, %v320
      %v323 = vpack.c.b16 %v321, %v321
      %vm326 = vcmask 125952
      %327 = vst.msk [vmem:[%s143] sm:$0xf] %vm326, %v322
      %328 = vst.msk [vmem:[%s143 + $0x4] sm:$0xf] %vm326, %v323
      %p329 = scmp.lt.s32.totalorder %s13, 1
      %s330 = scalar_select %p329, %s13, 1
      %s331 = smul.addr %s330, 2
      %s332 = smul.addr %s331, 4
      %s333 = scalar_lea.vmem %s2, %s332
      // Predicated region
      $region29: #{unet_forward.13} parent=27 // pred_check
        %p334 = pneg %p78
      $region30: #{unet_forward.13} parent=27 // pred_check_branch
        %336 = sbr.rel (%p334) target = $region32
      $region31: #{unet_forward.13} parent=27 // pred_region
        _
      $region32: #{unet_forward.13} parent=27 // pred_fallthru
        _
    $region28: #{unet_forward.13} parent=5 // pred_fallthru
      _
    %p337 = scmp.le.s32.totalorder 2, %s8
    // Predicated region
    $region33: #{unet_forward.13} parent=5 // pred_check
      %p338 = pneg %p337
    $region34: #{unet_forward.13} parent=5 // pred_check_branch
      %340 = sbr.rel (%p338) target = $region36
    $region35: #{unet_forward.13} parent=5 // pred_region
      %s341 = ssub.s32 %s8, 2
      // Predicated region
      $region37: #{unet_forward.13} parent=35 // pred_check
        %p342 = pneg %p84
      $region38: #{unet_forward.13} parent=35 // pred_check_branch
        %344 = sbr.rel (%p342) target = $region40
      $region39: #{unet_forward.13} parent=35 // pred_region
        %p345 = scmp.lt.s32.totalorder %s14, 1
        %s346 = scalar_select %p345, %s14, 1
        %s347 = smul.addr %s346, 2
        %s348 = smul.addr %s347, 4
        %s349 = scalar_lea.vmem %s2, %s348
      $region40: #{unet_forward.13} parent=35 // pred_fallthru
        _
    $region36: #{unet_forward.13} parent=5 // pred_fallthru
      _
  $region6: #{unet_forward.13} parent=0 // loop_footer
    %s12 = sadd.s32 1, %s8
  $region7: #{unet_forward.13} parent=0 // loop_footer_branch
    %7 = sbr.rel target = $region3
  $region8: #{unet_forward.13} parent=0 // loop_exit
    _

// kernel: unet_forward.14
$region0: #{unet_forward.14}
  #allocation0 [shape = 'u32[]', space=smem, size = 0x4, offset = 0x4, fixed_abs, tag = 'smem constant byte address 0x4 - core index']
  #allocation1 [shape = 'u32[144,128]{1,0:T(1,128)}', space=vmem, size = 0x12000, scoped, tag = 'internal scratch']
  %s0 = inlined_call_operand.vmem [shape: bf16[16,144], index: 0, kind: input, shape index: {}]
  %s1 = inlined_call_operand.vmem [shape: bf16[2,144,4], index: 1, kind: input, shape index: {}]
  %s2 = inlined_call_operand.vmem [shape: bf16[2,16,4], index: 2, kind: output, shape index: {}]
  %s3 = sld [smem:[#allocation0]]
  $region41: #{unet_forward.14} parent=0
    _
  %s5 = ssub.s32 1, %s3
  %s6 = scalar_select 0, %s5, %s3
  loop: start=0, step=1, limit=4
  $region2: #{unet_forward.14} parent=0 // loop_pre_header
    _
  $region3: #{unet_forward.14} parent=0 // loop_header
    %s8 = sphi 0, %s12
    %p9 = scmp.ge.s32.totalorder %s8, 4
    %s16 = sphi 0, %s16
    %s18 = sphi 0, %s16
    %s19 = sphi 0, %s18
    %s33 = sphi 0, %s19
    %s39 = sphi 0, %s41
    %s42 = sphi 0, %s39
    %s43 = sphi 0, %s42
    %s59 = sphi 0, %s43
    %s65 = sphi 0, %s67
    %s68 = sphi 0, %s65
    %s69 = sphi 0, %s68
    %s85 = sphi 0, %s69
  $region4: #{unet_forward.14} parent=0 // loop_header_branch
    %11 = sbr.rel (%p9) target = $region8
  $region5: #{unet_forward.14} parent=0 // loop_body
    %s13 = ssub.s32 %s8, 1
    %s14 = ssub.s32 %s8, 2
    %s15 = sadd.s32 %s8, 1
    %s17 = sadd.s32 %s16, 1
    %p20 = scmp.eq.s32.totalorder %s8, 1
    %p21 = scmp.ne.s32.totalorder %s16, %s18
    %p22 = scmp.eq.s32.totalorder %s8, 0
    %p23 = por %p21, %p22
    %p24 = scmp.ne.s32.totalorder %s16, %s18
    %p25 = scmp.eq.s32.totalorder %s13, 1
    %p26 = por %p24, %p25
    %p27 = scmp.ne.s32.totalorder %s18, %s19
    %p28 = scmp.eq.s32.totalorder %s13, 0
    %p29 = por %p27, %p28
    %p30 = scmp.ne.s32.totalorder %s18, %s19
    %p31 = scmp.eq.s32.totalorder %s14, 1
    %p32 = por %p30, %p31
    %p34 = scmp.ne.s32.totalorder %s19, %s33
    %p35 = scmp.eq.s32.totalorder %s14, 0
    %p36 = por %p34, %p35
    %s37 = ssub.s32 %s8, %s15
    %p38 = scmp.eq.s32.totalorder %s37, 0
    %s40 = sadd.s32 %s39, 1
    %s41 = scalar_select %p38, %s39, %s40
    %p44 = pneg %p38
    %p45 = scmp.eq.s32.totalorder %s8, 1
    %p46 = por %p44, %p45
    %p47 = scmp.ne.s32.totalorder %s39, %s42
    %p48 = scmp.eq.s32.totalorder %s8, 0
    %p49 = por %p47, %p48
    %p50 = scmp.ne.s32.totalorder %s39, %s42
    %p51 = scmp.eq.s32.totalorder %s13, 1
    %p52 = por %p50, %p51
    %p53 = scmp.ne.s32.totalorder %s42, %s43
    %p54 = scmp.eq.s32.totalorder %s13, 0
    %p55 = por %p53, %p54
    %p56 = scmp.ne.s32.totalorder %s42, %s43
    %p57 = scmp.eq.s32.totalorder %s14, 1
    %p58 = por %p56, %p57
    %p60 = scmp.ne.s32.totalorder %s43, %s59
    %p61 = scmp.eq.s32.totalorder %s14, 0
    %p62 = por %p60, %p61
    %s63 = ssub.s32 %s8, %s15
    %p64 = scmp.eq.s32.totalorder %s63, 0
    %s66 = sadd.s32 %s65, 1
    %s67 = scalar_select %p64, %s65, %s66
    %p70 = pneg %p64
    %p71 = scmp.eq.s32.totalorder %s8, 1
    %p72 = por %p70, %p71
    %p73 = scmp.ne.s32.totalorder %s65, %s68
    %p74 = scmp.eq.s32.totalorder %s8, 0
    %p75 = por %p73, %p74
    %p76 = scmp.ne.s32.totalorder %s65, %s68
    %p77 = scmp.eq.s32.totalorder %s13, 1
    %p78 = por %p76, %p77
    %p79 = scmp.ne.s32.totalorder %s68, %s69
    %p80 = scmp.eq.s32.totalorder %s13, 0
    %p81 = por %p79, %p80
    %p82 = scmp.ne.s32.totalorder %s68, %s69
    %p83 = scmp.eq.s32.totalorder %s14, 1
    %p84 = por %p82, %p83
    %p86 = scmp.ne.s32.totalorder %s69, %s85
    %p87 = scmp.eq.s32.totalorder %s14, 0
    %p88 = por %p86, %p87
    %p89 = scmp.le.s32.totalorder 1, %s8
    %p90 = scmp.lt.s32.totalorder %s8, 3
    %p91 = pnand %p89, %p90
    %p92 = pneg %p91
    // Predicated region
    $region9: #{unet_forward.14} parent=5 // pred_check
      _
    $region10: #{unet_forward.14} parent=5 // pred_check_branch
      %94 = sbr.rel (%p91) target = $region12
    $region11: #{unet_forward.14} parent=5 // pred_region
      %s95 = ssub.s32 %s8, 1
      // Predicated region
      $region13: #{unet_forward.14} parent=11 // pred_check
        %p96 = pneg %p29
      $region14: #{unet_forward.14} parent=11 // pred_check_branch
        %98 = sbr.rel (%p96) target = $region16
      $region15: #{unet_forward.14} parent=11 // pred_region
        _
      $region16: #{unet_forward.14} parent=11 // pred_fallthru
        _
    $region12: #{unet_forward.14} parent=5 // pred_fallthru
      _
    %p99 = scmp.lt.s32.totalorder %s8, 2
    // Predicated region
    $region17: #{unet_forward.14} parent=5 // pred_check
      %p100 = pneg %p99
    $region18: #{unet_forward.14} parent=5 // pred_check_branch
      %102 = sbr.rel (%p100) target = $region20
    $region19: #{unet_forward.14} parent=5 // pred_region
      // Predicated region
      $region21: #{unet_forward.14} parent=19 // pred_check
        %p103 = pneg %p49
      $region22: #{unet_forward.14} parent=19 // pred_check_branch
        %105 = sbr.rel (%p103) target = $region24
      $region23: #{unet_forward.14} parent=19 // pred_region
        %p106 = scmp.lt.s32.totalorder %s8, 1
        %s107 = scalar_select %p106, %s8, 1
        %s108 = smul.addr %s107, 18
        %s109 = smul.addr %s108, 4
        %s110 = scalar_lea.vmem %s1, %s109
      $region24: #{unet_forward.14} parent=19 // pred_fallthru
        _
    $region20: #{unet_forward.14} parent=5 // pred_fallthru
      _
    %p111 = scmp.le.s32.totalorder 1, %s8
    %p112 = scmp.lt.s32.totalorder %s8, 3
    %p113 = pnand %p111, %p112
    %p114 = pneg %p113
    // Predicated region
    $region25: #{unet_forward.14} parent=5 // pred_check
      _
    $region26: #{unet_forward.14} parent=5 // pred_check_branch
      %116 = sbr.rel (%p113) target = $region28
    $region27: #{unet_forward.14} parent=5 // pred_region
      %s117 = ssub.s32 %s8, 1
      %p118 = pneg %p29
      %p119 = pneg %p26
      %p120 = scmp.lt.s32.totalorder %s13, 1
      %s121 = scalar_select %p120, %s13, 1
      %s122 = smul.addr %s121, 18
      %s123 = smul.addr %s122, 4
      %s124 = scalar_lea.vmem %s1, %s123
      %p125 = pneg %p55
      %p126 = pneg %p52
      %p127 = pneg %p81
      %p128 = pneg %p78
      %p129 = scmp.lt.s32.totalorder %s13, 1
      %s130 = scalar_select %p129, %s13, 1
      %s131 = smul.addr %s130, 2
      %s132 = smul.addr %s131, 4
      %s133 = scalar_lea.vmem %s2, %s132
      %p134 = scmp.lt.s32.totalorder %s13, 1
      %s135 = scalar_select %p134, %s13, 1
      %s136 = smul.addr %s135, 18
      %s137 = smul.addr %s136, 4
      %s138 = scalar_lea.vmem %s1, %s137
      %p139 = scmp.lt.s32.totalorder %s13, 1
      %s140 = scalar_select %p139, %s13, 1
      %s141 = smul.addr %s140, 2
      %s142 = smul.addr %s141, 4
      %s143 = scalar_lea.vmem %s2, %s142
      %v145 = vld [vmem:[%s0] sm:$0xff]
      %v146 = vld [vmem:[%s0 + $0x8] sm:$0xff]
      %v147 = vld [vmem:[%s138] sm:$0xf]
      %v148 = vld [vmem:[%s138 + $0x4] sm:$0xf]
      %v149 = vld [vmem:[%s138 + $0x8] sm:$0xf]
      %v150 = vld [vmem:[%s138 + $0xc] sm:$0xf]
      %v151 = vld [vmem:[%s138 + $0x10] sm:$0xf]
      %v152 = vld [vmem:[%s138 + $0x14] sm:$0xf]
      %v153 = vld [vmem:[%s138 + $0x18] sm:$0xf]
      %v154 = vld [vmem:[%s138 + $0x1c] sm:$0xf]
      %v155 = vld [vmem:[%s138 + $0x20] sm:$0xf]
      %v156 = vld [vmem:[%s138 + $0x24] sm:$0xf]
      %v157 = vld [vmem:[%s138 + $0x28] sm:$0xf]
      %v158 = vld [vmem:[%s138 + $0x2c] sm:$0xf]
      %v159 = vld [vmem:[%s138 + $0x30] sm:$0xf]
      %v160 = vld [vmem:[%s138 + $0x34] sm:$0xf]
      %v161 = vld [vmem:[%s138 + $0x38] sm:$0xf]
      %v162 = vld [vmem:[%s138 + $0x3c] sm:$0xf]
      %v163 = vld [vmem:[%s138 + $0x40] sm:$0xf]
      %v164 = vld [vmem:[%s138 + $0x44] sm:$0xf]
      %v167 = vunpack.c.l.b16 %v145
      %v168 = vunpack.c.h.b16 %v145
      %v169 = vunpack.c.l.b16 %v146
      %v170 = vunpack.c.h.b16 %v146
      %v171 = vpack.c.b16 %v169, %v167
      %v172 = vpack.c.b16 %v170, %v168
      %v192 = vunpack.c.l.b16 %v147
      %v193 = vunpack.c.l.b16 %v148
      %v194 = vunpack.c.l.b16 %v149
      %v195 = vunpack.c.l.b16 %v150
      %v196 = vunpack.c.l.b16 %v151
      %v197 = vunpack.c.l.b16 %v152
      %v198 = vunpack.c.l.b16 %v153
      %v199 = vunpack.c.l.b16 %v154
      %v200 = vunpack.c.l.b16 %v155
      %v201 = vunpack.c.l.b16 %v156
      %v202 = vunpack.c.l.b16 %v157
      %v203 = vunpack.c.l.b16 %v158
      %v204 = vunpack.c.l.b16 %v159
      %v205 = vunpack.c.l.b16 %v160
      %v206 = vunpack.c.l.b16 %v161
      %v207 = vunpack.c.l.b16 %v162
      %v208 = vunpack.c.l.b16 %v163
      %v209 = vunpack.c.l.b16 %v164
      %v210 = vpack.c.b16 %v193, %v192
      %v211 = vpack.c.b16 %v195, %v194
      %v212 = vpack.c.b16 %v197, %v196
      %v213 = vpack.c.b16 %v199, %v198
      %v214 = vpack.c.b16 %v201, %v200
      %v215 = vpack.c.b16 %v203, %v202
      %v216 = vpack.c.b16 %v205, %v204
      %v217 = vpack.c.b16 %v207, %v206
      %v218 = vpack.c.b16 %v209, %v208
      %vm228 = vcmask 130048
      %v230 = vsel %vm228, %v172, 0
      %232 = vmatprep.subr.bf16.mxu0 0
      %233 = vmatpush1.bf16.msra.mxu0 %v210
      %234 = vmatprep.subr.bf16.mxu0 0
      %235 = vmatpush1.bf16.msra.mxu0 %v211
      %236 = vmatprep.subr.bf16.mxu0 0
      %237 = vmatpush1.bf16.msra.mxu0 %v212
      %238 = vmatprep.subr.bf16.mxu0 0
      %239 = vmatpush1.bf16.msra.mxu0 %v213
      %240 = vmatprep.subr.bf16.mxu0 0
      %241 = vmatpush1.bf16.msra.mxu0 %v214
      %242 = vmatprep.subr.bf16.mxu0 0
      %243 = vmatpush1.bf16.msra.mxu0 %v215
      %244 = vmatprep.subr.bf16.mxu0 0
      %245 = vmatpush1.bf16.msra.mxu0 %v216
      %246 = vmatprep.subr.bf16.mxu0 0
      %247 = vmatpush1.bf16.msra.mxu0 %v217
      %248 = vmatprep.subr.bf16.mxu0 0
      %249 = vmatpush1.bf16.msra.mxu0 %v218
      %250 = vmatprep.subr.bf16.mxu0 0
      %251 = vmatpush1.bf16.msra.mxu0 0
      %252 = vmatprep.subr.bf16.mxu0 0
      %253 = vmatpush1.bf16.msra.mxu0 0
      %254 = vmatprep.subr.bf16.mxu0 0
      %255 = vmatpush1.bf16.msra.mxu0 0
      %256 = vmatprep.subr.bf16.mxu0 0
      %257 = vmatpush1.bf16.msra.mxu0 0
      %258 = vmatprep.subr.bf16.mxu0 0
      %259 = vmatpush1.bf16.msra.mxu0 0
      %260 = vmatprep.subr.bf16.mxu0 0
      %261 = vmatpush1.bf16.msra.mxu0 0
      %262 = vmatprep.subr.bf16.mxu0 0
      %263 = vmatpush1.bf16.msra.mxu0 0
      %264 = vmatprep.mubr.bf16.mxu0 %v230
      %265 = vmatmul.mubr.bf16.gmra.mrb[0].mxu0 %v171
      %v266 = vpop.f32.mrb[0].mxu0
      %v267 = vadd.f32 0.0, %v266
      %v268 = vpop.f32.mrb[0].mxu0
      %v269 = vpop.f32.mrb[0].mxu0
      %v270 = vadd.f32 0.0, %v269
      %v271 = vpop.f32.mrb[0].mxu0
      %272 = vdwg.mxu0
      %vm273 = vcmask 31744
      %v274 = vsel %vm273, %v267, 0.0
      %v275 = vsel %vm273, %v270, 0.0
      %v276 = vadd.f32 %v274, %v275
      %277 = vadd.xlane.f32.xlu0 %v276
      %v278 = vpop.xlane.xlu0 %277
      %v279 = vrot.slane %v278, 4
      %v280 = vadd.f32 %v278, %v279
      %v281 = vrot.slane %v280, 2
      %v282 = vadd.f32 %v280, %v281
      %v283 = vrot.slane %v282, 1
      %v284 = vadd.f32 %v282, %v283
      %s285 = vtos %v284
      %v286 = vstv %s285
      %v287 = vrcp.pop 64.0
      %v288 = vmul.f32 %v286, %v287
      %v289 = vsub.f32 %v267, %v288
      %v290 = vsub.f32 %v270, %v288
      %v291 = vmul.f32 %v289, %v289
      %v292 = vmul.f32 %v290, %v290
      %v293 = vsel %vm273, %v291, 0.0
      %v294 = vsel %vm273, %v292, 0.0
      %v295 = vadd.f32 %v293, %v294
      %296 = vadd.xlane.f32.xlu0 %v295
      %v297 = vpop.xlane.xlu0 %296
      %v298 = vrot.slane %v297, 4
      %v299 = vadd.f32 %v297, %v298
      %v300 = vrot.slane %v299, 2
      %v301 = vadd.f32 %v299, %v300
      %v302 = vrot.slane %v301, 1
      %v303 = vadd.f32 %v301, %v302
      %s304 = vtos %v303
      %v305 = vstv %s304
      %v306 = vrcp.pop 63.0
      %v307 = vmul.f32 %v305, %v306
      %v308 = vrsqrt.pop %v307
      %v309 = vmul.f32 %v307, %v308
      %vm310 = vcmp.eq.f32.partialorder %v307, inf
      %v311 = vsel %vm310, %v307, %v309
      %vm312 = vcmp.eq.f32.partialorder %v307, 0.0
      %v313 = vand.u32 %v307, 2147483648
      %v314 = vsel %vm312, %v313, %v311
      %v315 = vadd.f32 %v314, 1e-05
      %v316 = vrcp.pop %v315
      %v317 = vmul.f32 %v289, %v316
      %v318 = vmul.f32 %v290, %v316
      %v319 = vpack.c.bf16 %v318, %v317
      %v321 = vunpack.c.l.b16 %v319
      %v322 = vunpack.c.h.b16 %v319
      %v323 = vpack.c.b16 %v321, %v321
      %v324 = vpack.c.b16 %v322, %v322
      %vm327 = vcmask 27648
      %328 = vst.msk [vmem:[%s143] sm:$0xf] %vm327, %v323
      %329 = vst.msk [vmem:[%s143 + $0x4] sm:$0xf] %vm327, %v324
      %p330 = scmp.lt.s32.totalorder %s13, 1
      %s331 = scalar_select %p330, %s13, 1
      %s332 = smul.addr %s331, 2
      %s333 = smul.addr %s332, 4
      %s334 = scalar_lea.vmem %s2, %s333
      // Predicated region
      $region29: #{unet_forward.14} parent=27 // pred_check
        %p335 = pneg %p78
      $region30: #{unet_forward.14} parent=27 // pred_check_branch
        %337 = sbr.rel (%p335) target = $region32
      $region31: #{unet_forward.14} parent=27 // pred_region
        _
      $region32: #{unet_forward.14} parent=27 // pred_fallthru
        _
    $region28: #{unet_forward.14} parent=5 // pred_fallthru
      _
    %p338 = scmp.le.s32.totalorder 2, %s8
    // Predicated region
    $region33: #{unet_forward.14} parent=5 // pred_check
      %p339 = pneg %p338
    $region34: #{unet_forward.14} parent=5 // pred_check_branch
      %341 = sbr.rel (%p339) target = $region36
    $region35: #{unet_forward.14} parent=5 // pred_region
      %s342 = ssub.s32 %s8, 2
      // Predicated region
      $region37: #{unet_forward.14} parent=35 // pred_check
        %p343 = pneg %p84
      $region38: #{unet_forward.14} parent=35 // pred_check_branch
        %345 = sbr.rel (%p343) target = $region40
      $region39: #{unet_forward.14} parent=35 // pred_region
        %p346 = scmp.lt.s32.totalorder %s14, 1
        %s347 = scalar_select %p346, %s14, 1
        %s348 = smul.addr %s347, 2
        %s349 = smul.addr %s348, 4
        %s350 = scalar_lea.vmem %s2, %s349
      $region40: #{unet_forward.14} parent=35 // pred_fallthru
        _
    $region36: #{unet_forward.14} parent=5 // pred_fallthru
      _
  $region6: #{unet_forward.14} parent=0 // loop_footer
    %s12 = sadd.s32 1, %s8
  $region7: #{unet_forward.14} parent=0 // loop_footer_branch
    %7 = sbr.rel target = $region3
  $region8: #{unet_forward.14} parent=0 // loop_exit
    _

// kernel: unet_forward.15
$region0: #{unet_forward.15}
  #allocation0 [shape = 'u32[]', space=smem, size = 0x4, offset = 0x4, fixed_abs, tag = 'smem constant byte address 0x4 - core index']
  #allocation1 [shape = 'u32[144,128]{1,0:T(1,128)}', space=vmem, size = 0x12000, scoped, tag = 'internal scratch']
  %s0 = inlined_call_operand.vmem [shape: bf16[16,144], index: 0, kind: input, shape index: {}]
  %s1 = inlined_call_operand.vmem [shape: bf16[2,144,1], index: 1, kind: input, shape index: {}]
  %s2 = inlined_call_operand.vmem [shape: bf16[2,16,1], index: 2, kind: output, shape index: {}]
  %s3 = sld [smem:[#allocation0]]
  $region41: #{unet_forward.15} parent=0
    _
  %s5 = ssub.s32 1, %s3
  %s6 = scalar_select 0, %s5, %s3
  loop: start=0, step=1, limit=4
  $region2: #{unet_forward.15} parent=0 // loop_pre_header
    _
  $region3: #{unet_forward.15} parent=0 // loop_header
    %s8 = sphi 0, %s12
    %p9 = scmp.ge.s32.totalorder %s8, 4
    %s16 = sphi 0, %s16
    %s18 = sphi 0, %s16
    %s19 = sphi 0, %s18
    %s33 = sphi 0, %s19
    %s39 = sphi 0, %s41
    %s42 = sphi 0, %s39
    %s43 = sphi 0, %s42
    %s59 = sphi 0, %s43
    %s65 = sphi 0, %s67
    %s68 = sphi 0, %s65
    %s69 = sphi 0, %s68
    %s85 = sphi 0, %s69
  $region4: #{unet_forward.15} parent=0 // loop_header_branch
    %11 = sbr.rel (%p9) target = $region8
  $region5: #{unet_forward.15} parent=0 // loop_body
    %s13 = ssub.s32 %s8, 1
    %s14 = ssub.s32 %s8, 2
    %s15 = sadd.s32 %s8, 1
    %s17 = sadd.s32 %s16, 1
    %p20 = scmp.eq.s32.totalorder %s8, 1
    %p21 = scmp.ne.s32.totalorder %s16, %s18
    %p22 = scmp.eq.s32.totalorder %s8, 0
    %p23 = por %p21, %p22
    %p24 = scmp.ne.s32.totalorder %s16, %s18
    %p25 = scmp.eq.s32.totalorder %s13, 1
    %p26 = por %p24, %p25
    %p27 = scmp.ne.s32.totalorder %s18, %s19
    %p28 = scmp.eq.s32.totalorder %s13, 0
    %p29 = por %p27, %p28
    %p30 = scmp.ne.s32.totalorder %s18, %s19
    %p31 = scmp.eq.s32.totalorder %s14, 1
    %p32 = por %p30, %p31
    %p34 = scmp.ne.s32.totalorder %s19, %s33
    %p35 = scmp.eq.s32.totalorder %s14, 0
    %p36 = por %p34, %p35
    %s37 = ssub.s32 %s8, %s15
    %p38 = scmp.eq.s32.totalorder %s37, 0
    %s40 = sadd.s32 %s39, 1
    %s41 = scalar_select %p38, %s39, %s40
    %p44 = pneg %p38
    %p45 = scmp.eq.s32.totalorder %s8, 1
    %p46 = por %p44, %p45
    %p47 = scmp.ne.s32.totalorder %s39, %s42
    %p48 = scmp.eq.s32.totalorder %s8, 0
    %p49 = por %p47, %p48
    %p50 = scmp.ne.s32.totalorder %s39, %s42
    %p51 = scmp.eq.s32.totalorder %s13, 1
    %p52 = por %p50, %p51
    %p53 = scmp.ne.s32.totalorder %s42, %s43
    %p54 = scmp.eq.s32.totalorder %s13, 0
    %p55 = por %p53, %p54
    %p56 = scmp.ne.s32.totalorder %s42, %s43
    %p57 = scmp.eq.s32.totalorder %s14, 1
    %p58 = por %p56, %p57
    %p60 = scmp.ne.s32.totalorder %s43, %s59
    %p61 = scmp.eq.s32.totalorder %s14, 0
    %p62 = por %p60, %p61
    %s63 = ssub.s32 %s8, %s15
    %p64 = scmp.eq.s32.totalorder %s63, 0
    %s66 = sadd.s32 %s65, 1
    %s67 = scalar_select %p64, %s65, %s66
    %p70 = pneg %p64
    %p71 = scmp.eq.s32.totalorder %s8, 1
    %p72 = por %p70, %p71
    %p73 = scmp.ne.s32.totalorder %s65, %s68
    %p74 = scmp.eq.s32.totalorder %s8, 0
    %p75 = por %p73, %p74
    %p76 = scmp.ne.s32.totalorder %s65, %s68
    %p77 = scmp.eq.s32.totalorder %s13, 1
    %p78 = por %p76, %p77
    %p79 = scmp.ne.s32.totalorder %s68, %s69
    %p80 = scmp.eq.s32.totalorder %s13, 0
    %p81 = por %p79, %p80
    %p82 = scmp.ne.s32.totalorder %s68, %s69
    %p83 = scmp.eq.s32.totalorder %s14, 1
    %p84 = por %p82, %p83
    %p86 = scmp.ne.s32.totalorder %s69, %s85
    %p87 = scmp.eq.s32.totalorder %s14, 0
    %p88 = por %p86, %p87
    %p89 = scmp.le.s32.totalorder 1, %s8
    %p90 = scmp.lt.s32.totalorder %s8, 3
    %p91 = pnand %p89, %p90
    %p92 = pneg %p91
    // Predicated region
    $region9: #{unet_forward.15} parent=5 // pred_check
      _
    $region10: #{unet_forward.15} parent=5 // pred_check_branch
      %94 = sbr.rel (%p91) target = $region12
    $region11: #{unet_forward.15} parent=5 // pred_region
      %s95 = ssub.s32 %s8, 1
      // Predicated region
      $region13: #{unet_forward.15} parent=11 // pred_check
        %p96 = pneg %p29
      $region14: #{unet_forward.15} parent=11 // pred_check_branch
        %98 = sbr.rel (%p96) target = $region16
      $region15: #{unet_forward.15} parent=11 // pred_region
        _
      $region16: #{unet_forward.15} parent=11 // pred_fallthru
        _
    $region12: #{unet_forward.15} parent=5 // pred_fallthru
      _
    %p99 = scmp.lt.s32.totalorder %s8, 2
    // Predicated region
    $region17: #{unet_forward.15} parent=5 // pred_check
      %p100 = pneg %p99
    $region18: #{unet_forward.15} parent=5 // pred_check_branch
      %102 = sbr.rel (%p100) target = $region20
    $region19: #{unet_forward.15} parent=5 // pred_region
      // Predicated region
      $region21: #{unet_forward.15} parent=19 // pred_check
        %p103 = pneg %p49
      $region22: #{unet_forward.15} parent=19 // pred_check_branch
        %105 = sbr.rel (%p103) target = $region24
      $region23: #{unet_forward.15} parent=19 // pred_region
        %p106 = scmp.lt.s32.totalorder %s8, 1
        %s107 = scalar_select %p106, %s8, 1
        %s108 = smul.addr %s107, 18
        %s109 = smul.addr %s108, 4
        %s110 = scalar_lea.vmem %s1, %s109
      $region24: #{unet_forward.15} parent=19 // pred_fallthru
        _
    $region20: #{unet_forward.15} parent=5 // pred_fallthru
      _
    %p111 = scmp.le.s32.totalorder 1, %s8
    %p112 = scmp.lt.s32.totalorder %s8, 3
    %p113 = pnand %p111, %p112
    %p114 = pneg %p113
    // Predicated region
    $region25: #{unet_forward.15} parent=5 // pred_check
      _
    $region26: #{unet_forward.15} parent=5 // pred_check_branch
      %116 = sbr.rel (%p113) target = $region28
    $region27: #{unet_forward.15} parent=5 // pred_region
      %s117 = ssub.s32 %s8, 1
      %p118 = pneg %p29
      %p119 = pneg %p26
      %p120 = scmp.lt.s32.totalorder %s13, 1
      %s121 = scalar_select %p120, %s13, 1
      %s122 = smul.addr %s121, 18
      %s123 = smul.addr %s122, 4
      %s124 = scalar_lea.vmem %s1, %s123
      %p125 = pneg %p55
      %p126 = pneg %p52
      %p127 = pneg %p81
      %p128 = pneg %p78
      %p129 = scmp.lt.s32.totalorder %s13, 1
      %s130 = scalar_select %p129, %s13, 1
      %s131 = smul.addr %s130, 2
      %s132 = smul.addr %s131, 4
      %s133 = scalar_lea.vmem %s2, %s132
      %p134 = scmp.lt.s32.totalorder %s13, 1
      %s135 = scalar_select %p134, %s13, 1
      %s136 = smul.addr %s135, 18
      %s137 = smul.addr %s136, 4
      %s138 = scalar_lea.vmem %s1, %s137
      %p139 = scmp.lt.s32.totalorder %s13, 1
      %s140 = scalar_select %p139, %s13, 1
      %s141 = smul.addr %s140, 2
      %s142 = smul.addr %s141, 4
      %s143 = scalar_lea.vmem %s2, %s142
      %v145 = vld [vmem:[%s0] sm:$0xff]
      %v146 = vld [vmem:[%s0 + $0x8] sm:$0xff]
      %v147 = vld [vmem:[%s138] sm:$0xf]
      %v148 = vld [vmem:[%s138 + $0x4] sm:$0xf]
      %v149 = vld [vmem:[%s138 + $0x8] sm:$0xf]
      %v150 = vld [vmem:[%s138 + $0xc] sm:$0xf]
      %v151 = vld [vmem:[%s138 + $0x10] sm:$0xf]
      %v152 = vld [vmem:[%s138 + $0x14] sm:$0xf]
      %v153 = vld [vmem:[%s138 + $0x18] sm:$0xf]
      %v154 = vld [vmem:[%s138 + $0x1c] sm:$0xf]
      %v155 = vld [vmem:[%s138 + $0x20] sm:$0xf]
      %v156 = vld [vmem:[%s138 + $0x24] sm:$0xf]
      %v157 = vld [vmem:[%s138 + $0x28] sm:$0xf]
      %v158 = vld [vmem:[%s138 + $0x2c] sm:$0xf]
      %v159 = vld [vmem:[%s138 + $0x30] sm:$0xf]
      %v160 = vld [vmem:[%s138 + $0x34] sm:$0xf]
      %v161 = vld [vmem:[%s138 + $0x38] sm:$0xf]
      %v162 = vld [vmem:[%s138 + $0x3c] sm:$0xf]
      %v163 = vld [vmem:[%s138 + $0x40] sm:$0xf]
      %v164 = vld [vmem:[%s138 + $0x44] sm:$0xf]
      %v167 = vunpack.c.l.b16 %v145
      %v168 = vunpack.c.h.b16 %v145
      %v169 = vunpack.c.l.b16 %v146
      %v170 = vunpack.c.h.b16 %v146
      %v171 = vpack.c.b16 %v169, %v167
      %v172 = vpack.c.b16 %v170, %v168
      %v192 = vunpack.c.l.b16 %v147
      %v193 = vunpack.c.l.b16 %v148
      %v194 = vunpack.c.l.b16 %v149
      %v195 = vunpack.c.l.b16 %v150
      %v196 = vunpack.c.l.b16 %v151
      %v197 = vunpack.c.l.b16 %v152
      %v198 = vunpack.c.l.b16 %v153
      %v199 = vunpack.c.l.b16 %v154
      %v200 = vunpack.c.l.b16 %v155
      %v201 = vunpack.c.l.b16 %v156
      %v202 = vunpack.c.l.b16 %v157
      %v203 = vunpack.c.l.b16 %v158
      %v204 = vunpack.c.l.b16 %v159
      %v205 = vunpack.c.l.b16 %v160
      %v206 = vunpack.c.l.b16 %v161
      %v207 = vunpack.c.l.b16 %v162
      %v208 = vunpack.c.l.b16 %v163
      %v209 = vunpack.c.l.b16 %v164
      %v210 = vpack.c.b16 %v193, %v192
      %v211 = vpack.c.b16 %v195, %v194
      %v212 = vpack.c.b16 %v197, %v196
      %v213 = vpack.c.b16 %v199, %v198
      %v214 = vpack.c.b16 %v201, %v200
      %v215 = vpack.c.b16 %v203, %v202
      %v216 = vpack.c.b16 %v205, %v204
      %v217 = vpack.c.b16 %v207, %v206
      %v218 = vpack.c.b16 %v209, %v208
      %vm228 = vcmask 130048
      %v230 = vsel %vm228, %v172, 0
      %232 = vmatprep.subr.bf16.mxu0 0
      %233 = vmatpush1.bf16.msra.mxu0 %v210
      %234 = vmatprep.subr.bf16.mxu0 0
      %235 = vmatpush1.bf16.msra.mxu0 %v211
      %236 = vmatprep.subr.bf16.mxu0 0
      %237 = vmatpush1.bf16.msra.mxu0 %v212
      %238 = vmatprep.subr.bf16.mxu0 0
      %239 = vmatpush1.bf16.msra.mxu0 %v213
      %240 = vmatprep.subr.bf16.mxu0 0
      %241 = vmatpush1.bf16.msra.mxu0 %v214
      %242 = vmatprep.subr.bf16.mxu0 0
      %243 = vmatpush1.bf16.msra.mxu0 %v215
      %244 = vmatprep.subr.bf16.mxu0 0
      %245 = vmatpush1.bf16.msra.mxu0 %v216
      %246 = vmatprep.subr.bf16.mxu0 0
      %247 = vmatpush1.bf16.msra.mxu0 %v217
      %248 = vmatprep.subr.bf16.mxu0 0
      %249 = vmatpush1.bf16.msra.mxu0 %v218
      %250 = vmatprep.subr.bf16.mxu0 0
      %251 = vmatpush1.bf16.msra.mxu0 0
      %252 = vmatprep.subr.bf16.mxu0 0
      %253 = vmatpush1.bf16.msra.mxu0 0
      %254 = vmatprep.subr.bf16.mxu0 0
      %255 = vmatpush1.bf16.msra.mxu0 0
      %256 = vmatprep.subr.bf16.mxu0 0
      %257 = vmatpush1.bf16.msra.mxu0 0
      %258 = vmatprep.subr.bf16.mxu0 0
      %259 = vmatpush1.bf16.msra.mxu0 0
      %260 = vmatprep.subr.bf16.mxu0 0
      %261 = vmatpush1.bf16.msra.mxu0 0
      %262 = vmatprep.subr.bf16.mxu0 0
      %263 = vmatpush1.bf16.msra.mxu0 0
      %264 = vmatprep.mubr.bf16.mxu0 %v230
      %265 = vmatmul.mubr.bf16.gmra.mrb[0].mxu0 %v171
      %v266 = vpop.f32.mrb[0].mxu0
      %v267 = vadd.f32 0.0, %v266
      %v268 = vpop.f32.mrb[0].mxu0
      %v269 = vpop.f32.mrb[0].mxu0
      %v270 = vadd.f32 0.0, %v269
      %v271 = vpop.f32.mrb[0].mxu0
      %272 = vdwg.mxu0
      %vm273 = vcmask 7168
      %v274 = vsel %vm273, %v267, 0.0
      %v275 = vsel %vm273, %v270, 0.0
      %v276 = vadd.f32 %v274, %v275
      %277 = vadd.xlane.f32.xlu0 %v276
      %v278 = vpop.xlane.xlu0 %277
      %v279 = vrot.slane %v278, 4
      %v280 = vadd.f32 %v278, %v279
      %v281 = vrot.slane %v280, 2
      %v282 = vadd.f32 %v280, %v281
      %v283 = vrot.slane %v282, 1
      %v284 = vadd.f32 %v282, %v283
      %s285 = vtos %v284
      %v286 = vstv %s285
      %v287 = vrcp.pop 16.0
      %v288 = vmul.f32 %v286, %v287
      %v289 = vsub.f32 %v267, %v288
      %v290 = vsub.f32 %v270, %v288
      %v291 = vmul.f32 %v289, %v289
      %v292 = vmul.f32 %v290, %v290
      %v293 = vsel %vm273, %v291, 0.0
      %v294 = vsel %vm273, %v292, 0.0
      %v295 = vadd.f32 %v293, %v294
      %296 = vadd.xlane.f32.xlu0 %v295
      %v297 = vpop.xlane.xlu0 %296
      %v298 = vrot.slane %v297, 4
      %v299 = vadd.f32 %v297, %v298
      %v300 = vrot.slane %v299, 2
      %v301 = vadd.f32 %v299, %v300
      %v302 = vrot.slane %v301, 1
      %v303 = vadd.f32 %v301, %v302
      %s304 = vtos %v303
      %v305 = vstv %s304
      %v306 = vrcp.pop 15.0
      %v307 = vmul.f32 %v305, %v306
      %v308 = vrsqrt.pop %v307
      %v309 = vmul.f32 %v307, %v308
      %vm310 = vcmp.eq.f32.partialorder %v307, inf
      %v311 = vsel %vm310, %v307, %v309
      %vm312 = vcmp.eq.f32.partialorder %v307, 0.0
      %v313 = vand.u32 %v307, 2147483648
      %v314 = vsel %vm312, %v313, %v311
      %v315 = vadd.f32 %v314, 1e-05
      %v316 = vrcp.pop %v315
      %v317 = vmul.f32 %v289, %v316
      %v318 = vmul.f32 %v290, %v316
      %v319 = vpack.c.bf16 %v318, %v317
      %v321 = vunpack.c.l.b16 %v319
      %v322 = vunpack.c.h.b16 %v319
      %v323 = vpack.c.b16 %v321, %v321
      %v324 = vpack.c.b16 %v322, %v322
      %vm327 = vcmask 3072
      %328 = vst.msk [vmem:[%s143] sm:$0xf] %vm327, %v323
      %329 = vst.msk [vmem:[%s143 + $0x4] sm:$0xf] %vm327, %v324
      %p330 = scmp.lt.s32.totalorder %s13, 1
      %s331 = scalar_select %p330, %s13, 1
      %s332 = smul.addr %s331, 2
      %s333 = smul.addr %s332, 4
      %s334 = scalar_lea.vmem %s2, %s333
      // Predicated region
      $region29: #{unet_forward.15} parent=27 // pred_check
        %p335 = pneg %p78
      $region30: #{unet_forward.15} parent=27 // pred_check_branch
        %337 = sbr.rel (%p335) target = $region32
      $region31: #{unet_forward.15} parent=27 // pred_region
        _
      $region32: #{unet_forward.15} parent=27 // pred_fallthru
        _
    $region28: #{unet_forward.15} parent=5 // pred_fallthru
      _
    %p338 = scmp.le.s32.totalorder 2, %s8
    // Predicated region
    $region33: #{unet_forward.15} parent=5 // pred_check
      %p339 = pneg %p338
    $region34: #{unet_forward.15} parent=5 // pred_check_branch
      %341 = sbr.rel (%p339) target = $region36
    $region35: #{unet_forward.15} parent=5 // pred_region
      %s342 = ssub.s32 %s8, 2
      // Predicated region
      $region37: #{unet_forward.15} parent=35 // pred_check
        %p343 = pneg %p84
      $region38: #{unet_forward.15} parent=35 // pred_check_branch
        %345 = sbr.rel (%p343) target = $region40
      $region39: #{unet_forward.15} parent=35 // pred_region
        %p346 = scmp.lt.s32.totalorder %s14, 1
        %s347 = scalar_select %p346, %s14, 1
        %s348 = smul.addr %s347, 2
        %s349 = smul.addr %s348, 4
        %s350 = scalar_lea.vmem %s2, %s349
      $region40: #{unet_forward.15} parent=35 // pred_fallthru
        _
    $region36: #{unet_forward.15} parent=5 // pred_fallthru
      _
  $region6: #{unet_forward.15} parent=0 // loop_footer
    %s12 = sadd.s32 1, %s8
  $region7: #{unet_forward.15} parent=0 // loop_footer_branch
    %7 = sbr.rel target = $region3
  $region8: #{unet_forward.15} parent=0 // loop_exit
    _

// kernel: unet_forward.16
$region0: #{unet_forward.16}
  #allocation0 [shape = 'u32[]', space=smem, size = 0x4, offset = 0x4, fixed_abs, tag = 'smem constant byte address 0x4 - core index']
  #allocation1 [shape = 'u32[144,128]{1,0:T(1,128)}', space=vmem, size = 0x12000, scoped, tag = 'internal scratch']
  %s0 = inlined_call_operand.vmem [shape: bf16[64,128], index: 0, kind: input, shape index: {}]
  %s1 = inlined_call_operand.vmem [shape: bf16[2,128,4], index: 1, kind: input, shape index: {}]
  %s2 = inlined_call_operand.vmem [shape: f32[4,4], index: 2, kind: input, shape index: {}]
  %s3 = inlined_call_operand.vmem [shape: bf16[2,64,4], index: 3, kind: output, shape index: {}]
  %s4 = sld [smem:[#allocation0]]
  $region45: #{unet_forward.16} parent=0
    _
  %s6 = ssub.s32 1, %s4
  %s7 = scalar_select 0, %s6, %s4
  loop: start=0, step=1, limit=4
  $region2: #{unet_forward.16} parent=0 // loop_pre_header
    _
  $region3: #{unet_forward.16} parent=0 // loop_header
    %s9 = sphi 0, %s13
    %p10 = scmp.ge.s32.totalorder %s9, 4
    %s17 = sphi 0, %s17
    %s19 = sphi 0, %s17
    %s20 = sphi 0, %s19
    %s34 = sphi 0, %s20
    %s40 = sphi 0, %s42
    %s43 = sphi 0, %s40
    %s44 = sphi 0, %s43
    %s60 = sphi 0, %s44
    %s64 = sphi 0, %s64
    %s66 = sphi 0, %s64
    %s67 = sphi 0, %s66
    %s81 = sphi 0, %s67
    %s87 = sphi 0, %s89
    %s90 = sphi 0, %s87
    %s91 = sphi 0, %s90
    %s107 = sphi 0, %s91
  $region4: #{unet_forward.16} parent=0 // loop_header_branch
    %12 = sbr.rel (%p10) target = $region8
  $region5: #{unet_forward.16} parent=0 // loop_body
    %s14 = ssub.s32 %s9, 1
    %s15 = ssub.s32 %s9, 2
    %s16 = sadd.s32 %s9, 1
    %s18 = sadd.s32 %s17, 1
    %p21 = scmp.eq.s32.totalorder %s9, 1
    %p22 = scmp.ne.s32.totalorder %s17, %s19
    %p23 = scmp.eq.s32.totalorder %s9, 0
    %p24 = por %p22, %p23
    %p25 = scmp.ne.s32.totalorder %s17, %s19
    %p26 = scmp.eq.s32.totalorder %s14, 1
    %p27 = por %p25, %p26
    %p28 = scmp.ne.s32.totalorder %s19, %s20
    %p29 = scmp.eq.s32.totalorder %s14, 0
    %p30 = por %p28, %p29
    %p31 = scmp.ne.s32.totalorder %s19, %s20
    %p32 = scmp.eq.s32.totalorder %s15, 1
    %p33 = por %p31, %p32
    %p35 = scmp.ne.s32.totalorder %s20, %s34
    %p36 = scmp.eq.s32.totalorder %s15, 0
    %p37 = por %p35, %p36
    %s38 = ssub.s32 %s9, %s16
    %p39 = scmp.eq.s32.totalorder %s38, 0
    %s41 = sadd.s32 %s40, 1
    %s42 = scalar_select %p39, %s40, %s41
    %p45 = pneg %p39
    %p46 = scmp.eq.s32.totalorder %s9, 1
    %p47 = por %p45, %p46
    %p48 = scmp.ne.s32.totalorder %s40, %s43
    %p49 = scmp.eq.s32.totalorder %s9, 0
    %p50 = por %p48, %p49
    %p51 = scmp.ne.s32.totalorder %s40, %s43
    %p52 = scmp.eq.s32.totalorder %s14, 1
    %p53 = por %p51, %p52
    %p54 = scmp.ne.s32.totalorder %s43, %s44
    %p55 = scmp.eq.s32.totalorder %s14, 0
    %p56 = por %p54, %p55
    %p57 = scmp.ne.s32.totalorder %s43, %s44
    %p58 = scmp.eq.s32.totalorder %s15, 1
    %p59 = por %p57, %p58
    %p61 = scmp.ne.s32.totalorder %s44, %s60
    %p62 = scmp.eq.s32.totalorder %s15, 0
    %p63 = por %p61, %p62
    %s65 = sadd.s32 %s64, 1
    %p68 = scmp.eq.s32.totalorder %s9, 1
    %p69 = scmp.ne.s32.totalorder %s64, %s66
    %p70 = scmp.eq.s32.totalorder %s9, 0
    %p71 = por %p69, %p70
    %p72 = scmp.ne.s32.totalorder %s64, %s66
    %p73 = scmp.eq.s32.totalorder %s14, 1
    %p74 = por %p72, %p73
    %p75 = scmp.ne.s32.totalorder %s66, %s67
    %p76 = scmp.eq.s32.totalorder %s14, 0
    %p77 = por %p75, %p76
    %p78 = scmp.ne.s32.totalorder %s66, %s67
    %p79 = scmp.eq.s32.totalorder %s15, 1
    %p80 = por %p78, %p79
    %p82 = scmp.ne.s32.totalorder %s67, %s81
    %p83 = scmp.eq.s32.totalorder %s15, 0
    %p84 = por %p82, %p83
    %s85 = ssub.s32 %s9, %s16
    %p86 = scmp.eq.s32.totalorder %s85, 0
    %s88 = sadd.s32 %s87, 1
    %s89 = scalar_select %p86, %s87, %s88
    %p92 = pneg %p86
    %p93 = scmp.eq.s32.totalorder %s9, 1
    %p94 = por %p92, %p93
    %p95 = scmp.ne.s32.totalorder %s87, %s90
    %p96 = scmp.eq.s32.totalorder %s9, 0
    %p97 = por %p95, %p96
    %p98 = scmp.ne.s32.totalorder %s87, %s90
    %p99 = scmp.eq.s32.totalorder %s14, 1
    %p100 = por %p98, %p99
    %p101 = scmp.ne.s32.totalorder %s90, %s91
    %p102 = scmp.eq.s32.totalorder %s14, 0
    %p103 = por %p101, %p102
    %p104 = scmp.ne.s32.totalorder %s90, %s91
    %p105 = scmp.eq.s32.totalorder %s15, 1
    %p106 = por %p104, %p105
    %p108 = scmp.ne.s32.totalorder %s91, %s107
    %p109 = scmp.eq.s32.totalorder %s15, 0
    %p110 = por %p108, %p109
    %p111 = scmp.le.s32.totalorder 1, %s9
    %p112 = scmp.lt.s32.totalorder %s9, 3
    %p113 = pnand %p111, %p112
    %p114 = pneg %p113
    // Predicated region
    $region9: #{unet_forward.16} parent=5 // pred_check
      _
    $region10: #{unet_forward.16} parent=5 // pred_check_branch
      %116 = sbr.rel (%p113) target = $region12
    $region11: #{unet_forward.16} parent=5 // pred_region
      %s117 = ssub.s32 %s9, 1
      // Predicated region
      $region13: #{unet_forward.16} parent=11 // pred_check
        %p118 = pneg %p30
      $region14: #{unet_forward.16} parent=11 // pred_check_branch
        %120 = sbr.rel (%p118) target = $region16
      $region15: #{unet_forward.16} parent=11 // pred_region
        _
      $region16: #{unet_forward.16} parent=11 // pred_fallthru
        _
      // Predicated region
      $region17: #{unet_forward.16} parent=11 // pred_check
        %p121 = pneg %p77
      $region18: #{unet_forward.16} parent=11 // pred_check_branch
        %123 = sbr.rel (%p121) target = $region20
      $region19: #{unet_forward.16} parent=11 // pred_region
        _
      $region20: #{unet_forward.16} parent=11 // pred_fallthru
        _
    $region12: #{unet_forward.16} parent=5 // pred_fallthru
      _
    %p124 = scmp.lt.s32.totalorder %s9, 2
    // Predicated region
    $region21: #{unet_forward.16} parent=5 // pred_check
      %p125 = pneg %p124
    $region22: #{unet_forward.16} parent=5 // pred_check_branch
      %127 = sbr.rel (%p125) target = $region24
    $region23: #{unet_forward.16} parent=5 // pred_region
      // Predicated region
      $region25: #{unet_forward.16} parent=23 // pred_check
        %p128 = pneg %p50
      $region26: #{unet_forward.16} parent=23 // pred_check_branch
        %130 = sbr.rel (%p128) target = $region28
      $region27: #{unet_forward.16} parent=23 // pred_region
        %p131 = scmp.lt.s32.totalorder %s9, 1
        %s132 = scalar_select %p131, %s9, 1
        %s133 = smul.addr %s132, 16
        %s134 = smul.addr %s133, 4
        %s135 = scalar_lea.vmem %s1, %s134
      $region28: #{unet_forward.16} parent=23 // pred_fallthru
        _
    $region24: #{unet_forward.16} parent=5 // pred_fallthru
      _
    %p136 = scmp.le.s32.totalorder 1, %s9
    %p137 = scmp.lt.s32.totalorder %s9, 3
    %p138 = pnand %p136, %p137
    %p139 = pneg %p138
    // Predicated region
    $region29: #{unet_forward.16} parent=5 // pred_check
      _
    $region30: #{unet_forward.16} parent=5 // pred_check_branch
      %141 = sbr.rel (%p138) target = $region32
    $region31: #{unet_forward.16} parent=5 // pred_region
      %s142 = ssub.s32 %s9, 1
      %p143 = pneg %p30
      %p144 = pneg %p27
      %p145 = scmp.lt.s32.totalorder %s14, 1
      %s146 = scalar_select %p145, %s14, 1
      %s147 = smul.addr %s146, 16
      %s148 = smul.addr %s147, 4
      %s149 = scalar_lea.vmem %s1, %s148
      %p150 = pneg %p56
      %p151 = pneg %p53
      %p152 = pneg %p77
      %p153 = pneg %p74
      %p154 = pneg %p103
      %p155 = pneg %p100
      %p156 = scmp.lt.s32.totalorder %s14, 1
      %s157 = scalar_select %p156, %s14, 1
      %s158 = smul.addr %s157, 8
      %s159 = smul.addr %s158, 4
      %s160 = scalar_lea.vmem %s3, %s159
      %p161 = scmp.lt.s32.totalorder %s14, 1
      %s162 = scalar_select %p161, %s14, 1
      %s163 = smul.addr %s162, 16
      %s164 = smul.addr %s163, 4
      %s165 = scalar_lea.vmem %s1, %s164
      %p166 = scmp.lt.s32.totalorder %s14, 1
      %s167 = scalar_select %p166, %s14, 1
      %s168 = smul.addr %s167, 8
      %s169 = smul.addr %s168, 4
      %s170 = scalar_lea.vmem %s3, %s169
      %v172 = vld [vmem:[%s0] sm:$0xf]
      %v173 = vld [vmem:[%s0 + $0x4] sm:$0xf]
      %v174 = vld [vmem:[%s0 + $0x8] sm:$0xf]
      %v175 = vld [vmem:[%s0 + $0xc] sm:$0xf]
      %v176 = vld [vmem:[%s0 + $0x10] sm:$0xf]
      %v177 = vld [vmem:[%s0 + $0x14] sm:$0xf]
      %v178 = vld [vmem:[%s0 + $0x18] sm:$0xf]
      %v179 = vld [vmem:[%s0 + $0x1c] sm:$0xf]
      %v180 = vld [vmem:[%s165] sm:$0xf]
      %v181 = vld [vmem:[%s165 + $0x4] sm:$0xf]
      %v182 = vld [vmem:[%s165 + $0x8] sm:$0xf]
      %v183 = vld [vmem:[%s165 + $0xc] sm:$0xf]
      %v184 = vld [vmem:[%s165 + $0x10] sm:$0xf]
      %v185 = vld [vmem:[%s165 + $0x14] sm:$0xf]
      %v186 = vld [vmem:[%s165 + $0x18] sm:$0xf]
      %v187 = vld [vmem:[%s165 + $0x1c] sm:$0xf]
      %v188 = vld [vmem:[%s165 + $0x20] sm:$0xf]
      %v189 = vld [vmem:[%s165 + $0x24] sm:$0xf]
      %v190 = vld [vmem:[%s165 + $0x28] sm:$0xf]
      %v191 = vld [vmem:[%s165 + $0x2c] sm:$0xf]
      %v192 = vld [vmem:[%s165 + $0x30] sm:$0xf]
      %v193 = vld [vmem:[%s165 + $0x34] sm:$0xf]
      %v194 = vld [vmem:[%s165 + $0x38] sm:$0xf]
      %v195 = vld [vmem:[%s165 + $0x3c] sm:$0xf]
      %v204 = vunpack.c.l.b16 %v172
      %v205 = vunpack.c.l.b16 %v173
      %v206 = vunpack.c.l.b16 %v174
      %v207 = vunpack.c.l.b16 %v175
      %v208 = vunpack.c.l.b16 %v176
      %v209 = vunpack.c.l.b16 %v177
      %v210 = vunpack.c.l.b16 %v178
      %v211 = vunpack.c.l.b16 %v179
      %v212 = vpack.c.b16 %v205, %v204
      %v213 = vpack.c.b16 %v207, %v206
      %v214 = vpack.c.b16 %v209, %v208
      %v215 = vpack.c.b16 %v211, %v210
      %v236 = vunpack.c.l.b16 %v180
      %v237 = vunpack.c.l.b16 %v181
      %v238 = vunpack.c.l.b16 %v182
      %v239 = vunpack.c.l.b16 %v183
      %v240 = vunpack.c.l.b16 %v184
      %v241 = vunpack.c.l.b16 %v185
      %v242 = vunpack.c.l.b16 %v186
      %v243 = vunpack.c.l.b16 %v187
      %v244 = vunpack.c.l.b16 %v188
      %v245 = vunpack.c.l.b16 %v189
      %v246 = vunpack.c.l.b16 %v190
      %v247 = vunpack.c.l.b16 %v191
      %v248 = vunpack.c.l.b16 %v192
      %v249 = vunpack.c.l.b16 %v193
      %v250 = vunpack.c.l.b16 %v194
      %v251 = vunpack.c.l.b16 %v195
      %v252 = vpack.c.b16 %v237, %v236
      %v253 = vpack.c.b16 %v239, %v238
      %v254 = vpack.c.b16 %v241, %v240
      %v255 = vpack.c.b16 %v243, %v242
      %v256 = vpack.c.b16 %v245, %v244
      %v257 = vpack.c.b16 %v247, %v246
      %v258 = vpack.c.b16 %v249, %v248
      %v259 = vpack.c.b16 %v251, %v250
      %268 = vmatprep.subr.bf16.mxu0 0
      %269 = vmatpush1.bf16.msra.mxu0 %v252
      %270 = vmatprep.subr.bf16.mxu0 0
      %271 = vmatpush1.bf16.msra.mxu0 %v253
      %272 = vmatprep.subr.bf16.mxu0 0
      %273 = vmatpush1.bf16.msra.mxu0 %v254
      %274 = vmatprep.subr.bf16.mxu0 0
      %275 = vmatpush1.bf16.msra.mxu0 %v255
      %276 = vmatprep.subr.bf16.mxu0 0
      %277 = vmatpush1.bf16.msra.mxu0 %v256
      %278 = vmatprep.subr.bf16.mxu0 0
      %279 = vmatpush1.bf16.msra.mxu0 %v257
      %280 = vmatprep.subr.bf16.mxu0 0
      %281 = vmatpush1.bf16.msra.mxu0 %v258
      %282 = vmatprep.subr.bf16.mxu0 0
      %283 = vmatpush1.bf16.msra.mxu0 %v259
      %284 = vmatprep.subr.bf16.mxu0 0
      %285 = vmatpush1.bf16.msra.mxu0 0
      %286 = vmatprep.subr.bf16.mxu0 0
      %287 = vmatpush1.bf16.msra.mxu0 0
      %288 = vmatprep.subr.bf16.mxu0 0
      %289 = vmatpush1.bf16.msra.mxu0 0
      %290 = vmatprep.subr.bf16.mxu0 0
      %291 = vmatpush1.bf16.msra.mxu0 0
      %292 = vmatprep.subr.bf16.mxu0 0
      %293 = vmatpush1.bf16.msra.mxu0 0
      %294 = vmatprep.subr.bf16.mxu0 0
      %295 = vmatpush1.bf16.msra.mxu0 0
      %296 = vmatprep.subr.bf16.mxu0 0
      %297 = vmatpush1.bf16.msra.mxu0 0
      %298 = vmatprep.subr.bf16.mxu0 0
      %299 = vmatpush1.bf16.msra.mxu0 0
      %300 = vmatprep.mubr.bf16.mxu0 0
      %301 = vmatmul.mubr.bf16.gmra.mrb[0].mxu0 %v212
      %v302 = vpop.f32.mrb[0].mxu0
      %v303 = vadd.f32 0.0, %v302
      %v304 = vpop.f32.mrb[0].mxu0
      %v305 = vpop.f32.mrb[0].mxu0
      %v306 = vadd.f32 0.0, %v305
      %v307 = vpop.f32.mrb[0].mxu0
      %308 = vmatprep.mubr.bf16.mxu0 0
      %309 = vmatmul.mubr.bf16.gmra.mrb[0].mxu0 %v213
      %v310 = vpop.f32.mrb[0].mxu0
      %v311 = vadd.f32 0.0, %v310
      %v312 = vpop.f32.mrb[0].mxu0
      %v313 = vpop.f32.mrb[0].mxu0
      %v314 = vadd.f32 0.0, %v313
      %v315 = vpop.f32.mrb[0].mxu0
      %316 = vmatprep.mubr.bf16.mxu0 0
      %317 = vmatmul.mubr.bf16.gmra.mrb[0].mxu0 %v214
      %v318 = vpop.f32.mrb[0].mxu0
      %v319 = vadd.f32 0.0, %v318
      %v320 = vpop.f32.mrb[0].mxu0
      %v321 = vpop.f32.mrb[0].mxu0
      %v322 = vadd.f32 0.0, %v321
      %v323 = vpop.f32.mrb[0].mxu0
      %324 = vmatprep.mubr.bf16.mxu0 0
      %325 = vmatmul.mubr.bf16.gmra.mrb[0].mxu0 %v215
      %v326 = vpop.f32.mrb[0].mxu0
      %v327 = vadd.f32 0.0, %v326
      %v328 = vpop.f32.mrb[0].mxu0
      %v329 = vpop.f32.mrb[0].mxu0
      %v330 = vadd.f32 0.0, %v329
      %v331 = vpop.f32.mrb[0].mxu0
      %332 = vdwg.mxu0
      %v333 = vld [vmem:[%s2] sm:$0xf]
      %v334 = vlaneseq
      %v335 = vshrl.u32 %v334, 7
      %v336 = vsub.s32 0, %v335
      %v337 = vrot.slane %v333, %v336
      %v338 = vmul.f32 %v303, %v337
      %v339 = vmul.f32 %v306, %v337
      %vm340 = vcmask 31744
      %v341 = vsel %vm340, %v338, 0.0
      %v342 = vsel %vm340, %v339, 0.0
      %v343 = vadd.f32 %v341, %v342
      %344 = vadd.xlane.f32.xlu0 %v343
      %v345 = vpop.xlane.xlu0 %344
      %v346 = vrot.slane %v345, 4
      %v347 = vadd.f32 %v345, %v346
      %v348 = vrot.slane %v347, 2
      %v349 = vadd.f32 %v347, %v348
      %v350 = vrot.slane %v349, 1
      %v351 = vadd.f32 %v349, %v350
      %s352 = vtos %v351
      %v353 = vstv %s352
      %v354 = vadd.f32 %v353, 0.0
      %v355 = vlaneseq
      %v356 = vshrl.u32 %v355, 7
      %v357 = vsub.s32 1, %v356
      %v358 = vrot.slane %v333, %v357
      %v359 = vmul.f32 %v311, %v358
      %v360 = vmul.f32 %v314, %v358
      %v361 = vsel %vm340, %v359, 0.0
      %v362 = vsel %vm340, %v360, 0.0
      %v363 = vadd.f32 %v361, %v362
      %364 = vadd.xlane.f32.xlu0 %v363
      %v365 = vpop.xlane.xlu0 %364
      %v366 = vrot.slane %v365, 4
      %v367 = vadd.f32 %v365, %v366
      %v368 = vrot.slane %v367, 2
      %v369 = vadd.f32 %v367, %v368
      %v370 = vrot.slane %v369, 1
      %v371 = vadd.f32 %v369, %v370
      %s372 = vtos %v371
      %v373 = vstv %s372
      %v374 = vadd.f32 %v354, %v373
      %v375 = vlaneseq
      %v376 = vshrl.u32 %v375, 7
      %v377 = vsub.s32 2, %v376
      %v378 = vrot.slane %v333, %v377
      %v379 = vmul.f32 %v319, %v378
      %v380 = vmul.f32 %v322, %v378
      %v381 = vsel %vm340, %v379, 0.0
      %v382 = vsel %vm340, %v380, 0.0
      %v383 = vadd.f32 %v381, %v382
      %384 = vadd.xlane.f32.xlu0 %v383
      %v385 = vpop.xlane.xlu0 %384
      %v386 = vrot.slane %v385, 4
      %v387 = vadd.f32 %v385, %v386
      %v388 = vrot.slane %v387, 2
      %v389 = vadd.f32 %v387, %v388
      %v390 = vrot.slane %v389, 1
      %v391 = vadd.f32 %v389, %v390
      %s392 = vtos %v391
      %v393 = vstv %s392
      %v394 = vadd.f32 %v374, %v393
      %v395 = vlaneseq
      %v396 = vshrl.u32 %v395, 7
      %v397 = vsub.s32 3, %v396
      %v398 = vrot.slane %v333, %v397
      %v399 = vmul.f32 %v327, %v398
      %v400 = vmul.f32 %v330, %v398
      %v401 = vsel %vm340, %v399, 0.0
      %v402 = vsel %vm340, %v400, 0.0
      %v403 = vadd.f32 %v401, %v402
      %404 = vadd.xlane.f32.xlu0 %v403
      %v405 = vpop.xlane.xlu0 %404
      %v406 = vrot.slane %v405, 4
      %v407 = vadd.f32 %v405, %v406
      %v408 = vrot.slane %v407, 2
      %v409 = vadd.f32 %v407, %v408
      %v410 = vrot.slane %v409, 1
      %v411 = vadd.f32 %v409, %v410
      %s412 = vtos %v411
      %v413 = vstv %s412
      %v414 = vadd.f32 %v394, %v413
      %v415 = vrcp.pop 64.0
      %v416 = vmul.f32 %v414, %v415
      %v417 = vsub.f32 %v303, %v416
      %v418 = vsub.f32 %v306, %v416
      %v419 = vsub.f32 %v311, %v416
      %v420 = vsub.f32 %v314, %v416
      %v421 = vsub.f32 %v319, %v416
      %v422 = vsub.f32 %v322, %v416
      %v423 = vsub.f32 %v327, %v416
      %v424 = vsub.f32 %v330, %v416
      %v425 = vmul.f32 %v417, %v417
      %v426 = vmul.f32 %v418, %v418
      %v427 = vmul.f32 %v425, %v337
      %v428 = vmul.f32 %v426, %v337
      %v429 = vsel %vm340, %v427, 0.0
      %v430 = vsel %vm340, %v428, 0.0
      %v431 = vadd.f32 %v429, %v430
      %432 = vadd.xlane.f32.xlu0 %v431
      %v433 = vpop.xlane.xlu0 %432
      %v434 = vrot.slane %v433, 4
      %v435 = vadd.f32 %v433, %v434
      %v436 = vrot.slane %v435, 2
      %v437 = vadd.f32 %v435, %v436
      %v438 = vrot.slane %v437, 1
      %v439 = vadd.f32 %v437, %v438
      %s440 = vtos %v439
      %v441 = vstv %s440
      %v442 = vadd.f32 %v441, 0.0
      %v443 = vmul.f32 %v419, %v419
      %v444 = vmul.f32 %v420, %v420
      %v445 = vmul.f32 %v443, %v358
      %v446 = vmul.f32 %v444, %v358
      %v447 = vsel %vm340, %v445, 0.0
      %v448 = vsel %vm340, %v446, 0.0
      %v449 = vadd.f32 %v447, %v448
      %450 = vadd.xlane.f32.xlu0 %v449
      %v451 = vpop.xlane.xlu0 %450
      %v452 = vrot.slane %v451, 4
      %v453 = vadd.f32 %v451, %v452
      %v454 = vrot.slane %v453, 2
      %v455 = vadd.f32 %v453, %v454
      %v456 = vrot.slane %v455, 1
      %v457 = vadd.f32 %v455, %v456
      %s458 = vtos %v457
      %v459 = vstv %s458
      %v460 = vadd.f32 %v442, %v459
      %v461 = vmul.f32 %v421, %v421
      %v462 = vmul.f32 %v422, %v422
      %v463 = vmul.f32 %v461, %v378
      %v464 = vmul.f32 %v462, %v378
      %v465 = vsel %vm340, %v463, 0.0
      %v466 = vsel %vm340, %v464, 0.0
      %v467 = vadd.f32 %v465, %v466
      %468 = vadd.xlane.f32.xlu0 %v467
      %v469 = vpop.xlane.xlu0 %468
      %v470 = vrot.slane %v469, 4
      %v471 = vadd.f32 %v469, %v470
      %v472 = vrot.slane %v471, 2
      %v473 = vadd.f32 %v471, %v472
      %v474 = vrot.slane %v473, 1
      %v475 = vadd.f32 %v473, %v474
      %s476 = vtos %v475
      %v477 = vstv %s476
      %v478 = vadd.f32 %v460, %v477
      %v479 = vmul.f32 %v423, %v423
      %v480 = vmul.f32 %v424, %v424
      %v481 = vmul.f32 %v479, %v398
      %v482 = vmul.f32 %v480, %v398
      %v483 = vsel %vm340, %v481, 0.0
      %v484 = vsel %vm340, %v482, 0.0
      %v485 = vadd.f32 %v483, %v484
      %486 = vadd.xlane.f32.xlu0 %v485
      %v487 = vpop.xlane.xlu0 %486
      %v488 = vrot.slane %v487, 4
      %v489 = vadd.f32 %v487, %v488
      %v490 = vrot.slane %v489, 2
      %v491 = vadd.f32 %v489, %v490
      %v492 = vrot.slane %v491, 1
      %v493 = vadd.f32 %v491, %v492
      %s494 = vtos %v493
      %v495 = vstv %s494
      %v496 = vadd.f32 %v478, %v495
      %v497 = vrcp.pop 63.0
      %v498 = vmul.f32 %v496, %v497
      %v499 = vrsqrt.pop %v498
      %v500 = vmul.f32 %v498, %v499
      %vm501 = vcmp.eq.f32.partialorder %v498, inf
      %v502 = vsel %vm501, %v498, %v500
      %vm503 = vcmp.eq.f32.partialorder %v498, 0.0
      %v504 = vand.u32 %v498, 2147483648
      %v505 = vsel %vm503, %v504, %v502
      %v506 = vadd.f32 %v505, 1e-05
      %v507 = vrcp.pop %v506
      %v508 = vmul.f32 %v417, %v507
      %v509 = vmul.f32 %v418, %v507
      %v510 = vmul.f32 %v419, %v507
      %v511 = vmul.f32 %v420, %v507
      %v512 = vmul.f32 %v421, %v507
      %v513 = vmul.f32 %v422, %v507
      %v514 = vmul.f32 %v423, %v507
      %v515 = vmul.f32 %v424, %v507
      %v516 = vpack.c.bf16 %v509, %v508
      %v517 = vpack.c.bf16 %v511, %v510
      %v518 = vpack.c.bf16 %v513, %v512
      %v519 = vpack.c.bf16 %v515, %v514
      %v524 = vunpack.c.l.b16 %v516
      %v525 = vunpack.c.h.b16 %v516
      %v526 = vunpack.c.l.b16 %v517
      %v527 = vunpack.c.h.b16 %v517
      %v528 = vunpack.c.l.b16 %v518
      %v529 = vunpack.c.h.b16 %v518
      %v530 = vunpack.c.l.b16 %v519
      %v531 = vunpack.c.h.b16 %v519
      %v532 = vpack.c.b16 %v524, %v524
      %v533 = vpack.c.b16 %v525, %v525
      %v534 = vpack.c.b16 %v526, %v526
      %v535 = vpack.c.b16 %v527, %v527
      %v536 = vpack.c.b16 %v528, %v528
      %v537 = vpack.c.b16 %v529, %v529
      %v538 = vpack.c.b16 %v530, %v530
      %v539 = vpack.c.b16 %v531, %v531
      %vm548 = vcmask 27648
      %549 = vst.msk [vmem:[%s170] sm:$0xf] %vm548, %v532
      %550 = vst.msk [vmem:[%s170 + $0x4] sm:$0xf] %vm548, %v533
      %551 = vst.msk [vmem:[%s170 + $0x8] sm:$0xf] %vm548, %v534
      %552 = vst.msk [vmem:[%s170 + $0xc] sm:$0xf] %vm548, %v535
      %553 = vst.msk [vmem:[%s170 + $0x10] sm:$0xf] %vm548, %v536
      %554 = vst.msk [vmem:[%s170 + $0x14] sm:$0xf] %vm548, %v537
      %555 = vst.msk [vmem:[%s170 + $0x18] sm:$0xf] %vm548, %v538
      %556 = vst.msk [vmem:[%s170 + $0x1c] sm:$0xf] %vm548, %v539
      %p557 = scmp.lt.s32.totalorder %s14, 1
      %s558 = scalar_select %p557, %s14, 1
      %s559 = smul.addr %s558, 8
      %s560 = smul.addr %s559, 4
      %s561 = scalar_lea.vmem %s3, %s560
      // Predicated region
      $region33: #{unet_forward.16} parent=31 // pred_check
        %p562 = pneg %p100
      $region34: #{unet_forward.16} parent=31 // pred_check_branch
        %564 = sbr.rel (%p562) target = $region36
      $region35: #{unet_forward.16} parent=31 // pred_region
        _
      $region36: #{unet_forward.16} parent=31 // pred_fallthru
        _
    $region32: #{unet_forward.16} parent=5 // pred_fallthru
      _
    %p565 = scmp.le.s32.totalorder 2, %s9
    // Predicated region
    $region37: #{unet_forward.16} parent=5 // pred_check
      %p566 = pneg %p565
    $region38: #{unet_forward.16} parent=5 // pred_check_branch
      %568 = sbr.rel (%p566) target = $region40
    $region39: #{unet_forward.16} parent=5 // pred_region
      %s569 = ssub.s32 %s9, 2
      // Predicated region
      $region41: #{unet_forward.16} parent=39 // pred_check
        %p570 = pneg %p106
      $region42: #{unet_forward.16} parent=39 // pred_check_branch
        %572 = sbr.rel (%p570) target = $region44
      $region43: #{unet_forward.16} parent=39 // pred_region
        %p573 = scmp.lt.s32.totalorder %s15, 1
        %s574 = scalar_select %p573, %s15, 1
        %s575 = smul.addr %s574, 8
        %s576 = smul.addr %s575, 4
        %s577 = scalar_lea.vmem %s3, %s576
      $region44: #{unet_forward.16} parent=39 // pred_fallthru
        _
    $region40: #{unet_forward.16} parent=5 // pred_fallthru
      _
  $region6: #{unet_forward.16} parent=0 // loop_footer
    %s13 = sadd.s32 1, %s9
  $region7: #{unet_forward.16} parent=0 // loop_footer_branch
    %8 = sbr.rel target = $region3
  $region8: #{unet_forward.16} parent=0 // loop_exit
    _

// kernel: unet_forward.17
$region0: #{unet_forward.17}
  #allocation0 [shape = 'u32[]', space=smem, size = 0x4, offset = 0x4, fixed_abs, tag = 'smem constant byte address 0x4 - core index']
  #allocation1 [shape = 'u32[144,128]{1,0:T(1,128)}', space=vmem, size = 0x12000, scoped, tag = 'internal scratch']
  %s0 = inlined_call_operand.vmem [shape: bf16[64,128], index: 0, kind: input, shape index: {}]
  %s1 = inlined_call_operand.vmem [shape: bf16[2,128,9], index: 1, kind: input, shape index: {}]
  %s2 = inlined_call_operand.vmem [shape: f32[4,9], index: 2, kind: input, shape index: {}]
  %s3 = inlined_call_operand.vmem [shape: bf16[2,64,9], index: 3, kind: output, shape index: {}]
  %s4 = sld [smem:[#allocation0]]
  $region45: #{unet_forward.17} parent=0
    _
  %s6 = ssub.s32 1, %s4
  %s7 = scalar_select 0, %s6, %s4
  loop: start=0, step=1, limit=4
  $region2: #{unet_forward.17} parent=0 // loop_pre_header
    _
  $region3: #{unet_forward.17} parent=0 // loop_header
    %s9 = sphi 0, %s13
    %p10 = scmp.ge.s32.totalorder %s9, 4
    %s17 = sphi 0, %s17
    %s19 = sphi 0, %s17
    %s20 = sphi 0, %s19
    %s34 = sphi 0, %s20
    %s40 = sphi 0, %s42
    %s43 = sphi 0, %s40
    %s44 = sphi 0, %s43
    %s60 = sphi 0, %s44
    %s64 = sphi 0, %s64
    %s66 = sphi 0, %s64
    %s67 = sphi 0, %s66
    %s81 = sphi 0, %s67
    %s87 = sphi 0, %s89
    %s90 = sphi 0, %s87
    %s91 = sphi 0, %s90
    %s107 = sphi 0, %s91
  $region4: #{unet_forward.17} parent=0 // loop_header_branch
    %12 = sbr.rel (%p10) target = $region8
  $region5: #{unet_forward.17} parent=0 // loop_body
    %s14 = ssub.s32 %s9, 1
    %s15 = ssub.s32 %s9, 2
    %s16 = sadd.s32 %s9, 1
    %s18 = sadd.s32 %s17, 1
    %p21 = scmp.eq.s32.totalorder %s9, 1
    %p22 = scmp.ne.s32.totalorder %s17, %s19
    %p23 = scmp.eq.s32.totalorder %s9, 0
    %p24 = por %p22, %p23
    %p25 = scmp.ne.s32.totalorder %s17, %s19
    %p26 = scmp.eq.s32.totalorder %s14, 1
    %p27 = por %p25, %p26
    %p28 = scmp.ne.s32.totalorder %s19, %s20
    %p29 = scmp.eq.s32.totalorder %s14, 0
    %p30 = por %p28, %p29
    %p31 = scmp.ne.s32.totalorder %s19, %s20
    %p32 = scmp.eq.s32.totalorder %s15, 1
    %p33 = por %p31, %p32
    %p35 = scmp.ne.s32.totalorder %s20, %s34
    %p36 = scmp.eq.s32.totalorder %s15, 0
    %p37 = por %p35, %p36
    %s38 = ssub.s32 %s9, %s16
    %p39 = scmp.eq.s32.totalorder %s38, 0
    %s41 = sadd.s32 %s40, 1
    %s42 = scalar_select %p39, %s40, %s41
    %p45 = pneg %p39
    %p46 = scmp.eq.s32.totalorder %s9, 1
    %p47 = por %p45, %p46
    %p48 = scmp.ne.s32.totalorder %s40, %s43
    %p49 = scmp.eq.s32.totalorder %s9, 0
    %p50 = por %p48, %p49
    %p51 = scmp.ne.s32.totalorder %s40, %s43
    %p52 = scmp.eq.s32.totalorder %s14, 1
    %p53 = por %p51, %p52
    %p54 = scmp.ne.s32.totalorder %s43, %s44
    %p55 = scmp.eq.s32.totalorder %s14, 0
    %p56 = por %p54, %p55
    %p57 = scmp.ne.s32.totalorder %s43, %s44
    %p58 = scmp.eq.s32.totalorder %s15, 1
    %p59 = por %p57, %p58
    %p61 = scmp.ne.s32.totalorder %s44, %s60
    %p62 = scmp.eq.s32.totalorder %s15, 0
    %p63 = por %p61, %p62
    %s65 = sadd.s32 %s64, 1
    %p68 = scmp.eq.s32.totalorder %s9, 1
    %p69 = scmp.ne.s32.totalorder %s64, %s66
    %p70 = scmp.eq.s32.totalorder %s9, 0
    %p71 = por %p69, %p70
    %p72 = scmp.ne.s32.totalorder %s64, %s66
    %p73 = scmp.eq.s32.totalorder %s14, 1
    %p74 = por %p72, %p73
    %p75 = scmp.ne.s32.totalorder %s66, %s67
    %p76 = scmp.eq.s32.totalorder %s14, 0
    %p77 = por %p75, %p76
    %p78 = scmp.ne.s32.totalorder %s66, %s67
    %p79 = scmp.eq.s32.totalorder %s15, 1
    %p80 = por %p78, %p79
    %p82 = scmp.ne.s32.totalorder %s67, %s81
    %p83 = scmp.eq.s32.totalorder %s15, 0
    %p84 = por %p82, %p83
    %s85 = ssub.s32 %s9, %s16
    %p86 = scmp.eq.s32.totalorder %s85, 0
    %s88 = sadd.s32 %s87, 1
    %s89 = scalar_select %p86, %s87, %s88
    %p92 = pneg %p86
    %p93 = scmp.eq.s32.totalorder %s9, 1
    %p94 = por %p92, %p93
    %p95 = scmp.ne.s32.totalorder %s87, %s90
    %p96 = scmp.eq.s32.totalorder %s9, 0
    %p97 = por %p95, %p96
    %p98 = scmp.ne.s32.totalorder %s87, %s90
    %p99 = scmp.eq.s32.totalorder %s14, 1
    %p100 = por %p98, %p99
    %p101 = scmp.ne.s32.totalorder %s90, %s91
    %p102 = scmp.eq.s32.totalorder %s14, 0
    %p103 = por %p101, %p102
    %p104 = scmp.ne.s32.totalorder %s90, %s91
    %p105 = scmp.eq.s32.totalorder %s15, 1
    %p106 = por %p104, %p105
    %p108 = scmp.ne.s32.totalorder %s91, %s107
    %p109 = scmp.eq.s32.totalorder %s15, 0
    %p110 = por %p108, %p109
    %p111 = scmp.le.s32.totalorder 1, %s9
    %p112 = scmp.lt.s32.totalorder %s9, 3
    %p113 = pnand %p111, %p112
    %p114 = pneg %p113
    // Predicated region
    $region9: #{unet_forward.17} parent=5 // pred_check
      _
    $region10: #{unet_forward.17} parent=5 // pred_check_branch
      %116 = sbr.rel (%p113) target = $region12
    $region11: #{unet_forward.17} parent=5 // pred_region
      %s117 = ssub.s32 %s9, 1
      // Predicated region
      $region13: #{unet_forward.17} parent=11 // pred_check
        %p118 = pneg %p30
      $region14: #{unet_forward.17} parent=11 // pred_check_branch
        %120 = sbr.rel (%p118) target = $region16
      $region15: #{unet_forward.17} parent=11 // pred_region
        _
      $region16: #{unet_forward.17} parent=11 // pred_fallthru
        _
      // Predicated region
      $region17: #{unet_forward.17} parent=11 // pred_check
        %p121 = pneg %p77
      $region18: #{unet_forward.17} parent=11 // pred_check_branch
        %123 = sbr.rel (%p121) target = $region20
      $region19: #{unet_forward.17} parent=11 // pred_region
        _
      $region20: #{unet_forward.17} parent=11 // pred_fallthru
        _
    $region12: #{unet_forward.17} parent=5 // pred_fallthru
      _
    %p124 = scmp.lt.s32.totalorder %s9, 2
    // Predicated region
    $region21: #{unet_forward.17} parent=5 // pred_check
      %p125 = pneg %p124
    $region22: #{unet_forward.17} parent=5 // pred_check_branch
      %127 = sbr.rel (%p125) target = $region24
    $region23: #{unet_forward.17} parent=5 // pred_region
      // Predicated region
      $region25: #{unet_forward.17} parent=23 // pred_check
        %p128 = pneg %p50
      $region26: #{unet_forward.17} parent=23 // pred_check_branch
        %130 = sbr.rel (%p128) target = $region28
      $region27: #{unet_forward.17} parent=23 // pred_region
        %p131 = scmp.lt.s32.totalorder %s9, 1
        %s132 = scalar_select %p131, %s9, 1
        %s133 = smul.addr %s132, 16
        %s134 = smul.addr %s133, 4
        %s135 = scalar_lea.vmem %s1, %s134
      $region28: #{unet_forward.17} parent=23 // pred_fallthru
        _
    $region24: #{unet_forward.17} parent=5 // pred_fallthru
      _
    %p136 = scmp.le.s32.totalorder 1, %s9
    %p137 = scmp.lt.s32.totalorder %s9, 3
    %p138 = pnand %p136, %p137
    %p139 = pneg %p138
    // Predicated region
    $region29: #{unet_forward.17} parent=5 // pred_check
      _
    $region30: #{unet_forward.17} parent=5 // pred_check_branch
      %141 = sbr.rel (%p138) target = $region32
    $region31: #{unet_forward.17} parent=5 // pred_region
      %s142 = ssub.s32 %s9, 1
      %p143 = pneg %p30
      %p144 = pneg %p27
      %p145 = scmp.lt.s32.totalorder %s14, 1
      %s146 = scalar_select %p145, %s14, 1
      %s147 = smul.addr %s146, 16
      %s148 = smul.addr %s147, 4
      %s149 = scalar_lea.vmem %s1, %s148
      %p150 = pneg %p56
      %p151 = pneg %p53
      %p152 = pneg %p77
      %p153 = pneg %p74
      %p154 = pneg %p103
      %p155 = pneg %p100
      %p156 = scmp.lt.s32.totalorder %s14, 1
      %s157 = scalar_select %p156, %s14, 1
      %s158 = smul.addr %s157, 8
      %s159 = smul.addr %s158, 4
      %s160 = scalar_lea.vmem %s3, %s159
      %p161 = scmp.lt.s32.totalorder %s14, 1
      %s162 = scalar_select %p161, %s14, 1
      %s163 = smul.addr %s162, 16
      %s164 = smul.addr %s163, 4
      %s165 = scalar_lea.vmem %s1, %s164
      %p166 = scmp.lt.s32.totalorder %s14, 1
      %s167 = scalar_select %p166, %s14, 1
      %s168 = smul.addr %s167, 8
      %s169 = smul.addr %s168, 4
      %s170 = scalar_lea.vmem %s3, %s169
      %v172 = vld [vmem:[%s0] sm:$0xf]
      %v173 = vld [vmem:[%s0 + $0x4] sm:$0xf]
      %v174 = vld [vmem:[%s0 + $0x8] sm:$0xf]
      %v175 = vld [vmem:[%s0 + $0xc] sm:$0xf]
      %v176 = vld [vmem:[%s0 + $0x10] sm:$0xf]
      %v177 = vld [vmem:[%s0 + $0x14] sm:$0xf]
      %v178 = vld [vmem:[%s0 + $0x18] sm:$0xf]
      %v179 = vld [vmem:[%s0 + $0x1c] sm:$0xf]
      %v180 = vld [vmem:[%s165] sm:$0xf]
      %v181 = vld [vmem:[%s165 + $0x4] sm:$0xf]
      %v182 = vld [vmem:[%s165 + $0x8] sm:$0xf]
      %v183 = vld [vmem:[%s165 + $0xc] sm:$0xf]
      %v184 = vld [vmem:[%s165 + $0x10] sm:$0xf]
      %v185 = vld [vmem:[%s165 + $0x14] sm:$0xf]
      %v186 = vld [vmem:[%s165 + $0x18] sm:$0xf]
      %v187 = vld [vmem:[%s165 + $0x1c] sm:$0xf]
      %v188 = vld [vmem:[%s165 + $0x20] sm:$0xf]
      %v189 = vld [vmem:[%s165 + $0x24] sm:$0xf]
      %v190 = vld [vmem:[%s165 + $0x28] sm:$0xf]
      %v191 = vld [vmem:[%s165 + $0x2c] sm:$0xf]
      %v192 = vld [vmem:[%s165 + $0x30] sm:$0xf]
      %v193 = vld [vmem:[%s165 + $0x34] sm:$0xf]
      %v194 = vld [vmem:[%s165 + $0x38] sm:$0xf]
      %v195 = vld [vmem:[%s165 + $0x3c] sm:$0xf]
      %v204 = vunpack.c.l.b16 %v172
      %v205 = vunpack.c.l.b16 %v173
      %v206 = vunpack.c.l.b16 %v174
      %v207 = vunpack.c.l.b16 %v175
      %v208 = vunpack.c.l.b16 %v176
      %v209 = vunpack.c.l.b16 %v177
      %v210 = vunpack.c.l.b16 %v178
      %v211 = vunpack.c.l.b16 %v179
      %v212 = vpack.c.b16 %v205, %v204
      %v213 = vpack.c.b16 %v207, %v206
      %v214 = vpack.c.b16 %v209, %v208
      %v215 = vpack.c.b16 %v211, %v210
      %v236 = vunpack.c.l.b16 %v180
      %v237 = vunpack.c.l.b16 %v181
      %v238 = vunpack.c.l.b16 %v182
      %v239 = vunpack.c.l.b16 %v183
      %v240 = vunpack.c.l.b16 %v184
      %v241 = vunpack.c.l.b16 %v185
      %v242 = vunpack.c.l.b16 %v186
      %v243 = vunpack.c.l.b16 %v187
      %v244 = vunpack.c.l.b16 %v188
      %v245 = vunpack.c.l.b16 %v189
      %v246 = vunpack.c.l.b16 %v190
      %v247 = vunpack.c.l.b16 %v191
      %v248 = vunpack.c.l.b16 %v192
      %v249 = vunpack.c.l.b16 %v193
      %v250 = vunpack.c.l.b16 %v194
      %v251 = vunpack.c.l.b16 %v195
      %v252 = vpack.c.b16 %v237, %v236
      %v253 = vpack.c.b16 %v239, %v238
      %v254 = vpack.c.b16 %v241, %v240
      %v255 = vpack.c.b16 %v243, %v242
      %v256 = vpack.c.b16 %v245, %v244
      %v257 = vpack.c.b16 %v247, %v246
      %v258 = vpack.c.b16 %v249, %v248
      %v259 = vpack.c.b16 %v251, %v250
      %268 = vmatprep.subr.bf16.mxu0 0
      %269 = vmatpush1.bf16.msra.mxu0 %v252
      %270 = vmatprep.subr.bf16.mxu0 0
      %271 = vmatpush1.bf16.msra.mxu0 %v253
      %272 = vmatprep.subr.bf16.mxu0 0
      %273 = vmatpush1.bf16.msra.mxu0 %v254
      %274 = vmatprep.subr.bf16.mxu0 0
      %275 = vmatpush1.bf16.msra.mxu0 %v255
      %276 = vmatprep.subr.bf16.mxu0 0
      %277 = vmatpush1.bf16.msra.mxu0 %v256
      %278 = vmatprep.subr.bf16.mxu0 0
      %279 = vmatpush1.bf16.msra.mxu0 %v257
      %280 = vmatprep.subr.bf16.mxu0 0
      %281 = vmatpush1.bf16.msra.mxu0 %v258
      %282 = vmatprep.subr.bf16.mxu0 0
      %283 = vmatpush1.bf16.msra.mxu0 %v259
      %284 = vmatprep.subr.bf16.mxu0 0
      %285 = vmatpush1.bf16.msra.mxu0 0
      %286 = vmatprep.subr.bf16.mxu0 0
      %287 = vmatpush1.bf16.msra.mxu0 0
      %288 = vmatprep.subr.bf16.mxu0 0
      %289 = vmatpush1.bf16.msra.mxu0 0
      %290 = vmatprep.subr.bf16.mxu0 0
      %291 = vmatpush1.bf16.msra.mxu0 0
      %292 = vmatprep.subr.bf16.mxu0 0
      %293 = vmatpush1.bf16.msra.mxu0 0
      %294 = vmatprep.subr.bf16.mxu0 0
      %295 = vmatpush1.bf16.msra.mxu0 0
      %296 = vmatprep.subr.bf16.mxu0 0
      %297 = vmatpush1.bf16.msra.mxu0 0
      %298 = vmatprep.subr.bf16.mxu0 0
      %299 = vmatpush1.bf16.msra.mxu0 0
      %300 = vmatprep.mubr.bf16.mxu0 0
      %301 = vmatmul.mubr.bf16.gmra.mrb[0].mxu0 %v212
      %v302 = vpop.f32.mrb[0].mxu0
      %v303 = vadd.f32 0.0, %v302
      %v304 = vpop.f32.mrb[0].mxu0
      %v305 = vpop.f32.mrb[0].mxu0
      %v306 = vadd.f32 0.0, %v305
      %v307 = vpop.f32.mrb[0].mxu0
      %308 = vmatprep.mubr.bf16.mxu0 0
      %309 = vmatmul.mubr.bf16.gmra.mrb[0].mxu0 %v213
      %v310 = vpop.f32.mrb[0].mxu0
      %v311 = vadd.f32 0.0, %v310
      %v312 = vpop.f32.mrb[0].mxu0
      %v313 = vpop.f32.mrb[0].mxu0
      %v314 = vadd.f32 0.0, %v313
      %v315 = vpop.f32.mrb[0].mxu0
      %316 = vmatprep.mubr.bf16.mxu0 0
      %317 = vmatmul.mubr.bf16.gmra.mrb[0].mxu0 %v214
      %v318 = vpop.f32.mrb[0].mxu0
      %v319 = vadd.f32 0.0, %v318
      %v320 = vpop.f32.mrb[0].mxu0
      %v321 = vpop.f32.mrb[0].mxu0
      %v322 = vadd.f32 0.0, %v321
      %v323 = vpop.f32.mrb[0].mxu0
      %324 = vmatprep.mubr.bf16.mxu0 0
      %325 = vmatmul.mubr.bf16.gmra.mrb[0].mxu0 %v215
      %v326 = vpop.f32.mrb[0].mxu0
      %v327 = vadd.f32 0.0, %v326
      %v328 = vpop.f32.mrb[0].mxu0
      %v329 = vpop.f32.mrb[0].mxu0
      %v330 = vadd.f32 0.0, %v329
      %v331 = vpop.f32.mrb[0].mxu0
      %332 = vdwg.mxu0
      %v333 = vld [vmem:[%s2] sm:$0xf]
      %v334 = vlaneseq
      %v335 = vshrl.u32 %v334, 7
      %v336 = vsub.s32 0, %v335
      %v337 = vrot.slane %v333, %v336
      %v338 = vmul.f32 %v303, %v337
      %v339 = vmul.f32 %v306, %v337
      %vm340 = vcmask 72704
      %v341 = vsel %vm340, %v338, 0.0
      %v342 = vsel %vm340, %v339, 0.0
      %v343 = vadd.f32 %v341, %v342
      %344 = vadd.xlane.f32.xlu0 %v343
      %v345 = vpop.xlane.xlu0 %344
      %v346 = vrot.slane %v345, 4
      %v347 = vadd.f32 %v345, %v346
      %v348 = vrot.slane %v347, 2
      %v349 = vadd.f32 %v347, %v348
      %v350 = vrot.slane %v349, 1
      %v351 = vadd.f32 %v349, %v350
      %s352 = vtos %v351
      %v353 = vstv %s352
      %v354 = vadd.f32 %v353, 0.0
      %v355 = vlaneseq
      %v356 = vshrl.u32 %v355, 7
      %v357 = vsub.s32 1, %v356
      %v358 = vrot.slane %v333, %v357
      %v359 = vmul.f32 %v311, %v358
      %v360 = vmul.f32 %v314, %v358
      %v361 = vsel %vm340, %v359, 0.0
      %v362 = vsel %vm340, %v360, 0.0
      %v363 = vadd.f32 %v361, %v362
      %364 = vadd.xlane.f32.xlu0 %v363
      %v365 = vpop.xlane.xlu0 %364
      %v366 = vrot.slane %v365, 4
      %v367 = vadd.f32 %v365, %v366
      %v368 = vrot.slane %v367, 2
      %v369 = vadd.f32 %v367, %v368
      %v370 = vrot.slane %v369, 1
      %v371 = vadd.f32 %v369, %v370
      %s372 = vtos %v371
      %v373 = vstv %s372
      %v374 = vadd.f32 %v354, %v373
      %v375 = vlaneseq
      %v376 = vshrl.u32 %v375, 7
      %v377 = vsub.s32 2, %v376
      %v378 = vrot.slane %v333, %v377
      %v379 = vmul.f32 %v319, %v378
      %v380 = vmul.f32 %v322, %v378
      %v381 = vsel %vm340, %v379, 0.0
      %v382 = vsel %vm340, %v380, 0.0
      %v383 = vadd.f32 %v381, %v382
      %384 = vadd.xlane.f32.xlu0 %v383
      %v385 = vpop.xlane.xlu0 %384
      %v386 = vrot.slane %v385, 4
      %v387 = vadd.f32 %v385, %v386
      %v388 = vrot.slane %v387, 2
      %v389 = vadd.f32 %v387, %v388
      %v390 = vrot.slane %v389, 1
      %v391 = vadd.f32 %v389, %v390
      %s392 = vtos %v391
      %v393 = vstv %s392
      %v394 = vadd.f32 %v374, %v393
      %v395 = vlaneseq
      %v396 = vshrl.u32 %v395, 7
      %v397 = vsub.s32 3, %v396
      %v398 = vrot.slane %v333, %v397
      %v399 = vmul.f32 %v327, %v398
      %v400 = vmul.f32 %v330, %v398
      %v401 = vsel %vm340, %v399, 0.0
      %v402 = vsel %vm340, %v400, 0.0
      %v403 = vadd.f32 %v401, %v402
      %404 = vadd.xlane.f32.xlu0 %v403
      %v405 = vpop.xlane.xlu0 %404
      %v406 = vrot.slane %v405, 4
      %v407 = vadd.f32 %v405, %v406
      %v408 = vrot.slane %v407, 2
      %v409 = vadd.f32 %v407, %v408
      %v410 = vrot.slane %v409, 1
      %v411 = vadd.f32 %v409, %v410
      %s412 = vtos %v411
      %v413 = vstv %s412
      %v414 = vadd.f32 %v394, %v413
      %v415 = vrcp.pop 256.0
      %v416 = vmul.f32 %v414, %v415
      %v417 = vsub.f32 %v303, %v416
      %v418 = vsub.f32 %v306, %v416
      %v419 = vsub.f32 %v311, %v416
      %v420 = vsub.f32 %v314, %v416
      %v421 = vsub.f32 %v319, %v416
      %v422 = vsub.f32 %v322, %v416
      %v423 = vsub.f32 %v327, %v416
      %v424 = vsub.f32 %v330, %v416
      %v425 = vmul.f32 %v417, %v417
      %v426 = vmul.f32 %v418, %v418
      %v427 = vmul.f32 %v425, %v337
      %v428 = vmul.f32 %v426, %v337
      %v429 = vsel %vm340, %v427, 0.0
      %v430 = vsel %vm340, %v428, 0.0
      %v431 = vadd.f32 %v429, %v430
      %432 = vadd.xlane.f32.xlu0 %v431
      %v433 = vpop.xlane.xlu0 %432
      %v434 = vrot.slane %v433, 4
      %v435 = vadd.f32 %v433, %v434
      %v436 = vrot.slane %v435, 2
      %v437 = vadd.f32 %v435, %v436
      %v438 = vrot.slane %v437, 1
      %v439 = vadd.f32 %v437, %v438
      %s440 = vtos %v439
      %v441 = vstv %s440
      %v442 = vadd.f32 %v441, 0.0
      %v443 = vmul.f32 %v419, %v419
      %v444 = vmul.f32 %v420, %v420
      %v445 = vmul.f32 %v443, %v358
      %v446 = vmul.f32 %v444, %v358
      %v447 = vsel %vm340, %v445, 0.0
      %v448 = vsel %vm340, %v446, 0.0
      %v449 = vadd.f32 %v447, %v448
      %450 = vadd.xlane.f32.xlu0 %v449
      %v451 = vpop.xlane.xlu0 %450
      %v452 = vrot.slane %v451, 4
      %v453 = vadd.f32 %v451, %v452
      %v454 = vrot.slane %v453, 2
      %v455 = vadd.f32 %v453, %v454
      %v456 = vrot.slane %v455, 1
      %v457 = vadd.f32 %v455, %v456
      %s458 = vtos %v457
      %v459 = vstv %s458
      %v460 = vadd.f32 %v442, %v459
      %v461 = vmul.f32 %v421, %v421
      %v462 = vmul.f32 %v422, %v422
      %v463 = vmul.f32 %v461, %v378
      %v464 = vmul.f32 %v462, %v378
      %v465 = vsel %vm340, %v463, 0.0
      %v466 = vsel %vm340, %v464, 0.0
      %v467 = vadd.f32 %v465, %v466
      %468 = vadd.xlane.f32.xlu0 %v467
      %v469 = vpop.xlane.xlu0 %468
      %v470 = vrot.slane %v469, 4
      %v471 = vadd.f32 %v469, %v470
      %v472 = vrot.slane %v471, 2
      %v473 = vadd.f32 %v471, %v472
      %v474 = vrot.slane %v473, 1
      %v475 = vadd.f32 %v473, %v474
      %s476 = vtos %v475
      %v477 = vstv %s476
      %v478 = vadd.f32 %v460, %v477
      %v479 = vmul.f32 %v423, %v423
      %v480 = vmul.f32 %v424, %v424
      %v481 = vmul.f32 %v479, %v398
      %v482 = vmul.f32 %v480, %v398
      %v483 = vsel %vm340, %v481, 0.0
      %v484 = vsel %vm340, %v482, 0.0
      %v485 = vadd.f32 %v483, %v484
      %486 = vadd.xlane.f32.xlu0 %v485
      %v487 = vpop.xlane.xlu0 %486
      %v488 = vrot.slane %v487, 4
      %v489 = vadd.f32 %v487, %v488
      %v490 = vrot.slane %v489, 2
      %v491 = vadd.f32 %v489, %v490
      %v492 = vrot.slane %v491, 1
      %v493 = vadd.f32 %v491, %v492
      %s494 = vtos %v493
      %v495 = vstv %s494
      %v496 = vadd.f32 %v478, %v495
      %v497 = vrcp.pop 255.0
      %v498 = vmul.f32 %v496, %v497
      %v499 = vrsqrt.pop %v498
      %v500 = vmul.f32 %v498, %v499
      %vm501 = vcmp.eq.f32.partialorder %v498, inf
      %v502 = vsel %vm501, %v498, %v500
      %vm503 = vcmp.eq.f32.partialorder %v498, 0.0
      %v504 = vand.u32 %v498, 2147483648
      %v505 = vsel %vm503, %v504, %v502
      %v506 = vadd.f32 %v505, 1e-05
      %v507 = vrcp.pop %v506
      %v508 = vmul.f32 %v417, %v507
      %v509 = vmul.f32 %v418, %v507
      %v510 = vmul.f32 %v419, %v507
      %v511 = vmul.f32 %v420, %v507
      %v512 = vmul.f32 %v421, %v507
      %v513 = vmul.f32 %v422, %v507
      %v514 = vmul.f32 %v423, %v507
      %v515 = vmul.f32 %v424, %v507
      %v516 = vpack.c.bf16 %v509, %v508
      %v517 = vpack.c.bf16 %v511, %v510
      %v518 = vpack.c.bf16 %v513, %v512
      %v519 = vpack.c.bf16 %v515, %v514
      %v524 = vunpack.c.l.b16 %v516
      %v525 = vunpack.c.h.b16 %v516
      %v526 = vunpack.c.l.b16 %v517
      %v527 = vunpack.c.h.b16 %v517
      %v528 = vunpack.c.l.b16 %v518
      %v529 = vunpack.c.h.b16 %v518
      %v530 = vunpack.c.l.b16 %v519
      %v531 = vunpack.c.h.b16 %v519
      %v532 = vpack.c.b16 %v524, %v524
      %v533 = vpack.c.b16 %v525, %v525
      %v534 = vpack.c.b16 %v526, %v526
      %v535 = vpack.c.b16 %v527, %v527
      %v536 = vpack.c.b16 %v528, %v528
      %v537 = vpack.c.b16 %v529, %v529
      %v538 = vpack.c.b16 %v530, %v530
      %v539 = vpack.c.b16 %v531, %v531
      %vm548 = vcmask 68608
      %549 = vst.msk [vmem:[%s170] sm:$0xf] %vm548, %v532
      %550 = vst.msk [vmem:[%s170 + $0x4] sm:$0xf] %vm548, %v533
      %551 = vst.msk [vmem:[%s170 + $0x8] sm:$0xf] %vm548, %v534
      %552 = vst.msk [vmem:[%s170 + $0xc] sm:$0xf] %vm548, %v535
      %553 = vst.msk [vmem:[%s170 + $0x10] sm:$0xf] %vm548, %v536
      %554 = vst.msk [vmem:[%s170 + $0x14] sm:$0xf] %vm548, %v537
      %555 = vst.msk [vmem:[%s170 + $0x18] sm:$0xf] %vm548, %v538
      %556 = vst.msk [vmem:[%s170 + $0x1c] sm:$0xf] %vm548, %v539
      %p557 = scmp.lt.s32.totalorder %s14, 1
      %s558 = scalar_select %p557, %s14, 1
      %s559 = smul.addr %s558, 8
      %s560 = smul.addr %s559, 4
      %s561 = scalar_lea.vmem %s3, %s560
      // Predicated region
      $region33: #{unet_forward.17} parent=31 // pred_check
        %p562 = pneg %p100
      $region34: #{unet_forward.17} parent=31 // pred_check_branch
        %564 = sbr.rel (%p562) target = $region36
      $region35: #{unet_forward.17} parent=31 // pred_region
        _
      $region36: #{unet_forward.17} parent=31 // pred_fallthru
        _
    $region32: #{unet_forward.17} parent=5 // pred_fallthru
      _
    %p565 = scmp.le.s32.totalorder 2, %s9
    // Predicated region
    $region37: #{unet_forward.17} parent=5 // pred_check
      %p566 = pneg %p565
    $region38: #{unet_forward.17} parent=5 // pred_check_branch
      %568 = sbr.rel (%p566) target = $region40
    $region39: #{unet_forward.17} parent=5 // pred_region
      %s569 = ssub.s32 %s9, 2
      // Predicated region
      $region41: #{unet_forward.17} parent=39 // pred_check
        %p570 = pneg %p106
      $region42: #{unet_forward.17} parent=39 // pred_check_branch
        %572 = sbr.rel (%p570) target = $region44
      $region43: #{unet_forward.17} parent=39 // pred_region
        %p573 = scmp.lt.s32.totalorder %s15, 1
        %s574 = scalar_select %p573, %s15, 1
        %s575 = smul.addr %s574, 8
        %s576 = smul.addr %s575, 4
        %s577 = scalar_lea.vmem %s3, %s576
      $region44: #{unet_forward.17} parent=39 // pred_fallthru
        _
    $region40: #{unet_forward.17} parent=5 // pred_fallthru
      _
  $region6: #{unet_forward.17} parent=0 // loop_footer
    %s13 = sadd.s32 1, %s9
  $region7: #{unet_forward.17} parent=0 // loop_footer_branch
    %8 = sbr.rel target = $region3
  $region8: #{unet_forward.17} parent=0 // loop_exit
    _

// kernel: unet_forward.18
$region0: #{unet_forward.18}
  #allocation0 [shape = 'u32[]', space=smem, size = 0x4, offset = 0x4, fixed_abs, tag = 'smem constant byte address 0x4 - core index']
  #allocation1 [shape = 'u32[144,128]{1,0:T(1,128)}', space=vmem, size = 0x12000, scoped, tag = 'internal scratch']
  %s0 = inlined_call_operand.vmem [shape: bf16[64,128], index: 0, kind: input, shape index: {}]
  %s1 = inlined_call_operand.vmem [shape: bf16[2,128,25], index: 1, kind: input, shape index: {}]
  %s2 = inlined_call_operand.vmem [shape: f32[4,25], index: 2, kind: input, shape index: {}]
  %s3 = inlined_call_operand.vmem [shape: bf16[2,64,25], index: 3, kind: output, shape index: {}]
  %s4 = sld [smem:[#allocation0]]
  $region45: #{unet_forward.18} parent=0
    _
  %s6 = ssub.s32 1, %s4
  %s7 = scalar_select 0, %s6, %s4
  loop: start=0, step=1, limit=4
  $region2: #{unet_forward.18} parent=0 // loop_pre_header
    _
  $region3: #{unet_forward.18} parent=0 // loop_header
    %s9 = sphi 0, %s13
    %p10 = scmp.ge.s32.totalorder %s9, 4
    %s17 = sphi 0, %s17
    %s19 = sphi 0, %s17
    %s20 = sphi 0, %s19
    %s34 = sphi 0, %s20
    %s40 = sphi 0, %s42
    %s43 = sphi 0, %s40
    %s44 = sphi 0, %s43
    %s60 = sphi 0, %s44
    %s64 = sphi 0, %s64
    %s66 = sphi 0, %s64
    %s67 = sphi 0, %s66
    %s81 = sphi 0, %s67
    %s87 = sphi 0, %s89
    %s90 = sphi 0, %s87
    %s91 = sphi 0, %s90
    %s107 = sphi 0, %s91
  $region4: #{unet_forward.18} parent=0 // loop_header_branch
    %12 = sbr.rel (%p10) target = $region8
  $region5: #{unet_forward.18} parent=0 // loop_body
    %s14 = ssub.s32 %s9, 1
    %s15 = ssub.s32 %s9, 2
    %s16 = sadd.s32 %s9, 1
    %s18 = sadd.s32 %s17, 1
    %p21 = scmp.eq.s32.totalorder %s9, 1
    %p22 = scmp.ne.s32.totalorder %s17, %s19
    %p23 = scmp.eq.s32.totalorder %s9, 0
    %p24 = por %p22, %p23
    %p25 = scmp.ne.s32.totalorder %s17, %s19
    %p26 = scmp.eq.s32.totalorder %s14, 1
    %p27 = por %p25, %p26
    %p28 = scmp.ne.s32.totalorder %s19, %s20
    %p29 = scmp.eq.s32.totalorder %s14, 0
    %p30 = por %p28, %p29
    %p31 = scmp.ne.s32.totalorder %s19, %s20
    %p32 = scmp.eq.s32.totalorder %s15, 1
    %p33 = por %p31, %p32
    %p35 = scmp.ne.s32.totalorder %s20, %s34
    %p36 = scmp.eq.s32.totalorder %s15, 0
    %p37 = por %p35, %p36
    %s38 = ssub.s32 %s9, %s16
    %p39 = scmp.eq.s32.totalorder %s38, 0
    %s41 = sadd.s32 %s40, 1
    %s42 = scalar_select %p39, %s40, %s41
    %p45 = pneg %p39
    %p46 = scmp.eq.s32.totalorder %s9, 1
    %p47 = por %p45, %p46
    %p48 = scmp.ne.s32.totalorder %s40, %s43
    %p49 = scmp.eq.s32.totalorder %s9, 0
    %p50 = por %p48, %p49
    %p51 = scmp.ne.s32.totalorder %s40, %s43
    %p52 = scmp.eq.s32.totalorder %s14, 1
    %p53 = por %p51, %p52
    %p54 = scmp.ne.s32.totalorder %s43, %s44
    %p55 = scmp.eq.s32.totalorder %s14, 0
    %p56 = por %p54, %p55
    %p57 = scmp.ne.s32.totalorder %s43, %s44
    %p58 = scmp.eq.s32.totalorder %s15, 1
    %p59 = por %p57, %p58
    %p61 = scmp.ne.s32.totalorder %s44, %s60
    %p62 = scmp.eq.s32.totalorder %s15, 0
    %p63 = por %p61, %p62
    %s65 = sadd.s32 %s64, 1
    %p68 = scmp.eq.s32.totalorder %s9, 1
    %p69 = scmp.ne.s32.totalorder %s64, %s66
    %p70 = scmp.eq.s32.totalorder %s9, 0
    %p71 = por %p69, %p70
    %p72 = scmp.ne.s32.totalorder %s64, %s66
    %p73 = scmp.eq.s32.totalorder %s14, 1
    %p74 = por %p72, %p73
    %p75 = scmp.ne.s32.totalorder %s66, %s67
    %p76 = scmp.eq.s32.totalorder %s14, 0
    %p77 = por %p75, %p76
    %p78 = scmp.ne.s32.totalorder %s66, %s67
    %p79 = scmp.eq.s32.totalorder %s15, 1
    %p80 = por %p78, %p79
    %p82 = scmp.ne.s32.totalorder %s67, %s81
    %p83 = scmp.eq.s32.totalorder %s15, 0
    %p84 = por %p82, %p83
    %s85 = ssub.s32 %s9, %s16
    %p86 = scmp.eq.s32.totalorder %s85, 0
    %s88 = sadd.s32 %s87, 1
    %s89 = scalar_select %p86, %s87, %s88
    %p92 = pneg %p86
    %p93 = scmp.eq.s32.totalorder %s9, 1
    %p94 = por %p92, %p93
    %p95 = scmp.ne.s32.totalorder %s87, %s90
    %p96 = scmp.eq.s32.totalorder %s9, 0
    %p97 = por %p95, %p96
    %p98 = scmp.ne.s32.totalorder %s87, %s90
    %p99 = scmp.eq.s32.totalorder %s14, 1
    %p100 = por %p98, %p99
    %p101 = scmp.ne.s32.totalorder %s90, %s91
    %p102 = scmp.eq.s32.totalorder %s14, 0
    %p103 = por %p101, %p102
    %p104 = scmp.ne.s32.totalorder %s90, %s91
    %p105 = scmp.eq.s32.totalorder %s15, 1
    %p106 = por %p104, %p105
    %p108 = scmp.ne.s32.totalorder %s91, %s107
    %p109 = scmp.eq.s32.totalorder %s15, 0
    %p110 = por %p108, %p109
    %p111 = scmp.le.s32.totalorder 1, %s9
    %p112 = scmp.lt.s32.totalorder %s9, 3
    %p113 = pnand %p111, %p112
    %p114 = pneg %p113
    // Predicated region
    $region9: #{unet_forward.18} parent=5 // pred_check
      _
    $region10: #{unet_forward.18} parent=5 // pred_check_branch
      %116 = sbr.rel (%p113) target = $region12
    $region11: #{unet_forward.18} parent=5 // pred_region
      %s117 = ssub.s32 %s9, 1
      // Predicated region
      $region13: #{unet_forward.18} parent=11 // pred_check
        %p118 = pneg %p30
      $region14: #{unet_forward.18} parent=11 // pred_check_branch
        %120 = sbr.rel (%p118) target = $region16
      $region15: #{unet_forward.18} parent=11 // pred_region
        _
      $region16: #{unet_forward.18} parent=11 // pred_fallthru
        _
      // Predicated region
      $region17: #{unet_forward.18} parent=11 // pred_check
        %p121 = pneg %p77
      $region18: #{unet_forward.18} parent=11 // pred_check_branch
        %123 = sbr.rel (%p121) target = $region20
      $region19: #{unet_forward.18} parent=11 // pred_region
        _
      $region20: #{unet_forward.18} parent=11 // pred_fallthru
        _
    $region12: #{unet_forward.18} parent=5 // pred_fallthru
      _
    %p124 = scmp.lt.s32.totalorder %s9, 2
    // Predicated region
    $region21: #{unet_forward.18} parent=5 // pred_check
      %p125 = pneg %p124
    $region22: #{unet_forward.18} parent=5 // pred_check_branch
      %127 = sbr.rel (%p125) target = $region24
    $region23: #{unet_forward.18} parent=5 // pred_region
      // Predicated region
      $region25: #{unet_forward.18} parent=23 // pred_check
        %p128 = pneg %p50
      $region26: #{unet_forward.18} parent=23 // pred_check_branch
        %130 = sbr.rel (%p128) target = $region28
      $region27: #{unet_forward.18} parent=23 // pred_region
        %p131 = scmp.lt.s32.totalorder %s9, 1
        %s132 = scalar_select %p131, %s9, 1
        %s133 = smul.addr %s132, 16
        %s134 = smul.addr %s133, 4
        %s135 = scalar_lea.vmem %s1, %s134
      $region28: #{unet_forward.18} parent=23 // pred_fallthru
        _
    $region24: #{unet_forward.18} parent=5 // pred_fallthru
      _
    %p136 = scmp.le.s32.totalorder 1, %s9
    %p137 = scmp.lt.s32.totalorder %s9, 3
    %p138 = pnand %p136, %p137
    %p139 = pneg %p138
    // Predicated region
    $region29: #{unet_forward.18} parent=5 // pred_check
      _
    $region30: #{unet_forward.18} parent=5 // pred_check_branch
      %141 = sbr.rel (%p138) target = $region32
    $region31: #{unet_forward.18} parent=5 // pred_region
      %s142 = ssub.s32 %s9, 1
      %p143 = pneg %p30
      %p144 = pneg %p27
      %p145 = scmp.lt.s32.totalorder %s14, 1
      %s146 = scalar_select %p145, %s14, 1
      %s147 = smul.addr %s146, 16
      %s148 = smul.addr %s147, 4
      %s149 = scalar_lea.vmem %s1, %s148
      %p150 = pneg %p56
      %p151 = pneg %p53
      %p152 = pneg %p77
      %p153 = pneg %p74
      %p154 = pneg %p103
      %p155 = pneg %p100
      %p156 = scmp.lt.s32.totalorder %s14, 1
      %s157 = scalar_select %p156, %s14, 1
      %s158 = smul.addr %s157, 8
      %s159 = smul.addr %s158, 4
      %s160 = scalar_lea.vmem %s3, %s159
      %p161 = scmp.lt.s32.totalorder %s14, 1
      %s162 = scalar_select %p161, %s14, 1
      %s163 = smul.addr %s162, 16
      %s164 = smul.addr %s163, 4
      %s165 = scalar_lea.vmem %s1, %s164
      %p166 = scmp.lt.s32.totalorder %s14, 1
      %s167 = scalar_select %p166, %s14, 1
      %s168 = smul.addr %s167, 8
      %s169 = smul.addr %s168, 4
      %s170 = scalar_lea.vmem %s3, %s169
      %v172 = vld [vmem:[%s0] sm:$0xf]
      %v173 = vld [vmem:[%s0 + $0x4] sm:$0xf]
      %v174 = vld [vmem:[%s0 + $0x8] sm:$0xf]
      %v175 = vld [vmem:[%s0 + $0xc] sm:$0xf]
      %v176 = vld [vmem:[%s0 + $0x10] sm:$0xf]
      %v177 = vld [vmem:[%s0 + $0x14] sm:$0xf]
      %v178 = vld [vmem:[%s0 + $0x18] sm:$0xf]
      %v179 = vld [vmem:[%s0 + $0x1c] sm:$0xf]
      %v180 = vld [vmem:[%s165] sm:$0xf]
      %v181 = vld [vmem:[%s165 + $0x4] sm:$0xf]
      %v182 = vld [vmem:[%s165 + $0x8] sm:$0xf]
      %v183 = vld [vmem:[%s165 + $0xc] sm:$0xf]
      %v184 = vld [vmem:[%s165 + $0x10] sm:$0xf]
      %v185 = vld [vmem:[%s165 + $0x14] sm:$0xf]
      %v186 = vld [vmem:[%s165 + $0x18] sm:$0xf]
      %v187 = vld [vmem:[%s165 + $0x1c] sm:$0xf]
      %v188 = vld [vmem:[%s165 + $0x20] sm:$0xf]
      %v189 = vld [vmem:[%s165 + $0x24] sm:$0xf]
      %v190 = vld [vmem:[%s165 + $0x28] sm:$0xf]
      %v191 = vld [vmem:[%s165 + $0x2c] sm:$0xf]
      %v192 = vld [vmem:[%s165 + $0x30] sm:$0xf]
      %v193 = vld [vmem:[%s165 + $0x34] sm:$0xf]
      %v194 = vld [vmem:[%s165 + $0x38] sm:$0xf]
      %v195 = vld [vmem:[%s165 + $0x3c] sm:$0xf]
      %v204 = vunpack.c.l.b16 %v172
      %v205 = vunpack.c.l.b16 %v173
      %v206 = vunpack.c.l.b16 %v174
      %v207 = vunpack.c.l.b16 %v175
      %v208 = vunpack.c.l.b16 %v176
      %v209 = vunpack.c.l.b16 %v177
      %v210 = vunpack.c.l.b16 %v178
      %v211 = vunpack.c.l.b16 %v179
      %v212 = vpack.c.b16 %v205, %v204
      %v213 = vpack.c.b16 %v207, %v206
      %v214 = vpack.c.b16 %v209, %v208
      %v215 = vpack.c.b16 %v211, %v210
      %v236 = vunpack.c.l.b16 %v180
      %v237 = vunpack.c.l.b16 %v181
      %v238 = vunpack.c.l.b16 %v182
      %v239 = vunpack.c.l.b16 %v183
      %v240 = vunpack.c.l.b16 %v184
      %v241 = vunpack.c.l.b16 %v185
      %v242 = vunpack.c.l.b16 %v186
      %v243 = vunpack.c.l.b16 %v187
      %v244 = vunpack.c.l.b16 %v188
      %v245 = vunpack.c.l.b16 %v189
      %v246 = vunpack.c.l.b16 %v190
      %v247 = vunpack.c.l.b16 %v191
      %v248 = vunpack.c.l.b16 %v192
      %v249 = vunpack.c.l.b16 %v193
      %v250 = vunpack.c.l.b16 %v194
      %v251 = vunpack.c.l.b16 %v195
      %v252 = vpack.c.b16 %v237, %v236
      %v253 = vpack.c.b16 %v239, %v238
      %v254 = vpack.c.b16 %v241, %v240
      %v255 = vpack.c.b16 %v243, %v242
      %v256 = vpack.c.b16 %v245, %v244
      %v257 = vpack.c.b16 %v247, %v246
      %v258 = vpack.c.b16 %v249, %v248
      %v259 = vpack.c.b16 %v251, %v250
      %268 = vmatprep.subr.bf16.mxu0 0
      %269 = vmatpush1.bf16.msra.mxu0 %v252
      %270 = vmatprep.subr.bf16.mxu0 0
      %271 = vmatpush1.bf16.msra.mxu0 %v253
      %272 = vmatprep.subr.bf16.mxu0 0
      %273 = vmatpush1.bf16.msra.mxu0 %v254
      %274 = vmatprep.subr.bf16.mxu0 0
      %275 = vmatpush1.bf16.msra.mxu0 %v255
      %276 = vmatprep.subr.bf16.mxu0 0
      %277 = vmatpush1.bf16.msra.mxu0 %v256
      %278 = vmatprep.subr.bf16.mxu0 0
      %279 = vmatpush1.bf16.msra.mxu0 %v257
      %280 = vmatprep.subr.bf16.mxu0 0
      %281 = vmatpush1.bf16.msra.mxu0 %v258
      %282 = vmatprep.subr.bf16.mxu0 0
      %283 = vmatpush1.bf16.msra.mxu0 %v259
      %284 = vmatprep.subr.bf16.mxu0 0
      %285 = vmatpush1.bf16.msra.mxu0 0
      %286 = vmatprep.subr.bf16.mxu0 0
      %287 = vmatpush1.bf16.msra.mxu0 0
      %288 = vmatprep.subr.bf16.mxu0 0
      %289 = vmatpush1.bf16.msra.mxu0 0
      %290 = vmatprep.subr.bf16.mxu0 0
      %291 = vmatpush1.bf16.msra.mxu0 0
      %292 = vmatprep.subr.bf16.mxu0 0
      %293 = vmatpush1.bf16.msra.mxu0 0
      %294 = vmatprep.subr.bf16.mxu0 0
      %295 = vmatpush1.bf16.msra.mxu0 0
      %296 = vmatprep.subr.bf16.mxu0 0
      %297 = vmatpush1.bf16.msra.mxu0 0
      %298 = vmatprep.subr.bf16.mxu0 0
      %299 = vmatpush1.bf16.msra.mxu0 0
      %300 = vmatprep.mubr.bf16.mxu0 0
      %301 = vmatmul.mubr.bf16.gmra.mrb[0].mxu0 %v212
      %v302 = vpop.f32.mrb[0].mxu0
      %v303 = vadd.f32 0.0, %v302
      %v304 = vpop.f32.mrb[0].mxu0
      %v305 = vpop.f32.mrb[0].mxu0
      %v306 = vadd.f32 0.0, %v305
      %v307 = vpop.f32.mrb[0].mxu0
      %308 = vmatprep.mubr.bf16.mxu0 0
      %309 = vmatmul.mubr.bf16.gmra.mrb[0].mxu0 %v213
      %v310 = vpop.f32.mrb[0].mxu0
      %v311 = vadd.f32 0.0, %v310
      %v312 = vpop.f32.mrb[0].mxu0
      %v313 = vpop.f32.mrb[0].mxu0
      %v314 = vadd.f32 0.0, %v313
      %v315 = vpop.f32.mrb[0].mxu0
      %316 = vmatprep.mubr.bf16.mxu0 0
      %317 = vmatmul.mubr.bf16.gmra.mrb[0].mxu0 %v214
      %v318 = vpop.f32.mrb[0].mxu0
      %v319 = vadd.f32 0.0, %v318
      %v320 = vpop.f32.mrb[0].mxu0
      %v321 = vpop.f32.mrb[0].mxu0
      %v322 = vadd.f32 0.0, %v321
      %v323 = vpop.f32.mrb[0].mxu0
      %324 = vmatprep.mubr.bf16.mxu0 0
      %325 = vmatmul.mubr.bf16.gmra.mrb[0].mxu0 %v215
      %v326 = vpop.f32.mrb[0].mxu0
      %v327 = vadd.f32 0.0, %v326
      %v328 = vpop.f32.mrb[0].mxu0
      %v329 = vpop.f32.mrb[0].mxu0
      %v330 = vadd.f32 0.0, %v329
      %v331 = vpop.f32.mrb[0].mxu0
      %332 = vdwg.mxu0
      %v333 = vld [vmem:[%s2] sm:$0xf]
      %v334 = vlaneseq
      %v335 = vshrl.u32 %v334, 7
      %v336 = vsub.s32 0, %v335
      %v337 = vrot.slane %v333, %v336
      %v338 = vmul.f32 %v303, %v337
      %v339 = vmul.f32 %v306, %v337
      %vm340 = vcmask 203776
      %v341 = vsel %vm340, %v338, 0.0
      %v342 = vsel %vm340, %v339, 0.0
      %v343 = vadd.f32 %v341, %v342
      %344 = vadd.xlane.f32.xlu0 %v343
      %v345 = vpop.xlane.xlu0 %344
      %v346 = vrot.slane %v345, 4
      %v347 = vadd.f32 %v345, %v346
      %v348 = vrot.slane %v347, 2
      %v349 = vadd.f32 %v347, %v348
      %v350 = vrot.slane %v349, 1
      %v351 = vadd.f32 %v349, %v350
      %s352 = vtos %v351
      %v353 = vstv %s352
      %v354 = vadd.f32 %v353, 0.0
      %v355 = vlaneseq
      %v356 = vshrl.u32 %v355, 7
      %v357 = vsub.s32 1, %v356
      %v358 = vrot.slane %v333, %v357
      %v359 = vmul.f32 %v311, %v358
      %v360 = vmul.f32 %v314, %v358
      %v361 = vsel %vm340, %v359, 0.0
      %v362 = vsel %vm340, %v360, 0.0
      %v363 = vadd.f32 %v361, %v362
      %364 = vadd.xlane.f32.xlu0 %v363
      %v365 = vpop.xlane.xlu0 %364
      %v366 = vrot.slane %v365, 4
      %v367 = vadd.f32 %v365, %v366
      %v368 = vrot.slane %v367, 2
      %v369 = vadd.f32 %v367, %v368
      %v370 = vrot.slane %v369, 1
      %v371 = vadd.f32 %v369, %v370
      %s372 = vtos %v371
      %v373 = vstv %s372
      %v374 = vadd.f32 %v354, %v373
      %v375 = vlaneseq
      %v376 = vshrl.u32 %v375, 7
      %v377 = vsub.s32 2, %v376
      %v378 = vrot.slane %v333, %v377
      %v379 = vmul.f32 %v319, %v378
      %v380 = vmul.f32 %v322, %v378
      %v381 = vsel %vm340, %v379, 0.0
      %v382 = vsel %vm340, %v380, 0.0
      %v383 = vadd.f32 %v381, %v382
      %384 = vadd.xlane.f32.xlu0 %v383
      %v385 = vpop.xlane.xlu0 %384
      %v386 = vrot.slane %v385, 4
      %v387 = vadd.f32 %v385, %v386
      %v388 = vrot.slane %v387, 2
      %v389 = vadd.f32 %v387, %v388
      %v390 = vrot.slane %v389, 1
      %v391 = vadd.f32 %v389, %v390
      %s392 = vtos %v391
      %v393 = vstv %s392
      %v394 = vadd.f32 %v374, %v393
      %v395 = vlaneseq
      %v396 = vshrl.u32 %v395, 7
      %v397 = vsub.s32 3, %v396
      %v398 = vrot.slane %v333, %v397
      %v399 = vmul.f32 %v327, %v398
      %v400 = vmul.f32 %v330, %v398
      %v401 = vsel %vm340, %v399, 0.0
      %v402 = vsel %vm340, %v400, 0.0
      %v403 = vadd.f32 %v401, %v402
      %404 = vadd.xlane.f32.xlu0 %v403
      %v405 = vpop.xlane.xlu0 %404
      %v406 = vrot.slane %v405, 4
      %v407 = vadd.f32 %v405, %v406
      %v408 = vrot.slane %v407, 2
      %v409 = vadd.f32 %v407, %v408
      %v410 = vrot.slane %v409, 1
      %v411 = vadd.f32 %v409, %v410
      %s412 = vtos %v411
      %v413 = vstv %s412
      %v414 = vadd.f32 %v394, %v413
      %v415 = vrcp.pop 1024.0
      %v416 = vmul.f32 %v414, %v415
      %v417 = vsub.f32 %v303, %v416
      %v418 = vsub.f32 %v306, %v416
      %v419 = vsub.f32 %v311, %v416
      %v420 = vsub.f32 %v314, %v416
      %v421 = vsub.f32 %v319, %v416
      %v422 = vsub.f32 %v322, %v416
      %v423 = vsub.f32 %v327, %v416
      %v424 = vsub.f32 %v330, %v416
      %v425 = vmul.f32 %v417, %v417
      %v426 = vmul.f32 %v418, %v418
      %v427 = vmul.f32 %v425, %v337
      %v428 = vmul.f32 %v426, %v337
      %v429 = vsel %vm340, %v427, 0.0
      %v430 = vsel %vm340, %v428, 0.0
      %v431 = vadd.f32 %v429, %v430
      %432 = vadd.xlane.f32.xlu0 %v431
      %v433 = vpop.xlane.xlu0 %432
      %v434 = vrot.slane %v433, 4
      %v435 = vadd.f32 %v433, %v434
      %v436 = vrot.slane %v435, 2
      %v437 = vadd.f32 %v435, %v436
      %v438 = vrot.slane %v437, 1
      %v439 = vadd.f32 %v437, %v438
      %s440 = vtos %v439
      %v441 = vstv %s440
      %v442 = vadd.f32 %v441, 0.0
      %v443 = vmul.f32 %v419, %v419
      %v444 = vmul.f32 %v420, %v420
      %v445 = vmul.f32 %v443, %v358
      %v446 = vmul.f32 %v444, %v358
      %v447 = vsel %vm340, %v445, 0.0
      %v448 = vsel %vm340, %v446, 0.0
      %v449 = vadd.f32 %v447, %v448
      %450 = vadd.xlane.f32.xlu0 %v449
      %v451 = vpop.xlane.xlu0 %450
      %v452 = vrot.slane %v451, 4
      %v453 = vadd.f32 %v451, %v452
      %v454 = vrot.slane %v453, 2
      %v455 = vadd.f32 %v453, %v454
      %v456 = vrot.slane %v455, 1
      %v457 = vadd.f32 %v455, %v456
      %s458 = vtos %v457
      %v459 = vstv %s458
      %v460 = vadd.f32 %v442, %v459
      %v461 = vmul.f32 %v421, %v421
      %v462 = vmul.f32 %v422, %v422
      %v463 = vmul.f32 %v461, %v378
      %v464 = vmul.f32 %v462, %v378
      %v465 = vsel %vm340, %v463, 0.0
      %v466 = vsel %vm340, %v464, 0.0
      %v467 = vadd.f32 %v465, %v466
      %468 = vadd.xlane.f32.xlu0 %v467
      %v469 = vpop.xlane.xlu0 %468
      %v470 = vrot.slane %v469, 4
      %v471 = vadd.f32 %v469, %v470
      %v472 = vrot.slane %v471, 2
      %v473 = vadd.f32 %v471, %v472
      %v474 = vrot.slane %v473, 1
      %v475 = vadd.f32 %v473, %v474
      %s476 = vtos %v475
      %v477 = vstv %s476
      %v478 = vadd.f32 %v460, %v477
      %v479 = vmul.f32 %v423, %v423
      %v480 = vmul.f32 %v424, %v424
      %v481 = vmul.f32 %v479, %v398
      %v482 = vmul.f32 %v480, %v398
      %v483 = vsel %vm340, %v481, 0.0
      %v484 = vsel %vm340, %v482, 0.0
      %v485 = vadd.f32 %v483, %v484
      %486 = vadd.xlane.f32.xlu0 %v485
      %v487 = vpop.xlane.xlu0 %486
      %v488 = vrot.slane %v487, 4
      %v489 = vadd.f32 %v487, %v488
      %v490 = vrot.slane %v489, 2
      %v491 = vadd.f32 %v489, %v490
      %v492 = vrot.slane %v491, 1
      %v493 = vadd.f32 %v491, %v492
      %s494 = vtos %v493
      %v495 = vstv %s494
      %v496 = vadd.f32 %v478, %v495
      %v497 = vrcp.pop 1023.0
      %v498 = vmul.f32 %v496, %v497
      %v499 = vrsqrt.pop %v498
      %v500 = vmul.f32 %v498, %v499
      %vm501 = vcmp.eq.f32.partialorder %v498, inf
      %v502 = vsel %vm501, %v498, %v500
      %vm503 = vcmp.eq.f32.partialorder %v498, 0.0
      %v504 = vand.u32 %v498, 2147483648
      %v505 = vsel %vm503, %v504, %v502
      %v506 = vadd.f32 %v505, 1e-05
      %v507 = vrcp.pop %v506
      %v508 = vmul.f32 %v417, %v507
      %v509 = vmul.f32 %v418, %v507
      %v510 = vmul.f32 %v419, %v507
      %v511 = vmul.f32 %v420, %v507
      %v512 = vmul.f32 %v421, %v507
      %v513 = vmul.f32 %v422, %v507
      %v514 = vmul.f32 %v423, %v507
      %v515 = vmul.f32 %v424, %v507
      %v516 = vpack.c.bf16 %v509, %v508
      %v517 = vpack.c.bf16 %v511, %v510
      %v518 = vpack.c.bf16 %v513, %v512
      %v519 = vpack.c.bf16 %v515, %v514
      %v524 = vunpack.c.l.b16 %v516
      %v525 = vunpack.c.h.b16 %v516
      %v526 = vunpack.c.l.b16 %v517
      %v527 = vunpack.c.h.b16 %v517
      %v528 = vunpack.c.l.b16 %v518
      %v529 = vunpack.c.h.b16 %v518
      %v530 = vunpack.c.l.b16 %v519
      %v531 = vunpack.c.h.b16 %v519
      %v532 = vpack.c.b16 %v524, %v524
      %v533 = vpack.c.b16 %v525, %v525
      %v534 = vpack.c.b16 %v526, %v526
      %v535 = vpack.c.b16 %v527, %v527
      %v536 = vpack.c.b16 %v528, %v528
      %v537 = vpack.c.b16 %v529, %v529
      %v538 = vpack.c.b16 %v530, %v530
      %v539 = vpack.c.b16 %v531, %v531
      %vm548 = vcmask 199680
      %549 = vst.msk [vmem:[%s170] sm:$0xf] %vm548, %v532
      %550 = vst.msk [vmem:[%s170 + $0x4] sm:$0xf] %vm548, %v533
      %551 = vst.msk [vmem:[%s170 + $0x8] sm:$0xf] %vm548, %v534
      %552 = vst.msk [vmem:[%s170 + $0xc] sm:$0xf] %vm548, %v535
      %553 = vst.msk [vmem:[%s170 + $0x10] sm:$0xf] %vm548, %v536
      %554 = vst.msk [vmem:[%s170 + $0x14] sm:$0xf] %vm548, %v537
      %555 = vst.msk [vmem:[%s170 + $0x18] sm:$0xf] %vm548, %v538
      %556 = vst.msk [vmem:[%s170 + $0x1c] sm:$0xf] %vm548, %v539
      %p557 = scmp.lt.s32.totalorder %s14, 1
      %s558 = scalar_select %p557, %s14, 1
      %s559 = smul.addr %s558, 8
      %s560 = smul.addr %s559, 4
      %s561 = scalar_lea.vmem %s3, %s560
      // Predicated region
      $region33: #{unet_forward.18} parent=31 // pred_check
        %p562 = pneg %p100
      $region34: #{unet_forward.18} parent=31 // pred_check_branch
        %564 = sbr.rel (%p562) target = $region36
      $region35: #{unet_forward.18} parent=31 // pred_region
        _
      $region36: #{unet_forward.18} parent=31 // pred_fallthru
        _
    $region32: #{unet_forward.18} parent=5 // pred_fallthru
      _
    %p565 = scmp.le.s32.totalorder 2, %s9
    // Predicated region
    $region37: #{unet_forward.18} parent=5 // pred_check
      %p566 = pneg %p565
    $region38: #{unet_forward.18} parent=5 // pred_check_branch
      %568 = sbr.rel (%p566) target = $region40
    $region39: #{unet_forward.18} parent=5 // pred_region
      %s569 = ssub.s32 %s9, 2
      // Predicated region
      $region41: #{unet_forward.18} parent=39 // pred_check
        %p570 = pneg %p106
      $region42: #{unet_forward.18} parent=39 // pred_check_branch
        %572 = sbr.rel (%p570) target = $region44
      $region43: #{unet_forward.18} parent=39 // pred_region
        %p573 = scmp.lt.s32.totalorder %s15, 1
        %s574 = scalar_select %p573, %s15, 1
        %s575 = smul.addr %s574, 8
        %s576 = smul.addr %s575, 4
        %s577 = scalar_lea.vmem %s3, %s576
      $region44: #{unet_forward.18} parent=39 // pred_fallthru
        _
    $region40: #{unet_forward.18} parent=5 // pred_fallthru
      _
  $region6: #{unet_forward.18} parent=0 // loop_footer
    %s13 = sadd.s32 1, %s9
  $region7: #{unet_forward.18} parent=0 // loop_footer_branch
    %8 = sbr.rel target = $region3
  $region8: #{unet_forward.18} parent=0 // loop_exit
    _

// kernel: unet_forward.19
$region0: #{unet_forward.19}
  #allocation0 [shape = 'u32[]', space=smem, size = 0x4, offset = 0x4, fixed_abs, tag = 'smem constant byte address 0x4 - core index']
  #allocation1 [shape = 'u32[144,128]{1,0:T(1,128)}', space=vmem, size = 0x12000, scoped, tag = 'internal scratch']
  %s0 = inlined_call_operand.vmem [shape: bf16[64,128], index: 0, kind: input, shape index: {}]
  %s1 = inlined_call_operand.vmem [shape: bf16[2,128,81], index: 1, kind: input, shape index: {}]
  %s2 = inlined_call_operand.vmem [shape: f32[4,81], index: 2, kind: input, shape index: {}]
  %s3 = inlined_call_operand.vmem [shape: bf16[2,64,81], index: 3, kind: output, shape index: {}]
  %s4 = sld [smem:[#allocation0]]
  $region45: #{unet_forward.19} parent=0
    _
  %s6 = ssub.s32 1, %s4
  %s7 = scalar_select 0, %s6, %s4
  loop: start=0, step=1, limit=4
  $region2: #{unet_forward.19} parent=0 // loop_pre_header
    _
  $region3: #{unet_forward.19} parent=0 // loop_header
    %s9 = sphi 0, %s13
    %p10 = scmp.ge.s32.totalorder %s9, 4
    %s17 = sphi 0, %s17
    %s19 = sphi 0, %s17
    %s20 = sphi 0, %s19
    %s34 = sphi 0, %s20
    %s40 = sphi 0, %s42
    %s43 = sphi 0, %s40
    %s44 = sphi 0, %s43
    %s60 = sphi 0, %s44
    %s64 = sphi 0, %s64
    %s66 = sphi 0, %s64
    %s67 = sphi 0, %s66
    %s81 = sphi 0, %s67
    %s87 = sphi 0, %s89
    %s90 = sphi 0, %s87
    %s91 = sphi 0, %s90
    %s107 = sphi 0, %s91
  $region4: #{unet_forward.19} parent=0 // loop_header_branch
    %12 = sbr.rel (%p10) target = $region8
  $region5: #{unet_forward.19} parent=0 // loop_body
    %s14 = ssub.s32 %s9, 1
    %s15 = ssub.s32 %s9, 2
    %s16 = sadd.s32 %s9, 1
    %s18 = sadd.s32 %s17, 1
    %p21 = scmp.eq.s32.totalorder %s9, 1
    %p22 = scmp.ne.s32.totalorder %s17, %s19
    %p23 = scmp.eq.s32.totalorder %s9, 0
    %p24 = por %p22, %p23
    %p25 = scmp.ne.s32.totalorder %s17, %s19
    %p26 = scmp.eq.s32.totalorder %s14, 1
    %p27 = por %p25, %p26
    %p28 = scmp.ne.s32.totalorder %s19, %s20
    %p29 = scmp.eq.s32.totalorder %s14, 0
    %p30 = por %p28, %p29
    %p31 = scmp.ne.s32.totalorder %s19, %s20
    %p32 = scmp.eq.s32.totalorder %s15, 1
    %p33 = por %p31, %p32
    %p35 = scmp.ne.s32.totalorder %s20, %s34
    %p36 = scmp.eq.s32.totalorder %s15, 0
    %p37 = por %p35, %p36
    %s38 = ssub.s32 %s9, %s16
    %p39 = scmp.eq.s32.totalorder %s38, 0
    %s41 = sadd.s32 %s40, 1
    %s42 = scalar_select %p39, %s40, %s41
    %p45 = pneg %p39
    %p46 = scmp.eq.s32.totalorder %s9, 1
    %p47 = por %p45, %p46
    %p48 = scmp.ne.s32.totalorder %s40, %s43
    %p49 = scmp.eq.s32.totalorder %s9, 0
    %p50 = por %p48, %p49
    %p51 = scmp.ne.s32.totalorder %s40, %s43
    %p52 = scmp.eq.s32.totalorder %s14, 1
    %p53 = por %p51, %p52
    %p54 = scmp.ne.s32.totalorder %s43, %s44
    %p55 = scmp.eq.s32.totalorder %s14, 0
    %p56 = por %p54, %p55
    %p57 = scmp.ne.s32.totalorder %s43, %s44
    %p58 = scmp.eq.s32.totalorder %s15, 1
    %p59 = por %p57, %p58
    %p61 = scmp.ne.s32.totalorder %s44, %s60
    %p62 = scmp.eq.s32.totalorder %s15, 0
    %p63 = por %p61, %p62
    %s65 = sadd.s32 %s64, 1
    %p68 = scmp.eq.s32.totalorder %s9, 1
    %p69 = scmp.ne.s32.totalorder %s64, %s66
    %p70 = scmp.eq.s32.totalorder %s9, 0
    %p71 = por %p69, %p70
    %p72 = scmp.ne.s32.totalorder %s64, %s66
    %p73 = scmp.eq.s32.totalorder %s14, 1
    %p74 = por %p72, %p73
    %p75 = scmp.ne.s32.totalorder %s66, %s67
    %p76 = scmp.eq.s32.totalorder %s14, 0
    %p77 = por %p75, %p76
    %p78 = scmp.ne.s32.totalorder %s66, %s67
    %p79 = scmp.eq.s32.totalorder %s15, 1
    %p80 = por %p78, %p79
    %p82 = scmp.ne.s32.totalorder %s67, %s81
    %p83 = scmp.eq.s32.totalorder %s15, 0
    %p84 = por %p82, %p83
    %s85 = ssub.s32 %s9, %s16
    %p86 = scmp.eq.s32.totalorder %s85, 0
    %s88 = sadd.s32 %s87, 1
    %s89 = scalar_select %p86, %s87, %s88
    %p92 = pneg %p86
    %p93 = scmp.eq.s32.totalorder %s9, 1
    %p94 = por %p92, %p93
    %p95 = scmp.ne.s32.totalorder %s87, %s90
    %p96 = scmp.eq.s32.totalorder %s9, 0
    %p97 = por %p95, %p96
    %p98 = scmp.ne.s32.totalorder %s87, %s90
    %p99 = scmp.eq.s32.totalorder %s14, 1
    %p100 = por %p98, %p99
    %p101 = scmp.ne.s32.totalorder %s90, %s91
    %p102 = scmp.eq.s32.totalorder %s14, 0
    %p103 = por %p101, %p102
    %p104 = scmp.ne.s32.totalorder %s90, %s91
    %p105 = scmp.eq.s32.totalorder %s15, 1
    %p106 = por %p104, %p105
    %p108 = scmp.ne.s32.totalorder %s91, %s107
    %p109 = scmp.eq.s32.totalorder %s15, 0
    %p110 = por %p108, %p109
    %p111 = scmp.le.s32.totalorder 1, %s9
    %p112 = scmp.lt.s32.totalorder %s9, 3
    %p113 = pnand %p111, %p112
    %p114 = pneg %p113
    // Predicated region
    $region9: #{unet_forward.19} parent=5 // pred_check
      _
    $region10: #{unet_forward.19} parent=5 // pred_check_branch
      %116 = sbr.rel (%p113) target = $region12
    $region11: #{unet_forward.19} parent=5 // pred_region
      %s117 = ssub.s32 %s9, 1
      // Predicated region
      $region13: #{unet_forward.19} parent=11 // pred_check
        %p118 = pneg %p30
      $region14: #{unet_forward.19} parent=11 // pred_check_branch
        %120 = sbr.rel (%p118) target = $region16
      $region15: #{unet_forward.19} parent=11 // pred_region
        _
      $region16: #{unet_forward.19} parent=11 // pred_fallthru
        _
      // Predicated region
      $region17: #{unet_forward.19} parent=11 // pred_check
        %p121 = pneg %p77
      $region18: #{unet_forward.19} parent=11 // pred_check_branch
        %123 = sbr.rel (%p121) target = $region20
      $region19: #{unet_forward.19} parent=11 // pred_region
        _
      $region20: #{unet_forward.19} parent=11 // pred_fallthru
        _
    $region12: #{unet_forward.19} parent=5 // pred_fallthru
      _
    %p124 = scmp.lt.s32.totalorder %s9, 2
    // Predicated region
    $region21: #{unet_forward.19} parent=5 // pred_check
      %p125 = pneg %p124
    $region22: #{unet_forward.19} parent=5 // pred_check_branch
      %127 = sbr.rel (%p125) target = $region24
    $region23: #{unet_forward.19} parent=5 // pred_region
      // Predicated region
      $region25: #{unet_forward.19} parent=23 // pred_check
        %p128 = pneg %p50
      $region26: #{unet_forward.19} parent=23 // pred_check_branch
        %130 = sbr.rel (%p128) target = $region28
      $region27: #{unet_forward.19} parent=23 // pred_region
        %p131 = scmp.lt.s32.totalorder %s9, 1
        %s132 = scalar_select %p131, %s9, 1
        %s133 = smul.addr %s132, 16
        %s134 = smul.addr %s133, 4
        %s135 = scalar_lea.vmem %s1, %s134
      $region28: #{unet_forward.19} parent=23 // pred_fallthru
        _
    $region24: #{unet_forward.19} parent=5 // pred_fallthru
      _
    %p136 = scmp.le.s32.totalorder 1, %s9
    %p137 = scmp.lt.s32.totalorder %s9, 3
    %p138 = pnand %p136, %p137
    %p139 = pneg %p138
    // Predicated region
    $region29: #{unet_forward.19} parent=5 // pred_check
      _
    $region30: #{unet_forward.19} parent=5 // pred_check_branch
      %141 = sbr.rel (%p138) target = $region32
    $region31: #{unet_forward.19} parent=5 // pred_region
      %s142 = ssub.s32 %s9, 1
      %p143 = pneg %p30
      %p144 = pneg %p27
      %p145 = scmp.lt.s32.totalorder %s14, 1
      %s146 = scalar_select %p145, %s14, 1
      %s147 = smul.addr %s146, 16
      %s148 = smul.addr %s147, 4
      %s149 = scalar_lea.vmem %s1, %s148
      %p150 = pneg %p56
      %p151 = pneg %p53
      %p152 = pneg %p77
      %p153 = pneg %p74
      %p154 = pneg %p103
      %p155 = pneg %p100
      %p156 = scmp.lt.s32.totalorder %s14, 1
      %s157 = scalar_select %p156, %s14, 1
      %s158 = smul.addr %s157, 8
      %s159 = smul.addr %s158, 4
      %s160 = scalar_lea.vmem %s3, %s159
      %p161 = scmp.lt.s32.totalorder %s14, 1
      %s162 = scalar_select %p161, %s14, 1
      %s163 = smul.addr %s162, 16
      %s164 = smul.addr %s163, 4
      %s165 = scalar_lea.vmem %s1, %s164
      %p166 = scmp.lt.s32.totalorder %s14, 1
      %s167 = scalar_select %p166, %s14, 1
      %s168 = smul.addr %s167, 8
      %s169 = smul.addr %s168, 4
      %s170 = scalar_lea.vmem %s3, %s169
      %v172 = vld [vmem:[%s0] sm:$0xf]
      %v173 = vld [vmem:[%s0 + $0x4] sm:$0xf]
      %v174 = vld [vmem:[%s0 + $0x8] sm:$0xf]
      %v175 = vld [vmem:[%s0 + $0xc] sm:$0xf]
      %v176 = vld [vmem:[%s0 + $0x10] sm:$0xf]
      %v177 = vld [vmem:[%s0 + $0x14] sm:$0xf]
      %v178 = vld [vmem:[%s0 + $0x18] sm:$0xf]
      %v179 = vld [vmem:[%s0 + $0x1c] sm:$0xf]
      %v180 = vld [vmem:[%s165] sm:$0xf]
      %v181 = vld [vmem:[%s165 + $0x4] sm:$0xf]
      %v182 = vld [vmem:[%s165 + $0x8] sm:$0xf]
      %v183 = vld [vmem:[%s165 + $0xc] sm:$0xf]
      %v184 = vld [vmem:[%s165 + $0x10] sm:$0xf]
      %v185 = vld [vmem:[%s165 + $0x14] sm:$0xf]
      %v186 = vld [vmem:[%s165 + $0x18] sm:$0xf]
      %v187 = vld [vmem:[%s165 + $0x1c] sm:$0xf]
      %v188 = vld [vmem:[%s165 + $0x20] sm:$0xf]
      %v189 = vld [vmem:[%s165 + $0x24] sm:$0xf]
      %v190 = vld [vmem:[%s165 + $0x28] sm:$0xf]
      %v191 = vld [vmem:[%s165 + $0x2c] sm:$0xf]
      %v192 = vld [vmem:[%s165 + $0x30] sm:$0xf]
      %v193 = vld [vmem:[%s165 + $0x34] sm:$0xf]
      %v194 = vld [vmem:[%s165 + $0x38] sm:$0xf]
      %v195 = vld [vmem:[%s165 + $0x3c] sm:$0xf]
      %v204 = vunpack.c.l.b16 %v172
      %v205 = vunpack.c.l.b16 %v173
      %v206 = vunpack.c.l.b16 %v174
      %v207 = vunpack.c.l.b16 %v175
      %v208 = vunpack.c.l.b16 %v176
      %v209 = vunpack.c.l.b16 %v177
      %v210 = vunpack.c.l.b16 %v178
      %v211 = vunpack.c.l.b16 %v179
      %v212 = vpack.c.b16 %v205, %v204
      %v213 = vpack.c.b16 %v207, %v206
      %v214 = vpack.c.b16 %v209, %v208
      %v215 = vpack.c.b16 %v211, %v210
      %v236 = vunpack.c.l.b16 %v180
      %v237 = vunpack.c.l.b16 %v181
      %v238 = vunpack.c.l.b16 %v182
      %v239 = vunpack.c.l.b16 %v183
      %v240 = vunpack.c.l.b16 %v184
      %v241 = vunpack.c.l.b16 %v185
      %v242 = vunpack.c.l.b16 %v186
      %v243 = vunpack.c.l.b16 %v187
      %v244 = vunpack.c.l.b16 %v188
      %v245 = vunpack.c.l.b16 %v189
      %v246 = vunpack.c.l.b16 %v190
      %v247 = vunpack.c.l.b16 %v191
      %v248 = vunpack.c.l.b16 %v192
      %v249 = vunpack.c.l.b16 %v193
      %v250 = vunpack.c.l.b16 %v194
      %v251 = vunpack.c.l.b16 %v195
      %v252 = vpack.c.b16 %v237, %v236
      %v253 = vpack.c.b16 %v239, %v238
      %v254 = vpack.c.b16 %v241, %v240
      %v255 = vpack.c.b16 %v243, %v242
      %v256 = vpack.c.b16 %v245, %v244
      %v257 = vpack.c.b16 %v247, %v246
      %v258 = vpack.c.b16 %v249, %v248
      %v259 = vpack.c.b16 %v251, %v250
      %268 = vmatprep.subr.bf16.mxu0 0
      %269 = vmatpush1.bf16.msra.mxu0 %v252
      %270 = vmatprep.subr.bf16.mxu0 0
      %271 = vmatpush1.bf16.msra.mxu0 %v253
      %272 = vmatprep.subr.bf16.mxu0 0
      %273 = vmatpush1.bf16.msra.mxu0 %v254
      %274 = vmatprep.subr.bf16.mxu0 0
      %275 = vmatpush1.bf16.msra.mxu0 %v255
      %276 = vmatprep.subr.bf16.mxu0 0
      %277 = vmatpush1.bf16.msra.mxu0 %v256
      %278 = vmatprep.subr.bf16.mxu0 0
      %279 = vmatpush1.bf16.msra.mxu0 %v257
      %280 = vmatprep.subr.bf16.mxu0 0
      %281 = vmatpush1.bf16.msra.mxu0 %v258
      %282 = vmatprep.subr.bf16.mxu0 0
      %283 = vmatpush1.bf16.msra.mxu0 %v259
      %284 = vmatprep.subr.bf16.mxu0 0
      %285 = vmatpush1.bf16.msra.mxu0 0
      %286 = vmatprep.subr.bf16.mxu0 0
      %287 = vmatpush1.bf16.msra.mxu0 0
      %288 = vmatprep.subr.bf16.mxu0 0
      %289 = vmatpush1.bf16.msra.mxu0 0
      %290 = vmatprep.subr.bf16.mxu0 0
      %291 = vmatpush1.bf16.msra.mxu0 0
      %292 = vmatprep.subr.bf16.mxu0 0
      %293 = vmatpush1.bf16.msra.mxu0 0
      %294 = vmatprep.subr.bf16.mxu0 0
      %295 = vmatpush1.bf16.msra.mxu0 0
      %296 = vmatprep.subr.bf16.mxu0 0
      %297 = vmatpush1.bf16.msra.mxu0 0
      %298 = vmatprep.subr.bf16.mxu0 0
      %299 = vmatpush1.bf16.msra.mxu0 0
      %300 = vmatprep.mubr.bf16.mxu0 0
      %301 = vmatmul.mubr.bf16.gmra.mrb[0].mxu0 %v212
      %v302 = vpop.f32.mrb[0].mxu0
      %v303 = vadd.f32 0.0, %v302
      %v304 = vpop.f32.mrb[0].mxu0
      %v305 = vpop.f32.mrb[0].mxu0
      %v306 = vadd.f32 0.0, %v305
      %v307 = vpop.f32.mrb[0].mxu0
      %308 = vmatprep.mubr.bf16.mxu0 0
      %309 = vmatmul.mubr.bf16.gmra.mrb[0].mxu0 %v213
      %v310 = vpop.f32.mrb[0].mxu0
      %v311 = vadd.f32 0.0, %v310
      %v312 = vpop.f32.mrb[0].mxu0
      %v313 = vpop.f32.mrb[0].mxu0
      %v314 = vadd.f32 0.0, %v313
      %v315 = vpop.f32.mrb[0].mxu0
      %316 = vmatprep.mubr.bf16.mxu0 0
      %317 = vmatmul.mubr.bf16.gmra.mrb[0].mxu0 %v214
      %v318 = vpop.f32.mrb[0].mxu0
      %v319 = vadd.f32 0.0, %v318
      %v320 = vpop.f32.mrb[0].mxu0
      %v321 = vpop.f32.mrb[0].mxu0
      %v322 = vadd.f32 0.0, %v321
      %v323 = vpop.f32.mrb[0].mxu0
      %324 = vmatprep.mubr.bf16.mxu0 0
      %325 = vmatmul.mubr.bf16.gmra.mrb[0].mxu0 %v215
      %v326 = vpop.f32.mrb[0].mxu0
      %v327 = vadd.f32 0.0, %v326
      %v328 = vpop.f32.mrb[0].mxu0
      %v329 = vpop.f32.mrb[0].mxu0
      %v330 = vadd.f32 0.0, %v329
      %v331 = vpop.f32.mrb[0].mxu0
      %332 = vdwg.mxu0
      %v333 = vld [vmem:[%s2] sm:$0xf]
      %v334 = vlaneseq
      %v335 = vshrl.u32 %v334, 7
      %v336 = vsub.s32 0, %v335
      %v337 = vrot.slane %v333, %v336
      %v338 = vmul.f32 %v303, %v337
      %v339 = vmul.f32 %v306, %v337
      %vm340 = vcmask 662528
      %v341 = vsel %vm340, %v338, 0.0
      %v342 = vsel %vm340, %v339, 0.0
      %v343 = vadd.f32 %v341, %v342
      %344 = vadd.xlane.f32.xlu0 %v343
      %v345 = vpop.xlane.xlu0 %344
      %v346 = vrot.slane %v345, 4
      %v347 = vadd.f32 %v345, %v346
      %v348 = vrot.slane %v347, 2
      %v349 = vadd.f32 %v347, %v348
      %v350 = vrot.slane %v349, 1
      %v351 = vadd.f32 %v349, %v350
      %s352 = vtos %v351
      %v353 = vstv %s352
      %v354 = vadd.f32 %v353, 0.0
      %v355 = vlaneseq
      %v356 = vshrl.u32 %v355, 7
      %v357 = vsub.s32 1, %v356
      %v358 = vrot.slane %v333, %v357
      %v359 = vmul.f32 %v311, %v358
      %v360 = vmul.f32 %v314, %v358
      %v361 = vsel %vm340, %v359, 0.0
      %v362 = vsel %vm340, %v360, 0.0
      %v363 = vadd.f32 %v361, %v362
      %364 = vadd.xlane.f32.xlu0 %v363
      %v365 = vpop.xlane.xlu0 %364
      %v366 = vrot.slane %v365, 4
      %v367 = vadd.f32 %v365, %v366
      %v368 = vrot.slane %v367, 2
      %v369 = vadd.f32 %v367, %v368
      %v370 = vrot.slane %v369, 1
      %v371 = vadd.f32 %v369, %v370
      %s372 = vtos %v371
      %v373 = vstv %s372
      %v374 = vadd.f32 %v354, %v373
      %v375 = vlaneseq
      %v376 = vshrl.u32 %v375, 7
      %v377 = vsub.s32 2, %v376
      %v378 = vrot.slane %v333, %v377
      %v379 = vmul.f32 %v319, %v378
      %v380 = vmul.f32 %v322, %v378
      %v381 = vsel %vm340, %v379, 0.0
      %v382 = vsel %vm340, %v380, 0.0
      %v383 = vadd.f32 %v381, %v382
      %384 = vadd.xlane.f32.xlu0 %v383
      %v385 = vpop.xlane.xlu0 %384
      %v386 = vrot.slane %v385, 4
      %v387 = vadd.f32 %v385, %v386
      %v388 = vrot.slane %v387, 2
      %v389 = vadd.f32 %v387, %v388
      %v390 = vrot.slane %v389, 1
      %v391 = vadd.f32 %v389, %v390
      %s392 = vtos %v391
      %v393 = vstv %s392
      %v394 = vadd.f32 %v374, %v393
      %v395 = vlaneseq
      %v396 = vshrl.u32 %v395, 7
      %v397 = vsub.s32 3, %v396
      %v398 = vrot.slane %v333, %v397
      %v399 = vmul.f32 %v327, %v398
      %v400 = vmul.f32 %v330, %v398
      %v401 = vsel %vm340, %v399, 0.0
      %v402 = vsel %vm340, %v400, 0.0
      %v403 = vadd.f32 %v401, %v402
      %404 = vadd.xlane.f32.xlu0 %v403
      %v405 = vpop.xlane.xlu0 %404
      %v406 = vrot.slane %v405, 4
      %v407 = vadd.f32 %v405, %v406
      %v408 = vrot.slane %v407, 2
      %v409 = vadd.f32 %v407, %v408
      %v410 = vrot.slane %v409, 1
      %v411 = vadd.f32 %v409, %v410
      %s412 = vtos %v411
      %v413 = vstv %s412
      %v414 = vadd.f32 %v394, %v413
      %v415 = vrcp.pop 4096.0
      %v416 = vmul.f32 %v414, %v415
      %v417 = vsub.f32 %v303, %v416
      %v418 = vsub.f32 %v306, %v416
      %v419 = vsub.f32 %v311, %v416
      %v420 = vsub.f32 %v314, %v416
      %v421 = vsub.f32 %v319, %v416
      %v422 = vsub.f32 %v322, %v416
      %v423 = vsub.f32 %v327, %v416
      %v424 = vsub.f32 %v330, %v416
      %v425 = vmul.f32 %v417, %v417
      %v426 = vmul.f32 %v418, %v418
      %v427 = vmul.f32 %v425, %v337
      %v428 = vmul.f32 %v426, %v337
      %v429 = vsel %vm340, %v427, 0.0
      %v430 = vsel %vm340, %v428, 0.0
      %v431 = vadd.f32 %v429, %v430
      %432 = vadd.xlane.f32.xlu0 %v431
      %v433 = vpop.xlane.xlu0 %432
      %v434 = vrot.slane %v433, 4
      %v435 = vadd.f32 %v433, %v434
      %v436 = vrot.slane %v435, 2
      %v437 = vadd.f32 %v435, %v436
      %v438 = vrot.slane %v437, 1
      %v439 = vadd.f32 %v437, %v438
      %s440 = vtos %v439
      %v441 = vstv %s440
      %v442 = vadd.f32 %v441, 0.0
      %v443 = vmul.f32 %v419, %v419
      %v444 = vmul.f32 %v420, %v420
      %v445 = vmul.f32 %v443, %v358
      %v446 = vmul.f32 %v444, %v358
      %v447 = vsel %vm340, %v445, 0.0
      %v448 = vsel %vm340, %v446, 0.0
      %v449 = vadd.f32 %v447, %v448
      %450 = vadd.xlane.f32.xlu0 %v449
      %v451 = vpop.xlane.xlu0 %450
      %v452 = vrot.slane %v451, 4
      %v453 = vadd.f32 %v451, %v452
      %v454 = vrot.slane %v453, 2
      %v455 = vadd.f32 %v453, %v454
      %v456 = vrot.slane %v455, 1
      %v457 = vadd.f32 %v455, %v456
      %s458 = vtos %v457
      %v459 = vstv %s458
      %v460 = vadd.f32 %v442, %v459
      %v461 = vmul.f32 %v421, %v421
      %v462 = vmul.f32 %v422, %v422
      %v463 = vmul.f32 %v461, %v378
      %v464 = vmul.f32 %v462, %v378
      %v465 = vsel %vm340, %v463, 0.0
      %v466 = vsel %vm340, %v464, 0.0
      %v467 = vadd.f32 %v465, %v466
      %468 = vadd.xlane.f32.xlu0 %v467
      %v469 = vpop.xlane.xlu0 %468
      %v470 = vrot.slane %v469, 4
      %v471 = vadd.f32 %v469, %v470
      %v472 = vrot.slane %v471, 2
      %v473 = vadd.f32 %v471, %v472
      %v474 = vrot.slane %v473, 1
      %v475 = vadd.f32 %v473, %v474
      %s476 = vtos %v475
      %v477 = vstv %s476
      %v478 = vadd.f32 %v460, %v477
      %v479 = vmul.f32 %v423, %v423
      %v480 = vmul.f32 %v424, %v424
      %v481 = vmul.f32 %v479, %v398
      %v482 = vmul.f32 %v480, %v398
      %v483 = vsel %vm340, %v481, 0.0
      %v484 = vsel %vm340, %v482, 0.0
      %v485 = vadd.f32 %v483, %v484
      %486 = vadd.xlane.f32.xlu0 %v485
      %v487 = vpop.xlane.xlu0 %486
      %v488 = vrot.slane %v487, 4
      %v489 = vadd.f32 %v487, %v488
      %v490 = vrot.slane %v489, 2
      %v491 = vadd.f32 %v489, %v490
      %v492 = vrot.slane %v491, 1
      %v493 = vadd.f32 %v491, %v492
      %s494 = vtos %v493
      %v495 = vstv %s494
      %v496 = vadd.f32 %v478, %v495
      %v497 = vrcp.pop 4095.0
      %v498 = vmul.f32 %v496, %v497
      %v499 = vrsqrt.pop %v498
      %v500 = vmul.f32 %v498, %v499
      %vm501 = vcmp.eq.f32.partialorder %v498, inf
      %v502 = vsel %vm501, %v498, %v500
      %vm503 = vcmp.eq.f32.partialorder %v498, 0.0
      %v504 = vand.u32 %v498, 2147483648
      %v505 = vsel %vm503, %v504, %v502
      %v506 = vadd.f32 %v505, 1e-05
      %v507 = vrcp.pop %v506
      %v508 = vmul.f32 %v417, %v507
      %v509 = vmul.f32 %v418, %v507
      %v510 = vmul.f32 %v419, %v507
      %v511 = vmul.f32 %v420, %v507
      %v512 = vmul.f32 %v421, %v507
      %v513 = vmul.f32 %v422, %v507
      %v514 = vmul.f32 %v423, %v507
      %v515 = vmul.f32 %v424, %v507
      %v516 = vpack.c.bf16 %v509, %v508
      %v517 = vpack.c.bf16 %v511, %v510
      %v518 = vpack.c.bf16 %v513, %v512
      %v519 = vpack.c.bf16 %v515, %v514
      %v524 = vunpack.c.l.b16 %v516
      %v525 = vunpack.c.h.b16 %v516
      %v526 = vunpack.c.l.b16 %v517
      %v527 = vunpack.c.h.b16 %v517
      %v528 = vunpack.c.l.b16 %v518
      %v529 = vunpack.c.h.b16 %v518
      %v530 = vunpack.c.l.b16 %v519
      %v531 = vunpack.c.h.b16 %v519
      %v532 = vpack.c.b16 %v524, %v524
      %v533 = vpack.c.b16 %v525, %v525
      %v534 = vpack.c.b16 %v526, %v526
      %v535 = vpack.c.b16 %v527, %v527
      %v536 = vpack.c.b16 %v528, %v528
      %v537 = vpack.c.b16 %v529, %v529
      %v538 = vpack.c.b16 %v530, %v530
      %v539 = vpack.c.b16 %v531, %v531
      %vm548 = vcmask 658432
      %549 = vst.msk [vmem:[%s170] sm:$0xf] %vm548, %v532
      %550 = vst.msk [vmem:[%s170 + $0x4] sm:$0xf] %vm548, %v533
      %551 = vst.msk [vmem:[%s170 + $0x8] sm:$0xf] %vm548, %v534
      %552 = vst.msk [vmem:[%s170 + $0xc] sm:$0xf] %vm548, %v535
      %553 = vst.msk [vmem:[%s170 + $0x10] sm:$0xf] %vm548, %v536
      %554 = vst.msk [vmem:[%s170 + $0x14] sm:$0xf] %vm548, %v537
      %555 = vst.msk [vmem:[%s170 + $0x18] sm:$0xf] %vm548, %v538
      %556 = vst.msk [vmem:[%s170 + $0x1c] sm:$0xf] %vm548, %v539
      %p557 = scmp.lt.s32.totalorder %s14, 1
      %s558 = scalar_select %p557, %s14, 1
      %s559 = smul.addr %s558, 8
      %s560 = smul.addr %s559, 4
      %s561 = scalar_lea.vmem %s3, %s560
      // Predicated region
      $region33: #{unet_forward.19} parent=31 // pred_check
        %p562 = pneg %p100
      $region34: #{unet_forward.19} parent=31 // pred_check_branch
        %564 = sbr.rel (%p562) target = $region36
      $region35: #{unet_forward.19} parent=31 // pred_region
        _
      $region36: #{unet_forward.19} parent=31 // pred_fallthru
        _
    $region32: #{unet_forward.19} parent=5 // pred_fallthru
      _
    %p565 = scmp.le.s32.totalorder 2, %s9
    // Predicated region
    $region37: #{unet_forward.19} parent=5 // pred_check
      %p566 = pneg %p565
    $region38: #{unet_forward.19} parent=5 // pred_check_branch
      %568 = sbr.rel (%p566) target = $region40
    $region39: #{unet_forward.19} parent=5 // pred_region
      %s569 = ssub.s32 %s9, 2
      // Predicated region
      $region41: #{unet_forward.19} parent=39 // pred_check
        %p570 = pneg %p106
      $region42: #{unet_forward.19} parent=39 // pred_check_branch
        %572 = sbr.rel (%p570) target = $region44
      $region43: #{unet_forward.19} parent=39 // pred_region
        %p573 = scmp.lt.s32.totalorder %s15, 1
        %s574 = scalar_select %p573, %s15, 1
        %s575 = smul.addr %s574, 8
        %s576 = smul.addr %s575, 4
        %s577 = scalar_lea.vmem %s3, %s576
      $region44: #{unet_forward.19} parent=39 // pred_fallthru
        _
    $region40: #{unet_forward.19} parent=5 // pred_fallthru
      _
  $region6: #{unet_forward.19} parent=0 // loop_footer
    %s13 = sadd.s32 1, %s9
  $region7: #{unet_forward.19} parent=0 // loop_footer_branch
    %8 = sbr.rel target = $region3
  $region8: #{unet_forward.19} parent=0 // loop_exit
    _

// kernel: unet_forward.20
$region0: #{unet_forward.20}
  #allocation0 [shape = 'u32[]', space=smem, size = 0x4, offset = 0x4, fixed_abs, tag = 'smem constant byte address 0x4 - core index']
  #allocation1 [shape = 'u32[144,128]{1,0:T(1,128)}', space=vmem, size = 0x12000, scoped, tag = 'internal scratch']
  %s0 = inlined_call_operand.vmem [shape: bf16[16,288], index: 0, kind: input, shape index: {}]
  %s1 = inlined_call_operand.vmem [shape: bf16[2,288,256], index: 1, kind: input, shape index: {}]
  %s2 = inlined_call_operand.vmem [shape: f32[16,1], index: 2, kind: input, shape index: {}]
  %s3 = inlined_call_operand.vmem [shape: bf16[2,16,256], index: 3, kind: output, shape index: {}]
  %s4 = sld [smem:[#allocation0]]
  $region22: #{unet_forward.20} parent=0
    _
  %s6 = ssub.s32 1, %s4
  %s7 = scalar_select 0, %s6, %s4
  // Predicated region
  $region2: #{unet_forward.20} parent=0 // pred_check
    _
  $region3: #{unet_forward.20} parent=0 // pred_check_branch
    %9 = sbr.rel (0) target = $region5
  $region4: #{unet_forward.20} parent=0 // pred_region
    _
  $region5: #{unet_forward.20} parent=0 // pred_fallthru
    _
  // Predicated region
  $region6: #{unet_forward.20} parent=0 // pred_check
    _
  $region7: #{unet_forward.20} parent=0 // pred_check_branch
    %11 = sbr.rel (0) target = $region9
  $region8: #{unet_forward.20} parent=0 // pred_region
    _
  $region9: #{unet_forward.20} parent=0 // pred_fallthru
    _
  // Predicated region
  $region10: #{unet_forward.20} parent=0 // pred_check
    _
  $region11: #{unet_forward.20} parent=0 // pred_check_branch
    %13 = sbr.rel (0) target = $region13
  $region12: #{unet_forward.20} parent=0 // pred_region
    _
  $region13: #{unet_forward.20} parent=0 // pred_fallthru
    _
  %v15 = vld [vmem:[%s0] sm:$0xff]
  %v16 = vld [vmem:[%s0 + $0x8] sm:$0xf]
  %v17 = vld [vmem:[%s0 + $0xc] sm:$0xff]
  %v18 = vld [vmem:[%s0 + $0x14] sm:$0xf]
  %v19 = vld [vmem:[%s2] sm:$0xff]
  %v20 = vld [vmem:[%s2 + $0x8] sm:$0xff]
  %v21 = vld [vmem:[%s1] sm:$0xff]
  %v22 = vld [vmem:[%s1 + $0x8] sm:$0xff]
  %v23 = vld [vmem:[%s1 + $0x10] sm:$0xff]
  %v24 = vld [vmem:[%s1 + $0x18] sm:$0xff]
  %v25 = vld [vmem:[%s1 + $0x20] sm:$0xff]
  %v26 = vld [vmem:[%s1 + $0x28] sm:$0xff]
  %v27 = vld [vmem:[%s1 + $0x30] sm:$0xff]
  %v28 = vld [vmem:[%s1 + $0x38] sm:$0xff]
  %v29 = vld [vmem:[%s1 + $0x40] sm:$0xff]
  %v30 = vld [vmem:[%s1 + $0x48] sm:$0xff]
  %v31 = vld [vmem:[%s1 + $0x50] sm:$0xff]
  %v32 = vld [vmem:[%s1 + $0x58] sm:$0xff]
  %v33 = vld [vmem:[%s1 + $0x60] sm:$0xff]
  %v34 = vld [vmem:[%s1 + $0x68] sm:$0xff]
  %v35 = vld [vmem:[%s1 + $0x70] sm:$0xff]
  %v36 = vld [vmem:[%s1 + $0x78] sm:$0xff]
  %v37 = vld [vmem:[%s1 + $0x80] sm:$0xff]
  %v38 = vld [vmem:[%s1 + $0x88] sm:$0xff]
  %v39 = vld [vmem:[%s1 + $0x90] sm:$0xff]
  %v40 = vld [vmem:[%s1 + $0x98] sm:$0xff]
  %v41 = vld [vmem:[%s1 + $0xa0] sm:$0xff]
  %v42 = vld [vmem:[%s1 + $0xa8] sm:$0xff]
  %v43 = vld [vmem:[%s1 + $0xb0] sm:$0xff]
  %v44 = vld [vmem:[%s1 + $0xb8] sm:$0xff]
  %v45 = vld [vmem:[%s1 + $0xc0] sm:$0xff]
  %v46 = vld [vmem:[%s1 + $0xc8] sm:$0xff]
  %v47 = vld [vmem:[%s1 + $0xd0] sm:$0xff]
  %v48 = vld [vmem:[%s1 + $0xd8] sm:$0xff]
  %v49 = vld [vmem:[%s1 + $0xe0] sm:$0xff]
  %v50 = vld [vmem:[%s1 + $0xe8] sm:$0xff]
  %v51 = vld [vmem:[%s1 + $0xf0] sm:$0xff]
  %v52 = vld [vmem:[%s1 + $0xf8] sm:$0xff]
  %v53 = vld [vmem:[%s1 + $0x100] sm:$0xff]
  %v54 = vld [vmem:[%s1 + $0x108] sm:$0xff]
  %v55 = vld [vmem:[%s1 + $0x110] sm:$0xff]
  %v56 = vld [vmem:[%s1 + $0x118] sm:$0xff]
  %58 = vset.pattern.permute.xlu0 0
  %59 = vperm.xlu0 %58, %v19
  %v60 = vpop.permute.xlu0 %59
  %63 = vset.pattern.permute.xlu0 0
  %64 = vperm.xlu0 %63, %v20
  %v65 = vpop.permute.xlu0 %64
  %v71 = vunpack.c.l.b16 %v15
  %v72 = vunpack.c.h.b16 %v15
  %v73 = vunpack.c.l.b16 %v16
  %v74 = vunpack.c.l.b16 %v17
  %v75 = vunpack.c.h.b16 %v17
  %v76 = vunpack.c.l.b16 %v18
  %v77 = vpack.c.b16 %v74, %v71
  %v78 = vpack.c.b16 %v75, %v72
  %v79 = vpack.c.b16 %v76, %v73
  %v118 = vunpack.c.l.b16 %v21
  %v119 = vunpack.c.h.b16 %v21
  %v120 = vunpack.c.l.b16 %v22
  %v121 = vunpack.c.h.b16 %v22
  %v122 = vunpack.c.l.b16 %v23
  %v123 = vunpack.c.h.b16 %v23
  %v124 = vunpack.c.l.b16 %v24
  %v125 = vunpack.c.h.b16 %v24
  %v126 = vunpack.c.l.b16 %v25
  %v127 = vunpack.c.h.b16 %v25
  %v128 = vunpack.c.l.b16 %v26
  %v129 = vunpack.c.h.b16 %v26
  %v130 = vunpack.c.l.b16 %v27
  %v131 = vunpack.c.h.b16 %v27
  %v132 = vunpack.c.l.b16 %v28
  %v133 = vunpack.c.h.b16 %v28
  %v134 = vunpack.c.l.b16 %v29
  %v135 = vunpack.c.h.b16 %v29
  %v136 = vunpack.c.l.b16 %v30
  %v137 = vunpack.c.h.b16 %v30
  %v138 = vunpack.c.l.b16 %v31
  %v139 = vunpack.c.h.b16 %v31
  %v140 = vunpack.c.l.b16 %v32
  %v141 = vunpack.c.h.b16 %v32
  %v142 = vunpack.c.l.b16 %v33
  %v143 = vunpack.c.h.b16 %v33
  %v144 = vunpack.c.l.b16 %v34
  %v145 = vunpack.c.h.b16 %v34
  %v146 = vunpack.c.l.b16 %v35
  %v147 = vunpack.c.h.b16 %v35
  %v148 = vunpack.c.l.b16 %v36
  %v149 = vunpack.c.h.b16 %v36
  %v150 = vunpack.c.l.b16 %v37
  %v151 = vunpack.c.h.b16 %v37
  %v152 = vunpack.c.l.b16 %v38
  %v153 = vunpack.c.h.b16 %v38
  %v154 = vunpack.c.l.b16 %v39
  %v155 = vunpack.c.h.b16 %v39
  %v156 = vunpack.c.l.b16 %v40
  %v157 = vunpack.c.h.b16 %v40
  %v158 = vunpack.c.l.b16 %v41
  %v159 = vunpack.c.h.b16 %v41
  %v160 = vunpack.c.l.b16 %v42
  %v161 = vunpack.c.h.b16 %v42
  %v162 = vunpack.c.l.b16 %v43
  %v163 = vunpack.c.h.b16 %v43
  %v164 = vunpack.c.l.b16 %v44
  %v165 = vunpack.c.h.b16 %v44
  %v166 = vunpack.c.l.b16 %v45
  %v167 = vunpack.c.h.b16 %v45
  %v168 = vunpack.c.l.b16 %v46
  %v169 = vunpack.c.h.b16 %v46
  %v170 = vunpack.c.l.b16 %v47
  %v171 = vunpack.c.h.b16 %v47
  %v172 = vunpack.c.l.b16 %v48
  %v173 = vunpack.c.h.b16 %v48
  %v174 = vunpack.c.l.b16 %v49
  %v175 = vunpack.c.h.b16 %v49
  %v176 = vunpack.c.l.b16 %v50
  %v177 = vunpack.c.h.b16 %v50
  %v178 = vunpack.c.l.b16 %v51
  %v179 = vunpack.c.h.b16 %v51
  %v180 = vunpack.c.l.b16 %v52
  %v181 = vunpack.c.h.b16 %v52
  %v182 = vunpack.c.l.b16 %v53
  %v183 = vunpack.c.h.b16 %v53
  %v184 = vunpack.c.l.b16 %v54
  %v185 = vunpack.c.h.b16 %v54
  %v186 = vunpack.c.l.b16 %v55
  %v187 = vunpack.c.h.b16 %v55
  %v188 = vunpack.c.l.b16 %v56
  %v189 = vunpack.c.h.b16 %v56
  %v190 = vpack.c.b16 %v120, %v118
  %v191 = vpack.c.b16 %v121, %v119
  %v192 = vpack.c.b16 %v124, %v122
  %v193 = vpack.c.b16 %v125, %v123
  %v194 = vpack.c.b16 %v128, %v126
  %v195 = vpack.c.b16 %v129, %v127
  %v196 = vpack.c.b16 %v132, %v130
  %v197 = vpack.c.b16 %v133, %v131
  %v198 = vpack.c.b16 %v136, %v134
  %v199 = vpack.c.b16 %v137, %v135
  %v200 = vpack.c.b16 %v140, %v138
  %v201 = vpack.c.b16 %v141, %v139
  %v202 = vpack.c.b16 %v144, %v142
  %v203 = vpack.c.b16 %v145, %v143
  %v204 = vpack.c.b16 %v148, %v146
  %v205 = vpack.c.b16 %v149, %v147
  %v206 = vpack.c.b16 %v152, %v150
  %v207 = vpack.c.b16 %v153, %v151
  %v208 = vpack.c.b16 %v156, %v154
  %v209 = vpack.c.b16 %v157, %v155
  %v210 = vpack.c.b16 %v160, %v158
  %v211 = vpack.c.b16 %v161, %v159
  %v212 = vpack.c.b16 %v164, %v162
  %v213 = vpack.c.b16 %v165, %v163
  %v214 = vpack.c.b16 %v168, %v166
  %v215 = vpack.c.b16 %v169, %v167
  %v216 = vpack.c.b16 %v172, %v170
  %v217 = vpack.c.b16 %v173, %v171
  %v218 = vpack.c.b16 %v176, %v174
  %v219 = vpack.c.b16 %v177, %v175
  %v220 = vpack.c.b16 %v180, %v178
  %v221 = vpack.c.b16 %v181, %v179
  %v222 = vpack.c.b16 %v184, %v182
  %v223 = vpack.c.b16 %v185, %v183
  %v224 = vpack.c.b16 %v188, %v186
  %v225 = vpack.c.b16 %v189, %v187
  %vm262 = vcmask 261120
  %v264 = vsel %vm262, %v79, 0
  %266 = vmatprep.subr.bf16.mxu0 %v191
  %267 = vmatpush1.bf16.msra.mxu0 %v190
  %268 = vmatprep.subr.bf16.mxu0 %v193
  %269 = vmatpush1.bf16.msra.mxu0 %v192
  %270 = vmatprep.subr.bf16.mxu0 %v195
  %271 = vmatpush1.bf16.msra.mxu0 %v194
  %272 = vmatprep.subr.bf16.mxu0 %v197
  %273 = vmatpush1.bf16.msra.mxu0 %v196
  %274 = vmatprep.subr.bf16.mxu0 %v199
  %275 = vmatpush1.bf16.msra.mxu0 %v198
  %276 = vmatprep.subr.bf16.mxu0 %v201
  %277 = vmatpush1.bf16.msra.mxu0 %v200
  %278 = vmatprep.subr.bf16.mxu0 %v203
  %279 = vmatpush1.bf16.msra.mxu0 %v202
  %280 = vmatprep.subr.bf16.mxu0 %v205
  %281 = vmatpush1.bf16.msra.mxu0 %v204
  %282 = vmatprep.subr.bf16.mxu0 %v207
  %283 = vmatpush1.bf16.msra.mxu0 %v206
  %284 = vmatprep.subr.bf16.mxu0 %v209
  %285 = vmatpush1.bf16.msra.mxu0 %v208
  %286 = vmatprep.subr.bf16.mxu0 %v211
  %287 = vmatpush1.bf16.msra.mxu0 %v210
  %288 = vmatprep.subr.bf16.mxu0 %v213
  %289 = vmatpush1.bf16.msra.mxu0 %v212
  %290 = vmatprep.subr.bf16.mxu0 %v215
  %291 = vmatpush1.bf16.msra.mxu0 %v214
  %292 = vmatprep.subr.bf16.mxu0 %v217
  %293 = vmatpush1.bf16.msra.mxu0 %v216
  %294 = vmatprep.subr.bf16.mxu0 %v219
  %295 = vmatpush1.bf16.msra.mxu0 %v218
  %296 = vmatprep.subr.bf16.mxu0 %v221
  %297 = vmatpush1.bf16.msra.mxu0 %v220
  %298 = vmatprep.mubr.bf16.mxu0 %v78
  %299 = vmatmul.mubr.bf16.gmra.mrb[0].mxu0 %v77
  %v300 = vpop.f32.mrb[0].mxu0
  %v301 = vadd.f32 %v60, %v300
  %v302 = vpop.f32.mrb[0].mxu0
  %v303 = vadd.f32 %v60, %v302
  %v304 = vpop.f32.mrb[0].mxu0
  %v305 = vadd.f32 %v65, %v304
  %v306 = vpop.f32.mrb[0].mxu0
  %v307 = vadd.f32 %v65, %v306
  %308 = vdwg.mxu0
  %309 = vmatprep.subr.bf16.mxu0 %v223
  %310 = vmatpush1.bf16.msra.mxu0 %v222
  %311 = vmatprep.subr.bf16.mxu0 %v225
  %312 = vmatpush1.bf16.msra.mxu0 %v224
  %313 = vmatprep.subr.bf16.mxu0 0
  %314 = vmatpush1.bf16.msra.mxu0 0
  %315 = vmatprep.subr.bf16.mxu0 0
  %316 = vmatpush1.bf16.msra.mxu0 0
  %317 = vmatprep.subr.bf16.mxu0 0
  %318 = vmatpush1.bf16.msra.mxu0 0
  %319 = vmatprep.subr.bf16.mxu0 0
  %320 = vmatpush1.bf16.msra.mxu0 0
  %321 = vmatprep.subr.bf16.mxu0 0
  %322 = vmatpush1.bf16.msra.mxu0 0
  %323 = vmatprep.subr.bf16.mxu0 0
  %324 = vmatpush1.bf16.msra.mxu0 0
  %325 = vmatprep.subr.bf16.mxu0 0
  %326 = vmatpush1.bf16.msra.mxu0 0
  %327 = vmatprep.subr.bf16.mxu0 0
  %328 = vmatpush1.bf16.msra.mxu0 0
  %329 = vmatprep.subr.bf16.mxu0 0
  %330 = vmatpush1.bf16.msra.mxu0 0
  %331 = vmatprep.subr.bf16.mxu0 0
  %332 = vmatpush1.bf16.msra.mxu0 0
  %333 = vmatprep.subr.bf16.mxu0 0
  %334 = vmatpush1.bf16.msra.mxu0 0
  %335 = vmatprep.subr.bf16.mxu0 0
  %336 = vmatpush1.bf16.msra.mxu0 0
  %337 = vmatprep.subr.bf16.mxu0 0
  %338 = vmatpush1.bf16.msra.mxu0 0
  %339 = vmatprep.subr.bf16.mxu0 0
  %340 = vmatpush1.bf16.msra.mxu0 0
  %341 = vmatprep.mubr.bf16.mxu0 0
  %342 = vmatmul.mubr.bf16.gmra.mrb[0].mxu0 %v264
  %v343 = vpop.f32.mrb[0].mxu0
  %v344 = vadd.f32 %v301, %v343
  %v345 = vpop.f32.mrb[0].mxu0
  %v346 = vadd.f32 %v303, %v345
  %v347 = vpop.f32.mrb[0].mxu0
  %v348 = vadd.f32 %v305, %v347
  %v349 = vpop.f32.mrb[0].mxu0
  %v350 = vadd.f32 %v307, %v349
  %351 = vdwg.mxu0
  %v352 = vadd.f32 %v344, %v346
  %353 = vadd.xlane.f32.xlu0 %v352
  %v354 = vpop.xlane.xlu0 %353
  %v355 = vadd.f32 %v348, %v350
  %356 = vadd.xlane.f32.xlu0 %v355
  %v357 = vpop.xlane.xlu0 %356
  %v358 = vadd.f32 %v354, 0.0
  %v359 = vadd.f32 %v357, 0.0
  %s360 = scalar_lea.vmem %s1, 288
  %v361 = vld [vmem:[%s360] sm:$0xff]
  %v362 = vld [vmem:[%s360 + $0x8] sm:$0xff]
  %v363 = vld [vmem:[%s360 + $0x10] sm:$0xff]
  %v364 = vld [vmem:[%s360 + $0x18] sm:$0xff]
  %v365 = vld [vmem:[%s360 + $0x20] sm:$0xff]
  %v366 = vld [vmem:[%s360 + $0x28] sm:$0xff]
  %v367 = vld [vmem:[%s360 + $0x30] sm:$0xff]
  %v368 = vld [vmem:[%s360 + $0x38] sm:$0xff]
  %v369 = vld [vmem:[%s360 + $0x40] sm:$0xff]
  %v370 = vld [vmem:[%s360 + $0x48] sm:$0xff]
  %v371 = vld [vmem:[%s360 + $0x50] sm:$0xff]
  %v372 = vld [vmem:[%s360 + $0x58] sm:$0xff]
  %v373 = vld [vmem:[%s360 + $0x60] sm:$0xff]
  %v374 = vld [vmem:[%s360 + $0x68] sm:$0xff]
  %v375 = vld [vmem:[%s360 + $0x70] sm:$0xff]
  %v376 = vld [vmem:[%s360 + $0x78] sm:$0xff]
  %v377 = vld [vmem:[%s360 + $0x80] sm:$0xff]
  %v378 = vld [vmem:[%s360 + $0x88] sm:$0xff]
  %v379 = vld [vmem:[%s360 + $0x90] sm:$0xff]
  %v380 = vld [vmem:[%s360 + $0x98] sm:$0xff]
  %v381 = vld [vmem:[%s360 + $0xa0] sm:$0xff]
  %v382 = vld [vmem:[%s360 + $0xa8] sm:$0xff]
  %v383 = vld [vmem:[%s360 + $0xb0] sm:$0xff]
  %v384 = vld [vmem:[%s360 + $0xb8] sm:$0xff]
  %v385 = vld [vmem:[%s360 + $0xc0] sm:$0xff]
  %v386 = vld [vmem:[%s360 + $0xc8] sm:$0xff]
  %v387 = vld [vmem:[%s360 + $0xd0] sm:$0xff]
  %v388 = vld [vmem:[%s360 + $0xd8] sm:$0xff]
  %v389 = vld [vmem:[%s360 + $0xe0] sm:$0xff]
  %v390 = vld [vmem:[%s360 + $0xe8] sm:$0xff]
  %v391 = vld [vmem:[%s360 + $0xf0] sm:$0xff]
  %v392 = vld [vmem:[%s360 + $0xf8] sm:$0xff]
  %v393 = vld [vmem:[%s360 + $0x100] sm:$0xff]
  %v394 = vld [vmem:[%s360 + $0x108] sm:$0xff]
  %v395 = vld [vmem:[%s360 + $0x110] sm:$0xff]
  %v396 = vld [vmem:[%s360 + $0x118] sm:$0xff]
  %v433 = vunpack.c.l.b16 %v361
  %v434 = vunpack.c.h.b16 %v361
  %v435 = vunpack.c.l.b16 %v362
  %v436 = vunpack.c.h.b16 %v362
  %v437 = vunpack.c.l.b16 %v363
  %v438 = vunpack.c.h.b16 %v363
  %v439 = vunpack.c.l.b16 %v364
  %v440 = vunpack.c.h.b16 %v364
  %v441 = vunpack.c.l.b16 %v365
  %v442 = vunpack.c.h.b16 %v365
  %v443 = vunpack.c.l.b16 %v366
  %v444 = vunpack.c.h.b16 %v366
  %v445 = vunpack.c.l.b16 %v367
  %v446 = vunpack.c.h.b16 %v367
  %v447 = vunpack.c.l.b16 %v368
  %v448 = vunpack.c.h.b16 %v368
  %v449 = vunpack.c.l.b16 %v369
  %v450 = vunpack.c.h.b16 %v369
  %v451 = vunpack.c.l.b16 %v370
  %v452 = vunpack.c.h.b16 %v370
  %v453 = vunpack.c.l.b16 %v371
  %v454 = vunpack.c.h.b16 %v371
  %v455 = vunpack.c.l.b16 %v372
  %v456 = vunpack.c.h.b16 %v372
  %v457 = vunpack.c.l.b16 %v373
  %v458 = vunpack.c.h.b16 %v373
  %v459 = vunpack.c.l.b16 %v374
  %v460 = vunpack.c.h.b16 %v374
  %v461 = vunpack.c.l.b16 %v375
  %v462 = vunpack.c.h.b16 %v375
  %v463 = vunpack.c.l.b16 %v376
  %v464 = vunpack.c.h.b16 %v376
  %v465 = vunpack.c.l.b16 %v377
  %v466 = vunpack.c.h.b16 %v377
  %v467 = vunpack.c.l.b16 %v378
  %v468 = vunpack.c.h.b16 %v378
  %v469 = vunpack.c.l.b16 %v379
  %v470 = vunpack.c.h.b16 %v379
  %v471 = vunpack.c.l.b16 %v380
  %v472 = vunpack.c.h.b16 %v380
  %v473 = vunpack.c.l.b16 %v381
  %v474 = vunpack.c.h.b16 %v381
  %v475 = vunpack.c.l.b16 %v382
  %v476 = vunpack.c.h.b16 %v382
  %v477 = vunpack.c.l.b16 %v383
  %v478 = vunpack.c.h.b16 %v383
  %v479 = vunpack.c.l.b16 %v384
  %v480 = vunpack.c.h.b16 %v384
  %v481 = vunpack.c.l.b16 %v385
  %v482 = vunpack.c.h.b16 %v385
  %v483 = vunpack.c.l.b16 %v386
  %v484 = vunpack.c.h.b16 %v386
  %v485 = vunpack.c.l.b16 %v387
  %v486 = vunpack.c.h.b16 %v387
  %v487 = vunpack.c.l.b16 %v388
  %v488 = vunpack.c.h.b16 %v388
  %v489 = vunpack.c.l.b16 %v389
  %v490 = vunpack.c.h.b16 %v389
  %v491 = vunpack.c.l.b16 %v390
  %v492 = vunpack.c.h.b16 %v390
  %v493 = vunpack.c.l.b16 %v391
  %v494 = vunpack.c.h.b16 %v391
  %v495 = vunpack.c.l.b16 %v392
  %v496 = vunpack.c.h.b16 %v392
  %v497 = vunpack.c.l.b16 %v393
  %v498 = vunpack.c.h.b16 %v393
  %v499 = vunpack.c.l.b16 %v394
  %v500 = vunpack.c.h.b16 %v394
  %v501 = vunpack.c.l.b16 %v395
  %v502 = vunpack.c.h.b16 %v395
  %v503 = vunpack.c.l.b16 %v396
  %v504 = vunpack.c.h.b16 %v396
  %v505 = vpack.c.b16 %v435, %v433
  %v506 = vpack.c.b16 %v436, %v434
  %v507 = vpack.c.b16 %v439, %v437
  %v508 = vpack.c.b16 %v440, %v438
  %v509 = vpack.c.b16 %v443, %v441
  %v510 = vpack.c.b16 %v444, %v442
  %v511 = vpack.c.b16 %v447, %v445
  %v512 = vpack.c.b16 %v448, %v446
  %v513 = vpack.c.b16 %v451, %v449
  %v514 = vpack.c.b16 %v452, %v450
  %v515 = vpack.c.b16 %v455, %v453
  %v516 = vpack.c.b16 %v456, %v454
  %v517 = vpack.c.b16 %v459, %v457
  %v518 = vpack.c.b16 %v460, %v458
  %v519 = vpack.c.b16 %v463, %v461
  %v520 = vpack.c.b16 %v464, %v462
  %v521 = vpack.c.b16 %v467, %v465
  %v522 = vpack.c.b16 %v468, %v466
  %v523 = vpack.c.b16 %v471, %v469
  %v524 = vpack.c.b16 %v472, %v470
  %v525 = vpack.c.b16 %v475, %v473
  %v526 = vpack.c.b16 %v476, %v474
  %v527 = vpack.c.b16 %v479, %v477
  %v528 = vpack.c.b16 %v480, %v478
  %v529 = vpack.c.b16 %v483, %v481
  %v530 = vpack.c.b16 %v484, %v482
  %v531 = vpack.c.b16 %v487, %v485
  %v532 = vpack.c.b16 %v488, %v486
  %v533 = vpack.c.b16 %v491, %v489
  %v534 = vpack.c.b16 %v492, %v490
  %v535 = vpack.c.b16 %v495, %v493
  %v536 = vpack.c.b16 %v496, %v494
  %v537 = vpack.c.b16 %v499, %v497
  %v538 = vpack.c.b16 %v500, %v498
  %v539 = vpack.c.b16 %v503, %v501
  %v540 = vpack.c.b16 %v504, %v502
  %577 = vmatprep.subr.bf16.mxu0 %v506
  %578 = vmatpush1.bf16.msra.mxu0 %v505
  %579 = vmatprep.subr.bf16.mxu0 %v508
  %580 = vmatpush1.bf16.msra.mxu0 %v507
  %581 = vmatprep.subr.bf16.mxu0 %v510
  %582 = vmatpush1.bf16.msra.mxu0 %v509
  %583 = vmatprep.subr.bf16.mxu0 %v512
  %584 = vmatpush1.bf16.msra.mxu0 %v511
  %585 = vmatprep.subr.bf16.mxu0 %v514
  %586 = vmatpush1.bf16.msra.mxu0 %v513
  %587 = vmatprep.subr.bf16.mxu0 %v516
  %588 = vmatpush1.bf16.msra.mxu0 %v515
  %589 = vmatprep.subr.bf16.mxu0 %v518
  %590 = vmatpush1.bf16.msra.mxu0 %v517
  %591 = vmatprep.subr.bf16.mxu0 %v520
  %592 = vmatpush1.bf16.msra.mxu0 %v519
  %593 = vmatprep.subr.bf16.mxu0 %v522
  %594 = vmatpush1.bf16.msra.mxu0 %v521
  %595 = vmatprep.subr.bf16.mxu0 %v524
  %596 = vmatpush1.bf16.msra.mxu0 %v523
  %597 = vmatprep.subr.bf16.mxu0 %v526
  %598 = vmatpush1.bf16.msra.mxu0 %v525
  %599 = vmatprep.subr.bf16.mxu0 %v528
  %600 = vmatpush1.bf16.msra.mxu0 %v527
  %601 = vmatprep.subr.bf16.mxu0 %v530
  %602 = vmatpush1.bf16.msra.mxu0 %v529
  %603 = vmatprep.subr.bf16.mxu0 %v532
  %604 = vmatpush1.bf16.msra.mxu0 %v531
  %605 = vmatprep.subr.bf16.mxu0 %v534
  %606 = vmatpush1.bf16.msra.mxu0 %v533
  %607 = vmatprep.subr.bf16.mxu0 %v536
  %608 = vmatpush1.bf16.msra.mxu0 %v535
  %609 = vmatprep.mubr.bf16.mxu0 %v78
  %610 = vmatmul.mubr.bf16.gmra.mrb[0].mxu0 %v77
  %v611 = vpop.f32.mrb[0].mxu0
  %v612 = vadd.f32 %v60, %v611
  %v613 = vpop.f32.mrb[0].mxu0
  %v614 = vadd.f32 %v60, %v613
  %v615 = vpop.f32.mrb[0].mxu0
  %v616 = vadd.f32 %v65, %v615
  %v617 = vpop.f32.mrb[0].mxu0
  %v618 = vadd.f32 %v65, %v617
  %619 = vdwg.mxu0
  %620 = vmatprep.subr.bf16.mxu0 %v538
  %621 = vmatpush1.bf16.msra.mxu0 %v537
  %622 = vmatprep.subr.bf16.mxu0 %v540
  %623 = vmatpush1.bf16.msra.mxu0 %v539
  %624 = vmatprep.subr.bf16.mxu0 0
  %625 = vmatpush1.bf16.msra.mxu0 0
  %626 = vmatprep.subr.bf16.mxu0 0
  %627 = vmatpush1.bf16.msra.mxu0 0
  %628 = vmatprep.subr.bf16.mxu0 0
  %629 = vmatpush1.bf16.msra.mxu0 0
  %630 = vmatprep.subr.bf16.mxu0 0
  %631 = vmatpush1.bf16.msra.mxu0 0
  %632 = vmatprep.subr.bf16.mxu0 0
  %633 = vmatpush1.bf16.msra.mxu0 0
  %634 = vmatprep.subr.bf16.mxu0 0
  %635 = vmatpush1.bf16.msra.mxu0 0
  %636 = vmatprep.subr.bf16.mxu0 0
  %637 = vmatpush1.bf16.msra.mxu0 0
  %638 = vmatprep.subr.bf16.mxu0 0
  %639 = vmatpush1.bf16.msra.mxu0 0
  %640 = vmatprep.subr.bf16.mxu0 0
  %641 = vmatpush1.bf16.msra.mxu0 0
  %642 = vmatprep.subr.bf16.mxu0 0
  %643 = vmatpush1.bf16.msra.mxu0 0
  %644 = vmatprep.subr.bf16.mxu0 0
  %645 = vmatpush1.bf16.msra.mxu0 0
  %646 = vmatprep.subr.bf16.mxu0 0
  %647 = vmatpush1.bf16.msra.mxu0 0
  %648 = vmatprep.subr.bf16.mxu0 0
  %649 = vmatpush1.bf16.msra.mxu0 0
  %650 = vmatprep.subr.bf16.mxu0 0
  %651 = vmatpush1.bf16.msra.mxu0 0
  %652 = vmatprep.mubr.bf16.mxu0 0
  %653 = vmatmul.mubr.bf16.gmra.mrb[0].mxu0 %v264
  %v654 = vpop.f32.mrb[0].mxu0
  %v655 = vadd.f32 %v612, %v654
  %v656 = vpop.f32.mrb[0].mxu0
  %v657 = vadd.f32 %v614, %v656
  %v658 = vpop.f32.mrb[0].mxu0
  %v659 = vadd.f32 %v616, %v658
  %v660 = vpop.f32.mrb[0].mxu0
  %v661 = vadd.f32 %v618, %v660
  %662 = vdwg.mxu0
  %v663 = vadd.f32 %v655, %v657
  %664 = vadd.xlane.f32.xlu0 %v663
  %v665 = vpop.xlane.xlu0 %664
  %v666 = vadd.f32 %v659, %v661
  %667 = vadd.xlane.f32.xlu0 %v666
  %v668 = vpop.xlane.xlu0 %667
  %v669 = vadd.f32 %v358, %v665
  %v670 = vadd.f32 %v359, %v668
  %v671 = vrcp.pop 512.0
  %v672 = vmul.f32 %v669, %v671
  %v673 = vmul.f32 %v670, %v671
  %v674 = vsub.f32 %v344, %v672
  %v675 = vsub.f32 %v346, %v672
  %v676 = vsub.f32 %v348, %v673
  %v677 = vsub.f32 %v350, %v673
  %v678 = vmul.f32 %v674, %v674
  %v679 = vmul.f32 %v675, %v675
  %v680 = vmul.f32 %v676, %v676
  %v681 = vmul.f32 %v677, %v677
  %v682 = vadd.f32 %v678, %v679
  %683 = vadd.xlane.f32.xlu0 %v682
  %v684 = vpop.xlane.xlu0 %683
  %v685 = vadd.f32 %v680, %v681
  %686 = vadd.xlane.f32.xlu0 %v685
  %v687 = vpop.xlane.xlu0 %686
  %v688 = vadd.f32 %v684, 0.0
  %v689 = vadd.f32 %v687, 0.0
  %v690 = vsub.f32 %v655, %v672
  %v691 = vsub.f32 %v657, %v672
  %v692 = vsub.f32 %v659, %v673
  %v693 = vsub.f32 %v661, %v673
  %v694 = vmul.f32 %v690, %v690
  %v695 = vmul.f32 %v691, %v691
  %v696 = vmul.f32 %v692, %v692
  %v697 = vmul.f32 %v693, %v693
  %v698 = vadd.f32 %v694, %v695
  %699 = vadd.xlane.f32.xlu0 %v698
  %v700 = vpop.xlane.xlu0 %699
  %v701 = vadd.f32 %v696, %v697
  %702 = vadd.xlane.f32.xlu0 %v701
  %v703 = vpop.xlane.xlu0 %702
  %v704 = vadd.f32 %v688, %v700
  %v705 = vadd.f32 %v689, %v703
  %v706 = vmul.f32 %v704, %v671
  %v707 = vmul.f32 %v705, %v671
  %v708 = vadd.f32 %v706, 1e-05
  %v709 = vadd.f32 %v707, 1e-05
  %v710 = vrsqrt.pop %v708
  %v711 = vrsqrt.pop %v709
  %v712 = vmul.f32 %v674, %v710
  %v713 = vmul.f32 %v675, %v710
  %v714 = vmul.f32 %v676, %v711
  %v715 = vmul.f32 %v677, %v711
  %v716 = vpack.c.bf16 %v714, %v712
  %v717 = vpack.c.bf16 %v715, %v713
  %v720 = vunpack.c.l.b16 %v716
  %v721 = vunpack.c.l.b16 %v717
  %v722 = vunpack.c.h.b16 %v716
  %v723 = vunpack.c.h.b16 %v717
  %v724 = vpack.c.b16 %v721, %v720
  %v725 = vpack.c.b16 %v723, %v722
  %728 = vst [vmem:[%s3] sm:$0xff] %v724
  %729 = vst [vmem:[%s3 + $0x8] sm:$0xff] %v725
  %v730 = vmul.f32 %v690, %v710
  %v731 = vmul.f32 %v691, %v710
  %v732 = vmul.f32 %v692, %v711
  %v733 = vmul.f32 %v693, %v711
  %v734 = vpack.c.bf16 %v732, %v730
  %v735 = vpack.c.bf16 %v733, %v731
  %v738 = vunpack.c.l.b16 %v734
  %v739 = vunpack.c.l.b16 %v735
  %v740 = vunpack.c.h.b16 %v734
  %v741 = vunpack.c.h.b16 %v735
  %v742 = vpack.c.b16 %v739, %v738
  %v743 = vpack.c.b16 %v741, %v740
  %s746 = scalar_lea.vmem %s3, 16
  %747 = vst [vmem:[%s746] sm:$0xff] %v742
  %748 = vst [vmem:[%s746 + $0x8] sm:$0xff] %v743
  // Predicated region
  $region14: #{unet_forward.20} parent=0 // pred_check
    _
  $region15: #{unet_forward.20} parent=0 // pred_check_branch
    %750 = sbr.rel (0) target = $region17
  $region16: #{unet_forward.20} parent=0 // pred_region
    _
  $region17: #{unet_forward.20} parent=0 // pred_fallthru
    _
  // Predicated region
  $region18: #{unet_forward.20} parent=0 // pred_check
    _
  $region19: #{unet_forward.20} parent=0 // pred_check_branch
    %752 = sbr.rel (0) target = $region21
  $region20: #{unet_forward.20} parent=0 // pred_region
    _
  $region21: #{unet_forward.20} parent=0 // pred_fallthru
    _

// kernel: unet_forward.21
$region0: #{unet_forward.21}
  #allocation0 [shape = 'u32[]', space=smem, size = 0x4, offset = 0x4, fixed_abs, tag = 'smem constant byte address 0x4 - core index']
  #allocation1 [shape = 'u32[144,128]{1,0:T(1,128)}', space=vmem, size = 0x12000, scoped, tag = 'internal scratch']
  %s0 = inlined_call_operand.vmem [shape: bf16[16,171], index: 0, kind: input, shape index: {}]
  %s1 = inlined_call_operand.vmem [shape: bf16[2,171,256], index: 1, kind: input, shape index: {}]
  %s2 = inlined_call_operand.vmem [shape: f32[16,1], index: 2, kind: input, shape index: {}]
  %s3 = inlined_call_operand.vmem [shape: bf16[3,16], index: 3, kind: input, shape index: {}]
  %s4 = inlined_call_operand.vmem [shape: f32[3,1], index: 4, kind: input, shape index: {}]
  %s5 = inlined_call_operand.vmem [shape: f32[2,3,256], index: 5, kind: output, shape index: {}]
  %s6 = sld [smem:[#allocation0]]
  $region30: #{unet_forward.21} parent=0
    _
  %s8 = ssub.s32 1, %s6
  %s9 = scalar_select 0, %s8, %s6
  // Predicated region
  $region2: #{unet_forward.21} parent=0 // pred_check
    _
  $region3: #{unet_forward.21} parent=0 // pred_check_branch
    %11 = sbr.rel (0) target = $region5
  $region4: #{unet_forward.21} parent=0 // pred_region
    _
  $region5: #{unet_forward.21} parent=0 // pred_fallthru
    _
  // Predicated region
  $region6: #{unet_forward.21} parent=0 // pred_check
    _
  $region7: #{unet_forward.21} parent=0 // pred_check_branch
    %13 = sbr.rel (0) target = $region9
  $region8: #{unet_forward.21} parent=0 // pred_region
    _
  $region9: #{unet_forward.21} parent=0 // pred_fallthru
    _
  // Predicated region
  $region10: #{unet_forward.21} parent=0 // pred_check
    _
  $region11: #{unet_forward.21} parent=0 // pred_check_branch
    %15 = sbr.rel (0) target = $region13
  $region12: #{unet_forward.21} parent=0 // pred_region
    _
  $region13: #{unet_forward.21} parent=0 // pred_fallthru
    _
  // Predicated region
  $region14: #{unet_forward.21} parent=0 // pred_check
    _
  $region15: #{unet_forward.21} parent=0 // pred_check_branch
    %17 = sbr.rel (0) target = $region17
  $region16: #{unet_forward.21} parent=0 // pred_region
    _
  $region17: #{unet_forward.21} parent=0 // pred_fallthru
    _
  // Predicated region
  $region18: #{unet_forward.21} parent=0 // pred_check
    _
  $region19: #{unet_forward.21} parent=0 // pred_check_branch
    %19 = sbr.rel (0) target = $region21
  $region20: #{unet_forward.21} parent=0 // pred_region
    _
  $region21: #{unet_forward.21} parent=0 // pred_fallthru
    _
  %v21 = vld [vmem:[%s0] sm:$0xff]
  %v22 = vld [vmem:[%s0 + $0x8] sm:$0xff]
  %v23 = vld [vmem:[%s2] sm:$0xff]
  %v24 = vld [vmem:[%s2 + $0x8] sm:$0xff]
  %v25 = vld [vmem:[%s1] sm:$0xff]
  %v26 = vld [vmem:[%s1 + $0x8] sm:$0xff]
  %v27 = vld [vmem:[%s1 + $0x10] sm:$0xff]
  %v28 = vld [vmem:[%s1 + $0x18] sm:$0xff]
  %v29 = vld [vmem:[%s1 + $0x20] sm:$0xff]
  %v30 = vld [vmem:[%s1 + $0x28] sm:$0xff]
  %v31 = vld [vmem:[%s1 + $0x30] sm:$0xff]
  %v32 = vld [vmem:[%s1 + $0x38] sm:$0xff]
  %v33 = vld [vmem:[%s1 + $0x40] sm:$0xff]
  %v34 = vld [vmem:[%s1 + $0x48] sm:$0xff]
  %v35 = vld [vmem:[%s1 + $0x50] sm:$0xff]
  %v36 = vld [vmem:[%s1 + $0x58] sm:$0xff]
  %v37 = vld [vmem:[%s1 + $0x60] sm:$0xff]
  %v38 = vld [vmem:[%s1 + $0x68] sm:$0xff]
  %v39 = vld [vmem:[%s1 + $0x70] sm:$0xff]
  %v40 = vld [vmem:[%s1 + $0x78] sm:$0xff]
  %v41 = vld [vmem:[%s1 + $0x80] sm:$0xff]
  %v42 = vld [vmem:[%s1 + $0x88] sm:$0xff]
  %v43 = vld [vmem:[%s1 + $0x90] sm:$0xff]
  %v44 = vld [vmem:[%s1 + $0x98] sm:$0xff]
  %v45 = vld [vmem:[%s1 + $0xa0] sm:$0xff]
  %v46 = vld [vmem:[%s1 + $0xa8] sm:$0x33]
  %48 = vset.pattern.permute.xlu0 0
  %49 = vperm.xlu0 %48, %v23
  %v50 = vpop.permute.xlu0 %49
  %53 = vset.pattern.permute.xlu0 0
  %54 = vperm.xlu0 %53, %v24
  %v55 = vpop.permute.xlu0 %54
  %v59 = vunpack.c.l.b16 %v21
  %v60 = vunpack.c.h.b16 %v21
  %v61 = vunpack.c.l.b16 %v22
  %v62 = vunpack.c.h.b16 %v22
  %v63 = vpack.c.b16 %v61, %v59
  %v64 = vpack.c.b16 %v62, %v60
  %v88 = vunpack.c.l.b16 %v25
  %v89 = vunpack.c.h.b16 %v25
  %v90 = vunpack.c.l.b16 %v26
  %v91 = vunpack.c.h.b16 %v26
  %v92 = vunpack.c.l.b16 %v27
  %v93 = vunpack.c.h.b16 %v27
  %v94 = vunpack.c.l.b16 %v28
  %v95 = vunpack.c.h.b16 %v28
  %v96 = vunpack.c.l.b16 %v29
  %v97 = vunpack.c.h.b16 %v29
  %v98 = vunpack.c.l.b16 %v30
  %v99 = vunpack.c.h.b16 %v30
  %v100 = vunpack.c.l.b16 %v31
  %v101 = vunpack.c.h.b16 %v31
  %v102 = vunpack.c.l.b16 %v32
  %v103 = vunpack.c.h.b16 %v32
  %v104 = vunpack.c.l.b16 %v33
  %v105 = vunpack.c.h.b16 %v33
  %v106 = vunpack.c.l.b16 %v34
  %v107 = vunpack.c.h.b16 %v34
  %v108 = vunpack.c.l.b16 %v35
  %v109 = vunpack.c.h.b16 %v35
  %v110 = vunpack.c.l.b16 %v36
  %v111 = vunpack.c.h.b16 %v36
  %v112 = vunpack.c.l.b16 %v37
  %v113 = vunpack.c.h.b16 %v37
  %v114 = vunpack.c.l.b16 %v38
  %v115 = vunpack.c.h.b16 %v38
  %v116 = vunpack.c.l.b16 %v39
  %v117 = vunpack.c.h.b16 %v39
  %v118 = vunpack.c.l.b16 %v40
  %v119 = vunpack.c.h.b16 %v40
  %v120 = vunpack.c.l.b16 %v41
  %v121 = vunpack.c.h.b16 %v41
  %v122 = vunpack.c.l.b16 %v42
  %v123 = vunpack.c.h.b16 %v42
  %v124 = vunpack.c.l.b16 %v43
  %v125 = vunpack.c.h.b16 %v43
  %v126 = vunpack.c.l.b16 %v44
  %v127 = vunpack.c.h.b16 %v44
  %v128 = vunpack.c.l.b16 %v45
  %v129 = vunpack.c.h.b16 %v45
  %v130 = vunpack.c.l.b16 %v46
  %v131 = vunpack.c.h.b16 %v46
  %v132 = vpack.c.b16 %v90, %v88
  %v133 = vpack.c.b16 %v91, %v89
  %v134 = vpack.c.b16 %v94, %v92
  %v135 = vpack.c.b16 %v95, %v93
  %v136 = vpack.c.b16 %v98, %v96
  %v137 = vpack.c.b16 %v99, %v97
  %v138 = vpack.c.b16 %v102, %v100
  %v139 = vpack.c.b16 %v103, %v101
  %v140 = vpack.c.b16 %v106, %v104
  %v141 = vpack.c.b16 %v107, %v105
  %v142 = vpack.c.b16 %v110, %v108
  %v143 = vpack.c.b16 %v111, %v109
  %v144 = vpack.c.b16 %v114, %v112
  %v145 = vpack.c.b16 %v115, %v113
  %v146 = vpack.c.b16 %v118, %v116
  %v147 = vpack.c.b16 %v119, %v117
  %v148 = vpack.c.b16 %v122, %v120
  %v149 = vpack.c.b16 %v123, %v121
  %v150 = vpack.c.b16 %v126, %v124
  %v151 = vpack.c.b16 %v127, %v125
  %v152 = vpack.c.b16 %v130, %v128
  %v153 = vpack.c.b16 %v131, %v129
  %vm174 = vcmask 351232
  %v176 = vsel %vm174, %v64, 0
  %vm178 = vcmask 1044480
  %vm179 = vcmask 1045504
  %v180 = vsel %vm178, 4294967295, 65535
  %v181 = vsel %vm179, %v180, 0
  %v183 = vand.u32 %v152, %v181
  %v186 = vand.u32 %v153, %v181
  %188 = vmatprep.subr.bf16.mxu0 %v133
  %189 = vmatpush1.bf16.msra.mxu0 %v132
  %190 = vmatprep.subr.bf16.mxu0 %v135
  %191 = vmatpush1.bf16.msra.mxu0 %v134
  %192 = vmatprep.subr.bf16.mxu0 %v137
  %193 = vmatpush1.bf16.msra.mxu0 %v136
  %194 = vmatprep.subr.bf16.mxu0 %v139
  %195 = vmatpush1.bf16.msra.mxu0 %v138
  %196 = vmatprep.subr.bf16.mxu0 %v141
  %197 = vmatpush1.bf16.msra.mxu0 %v140
  %198 = vmatprep.subr.bf16.mxu0 %v143
  %199 = vmatpush1.bf16.msra.mxu0 %v142
  %200 = vmatprep.subr.bf16.mxu0 %v145
  %201 = vmatpush1.bf16.msra.mxu0 %v144
  %202 = vmatprep.subr.bf16.mxu0 %v147
  %203 = vmatpush1.bf16.msra.mxu0 %v146
  %204 = vmatprep.subr.bf16.mxu0 %v149
  %205 = vmatpush1.bf16.msra.mxu0 %v148
  %206 = vmatprep.subr.bf16.mxu0 %v151
  %207 = vmatpush1.bf16.msra.mxu0 %v150
  %208 = vmatprep.subr.bf16.mxu0 %v186
  %209 = vmatpush1.bf16.msra.mxu0 %v183
  %210 = vmatprep.subr.bf16.mxu0 0
  %211 = vmatpush1.bf16.msra.mxu0 0
  %212 = vmatprep.subr.bf16.mxu0 0
  %213 = vmatpush1.bf16.msra.mxu0 0
  %214 = vmatprep.subr.bf16.mxu0 0
  %215 = vmatpush1.bf16.msra.mxu0 0
  %216 = vmatprep.subr.bf16.mxu0 0
  %217 = vmatpush1.bf16.msra.mxu0 0
  %218 = vmatprep.subr.bf16.mxu0 0
  %219 = vmatpush1.bf16.msra.mxu0 0
  %220 = vmatprep.mubr.bf16.mxu0 %v176
  %221 = vmatmul.mubr.bf16.gmra.mrb[0].mxu0 %v63
  %v222 = vpop.f32.mrb[0].mxu0
  %v223 = vadd.f32 %v50, %v222
  %v224 = vpop.f32.mrb[0].mxu0
  %v225 = vadd.f32 %v50, %v224
  %v226 = vpop.f32.mrb[0].mxu0
  %v227 = vadd.f32 %v55, %v226
  %v228 = vpop.f32.mrb[0].mxu0
  %v229 = vadd.f32 %v55, %v228
  %230 = vdwg.mxu0
  %v231 = vadd.f32 %v223, %v225
  %232 = vadd.xlane.f32.xlu0 %v231
  %v233 = vpop.xlane.xlu0 %232
  %v234 = vadd.f32 %v227, %v229
  %235 = vadd.xlane.f32.xlu0 %v234
  %v236 = vpop.xlane.xlu0 %235
  %v237 = vadd.f32 %v233, 0.0
  %v238 = vadd.f32 %v236, 0.0
  %s239 = scalar_lea.vmem %s1, 176
  %v240 = vld [vmem:[%s239] sm:$0xff]
  %v241 = vld [vmem:[%s239 + $0x8] sm:$0xff]
  %v242 = vld [vmem:[%s239 + $0x10] sm:$0xff]
  %v243 = vld [vmem:[%s239 + $0x18] sm:$0xff]
  %v244 = vld [vmem:[%s239 + $0x20] sm:$0xff]
  %v245 = vld [vmem:[%s239 + $0x28] sm:$0xff]
  %v246 = vld [vmem:[%s239 + $0x30] sm:$0xff]
  %v247 = vld [vmem:[%s239 + $0x38] sm:$0xff]
  %v248 = vld [vmem:[%s239 + $0x40] sm:$0xff]
  %v249 = vld [vmem:[%s239 + $0x48] sm:$0xff]
  %v250 = vld [vmem:[%s239 + $0x50] sm:$0xff]
  %v251 = vld [vmem:[%s239 + $0x58] sm:$0xff]
  %v252 = vld [vmem:[%s239 + $0x60] sm:$0xff]
  %v253 = vld [vmem:[%s239 + $0x68] sm:$0xff]
  %v254 = vld [vmem:[%s239 + $0x70] sm:$0xff]
  %v255 = vld [vmem:[%s239 + $0x78] sm:$0xff]
  %v256 = vld [vmem:[%s239 + $0x80] sm:$0xff]
  %v257 = vld [vmem:[%s239 + $0x88] sm:$0xff]
  %v258 = vld [vmem:[%s239 + $0x90] sm:$0xff]
  %v259 = vld [vmem:[%s239 + $0x98] sm:$0xff]
  %v260 = vld [vmem:[%s239 + $0xa0] sm:$0xff]
  %v261 = vld [vmem:[%s239 + $0xa8] sm:$0x33]
  %v284 = vunpack.c.l.b16 %v240
  %v285 = vunpack.c.h.b16 %v240
  %v286 = vunpack.c.l.b16 %v241
  %v287 = vunpack.c.h.b16 %v241
  %v288 = vunpack.c.l.b16 %v242
  %v289 = vunpack.c.h.b16 %v242
  %v290 = vunpack.c.l.b16 %v243
  %v291 = vunpack.c.h.b16 %v243
  %v292 = vunpack.c.l.b16 %v244
  %v293 = vunpack.c.h.b16 %v244
  %v294 = vunpack.c.l.b16 %v245
  %v295 = vunpack.c.h.b16 %v245
  %v296 = vunpack.c.l.b16 %v246
  %v297 = vunpack.c.h.b16 %v246
  %v298 = vunpack.c.l.b16 %v247
  %v299 = vunpack.c.h.b16 %v247
  %v300 = vunpack.c.l.b16 %v248
  %v301 = vunpack.c.h.b16 %v248
  %v302 = vunpack.c.l.b16 %v249
  %v303 = vunpack.c.h.b16 %v249
  %v304 = vunpack.c.l.b16 %v250
  %v305 = vunpack.c.h.b16 %v250
  %v306 = vunpack.c.l.b16 %v251
  %v307 = vunpack.c.h.b16 %v251
  %v308 = vunpack.c.l.b16 %v252
  %v309 = vunpack.c.h.b16 %v252
  %v310 = vunpack.c.l.b16 %v253
  %v311 = vunpack.c.h.b16 %v253
  %v312 = vunpack.c.l.b16 %v254
  %v313 = vunpack.c.h.b16 %v254
  %v314 = vunpack.c.l.b16 %v255
  %v315 = vunpack.c.h.b16 %v255
  %v316 = vunpack.c.l.b16 %v256
  %v317 = vunpack.c.h.b16 %v256
  %v318 = vunpack.c.l.b16 %v257
  %v319 = vunpack.c.h.b16 %v257
  %v320 = vunpack.c.l.b16 %v258
  %v321 = vunpack.c.h.b16 %v258
  %v322 = vunpack.c.l.b16 %v259
  %v323 = vunpack.c.h.b16 %v259
  %v324 = vunpack.c.l.b16 %v260
  %v325 = vunpack.c.h.b16 %v260
  %v326 = vunpack.c.l.b16 %v261
  %v327 = vunpack.c.h.b16 %v261
  %v328 = vpack.c.b16 %v286, %v284
  %v329 = vpack.c.b16 %v287, %v285
  %v330 = vpack.c.b16 %v290, %v288
  %v331 = vpack.c.b16 %v291, %v289
  %v332 = vpack.c.b16 %v294, %v292
  %v333 = vpack.c.b16 %v295, %v293
  %v334 = vpack.c.b16 %v298, %v296
  %v335 = vpack.c.b16 %v299, %v297
  %v336 = vpack.c.b16 %v302, %v300
  %v337 = vpack.c.b16 %v303, %v301
  %v338 = vpack.c.b16 %v306, %v304
  %v339 = vpack.c.b16 %v307, %v305
  %v340 = vpack.c.b16 %v310, %v308
  %v341 = vpack.c.b16 %v311, %v309
  %v342 = vpack.c.b16 %v314, %v312
  %v343 = vpack.c.b16 %v315, %v313
  %v344 = vpack.c.b16 %v318, %v316
  %v345 = vpack.c.b16 %v319, %v317
  %v346 = vpack.c.b16 %v322, %v320
  %v347 = vpack.c.b16 %v323, %v321
  %v348 = vpack.c.b16 %v326, %v324
  %v349 = vpack.c.b16 %v327, %v325
  %v371 = vand.u32 %v348, %v181
  %v374 = vand.u32 %v349, %v181
  %376 = vmatprep.subr.bf16.mxu0 %v329
  %377 = vmatpush1.bf16.msra.mxu0 %v328
  %378 = vmatprep.subr.bf16.mxu0 %v331
  %379 = vmatpush1.bf16.msra.mxu0 %v330
  %380 = vmatprep.subr.bf16.mxu0 %v333
  %381 = vmatpush1.bf16.msra.mxu0 %v332
  %382 = vmatprep.subr.bf16.mxu0 %v335
  %383 = vmatpush1.bf16.msra.mxu0 %v334
  %384 = vmatprep.subr.bf16.mxu0 %v337
  %385 = vmatpush1.bf16.msra.mxu0 %v336
  %386 = vmatprep.subr.bf16.mxu0 %v339
  %387 = vmatpush1.bf16.msra.mxu0 %v338
  %388 = vmatprep.subr.bf16.mxu0 %v341
  %389 = vmatpush1.bf16.msra.mxu0 %v340
  %390 = vmatprep.subr.bf16.mxu0 %v343
  %391 = vmatpush1.bf16.msra.mxu0 %v342
  %392 = vmatprep.subr.bf16.mxu0 %v345
  %393 = vmatpush1.bf16.msra.mxu0 %v344
  %394 = vmatprep.subr.bf16.mxu0 %v347
  %395 = vmatpush1.bf16.msra.mxu0 %v346
  %396 = vmatprep.subr.bf16.mxu0 %v374
  %397 = vmatpush1.bf16.msra.mxu0 %v371
  %398 = vmatprep.subr.bf16.mxu0 0
  %399 = vmatpush1.bf16.msra.mxu0 0
  %400 = vmatprep.subr.bf16.mxu0 0
  %401 = vmatpush1.bf16.msra.mxu0 0
  %402 = vmatprep.subr.bf16.mxu0 0
  %403 = vmatpush1.bf16.msra.mxu0 0
  %404 = vmatprep.subr.bf16.mxu0 0
  %405 = vmatpush1.bf16.msra.mxu0 0
  %406 = vmatprep.subr.bf16.mxu0 0
  %407 = vmatpush1.bf16.msra.mxu0 0
  %408 = vmatprep.mubr.bf16.mxu0 %v176
  %409 = vmatmul.mubr.bf16.gmra.mrb[0].mxu0 %v63
  %v410 = vpop.f32.mrb[0].mxu0
  %v411 = vadd.f32 %v50, %v410
  %v412 = vpop.f32.mrb[0].mxu0
  %v413 = vadd.f32 %v50, %v412
  %v414 = vpop.f32.mrb[0].mxu0
  %v415 = vadd.f32 %v55, %v414
  %v416 = vpop.f32.mrb[0].mxu0
  %v417 = vadd.f32 %v55, %v416
  %418 = vdwg.mxu0
  %v419 = vadd.f32 %v411, %v413
  %420 = vadd.xlane.f32.xlu0 %v419
  %v421 = vpop.xlane.xlu0 %420
  %v422 = vadd.f32 %v415, %v417
  %423 = vadd.xlane.f32.xlu0 %v422
  %v424 = vpop.xlane.xlu0 %423
  %v425 = vadd.f32 %v237, %v421
  %v426 = vadd.f32 %v238, %v424
  %v427 = vrcp.pop 512.0
  %v428 = vmul.f32 %v425, %v427
  %v429 = vmul.f32 %v426, %v427
  %v430 = vsub.f32 %v223, %v428
  %v431 = vsub.f32 %v225, %v428
  %v432 = vsub.f32 %v227, %v429
  %v433 = vsub.f32 %v229, %v429
  %v434 = vmul.f32 %v430, %v430
  %v435 = vmul.f32 %v431, %v431
  %v436 = vmul.f32 %v432, %v432
  %v437 = vmul.f32 %v433, %v433
  %v438 = vadd.f32 %v434, %v435
  %439 = vadd.xlane.f32.xlu0 %v438
  %v440 = vpop.xlane.xlu0 %439
  %v441 = vadd.f32 %v436, %v437
  %442 = vadd.xlane.f32.xlu0 %v441
  %v443 = vpop.xlane.xlu0 %442
  %v444 = vadd.f32 %v440, 0.0
  %v445 = vadd.f32 %v443, 0.0
  %v446 = vsub.f32 %v411, %v428
  %v447 = vsub.f32 %v413, %v428
  %v448 = vsub.f32 %v415, %v429
  %v449 = vsub.f32 %v417, %v429
  %v450 = vmul.f32 %v446, %v446
  %v451 = vmul.f32 %v447, %v447
  %v452 = vmul.f32 %v448, %v448
  %v453 = vmul.f32 %v449, %v449
  %v454 = vadd.f32 %v450, %v451
  %455 = vadd.xlane.f32.xlu0 %v454
  %v456 = vpop.xlane.xlu0 %455
  %v457 = vadd.f32 %v452, %v453
  %458 = vadd.xlane.f32.xlu0 %v457
  %v459 = vpop.xlane.xlu0 %458
  %v460 = vadd.f32 %v444, %v456
  %v461 = vadd.f32 %v445, %v459
  %v462 = vmul.f32 %v460, %v427
  %v463 = vmul.f32 %v461, %v427
  %v464 = vadd.f32 %v462, 1e-05
  %v465 = vadd.f32 %v463, 1e-05
  %v466 = vrsqrt.pop %v464
  %v467 = vrsqrt.pop %v465
  %v468 = vmul.f32 %v430, %v466
  %v469 = vmul.f32 %v431, %v466
  %v470 = vmul.f32 %v432, %v467
  %v471 = vmul.f32 %v433, %v467
  %v472 = vtanh.pop %v468
  %v473 = vtanh.pop %v469
  %v474 = vtanh.pop %v470
  %v475 = vtanh.pop %v471
  %v476 = vpack.c.bf16 %v474, %v472
  %v477 = vpack.c.bf16 %v475, %v473
  %v478 = vld [vmem:[%s3] sm:$0x3]
  %v479 = vld [vmem:[%s4] sm:$0x7]
  %481 = vset.pattern.permute.xlu0 0
  %482 = vperm.xlu0 %481, %v479
  %v483 = vpop.permute.xlu0 %482
  %vm485 = vcmask 130048
  %v487 = vsel %vm485, %v478, 0
  %489 = vmatprep.subr.bf16.mxu0 %v477
  %490 = vmatpush1.bf16.msra.mxu0 %v476
  %491 = vmatprep.subr.bf16.mxu0 0
  %492 = vmatpush1.bf16.msra.mxu0 0
  %493 = vmatprep.subr.bf16.mxu0 0
  %494 = vmatpush1.bf16.msra.mxu0 0
  %495 = vmatprep.subr.bf16.mxu0 0
  %496 = vmatpush1.bf16.msra.mxu0 0
  %497 = vmatprep.subr.bf16.mxu0 0
  %498 = vmatpush1.bf16.msra.mxu0 0
  %499 = vmatprep.subr.bf16.mxu0 0
  %500 = vmatpush1.bf16.msra.mxu0 0
  %501 = vmatprep.subr.bf16.mxu0 0
  %502 = vmatpush1.bf16.msra.mxu0 0
  %503 = vmatprep.subr.bf16.mxu0 0
  %504 = vmatpush1.bf16.msra.mxu0 0
  %505 = vmatprep.subr.bf16.mxu0 0
  %506 = vmatpush1.bf16.msra.mxu0 0
  %507 = vmatprep.subr.bf16.mxu0 0
  %508 = vmatpush1.bf16.msra.mxu0 0
  %509 = vmatprep.subr.bf16.mxu0 0
  %510 = vmatpush1.bf16.msra.mxu0 0
  %511 = vmatprep.subr.bf16.mxu0 0
  %512 = vmatpush1.bf16.msra.mxu0 0
  %513 = vmatprep.subr.bf16.mxu0 0
  %514 = vmatpush1.bf16.msra.mxu0 0
  %515 = vmatprep.subr.bf16.mxu0 0
  %516 = vmatpush1.bf16.msra.mxu0 0
  %517 = vmatprep.subr.bf16.mxu0 0
  %518 = vmatpush1.bf16.msra.mxu0 0
  %519 = vmatprep.subr.bf16.mxu0 0
  %520 = vmatpush1.bf16.msra.mxu0 0
  %521 = vmatprep.mubr.bf16.mxu0 0
  %522 = vmatmul.mubr.bf16.gmra.mrb[0].mxu0 %v487
  %v523 = vpop.f32.mrb[0].mxu0
  %v524 = vadd.f32 %v483, %v523
  %v525 = vpop.f32.mrb[0].mxu0
  %v526 = vadd.f32 %v483, %v525
  %v527 = vpop.f32.mrb[0].mxu0
  %v528 = vpop.f32.mrb[0].mxu0
  %529 = vdwg.mxu0
  %v530 = vand.u32 2147483647, %v524
  %v531 = vand.u32 2147483647, %v526
  %v532 = vmul.f32 %v530, 1.442695
  %v533 = vpow.pop %v532
  %v534 = vmul.f32 %v531, 1.442695
  %v535 = vpow.pop %v534
  %v536 = vsub.f32 %v533, 1.0
  %v537 = vsub.f32 %v535, 1.0
  %vm538 = vcmp.ge.f32.partialorder %v524, 0.0
  %vm539 = vcmp.ge.f32.partialorder %v526, 0.0
  %v540 = vsub.f32 0.0, %v536
  %v541 = vsub.f32 0.0, %v537
  %v542 = vsel %vm538, %v536, %v540
  %v543 = vsel %vm539, %v537, %v541
  %v546 = vcombine.low %v542, %v543
  %548 = vst [vmem:[%s5] sm:$0x77] %v546
  %v549 = vmul.f32 %v446, %v466
  %v550 = vmul.f32 %v447, %v466
  %v551 = vmul.f32 %v448, %v467
  %v552 = vmul.f32 %v449, %v467
  %v553 = vtanh.pop %v549
  %v554 = vtanh.pop %v550
  %v555 = vtanh.pop %v551
  %v556 = vtanh.pop %v552
  %v557 = vpack.c.bf16 %v555, %v553
  %v558 = vpack.c.bf16 %v556, %v554
  %v559 = vld [vmem:[%s3] sm:$0x3]
  %v560 = vld [vmem:[%s4] sm:$0x7]
  %562 = vset.pattern.permute.xlu0 0
  %563 = vperm.xlu0 %562, %v560
  %v564 = vpop.permute.xlu0 %563
  %v567 = vsel %vm485, %v559, 0
  %569 = vmatprep.subr.bf16.mxu0 %v558
  %570 = vmatpush1.bf16.msra.mxu0 %v557
  %571 = vmatprep.subr.bf16.mxu0 0
  %572 = vmatpush1.bf16.msra.mxu0 0
  %573 = vmatprep.subr.bf16.mxu0 0
  %574 = vmatpush1.bf16.msra.mxu0 0
  %575 = vmatprep.subr.bf16.mxu0 0
  %576 = vmatpush1.bf16.msra.mxu0 0
  %577 = vmatprep.subr.bf16.mxu0 0
  %578 = vmatpush1.bf16.msra.mxu0 0
  %579 = vmatprep.subr.bf16.mxu0 0
  %580 = vmatpush1.bf16.msra.mxu0 0
  %581 = vmatprep.subr.bf16.mxu0 0
  %582 = vmatpush1.bf16.msra.mxu0 0
  %583 = vmatprep.subr.bf16.mxu0 0
  %584 = vmatpush1.bf16.msra.mxu0 0
  %585 = vmatprep.subr.bf16.mxu0 0
  %586 = vmatpush1.bf16.msra.mxu0 0
  %587 = vmatprep.subr.bf16.mxu0 0
  %588 = vmatpush1.bf16.msra.mxu0 0
  %589 = vmatprep.subr.bf16.mxu0 0
  %590 = vmatpush1.bf16.msra.mxu0 0
  %591 = vmatprep.subr.bf16.mxu0 0
  %592 = vmatpush1.bf16.msra.mxu0 0
  %593 = vmatprep.subr.bf16.mxu0 0
  %594 = vmatpush1.bf16.msra.mxu0 0
  %595 = vmatprep.subr.bf16.mxu0 0
  %596 = vmatpush1.bf16.msra.mxu0 0
  %597 = vmatprep.subr.bf16.mxu0 0
  %598 = vmatpush1.bf16.msra.mxu0 0
  %599 = vmatprep.subr.bf16.mxu0 0
  %600 = vmatpush1.bf16.msra.mxu0 0
  %601 = vmatprep.mubr.bf16.mxu0 0
  %602 = vmatmul.mubr.bf16.gmra.mrb[0].mxu0 %v567
  %v603 = vpop.f32.mrb[0].mxu0
  %v604 = vadd.f32 %v564, %v603
  %v605 = vpop.f32.mrb[0].mxu0
  %v606 = vadd.f32 %v564, %v605
  %v607 = vpop.f32.mrb[0].mxu0
  %v608 = vpop.f32.mrb[0].mxu0
  %609 = vdwg.mxu0
  %v610 = vand.u32 2147483647, %v604
  %v611 = vand.u32 2147483647, %v606
  %v612 = vmul.f32 %v610, 1.442695
  %v613 = vpow.pop %v612
  %v614 = vmul.f32 %v611, 1.442695
  %v615 = vpow.pop %v614
  %v616 = vsub.f32 %v613, 1.0
  %v617 = vsub.f32 %v615, 1.0
  %vm618 = vcmp.ge.f32.partialorder %v604, 0.0
  %vm619 = vcmp.ge.f32.partialorder %v606, 0.0
  %v620 = vsub.f32 0.0, %v616
  %v621 = vsub.f32 0.0, %v617
  %v622 = vsel %vm618, %v616, %v620
  %v623 = vsel %vm619, %v617, %v621
  %v626 = vcombine.low %v622, %v623
  %s628 = scalar_lea.vmem %s5, 8
  %629 = vst [vmem:[%s628] sm:$0x77] %v626
  // Predicated region
  $region22: #{unet_forward.21} parent=0 // pred_check
    _
  $region23: #{unet_forward.21} parent=0 // pred_check_branch
    %631 = sbr.rel (0) target = $region25
  $region24: #{unet_forward.21} parent=0 // pred_region
    _
  $region25: #{unet_forward.21} parent=0 // pred_fallthru
    _
  // Predicated region
  $region26: #{unet_forward.21} parent=0 // pred_check
    _
  $region27: #{unet_forward.21} parent=0 // pred_check_branch
    %633 = sbr.rel (0) target = $region29
  $region28: #{unet_forward.21} parent=0 // pred_region
    _
  $region29: #{unet_forward.21} parent=0 // pred_fallthru
    _

</llo_original>
